<compile_context>
chip_gen: v6e
topology: v6e:2x2x1
jax: 0.10.0
libtpu: 0.0.40
codegen_flags: <defaults>
</compile_context>

<pallas_src>
import functools
import math

import jax
import jax.numpy as jnp
from jax.experimental import pallas as pl
from jax.experimental.pallas import tpu as pltpu


_VMEM_LIMIT_BYTES = 32 * 1024 * 1024


# ----------------------------------------------------------------------------
# Pallas kernel
# ----------------------------------------------------------------------------
def _layernorm(v, gamma, beta, eps=1e-6):
    # Two-pass statistics (numerically safer than E[x^2] - E[x]^2).
    mu = jnp.mean(v, axis=-1, keepdims=True)
    c = v - mu
    var = jnp.mean(c * c, axis=-1, keepdims=True)
    return c * jax.lax.rsqrt(var + eps) * gamma + beta


def _vit_forward_kernel(patches_ref, patch_w_ref, tokadd_ref, attn_bias_ref,
                        ln1g_ref, ln1b_ref, wqkv_ref, bqkv_ref,
                        wproj_ref, bproj_ref, ln2g_ref, ln2b_ref,
                        wfc1_ref, bfc1_ref, wfc2_ref, bfc2_ref,
                        hooks_ref,
                        *, num_heads, depth, hook_block_ids):
    D = patch_w_ref.shape[1]
    hd = D // num_heads

    # ---- fused prologue: patch-embed + cls/pos/patch-bias/pad assembly -----
    # Rows of `patches_ref` for the cls slot and the sublane padding are zero,
    # so after the matmul they receive exactly the additive constant
    # (cls+pos[0] for the cls row, 0 for pad rows, patch_bias+pos[n] else).
    x = jnp.dot(patches_ref[...], patch_w_ref[...],
                preferred_element_type=jnp.float32) + tokadd_ref[...]

    # Block-diagonal (per-image) additive attention bias; also masks pad keys.
    # NOTE: pad-token rows stay isolated only through this mask + the final
    # slice in the wrapper — keep it if blocks are ever modified.
    bias_mask = attn_bias_ref[...]                       # (R, R) f32

    for d in range(depth):                               # static unroll
        # --- multi-head self-attention ------------------------------------
        h1 = _layernorm(x, ln1g_ref[d], ln1b_ref[d])
        # One lane-dense (R, D) x (D, 3D) matmul; q-scale folded into Wq/bq.
        qkv = jnp.dot(h1.astype(jnp.bfloat16), wqkv_ref[d],
                      preferred_element_type=jnp.float32) + bqkv_ref[d]
        qkv_b = qkv.astype(jnp.bfloat16)
        wproj_d = wproj_ref[d]                           # (D, D) bf16

        attn = jnp.zeros_like(x)                         # (R, D) f32
        for h in range(num_heads):                       # static 32-lane slices
            q = qkv_b[:, h * hd:(h + 1) * hd]
            k = qkv_b[:, D + h * hd:D + (h + 1) * hd]
            v = qkv_b[:, 2 * D + h * hd:2 * D + (h + 1) * hd]

            s = jax.lax.dot_general(q, k, (((1,), (1,)), ((), ())),
                                    preferred_element_type=jnp.float32)
            s = s + bias_mask
            s = s - jnp.max(s, axis=-1, keepdims=True)
            p = jnp.exp(s)
            p = p * pl.reciprocal(jnp.sum(p, axis=-1, keepdims=True), approx=True)

            av = jnp.dot(p.astype(jnp.bfloat16), v,
                         preferred_element_type=jnp.float32)     # (R, hd)
            # Per-head K-chunk of the lane-dense output projection.
            attn = attn + jnp.dot(av.astype(jnp.bfloat16),
                                  wproj_d[h * hd:(h + 1) * hd, :],
                                  preferred_element_type=jnp.float32)
        x = x + attn + bproj_ref[d]

        # --- MLP ------------------------------------------------------------
        h2 = _layernorm(x, ln2g_ref[d], ln2b_ref[d])
        m = jnp.dot(h2.astype(jnp.bfloat16), wfc1_ref[d],
                    preferred_element_type=jnp.float32) + bfc1_ref[d]
        # TODO(synk): timm ViT uses exact (erf) GELU; tanh approximation here.
        m = jax.nn.gelu(m, approximate=True)
        m = jnp.dot(m.astype(jnp.bfloat16), wfc2_ref[d],
                    preferred_element_type=jnp.float32) + bfc2_ref[d]
        x = x + m

        # --- "forward hook": capture requested block outputs ---------------
        if d in hook_block_ids:
            hooks_ref[hook_block_ids.index(d)] = x


# ----------------------------------------------------------------------------
# Pallas wrapper (single fused call, grid=(1,))
# ----------------------------------------------------------------------------
def vit_forward(padded_patches, patch_w, tokadd, attn_bias, block_params, *,
                batch, n_pad, num_heads, depth, hook_block_ids, embed_dim):
    R = batch * n_pad
    D = embed_dim
    n_hooks = len(hook_block_ids)

    kernel = functools.partial(
        _vit_forward_kernel,
        num_heads=num_heads, depth=depth,
        hook_block_ids=tuple(hook_block_ids))

    inputs = [padded_patches, patch_w, tokadd, attn_bias] + list(block_params)
    in_specs = [pl.BlockSpec(a.shape, lambda i, n=a.ndim: (0,) * n)
                for a in inputs]

    return pl.pallas_call(
        kernel,
        out_shape=jax.ShapeDtypeStruct((n_hooks, R, D), jnp.float32),
        grid=(1,),
        in_specs=in_specs,
        out_specs=pl.BlockSpec((n_hooks, R, D), lambda i: (0, 0, 0)),
        compiler_params=pltpu.CompilerParams(
            dimension_semantics=("arbitrary",),
            vmem_limit_bytes=_VMEM_LIMIT_BYTES),
    )(*inputs)


# ----------------------------------------------------------------------------
# Synthetic ViT backbone with forward-hook-style activation capture
# ----------------------------------------------------------------------------
class PallasFeatureExtractor:
    """Mirrors FeatureExtractor2: forward(x) -> {layer_name: activation}."""

    def __init__(self, *, layers, img_size=16, patch_size=8, in_chans=3,
                 embed_dim=128, depth=3, num_heads=4, mlp_ratio=4, seed=0):
        # TODO(synk): no timm checkpoint loading (pre_trained weights) — params
        # are initialized deterministically in-script instead.
        self.layers = [str(l) for l in layers]
        self.hook_ids = sorted({int(l) for l in layers})
        self.patch_size = patch_size
        self.num_heads = num_heads
        self.embed_dim = embed_dim
        self.depth = depth

        num_patches = (img_size // patch_size) ** 2
        self.num_patches = num_patches
        self.num_tokens = num_patches + 1                       # + cls token
        self.num_tokens_padded = ((self.num_tokens + 7) // 8) * 8
        mlp_dim = embed_dim * mlp_ratio
        self.patch_dim = patch_size * patch_size * in_chans

        key = jax.random.PRNGKey(seed)
        ks = iter(jax.random.split(key, 128))
        std = 0.02

        def randn(shape):
            return (std * jax.random.normal(next(ks), shape)).astype(jnp.float32)

        D = embed_dim
        hd = D // num_heads
        scale = 1.0 / math.sqrt(hd)

        patch_w = randn((self.patch_dim, D))
        patch_b = jnp.zeros((D,), jnp.float32)
        cls_token = randn((1, D))
        pos_embed = randn((self.num_tokens, D))

        self.patch_w = patch_w.astype(jnp.bfloat16)

        # Additive token constant for the fused prologue:
        #   row 0        -> cls + pos[0]        (cls patch row is zero)
        #   rows 1..Nt-1 -> patch_bias + pos[n]
        #   pad rows     -> 0
        tokadd = jnp.zeros((self.num_tokens_padded, D), jnp.float32)
        tokadd = tokadd.at[0].set(cls_token[0] + pos_embed[0])
        tokadd = tokadd.at[1:self.num_tokens].set(patch_b[None, :] + pos_embed[1:])
        self.tokadd_base = tokadd

        ln1g, ln1b, wqkv, bqkv = [], [], [], []
        wproj, bproj, ln2g, ln2b = [], [], [], []
        wfc1, bfc1, wfc2, bfc2 = [], [], [], []
        for _ in range(depth):
            w = randn((D, 3 * D))
            b = jnp.zeros((3 * D,), jnp.float32)
            # Fold the 1/sqrt(hd) attention scale into the q columns (free).
            w = w.at[:, :D].multiply(scale)
            b = b.at[:D].multiply(scale)
            wqkv.append(w.astype(jnp.bfloat16))
            bqkv.append(b.reshape(1, 3 * D))
            wproj.append(randn((D, D)).astype(jnp.bfloat16))
            bproj.append(jnp.zeros((1, D), jnp.float32))
            ln1g.append(jnp.ones((1, D), jnp.float32))
            ln1b.append(jnp.zeros((1, D), jnp.float32))
            ln2g.append(jnp.ones((1, D), jnp.float32))
            ln2b.append(jnp.zeros((1, D), jnp.float32))
            wfc1.append(randn((D, mlp_dim)).astype(jnp.bfloat16))
            bfc1.append(jnp.zeros((1, mlp_dim), jnp.float32))
            wfc2.append(randn((mlp_dim, D)).astype(jnp.bfloat16))
            bfc2.append(jnp.zeros((1, D), jnp.float32))

        stack = lambda xs: jnp.stack(xs, axis=0)
        # Order must match the kernel signature.
        self.block_params = [
            stack(ln1g), stack(ln1b), stack(wqkv), stack(bqkv),
            stack(wproj), stack(bproj), stack(ln2g), stack(ln2b),
            stack(wfc1), stack(bfc1), stack(wfc2), stack(bfc2),
        ]

    def __call__(self, x):
        # x: NCHW float32
        B, C, Himg, Wimg = x.shape
        P = self.patch_size
        D = self.embed_dim
        Nt = self.num_tokens
        N_pad = self.num_tokens_padded
        nh, nw = Himg // P, Wimg // P

        # Patchify (layout glue, plain JAX): NCHW -> (B, Np, P*P*C)
        patches = x.reshape(B, C, nh, P, nw, P).transpose(0, 2, 4, 3, 5, 1)
        patches = patches.reshape(B, nh * nw, P * P * C)

        # Scatter patch rows into their token slots; cls slot 0 and the pad
        # rows stay zero so the kernel prologue can fuse embed + cls + pos.
        padded = jnp.zeros((B, N_pad, self.patch_dim), jnp.bfloat16)
        padded = padded.at[:, 1:Nt, :].set(patches.astype(jnp.bfloat16))
        padded = padded.reshape(B * N_pad, self.patch_dim)

        tokadd = jnp.tile(self.tokadd_base, (B, 1))              # (B*N_pad, D)

        # Block-diagonal (per-image) additive attention bias, masking pad keys.
        bid = jnp.arange(B * N_pad, dtype=jnp.int32) // N_pad
        tokid = jnp.arange(B * N_pad, dtype=jnp.int32) % N_pad
        attn_bias = jnp.where(
            (bid[:, None] == bid[None, :]) & (tokid[None, :] < Nt),
            0.0, -1e30).astype(jnp.float32)

        hooks = vit_forward(padded, self.patch_w, tokadd, attn_bias,
                            self.block_params,
                            batch=B, n_pad=N_pad, num_heads=self.num_heads,
                            depth=self.depth, hook_block_ids=self.hook_ids,
                            embed_dim=D)
        hooks = hooks.reshape(len(self.hook_ids), B, N_pad, D)

        activation = {}
        for slot, blk in enumerate(self.hook_ids):               # "forward hooks"
            activation[str(blk)] = hooks[slot, :, :Nt, :]
        return activation


# ----------------------------------------------------------------------------
if __name__ == "__main__":
    key = jax.random.PRNGKey(0)
    x = jax.random.normal(key, (2, 3, 16, 16), dtype=jnp.float32)  # NCHW input

    extractor = PallasFeatureExtractor(layers=[1, 2], img_size=16, patch_size=8,
                                       in_chans=3, embed_dim=128, depth=3,
                                       num_heads=4, seed=0)
    feats = extractor(x)
    assert sorted(feats.keys()) == ["1", "2"]
    for name, act in feats.items():
        jax.block_until_ready(act)
        assert act.shape == (2, extractor.num_tokens, extractor.embed_dim), act.shape
        assert bool(jnp.all(jnp.isfinite(act)))
    print("KERNEL_OK")
</pallas_src>

<mosaic_0001>
module attributes {stable_mosaic.version = 11 : i64} {
  func.func @_vit_forward_kernel(%arg0: i32, %arg1: memref<16x192xbf16, #tpu.memory_space<vmem>>, %arg2: memref<192x128xbf16, #tpu.memory_space<vmem>>, %arg3: memref<16x128xf32, #tpu.memory_space<vmem>>, %arg4: memref<16x16xf32, #tpu.memory_space<vmem>>, %arg5: memref<3x1x128xf32, #tpu.memory_space<vmem>>, %arg6: memref<3x1x128xf32, #tpu.memory_space<vmem>>, %arg7: memref<3x128x384xbf16, #tpu.memory_space<vmem>>, %arg8: memref<3x1x384xf32, #tpu.memory_space<vmem>>, %arg9: memref<3x128x128xbf16, #tpu.memory_space<vmem>>, %arg10: memref<3x1x128xf32, #tpu.memory_space<vmem>>, %arg11: memref<3x1x128xf32, #tpu.memory_space<vmem>>, %arg12: memref<3x1x128xf32, #tpu.memory_space<vmem>>, %arg13: memref<3x128x512xbf16, #tpu.memory_space<vmem>>, %arg14: memref<3x1x512xf32, #tpu.memory_space<vmem>>, %arg15: memref<3x512x128xbf16, #tpu.memory_space<vmem>>, %arg16: memref<3x1x128xf32, #tpu.memory_space<vmem>>, %arg17: memref<2x16x128xf32, #tpu.memory_space<vmem>>) attributes {dimension_semantics = [#tpu.dimension_semantics<arbitrary>], iteration_bounds = array<i64: 1>, scalar_prefetch = 0 : i64, scratch_operands = 0 : i64, tpu.core_type = #tpu.core_type<tc>, window_params = [{pipeline_mode = #tpu.pipeline_mode<synchronous>, transform_indices = @transform_0, window_bounds = array<i64: 16, 192>}, {pipeline_mode = #tpu.pipeline_mode<synchronous>, transform_indices = @transform_1, window_bounds = array<i64: 192, 128>}, {pipeline_mode = #tpu.pipeline_mode<synchronous>, transform_indices = @transform_2, window_bounds = array<i64: 16, 128>}, {pipeline_mode = #tpu.pipeline_mode<synchronous>, transform_indices = @transform_3, window_bounds = array<i64: 16, 16>}, {pipeline_mode = #tpu.pipeline_mode<synchronous>, transform_indices = @transform_4, window_bounds = array<i64: 3, 1, 128>}, {pipeline_mode = #tpu.pipeline_mode<synchronous>, transform_indices = @transform_5, window_bounds = array<i64: 3, 1, 128>}, {pipeline_mode = #tpu.pipeline_mode<synchronous>, transform_indices = @transform_6, window_bounds = array<i64: 3, 128, 384>}, {pipeline_mode = #tpu.pipeline_mode<synchronous>, transform_indices = @transform_7, window_bounds = array<i64: 3, 1, 384>}, {pipeline_mode = #tpu.pipeline_mode<synchronous>, transform_indices = @transform_8, window_bounds = array<i64: 3, 128, 128>}, {pipeline_mode = #tpu.pipeline_mode<synchronous>, transform_indices = @transform_9, window_bounds = array<i64: 3, 1, 128>}, {pipeline_mode = #tpu.pipeline_mode<synchronous>, transform_indices = @transform_10, window_bounds = array<i64: 3, 1, 128>}, {pipeline_mode = #tpu.pipeline_mode<synchronous>, transform_indices = @transform_11, window_bounds = array<i64: 3, 1, 128>}, {pipeline_mode = #tpu.pipeline_mode<synchronous>, transform_indices = @transform_12, window_bounds = array<i64: 3, 128, 512>}, {pipeline_mode = #tpu.pipeline_mode<synchronous>, transform_indices = @transform_13, window_bounds = array<i64: 3, 1, 512>}, {pipeline_mode = #tpu.pipeline_mode<synchronous>, transform_indices = @transform_14, window_bounds = array<i64: 3, 512, 128>}, {pipeline_mode = #tpu.pipeline_mode<synchronous>, transform_indices = @transform_15, window_bounds = array<i64: 3, 1, 128>}, {pipeline_mode = #tpu.pipeline_mode<synchronous>, transform_indices = @transform_16, window_bounds = array<i64: 2, 16, 128>}]} {
    %c0 = arith.constant 0 : index
    %c0_0 = arith.constant 0 : index
    %0 = vector.load %arg1[%c0, %c0_0] : memref<16x192xbf16, #tpu.memory_space<vmem>>, vector<16x192xbf16>
    %c0_1 = arith.constant 0 : index
    %c0_2 = arith.constant 0 : index
    %1 = vector.load %arg2[%c0_1, %c0_2] : memref<192x128xbf16, #tpu.memory_space<vmem>>, vector<192x128xbf16>
    %cst = arith.constant dense<0.000000e+00> : vector<16x128xf32>
    %2 = tpu.matmul %0, %1, %cst {dimension_numbers = #tpu.dot_dimension_numbers<[1], [0], [0], [1], [0, 0, 1, 1], [], []>} : vector<16x192xbf16>, vector<192x128xbf16>, vector<16x128xf32> -> vector<16x128xf32>
    %c0_3 = arith.constant 0 : index
    %c0_4 = arith.constant 0 : index
    %3 = vector.load %arg3[%c0_3, %c0_4] : memref<16x128xf32, #tpu.memory_space<vmem>>, vector<16x128xf32>
    %4 = arith.addf %2, %3 : vector<16x128xf32>
    %c0_5 = arith.constant 0 : index
    %c0_6 = arith.constant 0 : index
    %5 = vector.load %arg4[%c0_5, %c0_6] : memref<16x16xf32, #tpu.memory_space<vmem>>, vector<16x16xf32>
    %c0_7 = arith.constant 0 : index
    %c0_8 = arith.constant 0 : index
    %c0_9 = arith.constant 0 : index
    %6 = vector.load %arg5[%c0_7, %c0_8, %c0_9] : memref<3x1x128xf32, #tpu.memory_space<vmem>>, vector<1x1x128xf32>
    %7 = vector.shape_cast %6 : vector<1x1x128xf32> to vector<1x128xf32>
    %c0_10 = arith.constant 0 : index
    %c0_11 = arith.constant 0 : index
    %c0_12 = arith.constant 0 : index
    %8 = vector.load %arg6[%c0_10, %c0_11, %c0_12] : memref<3x1x128xf32, #tpu.memory_space<vmem>>, vector<1x1x128xf32>
    %9 = vector.shape_cast %8 : vector<1x1x128xf32> to vector<1x128xf32>
    %cst_13 = arith.constant dense<0.000000e+00> : vector<16xf32>
    %10 = vector.multi_reduction <add>, %4, %cst_13 [1] : vector<16x128xf32> to vector<16xf32>
    %11 = vector.shape_cast %10 : vector<16xf32> to vector<16x1xf32>
    %cst_14 = arith.constant 1.280000e+02 : f32
    %12 = vector.broadcast %cst_14 : f32 to vector<16x1xf32>
    %13 = arith.divf %11, %12 : vector<16x1xf32>
    %14 = vector.broadcast %13 : vector<16x1xf32> to vector<16x128xf32>
    %15 = arith.subf %4, %14 : vector<16x128xf32>
    %16 = arith.mulf %15, %15 : vector<16x128xf32>
    %cst_15 = arith.constant dense<0.000000e+00> : vector<16xf32>
    %17 = vector.multi_reduction <add>, %16, %cst_15 [1] : vector<16x128xf32> to vector<16xf32>
    %18 = vector.shape_cast %17 : vector<16xf32> to vector<16x1xf32>
    %cst_16 = arith.constant 1.280000e+02 : f32
    %19 = vector.broadcast %cst_16 : f32 to vector<16x1xf32>
    %20 = arith.divf %18, %19 : vector<16x1xf32>
    %cst_17 = arith.constant 9.99999997E-7 : f32
    %21 = vector.broadcast %cst_17 : f32 to vector<16x1xf32>
    %22 = arith.addf %20, %21 : vector<16x1xf32>
    %23 = math.rsqrt %22 : vector<16x1xf32>
    %24 = vector.broadcast %23 : vector<16x1xf32> to vector<16x128xf32>
    %25 = arith.mulf %15, %24 : vector<16x128xf32>
    %26 = vector.broadcast %7 : vector<1x128xf32> to vector<16x128xf32>
    %27 = arith.mulf %25, %26 : vector<16x128xf32>
    %28 = vector.broadcast %9 : vector<1x128xf32> to vector<16x128xf32>
    %29 = arith.addf %27, %28 : vector<16x128xf32>
    %30 = arith.truncf %29 : vector<16x128xf32> to vector<16x128xbf16>
    %c0_18 = arith.constant 0 : index
    %c0_19 = arith.constant 0 : index
    %c0_20 = arith.constant 0 : index
    %31 = vector.load %arg7[%c0_18, %c0_19, %c0_20] : memref<3x128x384xbf16, #tpu.memory_space<vmem>>, vector<1x128x384xbf16>
    %32 = vector.shape_cast %31 : vector<1x128x384xbf16> to vector<128x384xbf16>
    %cst_21 = arith.constant dense<0.000000e+00> : vector<16x384xf32>
    %33 = tpu.matmul %30, %32, %cst_21 {dimension_numbers = #tpu.dot_dimension_numbers<[1], [0], [0], [1], [0, 0, 1, 1], [], []>} : vector<16x128xbf16>, vector<128x384xbf16>, vector<16x384xf32> -> vector<16x384xf32>
    %c0_22 = arith.constant 0 : index
    %c0_23 = arith.constant 0 : index
    %c0_24 = arith.constant 0 : index
    %34 = vector.load %arg8[%c0_22, %c0_23, %c0_24] : memref<3x1x384xf32, #tpu.memory_space<vmem>>, vector<1x1x384xf32>
    %35 = vector.shape_cast %34 : vector<1x1x384xf32> to vector<1x384xf32>
    %36 = vector.broadcast %35 : vector<1x384xf32> to vector<16x384xf32>
    %37 = arith.addf %33, %36 : vector<16x384xf32>
    %38 = arith.truncf %37 : vector<16x384xf32> to vector<16x384xbf16>
    %c0_25 = arith.constant 0 : index
    %c0_26 = arith.constant 0 : index
    %c0_27 = arith.constant 0 : index
    %39 = vector.load %arg9[%c0_25, %c0_26, %c0_27] : memref<3x128x128xbf16, #tpu.memory_space<vmem>>, vector<1x128x128xbf16>
    %40 = vector.shape_cast %39 : vector<1x128x128xbf16> to vector<128x128xbf16>
    %cst_28 = arith.constant 0.000000e+00 : f32
    %41 = vector.broadcast %cst_28 : f32 to vector<16x128xf32>
    %42 = vector.extract_strided_slice %38 {offsets = [0, 0], sizes = [16, 32], strides = [1, 1]} : vector<16x384xbf16> to vector<16x32xbf16>
    %43 = vector.extract_strided_slice %38 {offsets = [0, 128], sizes = [16, 32], strides = [1, 1]} : vector<16x384xbf16> to vector<16x32xbf16>
    %44 = vector.extract_strided_slice %38 {offsets = [0, 256], sizes = [16, 32], strides = [1, 1]} : vector<16x384xbf16> to vector<16x32xbf16>
    %cst_29 = arith.constant dense<0.000000e+00> : vector<16x16xf32>
    %45 = tpu.matmul %42, %43, %cst_29 {dimension_numbers = #tpu.dot_dimension_numbers<[1], [1], [0], [0], [0, 0, 1, 0], [], []>} : vector<16x32xbf16>, vector<16x32xbf16>, vector<16x16xf32> -> vector<16x16xf32>
    %46 = arith.addf %45, %5 : vector<16x16xf32>
    %cst_30 = arith.constant dense<0xFF800000> : vector<16xf32>
    %47 = vector.multi_reduction <maximumf>, %46, %cst_30 [1] : vector<16x16xf32> to vector<16xf32>
    %48 = vector.shape_cast %47 : vector<16xf32> to vector<16x1xf32>
    %49 = vector.broadcast %48 : vector<16x1xf32> to vector<16x16xf32>
    %50 = arith.subf %46, %49 : vector<16x16xf32>
    %51 = math.exp %50 : vector<16x16xf32>
    %cst_31 = arith.constant dense<0.000000e+00> : vector<16xf32>
    %52 = vector.multi_reduction <add>, %51, %cst_31 [1] : vector<16x16xf32> to vector<16xf32>
    %53 = vector.shape_cast %52 : vector<16xf32> to vector<16x1xf32>
    %54 = tpu.reciprocal %53 {approx = true} : vector<16x1xf32> -> vector<16x1xf32>
    %55 = vector.broadcast %54 : vector<16x1xf32> to vector<16x16xf32>
    %56 = arith.mulf %51, %55 : vector<16x16xf32>
    %57 = arith.truncf %56 : vector<16x16xf32> to vector<16x16xbf16>
    %cst_32 = arith.constant dense<0.000000e+00> : vector<16x32xf32>
    %58 = tpu.matmul %57, %44, %cst_32 {dimension_numbers = #tpu.dot_dimension_numbers<[1], [0], [0], [1], [0, 0, 1, 1], [], []>} : vector<16x16xbf16>, vector<16x32xbf16>, vector<16x32xf32> -> vector<16x32xf32>
    %59 = arith.truncf %58 : vector<16x32xf32> to vector<16x32xbf16>
    %60 = vector.extract_strided_slice %40 {offsets = [0, 0], sizes = [32, 128], strides = [1, 1]} : vector<128x128xbf16> to vector<32x128xbf16>
    %cst_33 = arith.constant dense<0.000000e+00> : vector<16x128xf32>
    %61 = tpu.matmul %59, %60, %cst_33 {dimension_numbers = #tpu.dot_dimension_numbers<[1], [0], [0], [1], [0, 0, 1, 1], [], []>} : vector<16x32xbf16>, vector<32x128xbf16>, vector<16x128xf32> -> vector<16x128xf32>
    %62 = arith.addf %41, %61 : vector<16x128xf32>
    %63 = vector.extract_strided_slice %38 {offsets = [0, 32], sizes = [16, 32], strides = [1, 1]} : vector<16x384xbf16> to vector<16x32xbf16>
    %64 = vector.extract_strided_slice %38 {offsets = [0, 160], sizes = [16, 32], strides = [1, 1]} : vector<16x384xbf16> to vector<16x32xbf16>
    %65 = vector.extract_strided_slice %38 {offsets = [0, 288], sizes = [16, 32], strides = [1, 1]} : vector<16x384xbf16> to vector<16x32xbf16>
    %cst_34 = arith.constant dense<0.000000e+00> : vector<16x16xf32>
    %66 = tpu.matmul %63, %64, %cst_34 {dimension_numbers = #tpu.dot_dimension_numbers<[1], [1], [0], [0], [0, 0, 1, 0], [], []>} : vector<16x32xbf16>, vector<16x32xbf16>, vector<16x16xf32> -> vector<16x16xf32>
    %67 = arith.addf %66, %5 : vector<16x16xf32>
    %cst_35 = arith.constant dense<0xFF800000> : vector<16xf32>
    %68 = vector.multi_reduction <maximumf>, %67, %cst_35 [1] : vector<16x16xf32> to vector<16xf32>
    %69 = vector.shape_cast %68 : vector<16xf32> to vector<16x1xf32>
    %70 = vector.broadcast %69 : vector<16x1xf32> to vector<16x16xf32>
    %71 = arith.subf %67, %70 : vector<16x16xf32>
    %72 = math.exp %71 : vector<16x16xf32>
    %cst_36 = arith.constant dense<0.000000e+00> : vector<16xf32>
    %73 = vector.multi_reduction <add>, %72, %cst_36 [1] : vector<16x16xf32> to vector<16xf32>
    %74 = vector.shape_cast %73 : vector<16xf32> to vector<16x1xf32>
    %75 = tpu.reciprocal %74 {approx = true} : vector<16x1xf32> -> vector<16x1xf32>
    %76 = vector.broadcast %75 : vector<16x1xf32> to vector<16x16xf32>
    %77 = arith.mulf %72, %76 : vector<16x16xf32>
    %78 = arith.truncf %77 : vector<16x16xf32> to vector<16x16xbf16>
    %cst_37 = arith.constant dense<0.000000e+00> : vector<16x32xf32>
    %79 = tpu.matmul %78, %65, %cst_37 {dimension_numbers = #tpu.dot_dimension_numbers<[1], [0], [0], [1], [0, 0, 1, 1], [], []>} : vector<16x16xbf16>, vector<16x32xbf16>, vector<16x32xf32> -> vector<16x32xf32>
    %80 = arith.truncf %79 : vector<16x32xf32> to vector<16x32xbf16>
    %81 = vector.extract_strided_slice %40 {offsets = [32, 0], sizes = [32, 128], strides = [1, 1]} : vector<128x128xbf16> to vector<32x128xbf16>
    %cst_38 = arith.constant dense<0.000000e+00> : vector<16x128xf32>
    %82 = tpu.matmul %80, %81, %cst_38 {dimension_numbers = #tpu.dot_dimension_numbers<[1], [0], [0], [1], [0, 0, 1, 1], [], []>} : vector<16x32xbf16>, vector<32x128xbf16>, vector<16x128xf32> -> vector<16x128xf32>
    %83 = arith.addf %62, %82 : vector<16x128xf32>
    %84 = vector.extract_strided_slice %38 {offsets = [0, 64], sizes = [16, 32], strides = [1, 1]} : vector<16x384xbf16> to vector<16x32xbf16>
    %85 = vector.extract_strided_slice %38 {offsets = [0, 192], sizes = [16, 32], strides = [1, 1]} : vector<16x384xbf16> to vector<16x32xbf16>
    %86 = vector.extract_strided_slice %38 {offsets = [0, 320], sizes = [16, 32], strides = [1, 1]} : vector<16x384xbf16> to vector<16x32xbf16>
    %cst_39 = arith.constant dense<0.000000e+00> : vector<16x16xf32>
    %87 = tpu.matmul %84, %85, %cst_39 {dimension_numbers = #tpu.dot_dimension_numbers<[1], [1], [0], [0], [0, 0, 1, 0], [], []>} : vector<16x32xbf16>, vector<16x32xbf16>, vector<16x16xf32> -> vector<16x16xf32>
    %88 = arith.addf %87, %5 : vector<16x16xf32>
    %cst_40 = arith.constant dense<0xFF800000> : vector<16xf32>
    %89 = vector.multi_reduction <maximumf>, %88, %cst_40 [1] : vector<16x16xf32> to vector<16xf32>
    %90 = vector.shape_cast %89 : vector<16xf32> to vector<16x1xf32>
    %91 = vector.broadcast %90 : vector<16x1xf32> to vector<16x16xf32>
    %92 = arith.subf %88, %91 : vector<16x16xf32>
    %93 = math.exp %92 : vector<16x16xf32>
    %cst_41 = arith.constant dense<0.000000e+00> : vector<16xf32>
    %94 = vector.multi_reduction <add>, %93, %cst_41 [1] : vector<16x16xf32> to vector<16xf32>
    %95 = vector.shape_cast %94 : vector<16xf32> to vector<16x1xf32>
    %96 = tpu.reciprocal %95 {approx = true} : vector<16x1xf32> -> vector<16x1xf32>
    %97 = vector.broadcast %96 : vector<16x1xf32> to vector<16x16xf32>
    %98 = arith.mulf %93, %97 : vector<16x16xf32>
    %99 = arith.truncf %98 : vector<16x16xf32> to vector<16x16xbf16>
    %cst_42 = arith.constant dense<0.000000e+00> : vector<16x32xf32>
    %100 = tpu.matmul %99, %86, %cst_42 {dimension_numbers = #tpu.dot_dimension_numbers<[1], [0], [0], [1], [0, 0, 1, 1], [], []>} : vector<16x16xbf16>, vector<16x32xbf16>, vector<16x32xf32> -> vector<16x32xf32>
    %101 = arith.truncf %100 : vector<16x32xf32> to vector<16x32xbf16>
    %102 = vector.extract_strided_slice %40 {offsets = [64, 0], sizes = [32, 128], strides = [1, 1]} : vector<128x128xbf16> to vector<32x128xbf16>
    %cst_43 = arith.constant dense<0.000000e+00> : vector<16x128xf32>
    %103 = tpu.matmul %101, %102, %cst_43 {dimension_numbers = #tpu.dot_dimension_numbers<[1], [0], [0], [1], [0, 0, 1, 1], [], []>} : vector<16x32xbf16>, vector<32x128xbf16>, vector<16x128xf32> -> vector<16x128xf32>
    %104 = arith.addf %83, %103 : vector<16x128xf32>
    %105 = vector.extract_strided_slice %38 {offsets = [0, 96], sizes = [16, 32], strides = [1, 1]} : vector<16x384xbf16> to vector<16x32xbf16>
    %106 = vector.extract_strided_slice %38 {offsets = [0, 224], sizes = [16, 32], strides = [1, 1]} : vector<16x384xbf16> to vector<16x32xbf16>
    %107 = vector.extract_strided_slice %38 {offsets = [0, 352], sizes = [16, 32], strides = [1, 1]} : vector<16x384xbf16> to vector<16x32xbf16>
    %cst_44 = arith.constant dense<0.000000e+00> : vector<16x16xf32>
    %108 = tpu.matmul %105, %106, %cst_44 {dimension_numbers = #tpu.dot_dimension_numbers<[1], [1], [0], [0], [0, 0, 1, 0], [], []>} : vector<16x32xbf16>, vector<16x32xbf16>, vector<16x16xf32> -> vector<16x16xf32>
    %109 = arith.addf %108, %5 : vector<16x16xf32>
    %cst_45 = arith.constant dense<0xFF800000> : vector<16xf32>
    %110 = vector.multi_reduction <maximumf>, %109, %cst_45 [1] : vector<16x16xf32> to vector<16xf32>
    %111 = vector.shape_cast %110 : vector<16xf32> to vector<16x1xf32>
    %112 = vector.broadcast %111 : vector<16x1xf32> to vector<16x16xf32>
    %113 = arith.subf %109, %112 : vector<16x16xf32>
    %114 = math.exp %113 : vector<16x16xf32>
    %cst_46 = arith.constant dense<0.000000e+00> : vector<16xf32>
    %115 = vector.multi_reduction <add>, %114, %cst_46 [1] : vector<16x16xf32> to vector<16xf32>
    %116 = vector.shape_cast %115 : vector<16xf32> to vector<16x1xf32>
    %117 = tpu.reciprocal %116 {approx = true} : vector<16x1xf32> -> vector<16x1xf32>
    %118 = vector.broadcast %117 : vector<16x1xf32> to vector<16x16xf32>
    %119 = arith.mulf %114, %118 : vector<16x16xf32>
    %120 = arith.truncf %119 : vector<16x16xf32> to vector<16x16xbf16>
    %cst_47 = arith.constant dense<0.000000e+00> : vector<16x32xf32>
    %121 = tpu.matmul %120, %107, %cst_47 {dimension_numbers = #tpu.dot_dimension_numbers<[1], [0], [0], [1], [0, 0, 1, 1], [], []>} : vector<16x16xbf16>, vector<16x32xbf16>, vector<16x32xf32> -> vector<16x32xf32>
    %122 = arith.truncf %121 : vector<16x32xf32> to vector<16x32xbf16>
    %123 = vector.extract_strided_slice %40 {offsets = [96, 0], sizes = [32, 128], strides = [1, 1]} : vector<128x128xbf16> to vector<32x128xbf16>
    %cst_48 = arith.constant dense<0.000000e+00> : vector<16x128xf32>
    %124 = tpu.matmul %122, %123, %cst_48 {dimension_numbers = #tpu.dot_dimension_numbers<[1], [0], [0], [1], [0, 0, 1, 1], [], []>} : vector<16x32xbf16>, vector<32x128xbf16>, vector<16x128xf32> -> vector<16x128xf32>
    %125 = arith.addf %104, %124 : vector<16x128xf32>
    %126 = arith.addf %4, %125 : vector<16x128xf32>
    %c0_49 = arith.constant 0 : index
    %c0_50 = arith.constant 0 : index
    %c0_51 = arith.constant 0 : index
    %127 = vector.load %arg10[%c0_49, %c0_50, %c0_51] : memref<3x1x128xf32, #tpu.memory_space<vmem>>, vector<1x1x128xf32>
    %128 = vector.shape_cast %127 : vector<1x1x128xf32> to vector<1x128xf32>
    %129 = vector.broadcast %128 : vector<1x128xf32> to vector<16x128xf32>
    %130 = arith.addf %126, %129 : vector<16x128xf32>
    %c0_52 = arith.constant 0 : index
    %c0_53 = arith.constant 0 : index
    %c0_54 = arith.constant 0 : index
    %131 = vector.load %arg11[%c0_52, %c0_53, %c0_54] : memref<3x1x128xf32, #tpu.memory_space<vmem>>, vector<1x1x128xf32>
    %132 = vector.shape_cast %131 : vector<1x1x128xf32> to vector<1x128xf32>
    %c0_55 = arith.constant 0 : index
    %c0_56 = arith.constant 0 : index
    %c0_57 = arith.constant 0 : index
    %133 = vector.load %arg12[%c0_55, %c0_56, %c0_57] : memref<3x1x128xf32, #tpu.memory_space<vmem>>, vector<1x1x128xf32>
    %134 = vector.shape_cast %133 : vector<1x1x128xf32> to vector<1x128xf32>
    %cst_58 = arith.constant dense<0.000000e+00> : vector<16xf32>
    %135 = vector.multi_reduction <add>, %130, %cst_58 [1] : vector<16x128xf32> to vector<16xf32>
    %136 = vector.shape_cast %135 : vector<16xf32> to vector<16x1xf32>
    %cst_59 = arith.constant 1.280000e+02 : f32
    %137 = vector.broadcast %cst_59 : f32 to vector<16x1xf32>
    %138 = arith.divf %136, %137 : vector<16x1xf32>
    %139 = vector.broadcast %138 : vector<16x1xf32> to vector<16x128xf32>
    %140 = arith.subf %130, %139 : vector<16x128xf32>
    %141 = arith.mulf %140, %140 : vector<16x128xf32>
    %cst_60 = arith.constant dense<0.000000e+00> : vector<16xf32>
    %142 = vector.multi_reduction <add>, %141, %cst_60 [1] : vector<16x128xf32> to vector<16xf32>
    %143 = vector.shape_cast %142 : vector<16xf32> to vector<16x1xf32>
    %cst_61 = arith.constant 1.280000e+02 : f32
    %144 = vector.broadcast %cst_61 : f32 to vector<16x1xf32>
    %145 = arith.divf %143, %144 : vector<16x1xf32>
    %cst_62 = arith.constant 9.99999997E-7 : f32
    %146 = vector.broadcast %cst_62 : f32 to vector<16x1xf32>
    %147 = arith.addf %145, %146 : vector<16x1xf32>
    %148 = math.rsqrt %147 : vector<16x1xf32>
    %149 = vector.broadcast %148 : vector<16x1xf32> to vector<16x128xf32>
    %150 = arith.mulf %140, %149 : vector<16x128xf32>
    %151 = vector.broadcast %132 : vector<1x128xf32> to vector<16x128xf32>
    %152 = arith.mulf %150, %151 : vector<16x128xf32>
    %153 = vector.broadcast %134 : vector<1x128xf32> to vector<16x128xf32>
    %154 = arith.addf %152, %153 : vector<16x128xf32>
    %155 = arith.truncf %154 : vector<16x128xf32> to vector<16x128xbf16>
    %c0_63 = arith.constant 0 : index
    %c0_64 = arith.constant 0 : index
    %c0_65 = arith.constant 0 : index
    %156 = vector.load %arg13[%c0_63, %c0_64, %c0_65] : memref<3x128x512xbf16, #tpu.memory_space<vmem>>, vector<1x128x512xbf16>
    %157 = vector.shape_cast %156 : vector<1x128x512xbf16> to vector<128x512xbf16>
    %cst_66 = arith.constant dense<0.000000e+00> : vector<16x512xf32>
    %158 = tpu.matmul %155, %157, %cst_66 {dimension_numbers = #tpu.dot_dimension_numbers<[1], [0], [0], [1], [0, 0, 1, 1], [], []>} : vector<16x128xbf16>, vector<128x512xbf16>, vector<16x512xf32> -> vector<16x512xf32>
    %c0_67 = arith.constant 0 : index
    %c0_68 = arith.constant 0 : index
    %c0_69 = arith.constant 0 : index
    %159 = vector.load %arg14[%c0_67, %c0_68, %c0_69] : memref<3x1x512xf32, #tpu.memory_space<vmem>>, vector<1x1x512xf32>
    %160 = vector.shape_cast %159 : vector<1x1x512xf32> to vector<1x512xf32>
    %161 = vector.broadcast %160 : vector<1x512xf32> to vector<16x512xf32>
    %162 = arith.addf %158, %161 : vector<16x512xf32>
    %163 = arith.mulf %162, %162 : vector<16x512xf32>
    %164 = arith.mulf %162, %163 : vector<16x512xf32>
    %cst_70 = arith.constant 4.471500e-02 : f32
    %165 = vector.broadcast %cst_70 : f32 to vector<16x512xf32>
    %166 = arith.mulf %165, %164 : vector<16x512xf32>
    %167 = arith.addf %162, %166 : vector<16x512xf32>
    %cst_71 = arith.constant 0.797884583 : f32
    %168 = vector.broadcast %cst_71 : f32 to vector<16x512xf32>
    %169 = arith.mulf %168, %167 : vector<16x512xf32>
    %170 = math.tanh %169 : vector<16x512xf32>
    %cst_72 = arith.constant 1.000000e+00 : f32
    %171 = vector.broadcast %cst_72 : f32 to vector<16x512xf32>
    %172 = arith.addf %171, %170 : vector<16x512xf32>
    %cst_73 = arith.constant 5.000000e-01 : f32
    %173 = vector.broadcast %cst_73 : f32 to vector<16x512xf32>
    %174 = arith.mulf %173, %172 : vector<16x512xf32>
    %175 = arith.mulf %162, %174 : vector<16x512xf32>
    %176 = arith.truncf %175 : vector<16x512xf32> to vector<16x512xbf16>
    %c0_74 = arith.constant 0 : index
    %c0_75 = arith.constant 0 : index
    %c0_76 = arith.constant 0 : index
    %177 = vector.load %arg15[%c0_74, %c0_75, %c0_76] : memref<3x512x128xbf16, #tpu.memory_space<vmem>>, vector<1x512x128xbf16>
    %178 = vector.shape_cast %177 : vector<1x512x128xbf16> to vector<512x128xbf16>
    %cst_77 = arith.constant dense<0.000000e+00> : vector<16x128xf32>
    %179 = tpu.matmul %176, %178, %cst_77 {dimension_numbers = #tpu.dot_dimension_numbers<[1], [0], [0], [1], [0, 0, 1, 1], [], []>} : vector<16x512xbf16>, vector<512x128xbf16>, vector<16x128xf32> -> vector<16x128xf32>
    %c0_78 = arith.constant 0 : index
    %c0_79 = arith.constant 0 : index
    %c0_80 = arith.constant 0 : index
    %180 = vector.load %arg16[%c0_78, %c0_79, %c0_80] : memref<3x1x128xf32, #tpu.memory_space<vmem>>, vector<1x1x128xf32>
    %181 = vector.shape_cast %180 : vector<1x1x128xf32> to vector<1x128xf32>
    %182 = vector.broadcast %181 : vector<1x128xf32> to vector<16x128xf32>
    %183 = arith.addf %179, %182 : vector<16x128xf32>
    %184 = arith.addf %130, %183 : vector<16x128xf32>
    %c1 = arith.constant 1 : index
    %c0_81 = arith.constant 0 : index
    %c0_82 = arith.constant 0 : index
    %185 = vector.load %arg5[%c1, %c0_81, %c0_82] : memref<3x1x128xf32, #tpu.memory_space<vmem>>, vector<1x1x128xf32>
    %186 = vector.shape_cast %185 : vector<1x1x128xf32> to vector<1x128xf32>
    %c1_83 = arith.constant 1 : index
    %c0_84 = arith.constant 0 : index
    %c0_85 = arith.constant 0 : index
    %187 = vector.load %arg6[%c1_83, %c0_84, %c0_85] : memref<3x1x128xf32, #tpu.memory_space<vmem>>, vector<1x1x128xf32>
    %188 = vector.shape_cast %187 : vector<1x1x128xf32> to vector<1x128xf32>
    %cst_86 = arith.constant dense<0.000000e+00> : vector<16xf32>
    %189 = vector.multi_reduction <add>, %184, %cst_86 [1] : vector<16x128xf32> to vector<16xf32>
    %190 = vector.shape_cast %189 : vector<16xf32> to vector<16x1xf32>
    %cst_87 = arith.constant 1.280000e+02 : f32
    %191 = vector.broadcast %cst_87 : f32 to vector<16x1xf32>
    %192 = arith.divf %190, %191 : vector<16x1xf32>
    %193 = vector.broadcast %192 : vector<16x1xf32> to vector<16x128xf32>
    %194 = arith.subf %184, %193 : vector<16x128xf32>
    %195 = arith.mulf %194, %194 : vector<16x128xf32>
    %cst_88 = arith.constant dense<0.000000e+00> : vector<16xf32>
    %196 = vector.multi_reduction <add>, %195, %cst_88 [1] : vector<16x128xf32> to vector<16xf32>
    %197 = vector.shape_cast %196 : vector<16xf32> to vector<16x1xf32>
    %cst_89 = arith.constant 1.280000e+02 : f32
    %198 = vector.broadcast %cst_89 : f32 to vector<16x1xf32>
    %199 = arith.divf %197, %198 : vector<16x1xf32>
    %cst_90 = arith.constant 9.99999997E-7 : f32
    %200 = vector.broadcast %cst_90 : f32 to vector<16x1xf32>
    %201 = arith.addf %199, %200 : vector<16x1xf32>
    %202 = math.rsqrt %201 : vector<16x1xf32>
    %203 = vector.broadcast %202 : vector<16x1xf32> to vector<16x128xf32>
    %204 = arith.mulf %194, %203 : vector<16x128xf32>
    %205 = vector.broadcast %186 : vector<1x128xf32> to vector<16x128xf32>
    %206 = arith.mulf %204, %205 : vector<16x128xf32>
    %207 = vector.broadcast %188 : vector<1x128xf32> to vector<16x128xf32>
    %208 = arith.addf %206, %207 : vector<16x128xf32>
    %209 = arith.truncf %208 : vector<16x128xf32> to vector<16x128xbf16>
    %c1_91 = arith.constant 1 : index
    %c0_92 = arith.constant 0 : index
    %c0_93 = arith.constant 0 : index
    %210 = vector.load %arg7[%c1_91, %c0_92, %c0_93] : memref<3x128x384xbf16, #tpu.memory_space<vmem>>, vector<1x128x384xbf16>
    %211 = vector.shape_cast %210 : vector<1x128x384xbf16> to vector<128x384xbf16>
    %cst_94 = arith.constant dense<0.000000e+00> : vector<16x384xf32>
    %212 = tpu.matmul %209, %211, %cst_94 {dimension_numbers = #tpu.dot_dimension_numbers<[1], [0], [0], [1], [0, 0, 1, 1], [], []>} : vector<16x128xbf16>, vector<128x384xbf16>, vector<16x384xf32> -> vector<16x384xf32>
    %c1_95 = arith.constant 1 : index
    %c0_96 = arith.constant 0 : index
    %c0_97 = arith.constant 0 : index
    %213 = vector.load %arg8[%c1_95, %c0_96, %c0_97] : memref<3x1x384xf32, #tpu.memory_space<vmem>>, vector<1x1x384xf32>
    %214 = vector.shape_cast %213 : vector<1x1x384xf32> to vector<1x384xf32>
    %215 = vector.broadcast %214 : vector<1x384xf32> to vector<16x384xf32>
    %216 = arith.addf %212, %215 : vector<16x384xf32>
    %217 = arith.truncf %216 : vector<16x384xf32> to vector<16x384xbf16>
    %c1_98 = arith.constant 1 : index
    %c0_99 = arith.constant 0 : index
    %c0_100 = arith.constant 0 : index
    %218 = vector.load %arg9[%c1_98, %c0_99, %c0_100] : memref<3x128x128xbf16, #tpu.memory_space<vmem>>, vector<1x128x128xbf16>
    %219 = vector.shape_cast %218 : vector<1x128x128xbf16> to vector<128x128xbf16>
    %cst_101 = arith.constant 0.000000e+00 : f32
    %220 = vector.broadcast %cst_101 : f32 to vector<16x128xf32>
    %221 = vector.extract_strided_slice %217 {offsets = [0, 0], sizes = [16, 32], strides = [1, 1]} : vector<16x384xbf16> to vector<16x32xbf16>
    %222 = vector.extract_strided_slice %217 {offsets = [0, 128], sizes = [16, 32], strides = [1, 1]} : vector<16x384xbf16> to vector<16x32xbf16>
    %223 = vector.extract_strided_slice %217 {offsets = [0, 256], sizes = [16, 32], strides = [1, 1]} : vector<16x384xbf16> to vector<16x32xbf16>
    %cst_102 = arith.constant dense<0.000000e+00> : vector<16x16xf32>
    %224 = tpu.matmul %221, %222, %cst_102 {dimension_numbers = #tpu.dot_dimension_numbers<[1], [1], [0], [0], [0, 0, 1, 0], [], []>} : vector<16x32xbf16>, vector<16x32xbf16>, vector<16x16xf32> -> vector<16x16xf32>
    %225 = arith.addf %224, %5 : vector<16x16xf32>
    %cst_103 = arith.constant dense<0xFF800000> : vector<16xf32>
    %226 = vector.multi_reduction <maximumf>, %225, %cst_103 [1] : vector<16x16xf32> to vector<16xf32>
    %227 = vector.shape_cast %226 : vector<16xf32> to vector<16x1xf32>
    %228 = vector.broadcast %227 : vector<16x1xf32> to vector<16x16xf32>
    %229 = arith.subf %225, %228 : vector<16x16xf32>
    %230 = math.exp %229 : vector<16x16xf32>
    %cst_104 = arith.constant dense<0.000000e+00> : vector<16xf32>
    %231 = vector.multi_reduction <add>, %230, %cst_104 [1] : vector<16x16xf32> to vector<16xf32>
    %232 = vector.shape_cast %231 : vector<16xf32> to vector<16x1xf32>
    %233 = tpu.reciprocal %232 {approx = true} : vector<16x1xf32> -> vector<16x1xf32>
    %234 = vector.broadcast %233 : vector<16x1xf32> to vector<16x16xf32>
    %235 = arith.mulf %230, %234 : vector<16x16xf32>
    %236 = arith.truncf %235 : vector<16x16xf32> to vector<16x16xbf16>
    %cst_105 = arith.constant dense<0.000000e+00> : vector<16x32xf32>
    %237 = tpu.matmul %236, %223, %cst_105 {dimension_numbers = #tpu.dot_dimension_numbers<[1], [0], [0], [1], [0, 0, 1, 1], [], []>} : vector<16x16xbf16>, vector<16x32xbf16>, vector<16x32xf32> -> vector<16x32xf32>
    %238 = arith.truncf %237 : vector<16x32xf32> to vector<16x32xbf16>
    %239 = vector.extract_strided_slice %219 {offsets = [0, 0], sizes = [32, 128], strides = [1, 1]} : vector<128x128xbf16> to vector<32x128xbf16>
    %cst_106 = arith.constant dense<0.000000e+00> : vector<16x128xf32>
    %240 = tpu.matmul %238, %239, %cst_106 {dimension_numbers = #tpu.dot_dimension_numbers<[1], [0], [0], [1], [0, 0, 1, 1], [], []>} : vector<16x32xbf16>, vector<32x128xbf16>, vector<16x128xf32> -> vector<16x128xf32>
    %241 = arith.addf %220, %240 : vector<16x128xf32>
    %242 = vector.extract_strided_slice %217 {offsets = [0, 32], sizes = [16, 32], strides = [1, 1]} : vector<16x384xbf16> to vector<16x32xbf16>
    %243 = vector.extract_strided_slice %217 {offsets = [0, 160], sizes = [16, 32], strides = [1, 1]} : vector<16x384xbf16> to vector<16x32xbf16>
    %244 = vector.extract_strided_slice %217 {offsets = [0, 288], sizes = [16, 32], strides = [1, 1]} : vector<16x384xbf16> to vector<16x32xbf16>
    %cst_107 = arith.constant dense<0.000000e+00> : vector<16x16xf32>
    %245 = tpu.matmul %242, %243, %cst_107 {dimension_numbers = #tpu.dot_dimension_numbers<[1], [1], [0], [0], [0, 0, 1, 0], [], []>} : vector<16x32xbf16>, vector<16x32xbf16>, vector<16x16xf32> -> vector<16x16xf32>
    %246 = arith.addf %245, %5 : vector<16x16xf32>
    %cst_108 = arith.constant dense<0xFF800000> : vector<16xf32>
    %247 = vector.multi_reduction <maximumf>, %246, %cst_108 [1] : vector<16x16xf32> to vector<16xf32>
    %248 = vector.shape_cast %247 : vector<16xf32> to vector<16x1xf32>
    %249 = vector.broadcast %248 : vector<16x1xf32> to vector<16x16xf32>
    %250 = arith.subf %246, %249 : vector<16x16xf32>
    %251 = math.exp %250 : vector<16x16xf32>
    %cst_109 = arith.constant dense<0.000000e+00> : vector<16xf32>
    %252 = vector.multi_reduction <add>, %251, %cst_109 [1] : vector<16x16xf32> to vector<16xf32>
    %253 = vector.shape_cast %252 : vector<16xf32> to vector<16x1xf32>
    %254 = tpu.reciprocal %253 {approx = true} : vector<16x1xf32> -> vector<16x1xf32>
    %255 = vector.broadcast %254 : vector<16x1xf32> to vector<16x16xf32>
    %256 = arith.mulf %251, %255 : vector<16x16xf32>
    %257 = arith.truncf %256 : vector<16x16xf32> to vector<16x16xbf16>
    %cst_110 = arith.constant dense<0.000000e+00> : vector<16x32xf32>
    %258 = tpu.matmul %257, %244, %cst_110 {dimension_numbers = #tpu.dot_dimension_numbers<[1], [0], [0], [1], [0, 0, 1, 1], [], []>} : vector<16x16xbf16>, vector<16x32xbf16>, vector<16x32xf32> -> vector<16x32xf32>
    %259 = arith.truncf %258 : vector<16x32xf32> to vector<16x32xbf16>
    %260 = vector.extract_strided_slice %219 {offsets = [32, 0], sizes = [32, 128], strides = [1, 1]} : vector<128x128xbf16> to vector<32x128xbf16>
    %cst_111 = arith.constant dense<0.000000e+00> : vector<16x128xf32>
    %261 = tpu.matmul %259, %260, %cst_111 {dimension_numbers = #tpu.dot_dimension_numbers<[1], [0], [0], [1], [0, 0, 1, 1], [], []>} : vector<16x32xbf16>, vector<32x128xbf16>, vector<16x128xf32> -> vector<16x128xf32>
    %262 = arith.addf %241, %261 : vector<16x128xf32>
    %263 = vector.extract_strided_slice %217 {offsets = [0, 64], sizes = [16, 32], strides = [1, 1]} : vector<16x384xbf16> to vector<16x32xbf16>
    %264 = vector.extract_strided_slice %217 {offsets = [0, 192], sizes = [16, 32], strides = [1, 1]} : vector<16x384xbf16> to vector<16x32xbf16>
    %265 = vector.extract_strided_slice %217 {offsets = [0, 320], sizes = [16, 32], strides = [1, 1]} : vector<16x384xbf16> to vector<16x32xbf16>
    %cst_112 = arith.constant dense<0.000000e+00> : vector<16x16xf32>
    %266 = tpu.matmul %263, %264, %cst_112 {dimension_numbers = #tpu.dot_dimension_numbers<[1], [1], [0], [0], [0, 0, 1, 0], [], []>} : vector<16x32xbf16>, vector<16x32xbf16>, vector<16x16xf32> -> vector<16x16xf32>
    %267 = arith.addf %266, %5 : vector<16x16xf32>
    %cst_113 = arith.constant dense<0xFF800000> : vector<16xf32>
    %268 = vector.multi_reduction <maximumf>, %267, %cst_113 [1] : vector<16x16xf32> to vector<16xf32>
    %269 = vector.shape_cast %268 : vector<16xf32> to vector<16x1xf32>
    %270 = vector.broadcast %269 : vector<16x1xf32> to vector<16x16xf32>
    %271 = arith.subf %267, %270 : vector<16x16xf32>
    %272 = math.exp %271 : vector<16x16xf32>
    %cst_114 = arith.constant dense<0.000000e+00> : vector<16xf32>
    %273 = vector.multi_reduction <add>, %272, %cst_114 [1] : vector<16x16xf32> to vector<16xf32>
    %274 = vector.shape_cast %273 : vector<16xf32> to vector<16x1xf32>
    %275 = tpu.reciprocal %274 {approx = true} : vector<16x1xf32> -> vector<16x1xf32>
    %276 = vector.broadcast %275 : vector<16x1xf32> to vector<16x16xf32>
    %277 = arith.mulf %272, %276 : vector<16x16xf32>
    %278 = arith.truncf %277 : vector<16x16xf32> to vector<16x16xbf16>
    %cst_115 = arith.constant dense<0.000000e+00> : vector<16x32xf32>
    %279 = tpu.matmul %278, %265, %cst_115 {dimension_numbers = #tpu.dot_dimension_numbers<[1], [0], [0], [1], [0, 0, 1, 1], [], []>} : vector<16x16xbf16>, vector<16x32xbf16>, vector<16x32xf32> -> vector<16x32xf32>
    %280 = arith.truncf %279 : vector<16x32xf32> to vector<16x32xbf16>
    %281 = vector.extract_strided_slice %219 {offsets = [64, 0], sizes = [32, 128], strides = [1, 1]} : vector<128x128xbf16> to vector<32x128xbf16>
    %cst_116 = arith.constant dense<0.000000e+00> : vector<16x128xf32>
    %282 = tpu.matmul %280, %281, %cst_116 {dimension_numbers = #tpu.dot_dimension_numbers<[1], [0], [0], [1], [0, 0, 1, 1], [], []>} : vector<16x32xbf16>, vector<32x128xbf16>, vector<16x128xf32> -> vector<16x128xf32>
    %283 = arith.addf %262, %282 : vector<16x128xf32>
    %284 = vector.extract_strided_slice %217 {offsets = [0, 96], sizes = [16, 32], strides = [1, 1]} : vector<16x384xbf16> to vector<16x32xbf16>
    %285 = vector.extract_strided_slice %217 {offsets = [0, 224], sizes = [16, 32], strides = [1, 1]} : vector<16x384xbf16> to vector<16x32xbf16>
    %286 = vector.extract_strided_slice %217 {offsets = [0, 352], sizes = [16, 32], strides = [1, 1]} : vector<16x384xbf16> to vector<16x32xbf16>
    %cst_117 = arith.constant dense<0.000000e+00> : vector<16x16xf32>
    %287 = tpu.matmul %284, %285, %cst_117 {dimension_numbers = #tpu.dot_dimension_numbers<[1], [1], [0], [0], [0, 0, 1, 0], [], []>} : vector<16x32xbf16>, vector<16x32xbf16>, vector<16x16xf32> -> vector<16x16xf32>
    %288 = arith.addf %287, %5 : vector<16x16xf32>
    %cst_118 = arith.constant dense<0xFF800000> : vector<16xf32>
    %289 = vector.multi_reduction <maximumf>, %288, %cst_118 [1] : vector<16x16xf32> to vector<16xf32>
    %290 = vector.shape_cast %289 : vector<16xf32> to vector<16x1xf32>
    %291 = vector.broadcast %290 : vector<16x1xf32> to vector<16x16xf32>
    %292 = arith.subf %288, %291 : vector<16x16xf32>
    %293 = math.exp %292 : vector<16x16xf32>
    %cst_119 = arith.constant dense<0.000000e+00> : vector<16xf32>
    %294 = vector.multi_reduction <add>, %293, %cst_119 [1] : vector<16x16xf32> to vector<16xf32>
    %295 = vector.shape_cast %294 : vector<16xf32> to vector<16x1xf32>
    %296 = tpu.reciprocal %295 {approx = true} : vector<16x1xf32> -> vector<16x1xf32>
    %297 = vector.broadcast %296 : vector<16x1xf32> to vector<16x16xf32>
    %298 = arith.mulf %293, %297 : vector<16x16xf32>
    %299 = arith.truncf %298 : vector<16x16xf32> to vector<16x16xbf16>
    %cst_120 = arith.constant dense<0.000000e+00> : vector<16x32xf32>
    %300 = tpu.matmul %299, %286, %cst_120 {dimension_numbers = #tpu.dot_dimension_numbers<[1], [0], [0], [1], [0, 0, 1, 1], [], []>} : vector<16x16xbf16>, vector<16x32xbf16>, vector<16x32xf32> -> vector<16x32xf32>
    %301 = arith.truncf %300 : vector<16x32xf32> to vector<16x32xbf16>
    %302 = vector.extract_strided_slice %219 {offsets = [96, 0], sizes = [32, 128], strides = [1, 1]} : vector<128x128xbf16> to vector<32x128xbf16>
    %cst_121 = arith.constant dense<0.000000e+00> : vector<16x128xf32>
    %303 = tpu.matmul %301, %302, %cst_121 {dimension_numbers = #tpu.dot_dimension_numbers<[1], [0], [0], [1], [0, 0, 1, 1], [], []>} : vector<16x32xbf16>, vector<32x128xbf16>, vector<16x128xf32> -> vector<16x128xf32>
    %304 = arith.addf %283, %303 : vector<16x128xf32>
    %305 = arith.addf %184, %304 : vector<16x128xf32>
    %c1_122 = arith.constant 1 : index
    %c0_123 = arith.constant 0 : index
    %c0_124 = arith.constant 0 : index
    %306 = vector.load %arg10[%c1_122, %c0_123, %c0_124] : memref<3x1x128xf32, #tpu.memory_space<vmem>>, vector<1x1x128xf32>
    %307 = vector.shape_cast %306 : vector<1x1x128xf32> to vector<1x128xf32>
    %308 = vector.broadcast %307 : vector<1x128xf32> to vector<16x128xf32>
    %309 = arith.addf %305, %308 : vector<16x128xf32>
    %c1_125 = arith.constant 1 : index
    %c0_126 = arith.constant 0 : index
    %c0_127 = arith.constant 0 : index
    %310 = vector.load %arg11[%c1_125, %c0_126, %c0_127] : memref<3x1x128xf32, #tpu.memory_space<vmem>>, vector<1x1x128xf32>
    %311 = vector.shape_cast %310 : vector<1x1x128xf32> to vector<1x128xf32>
    %c1_128 = arith.constant 1 : index
    %c0_129 = arith.constant 0 : index
    %c0_130 = arith.constant 0 : index
    %312 = vector.load %arg12[%c1_128, %c0_129, %c0_130] : memref<3x1x128xf32, #tpu.memory_space<vmem>>, vector<1x1x128xf32>
    %313 = vector.shape_cast %312 : vector<1x1x128xf32> to vector<1x128xf32>
    %cst_131 = arith.constant dense<0.000000e+00> : vector<16xf32>
    %314 = vector.multi_reduction <add>, %309, %cst_131 [1] : vector<16x128xf32> to vector<16xf32>
    %315 = vector.shape_cast %314 : vector<16xf32> to vector<16x1xf32>
    %cst_132 = arith.constant 1.280000e+02 : f32
    %316 = vector.broadcast %cst_132 : f32 to vector<16x1xf32>
    %317 = arith.divf %315, %316 : vector<16x1xf32>
    %318 = vector.broadcast %317 : vector<16x1xf32> to vector<16x128xf32>
    %319 = arith.subf %309, %318 : vector<16x128xf32>
    %320 = arith.mulf %319, %319 : vector<16x128xf32>
    %cst_133 = arith.constant dense<0.000000e+00> : vector<16xf32>
    %321 = vector.multi_reduction <add>, %320, %cst_133 [1] : vector<16x128xf32> to vector<16xf32>
    %322 = vector.shape_cast %321 : vector<16xf32> to vector<16x1xf32>
    %cst_134 = arith.constant 1.280000e+02 : f32
    %323 = vector.broadcast %cst_134 : f32 to vector<16x1xf32>
    %324 = arith.divf %322, %323 : vector<16x1xf32>
    %cst_135 = arith.constant 9.99999997E-7 : f32
    %325 = vector.broadcast %cst_135 : f32 to vector<16x1xf32>
    %326 = arith.addf %324, %325 : vector<16x1xf32>
    %327 = math.rsqrt %326 : vector<16x1xf32>
    %328 = vector.broadcast %327 : vector<16x1xf32> to vector<16x128xf32>
    %329 = arith.mulf %319, %328 : vector<16x128xf32>
    %330 = vector.broadcast %311 : vector<1x128xf32> to vector<16x128xf32>
    %331 = arith.mulf %329, %330 : vector<16x128xf32>
    %332 = vector.broadcast %313 : vector<1x128xf32> to vector<16x128xf32>
    %333 = arith.addf %331, %332 : vector<16x128xf32>
    %334 = arith.truncf %333 : vector<16x128xf32> to vector<16x128xbf16>
    %c1_136 = arith.constant 1 : index
    %c0_137 = arith.constant 0 : index
    %c0_138 = arith.constant 0 : index
    %335 = vector.load %arg13[%c1_136, %c0_137, %c0_138] : memref<3x128x512xbf16, #tpu.memory_space<vmem>>, vector<1x128x512xbf16>
    %336 = vector.shape_cast %335 : vector<1x128x512xbf16> to vector<128x512xbf16>
    %cst_139 = arith.constant dense<0.000000e+00> : vector<16x512xf32>
    %337 = tpu.matmul %334, %336, %cst_139 {dimension_numbers = #tpu.dot_dimension_numbers<[1], [0], [0], [1], [0, 0, 1, 1], [], []>} : vector<16x128xbf16>, vector<128x512xbf16>, vector<16x512xf32> -> vector<16x512xf32>
    %c1_140 = arith.constant 1 : index
    %c0_141 = arith.constant 0 : index
    %c0_142 = arith.constant 0 : index
    %338 = vector.load %arg14[%c1_140, %c0_141, %c0_142] : memref<3x1x512xf32, #tpu.memory_space<vmem>>, vector<1x1x512xf32>
    %339 = vector.shape_cast %338 : vector<1x1x512xf32> to vector<1x512xf32>
    %340 = vector.broadcast %339 : vector<1x512xf32> to vector<16x512xf32>
    %341 = arith.addf %337, %340 : vector<16x512xf32>
    %342 = arith.mulf %341, %341 : vector<16x512xf32>
    %343 = arith.mulf %341, %342 : vector<16x512xf32>
    %cst_143 = arith.constant 4.471500e-02 : f32
    %344 = vector.broadcast %cst_143 : f32 to vector<16x512xf32>
    %345 = arith.mulf %344, %343 : vector<16x512xf32>
    %346 = arith.addf %341, %345 : vector<16x512xf32>
    %cst_144 = arith.constant 0.797884583 : f32
    %347 = vector.broadcast %cst_144 : f32 to vector<16x512xf32>
    %348 = arith.mulf %347, %346 : vector<16x512xf32>
    %349 = math.tanh %348 : vector<16x512xf32>
    %cst_145 = arith.constant 1.000000e+00 : f32
    %350 = vector.broadcast %cst_145 : f32 to vector<16x512xf32>
    %351 = arith.addf %350, %349 : vector<16x512xf32>
    %cst_146 = arith.constant 5.000000e-01 : f32
    %352 = vector.broadcast %cst_146 : f32 to vector<16x512xf32>
    %353 = arith.mulf %352, %351 : vector<16x512xf32>
    %354 = arith.mulf %341, %353 : vector<16x512xf32>
    %355 = arith.truncf %354 : vector<16x512xf32> to vector<16x512xbf16>
    %c1_147 = arith.constant 1 : index
    %c0_148 = arith.constant 0 : index
    %c0_149 = arith.constant 0 : index
    %356 = vector.load %arg15[%c1_147, %c0_148, %c0_149] : memref<3x512x128xbf16, #tpu.memory_space<vmem>>, vector<1x512x128xbf16>
    %357 = vector.shape_cast %356 : vector<1x512x128xbf16> to vector<512x128xbf16>
    %cst_150 = arith.constant dense<0.000000e+00> : vector<16x128xf32>
    %358 = tpu.matmul %355, %357, %cst_150 {dimension_numbers = #tpu.dot_dimension_numbers<[1], [0], [0], [1], [0, 0, 1, 1], [], []>} : vector<16x512xbf16>, vector<512x128xbf16>, vector<16x128xf32> -> vector<16x128xf32>
    %c1_151 = arith.constant 1 : index
    %c0_152 = arith.constant 0 : index
    %c0_153 = arith.constant 0 : index
    %359 = vector.load %arg16[%c1_151, %c0_152, %c0_153] : memref<3x1x128xf32, #tpu.memory_space<vmem>>, vector<1x1x128xf32>
    %360 = vector.shape_cast %359 : vector<1x1x128xf32> to vector<1x128xf32>
    %361 = vector.broadcast %360 : vector<1x128xf32> to vector<16x128xf32>
    %362 = arith.addf %358, %361 : vector<16x128xf32>
    %363 = arith.addf %309, %362 : vector<16x128xf32>
    %c0_154 = arith.constant 0 : index
    %c0_155 = arith.constant 0 : index
    %c0_156 = arith.constant 0 : index
    %364 = vector.load %arg17[%c0_154, %c0_155, %c0_156] : memref<2x16x128xf32, #tpu.memory_space<vmem>>, vector<1x16x128xf32>
    %365 = vector.shape_cast %364 : vector<1x16x128xf32> to vector<16x128xf32>
    %366 = vector.shape_cast %363 : vector<16x128xf32> to vector<1x16x128xf32>
    tpu.vector_store %arg17[%c0_154, %c0_155, %c0_156], %366 {strides = array<i32>} : memref<2x16x128xf32, #tpu.memory_space<vmem>>, vector<1x16x128xf32>,
    %c2 = arith.constant 2 : index
    %c0_157 = arith.constant 0 : index
    %c0_158 = arith.constant 0 : index
    %367 = vector.load %arg5[%c2, %c0_157, %c0_158] : memref<3x1x128xf32, #tpu.memory_space<vmem>>, vector<1x1x128xf32>
    %368 = vector.shape_cast %367 : vector<1x1x128xf32> to vector<1x128xf32>
    %c2_159 = arith.constant 2 : index
    %c0_160 = arith.constant 0 : index
    %c0_161 = arith.constant 0 : index
    %369 = vector.load %arg6[%c2_159, %c0_160, %c0_161] : memref<3x1x128xf32, #tpu.memory_space<vmem>>, vector<1x1x128xf32>
    %370 = vector.shape_cast %369 : vector<1x1x128xf32> to vector<1x128xf32>
    %cst_162 = arith.constant dense<0.000000e+00> : vector<16xf32>
    %371 = vector.multi_reduction <add>, %363, %cst_162 [1] : vector<16x128xf32> to vector<16xf32>
    %372 = vector.shape_cast %371 : vector<16xf32> to vector<16x1xf32>
    %cst_163 = arith.constant 1.280000e+02 : f32
    %373 = vector.broadcast %cst_163 : f32 to vector<16x1xf32>
    %374 = arith.divf %372, %373 : vector<16x1xf32>
    %375 = vector.broadcast %374 : vector<16x1xf32> to vector<16x128xf32>
    %376 = arith.subf %363, %375 : vector<16x128xf32>
    %377 = arith.mulf %376, %376 : vector<16x128xf32>
    %cst_164 = arith.constant dense<0.000000e+00> : vector<16xf32>
    %378 = vector.multi_reduction <add>, %377, %cst_164 [1] : vector<16x128xf32> to vector<16xf32>
    %379 = vector.shape_cast %378 : vector<16xf32> to vector<16x1xf32>
    %cst_165 = arith.constant 1.280000e+02 : f32
    %380 = vector.broadcast %cst_165 : f32 to vector<16x1xf32>
    %381 = arith.divf %379, %380 : vector<16x1xf32>
    %cst_166 = arith.constant 9.99999997E-7 : f32
    %382 = vector.broadcast %cst_166 : f32 to vector<16x1xf32>
    %383 = arith.addf %381, %382 : vector<16x1xf32>
    %384 = math.rsqrt %383 : vector<16x1xf32>
    %385 = vector.broadcast %384 : vector<16x1xf32> to vector<16x128xf32>
    %386 = arith.mulf %376, %385 : vector<16x128xf32>
    %387 = vector.broadcast %368 : vector<1x128xf32> to vector<16x128xf32>
    %388 = arith.mulf %386, %387 : vector<16x128xf32>
    %389 = vector.broadcast %370 : vector<1x128xf32> to vector<16x128xf32>
    %390 = arith.addf %388, %389 : vector<16x128xf32>
    %391 = arith.truncf %390 : vector<16x128xf32> to vector<16x128xbf16>
    %c2_167 = arith.constant 2 : index
    %c0_168 = arith.constant 0 : index
    %c0_169 = arith.constant 0 : index
    %392 = vector.load %arg7[%c2_167, %c0_168, %c0_169] : memref<3x128x384xbf16, #tpu.memory_space<vmem>>, vector<1x128x384xbf16>
    %393 = vector.shape_cast %392 : vector<1x128x384xbf16> to vector<128x384xbf16>
    %cst_170 = arith.constant dense<0.000000e+00> : vector<16x384xf32>
    %394 = tpu.matmul %391, %393, %cst_170 {dimension_numbers = #tpu.dot_dimension_numbers<[1], [0], [0], [1], [0, 0, 1, 1], [], []>} : vector<16x128xbf16>, vector<128x384xbf16>, vector<16x384xf32> -> vector<16x384xf32>
    %c2_171 = arith.constant 2 : index
    %c0_172 = arith.constant 0 : index
    %c0_173 = arith.constant 0 : index
    %395 = vector.load %arg8[%c2_171, %c0_172, %c0_173] : memref<3x1x384xf32, #tpu.memory_space<vmem>>, vector<1x1x384xf32>
    %396 = vector.shape_cast %395 : vector<1x1x384xf32> to vector<1x384xf32>
    %397 = vector.broadcast %396 : vector<1x384xf32> to vector<16x384xf32>
    %398 = arith.addf %394, %397 : vector<16x384xf32>
    %399 = arith.truncf %398 : vector<16x384xf32> to vector<16x384xbf16>
    %c2_174 = arith.constant 2 : index
    %c0_175 = arith.constant 0 : index
    %c0_176 = arith.constant 0 : index
    %400 = vector.load %arg9[%c2_174, %c0_175, %c0_176] : memref<3x128x128xbf16, #tpu.memory_space<vmem>>, vector<1x128x128xbf16>
    %401 = vector.shape_cast %400 : vector<1x128x128xbf16> to vector<128x128xbf16>
    %cst_177 = arith.constant 0.000000e+00 : f32
    %402 = vector.broadcast %cst_177 : f32 to vector<16x128xf32>
    %403 = vector.extract_strided_slice %399 {offsets = [0, 0], sizes = [16, 32], strides = [1, 1]} : vector<16x384xbf16> to vector<16x32xbf16>
    %404 = vector.extract_strided_slice %399 {offsets = [0, 128], sizes = [16, 32], strides = [1, 1]} : vector<16x384xbf16> to vector<16x32xbf16>
    %405 = vector.extract_strided_slice %399 {offsets = [0, 256], sizes = [16, 32], strides = [1, 1]} : vector<16x384xbf16> to vector<16x32xbf16>
    %cst_178 = arith.constant dense<0.000000e+00> : vector<16x16xf32>
    %406 = tpu.matmul %403, %404, %cst_178 {dimension_numbers = #tpu.dot_dimension_numbers<[1], [1], [0], [0], [0, 0, 1, 0], [], []>} : vector<16x32xbf16>, vector<16x32xbf16>, vector<16x16xf32> -> vector<16x16xf32>
    %407 = arith.addf %406, %5 : vector<16x16xf32>
    %cst_179 = arith.constant dense<0xFF800000> : vector<16xf32>
    %408 = vector.multi_reduction <maximumf>, %407, %cst_179 [1] : vector<16x16xf32> to vector<16xf32>
    %409 = vector.shape_cast %408 : vector<16xf32> to vector<16x1xf32>
    %410 = vector.broadcast %409 : vector<16x1xf32> to vector<16x16xf32>
    %411 = arith.subf %407, %410 : vector<16x16xf32>
    %412 = math.exp %411 : vector<16x16xf32>
    %cst_180 = arith.constant dense<0.000000e+00> : vector<16xf32>
    %413 = vector.multi_reduction <add>, %412, %cst_180 [1] : vector<16x16xf32> to vector<16xf32>
    %414 = vector.shape_cast %413 : vector<16xf32> to vector<16x1xf32>
    %415 = tpu.reciprocal %414 {approx = true} : vector<16x1xf32> -> vector<16x1xf32>
    %416 = vector.broadcast %415 : vector<16x1xf32> to vector<16x16xf32>
    %417 = arith.mulf %412, %416 : vector<16x16xf32>
    %418 = arith.truncf %417 : vector<16x16xf32> to vector<16x16xbf16>
    %cst_181 = arith.constant dense<0.000000e+00> : vector<16x32xf32>
    %419 = tpu.matmul %418, %405, %cst_181 {dimension_numbers = #tpu.dot_dimension_numbers<[1], [0], [0], [1], [0, 0, 1, 1], [], []>} : vector<16x16xbf16>, vector<16x32xbf16>, vector<16x32xf32> -> vector<16x32xf32>
    %420 = arith.truncf %419 : vector<16x32xf32> to vector<16x32xbf16>
    %421 = vector.extract_strided_slice %401 {offsets = [0, 0], sizes = [32, 128], strides = [1, 1]} : vector<128x128xbf16> to vector<32x128xbf16>
    %cst_182 = arith.constant dense<0.000000e+00> : vector<16x128xf32>
    %422 = tpu.matmul %420, %421, %cst_182 {dimension_numbers = #tpu.dot_dimension_numbers<[1], [0], [0], [1], [0, 0, 1, 1], [], []>} : vector<16x32xbf16>, vector<32x128xbf16>, vector<16x128xf32> -> vector<16x128xf32>
    %423 = arith.addf %402, %422 : vector<16x128xf32>
    %424 = vector.extract_strided_slice %399 {offsets = [0, 32], sizes = [16, 32], strides = [1, 1]} : vector<16x384xbf16> to vector<16x32xbf16>
    %425 = vector.extract_strided_slice %399 {offsets = [0, 160], sizes = [16, 32], strides = [1, 1]} : vector<16x384xbf16> to vector<16x32xbf16>
    %426 = vector.extract_strided_slice %399 {offsets = [0, 288], sizes = [16, 32], strides = [1, 1]} : vector<16x384xbf16> to vector<16x32xbf16>
    %cst_183 = arith.constant dense<0.000000e+00> : vector<16x16xf32>
    %427 = tpu.matmul %424, %425, %cst_183 {dimension_numbers = #tpu.dot_dimension_numbers<[1], [1], [0], [0], [0, 0, 1, 0], [], []>} : vector<16x32xbf16>, vector<16x32xbf16>, vector<16x16xf32> -> vector<16x16xf32>
    %428 = arith.addf %427, %5 : vector<16x16xf32>
    %cst_184 = arith.constant dense<0xFF800000> : vector<16xf32>
    %429 = vector.multi_reduction <maximumf>, %428, %cst_184 [1] : vector<16x16xf32> to vector<16xf32>
    %430 = vector.shape_cast %429 : vector<16xf32> to vector<16x1xf32>
    %431 = vector.broadcast %430 : vector<16x1xf32> to vector<16x16xf32>
    %432 = arith.subf %428, %431 : vector<16x16xf32>
    %433 = math.exp %432 : vector<16x16xf32>
    %cst_185 = arith.constant dense<0.000000e+00> : vector<16xf32>
    %434 = vector.multi_reduction <add>, %433, %cst_185 [1] : vector<16x16xf32> to vector<16xf32>
    %435 = vector.shape_cast %434 : vector<16xf32> to vector<16x1xf32>
    %436 = tpu.reciprocal %435 {approx = true} : vector<16x1xf32> -> vector<16x1xf32>
    %437 = vector.broadcast %436 : vector<16x1xf32> to vector<16x16xf32>
    %438 = arith.mulf %433, %437 : vector<16x16xf32>
    %439 = arith.truncf %438 : vector<16x16xf32> to vector<16x16xbf16>
    %cst_186 = arith.constant dense<0.000000e+00> : vector<16x32xf32>
    %440 = tpu.matmul %439, %426, %cst_186 {dimension_numbers = #tpu.dot_dimension_numbers<[1], [0], [0], [1], [0, 0, 1, 1], [], []>} : vector<16x16xbf16>, vector<16x32xbf16>, vector<16x32xf32> -> vector<16x32xf32>
    %441 = arith.truncf %440 : vector<16x32xf32> to vector<16x32xbf16>
    %442 = vector.extract_strided_slice %401 {offsets = [32, 0], sizes = [32, 128], strides = [1, 1]} : vector<128x128xbf16> to vector<32x128xbf16>
    %cst_187 = arith.constant dense<0.000000e+00> : vector<16x128xf32>
    %443 = tpu.matmul %441, %442, %cst_187 {dimension_numbers = #tpu.dot_dimension_numbers<[1], [0], [0], [1], [0, 0, 1, 1], [], []>} : vector<16x32xbf16>, vector<32x128xbf16>, vector<16x128xf32> -> vector<16x128xf32>
    %444 = arith.addf %423, %443 : vector<16x128xf32>
    %445 = vector.extract_strided_slice %399 {offsets = [0, 64], sizes = [16, 32], strides = [1, 1]} : vector<16x384xbf16> to vector<16x32xbf16>
    %446 = vector.extract_strided_slice %399 {offsets = [0, 192], sizes = [16, 32], strides = [1, 1]} : vector<16x384xbf16> to vector<16x32xbf16>
    %447 = vector.extract_strided_slice %399 {offsets = [0, 320], sizes = [16, 32], strides = [1, 1]} : vector<16x384xbf16> to vector<16x32xbf16>
    %cst_188 = arith.constant dense<0.000000e+00> : vector<16x16xf32>
    %448 = tpu.matmul %445, %446, %cst_188 {dimension_numbers = #tpu.dot_dimension_numbers<[1], [1], [0], [0], [0, 0, 1, 0], [], []>} : vector<16x32xbf16>, vector<16x32xbf16>, vector<16x16xf32> -> vector<16x16xf32>
    %449 = arith.addf %448, %5 : vector<16x16xf32>
    %cst_189 = arith.constant dense<0xFF800000> : vector<16xf32>
    %450 = vector.multi_reduction <maximumf>, %449, %cst_189 [1] : vector<16x16xf32> to vector<16xf32>
    %451 = vector.shape_cast %450 : vector<16xf32> to vector<16x1xf32>
    %452 = vector.broadcast %451 : vector<16x1xf32> to vector<16x16xf32>
    %453 = arith.subf %449, %452 : vector<16x16xf32>
    %454 = math.exp %453 : vector<16x16xf32>
    %cst_190 = arith.constant dense<0.000000e+00> : vector<16xf32>
    %455 = vector.multi_reduction <add>, %454, %cst_190 [1] : vector<16x16xf32> to vector<16xf32>
    %456 = vector.shape_cast %455 : vector<16xf32> to vector<16x1xf32>
    %457 = tpu.reciprocal %456 {approx = true} : vector<16x1xf32> -> vector<16x1xf32>
    %458 = vector.broadcast %457 : vector<16x1xf32> to vector<16x16xf32>
    %459 = arith.mulf %454, %458 : vector<16x16xf32>
    %460 = arith.truncf %459 : vector<16x16xf32> to vector<16x16xbf16>
    %cst_191 = arith.constant dense<0.000000e+00> : vector<16x32xf32>
    %461 = tpu.matmul %460, %447, %cst_191 {dimension_numbers = #tpu.dot_dimension_numbers<[1], [0], [0], [1], [0, 0, 1, 1], [], []>} : vector<16x16xbf16>, vector<16x32xbf16>, vector<16x32xf32> -> vector<16x32xf32>
    %462 = arith.truncf %461 : vector<16x32xf32> to vector<16x32xbf16>
    %463 = vector.extract_strided_slice %401 {offsets = [64, 0], sizes = [32, 128], strides = [1, 1]} : vector<128x128xbf16> to vector<32x128xbf16>
    %cst_192 = arith.constant dense<0.000000e+00> : vector<16x128xf32>
    %464 = tpu.matmul %462, %463, %cst_192 {dimension_numbers = #tpu.dot_dimension_numbers<[1], [0], [0], [1], [0, 0, 1, 1], [], []>} : vector<16x32xbf16>, vector<32x128xbf16>, vector<16x128xf32> -> vector<16x128xf32>
    %465 = arith.addf %444, %464 : vector<16x128xf32>
    %466 = vector.extract_strided_slice %399 {offsets = [0, 96], sizes = [16, 32], strides = [1, 1]} : vector<16x384xbf16> to vector<16x32xbf16>
    %467 = vector.extract_strided_slice %399 {offsets = [0, 224], sizes = [16, 32], strides = [1, 1]} : vector<16x384xbf16> to vector<16x32xbf16>
    %468 = vector.extract_strided_slice %399 {offsets = [0, 352], sizes = [16, 32], strides = [1, 1]} : vector<16x384xbf16> to vector<16x32xbf16>
    %cst_193 = arith.constant dense<0.000000e+00> : vector<16x16xf32>
    %469 = tpu.matmul %466, %467, %cst_193 {dimension_numbers = #tpu.dot_dimension_numbers<[1], [1], [0], [0], [0, 0, 1, 0], [], []>} : vector<16x32xbf16>, vector<16x32xbf16>, vector<16x16xf32> -> vector<16x16xf32>
    %470 = arith.addf %469, %5 : vector<16x16xf32>
    %cst_194 = arith.constant dense<0xFF800000> : vector<16xf32>
    %471 = vector.multi_reduction <maximumf>, %470, %cst_194 [1] : vector<16x16xf32> to vector<16xf32>
    %472 = vector.shape_cast %471 : vector<16xf32> to vector<16x1xf32>
    %473 = vector.broadcast %472 : vector<16x1xf32> to vector<16x16xf32>
    %474 = arith.subf %470, %473 : vector<16x16xf32>
    %475 = math.exp %474 : vector<16x16xf32>
    %cst_195 = arith.constant dense<0.000000e+00> : vector<16xf32>
    %476 = vector.multi_reduction <add>, %475, %cst_195 [1] : vector<16x16xf32> to vector<16xf32>
    %477 = vector.shape_cast %476 : vector<16xf32> to vector<16x1xf32>
    %478 = tpu.reciprocal %477 {approx = true} : vector<16x1xf32> -> vector<16x1xf32>
    %479 = vector.broadcast %478 : vector<16x1xf32> to vector<16x16xf32>
    %480 = arith.mulf %475, %479 : vector<16x16xf32>
    %481 = arith.truncf %480 : vector<16x16xf32> to vector<16x16xbf16>
    %cst_196 = arith.constant dense<0.000000e+00> : vector<16x32xf32>
    %482 = tpu.matmul %481, %468, %cst_196 {dimension_numbers = #tpu.dot_dimension_numbers<[1], [0], [0], [1], [0, 0, 1, 1], [], []>} : vector<16x16xbf16>, vector<16x32xbf16>, vector<16x32xf32> -> vector<16x32xf32>
    %483 = arith.truncf %482 : vector<16x32xf32> to vector<16x32xbf16>
    %484 = vector.extract_strided_slice %401 {offsets = [96, 0], sizes = [32, 128], strides = [1, 1]} : vector<128x128xbf16> to vector<32x128xbf16>
    %cst_197 = arith.constant dense<0.000000e+00> : vector<16x128xf32>
    %485 = tpu.matmul %483, %484, %cst_197 {dimension_numbers = #tpu.dot_dimension_numbers<[1], [0], [0], [1], [0, 0, 1, 1], [], []>} : vector<16x32xbf16>, vector<32x128xbf16>, vector<16x128xf32> -> vector<16x128xf32>
    %486 = arith.addf %465, %485 : vector<16x128xf32>
    %487 = arith.addf %363, %486 : vector<16x128xf32>
    %c2_198 = arith.constant 2 : index
    %c0_199 = arith.constant 0 : index
    %c0_200 = arith.constant 0 : index
    %488 = vector.load %arg10[%c2_198, %c0_199, %c0_200] : memref<3x1x128xf32, #tpu.memory_space<vmem>>, vector<1x1x128xf32>
    %489 = vector.shape_cast %488 : vector<1x1x128xf32> to vector<1x128xf32>
    %490 = vector.broadcast %489 : vector<1x128xf32> to vector<16x128xf32>
    %491 = arith.addf %487, %490 : vector<16x128xf32>
    %c2_201 = arith.constant 2 : index
    %c0_202 = arith.constant 0 : index
    %c0_203 = arith.constant 0 : index
    %492 = vector.load %arg11[%c2_201, %c0_202, %c0_203] : memref<3x1x128xf32, #tpu.memory_space<vmem>>, vector<1x1x128xf32>
    %493 = vector.shape_cast %492 : vector<1x1x128xf32> to vector<1x128xf32>
    %c2_204 = arith.constant 2 : index
    %c0_205 = arith.constant 0 : index
    %c0_206 = arith.constant 0 : index
    %494 = vector.load %arg12[%c2_204, %c0_205, %c0_206] : memref<3x1x128xf32, #tpu.memory_space<vmem>>, vector<1x1x128xf32>
    %495 = vector.shape_cast %494 : vector<1x1x128xf32> to vector<1x128xf32>
    %cst_207 = arith.constant dense<0.000000e+00> : vector<16xf32>
    %496 = vector.multi_reduction <add>, %491, %cst_207 [1] : vector<16x128xf32> to vector<16xf32>
    %497 = vector.shape_cast %496 : vector<16xf32> to vector<16x1xf32>
    %cst_208 = arith.constant 1.280000e+02 : f32
    %498 = vector.broadcast %cst_208 : f32 to vector<16x1xf32>
    %499 = arith.divf %497, %498 : vector<16x1xf32>
    %500 = vector.broadcast %499 : vector<16x1xf32> to vector<16x128xf32>
    %501 = arith.subf %491, %500 : vector<16x128xf32>
    %502 = arith.mulf %501, %501 : vector<16x128xf32>
    %cst_209 = arith.constant dense<0.000000e+00> : vector<16xf32>
    %503 = vector.multi_reduction <add>, %502, %cst_209 [1] : vector<16x128xf32> to vector<16xf32>
    %504 = vector.shape_cast %503 : vector<16xf32> to vector<16x1xf32>
    %cst_210 = arith.constant 1.280000e+02 : f32
    %505 = vector.broadcast %cst_210 : f32 to vector<16x1xf32>
    %506 = arith.divf %504, %505 : vector<16x1xf32>
    %cst_211 = arith.constant 9.99999997E-7 : f32
    %507 = vector.broadcast %cst_211 : f32 to vector<16x1xf32>
    %508 = arith.addf %506, %507 : vector<16x1xf32>
    %509 = math.rsqrt %508 : vector<16x1xf32>
    %510 = vector.broadcast %509 : vector<16x1xf32> to vector<16x128xf32>
    %511 = arith.mulf %501, %510 : vector<16x128xf32>
    %512 = vector.broadcast %493 : vector<1x128xf32> to vector<16x128xf32>
    %513 = arith.mulf %511, %512 : vector<16x128xf32>
    %514 = vector.broadcast %495 : vector<1x128xf32> to vector<16x128xf32>
    %515 = arith.addf %513, %514 : vector<16x128xf32>
    %516 = arith.truncf %515 : vector<16x128xf32> to vector<16x128xbf16>
    %c2_212 = arith.constant 2 : index
    %c0_213 = arith.constant 0 : index
    %c0_214 = arith.constant 0 : index
    %517 = vector.load %arg13[%c2_212, %c0_213, %c0_214] : memref<3x128x512xbf16, #tpu.memory_space<vmem>>, vector<1x128x512xbf16>
    %518 = vector.shape_cast %517 : vector<1x128x512xbf16> to vector<128x512xbf16>
    %cst_215 = arith.constant dense<0.000000e+00> : vector<16x512xf32>
    %519 = tpu.matmul %516, %518, %cst_215 {dimension_numbers = #tpu.dot_dimension_numbers<[1], [0], [0], [1], [0, 0, 1, 1], [], []>} : vector<16x128xbf16>, vector<128x512xbf16>, vector<16x512xf32> -> vector<16x512xf32>
    %c2_216 = arith.constant 2 : index
    %c0_217 = arith.constant 0 : index
    %c0_218 = arith.constant 0 : index
    %520 = vector.load %arg14[%c2_216, %c0_217, %c0_218] : memref<3x1x512xf32, #tpu.memory_space<vmem>>, vector<1x1x512xf32>
    %521 = vector.shape_cast %520 : vector<1x1x512xf32> to vector<1x512xf32>
    %522 = vector.broadcast %521 : vector<1x512xf32> to vector<16x512xf32>
    %523 = arith.addf %519, %522 : vector<16x512xf32>
    %524 = arith.mulf %523, %523 : vector<16x512xf32>
    %525 = arith.mulf %523, %524 : vector<16x512xf32>
    %cst_219 = arith.constant 4.471500e-02 : f32
    %526 = vector.broadcast %cst_219 : f32 to vector<16x512xf32>
    %527 = arith.mulf %526, %525 : vector<16x512xf32>
    %528 = arith.addf %523, %527 : vector<16x512xf32>
    %cst_220 = arith.constant 0.797884583 : f32
    %529 = vector.broadcast %cst_220 : f32 to vector<16x512xf32>
    %530 = arith.mulf %529, %528 : vector<16x512xf32>
    %531 = math.tanh %530 : vector<16x512xf32>
    %cst_221 = arith.constant 1.000000e+00 : f32
    %532 = vector.broadcast %cst_221 : f32 to vector<16x512xf32>
    %533 = arith.addf %532, %531 : vector<16x512xf32>
    %cst_222 = arith.constant 5.000000e-01 : f32
    %534 = vector.broadcast %cst_222 : f32 to vector<16x512xf32>
    %535 = arith.mulf %534, %533 : vector<16x512xf32>
    %536 = arith.mulf %523, %535 : vector<16x512xf32>
    %537 = arith.truncf %536 : vector<16x512xf32> to vector<16x512xbf16>
    %c2_223 = arith.constant 2 : index
    %c0_224 = arith.constant 0 : index
    %c0_225 = arith.constant 0 : index
    %538 = vector.load %arg15[%c2_223, %c0_224, %c0_225] : memref<3x512x128xbf16, #tpu.memory_space<vmem>>, vector<1x512x128xbf16>
    %539 = vector.shape_cast %538 : vector<1x512x128xbf16> to vector<512x128xbf16>
    %cst_226 = arith.constant dense<0.000000e+00> : vector<16x128xf32>
    %540 = tpu.matmul %537, %539, %cst_226 {dimension_numbers = #tpu.dot_dimension_numbers<[1], [0], [0], [1], [0, 0, 1, 1], [], []>} : vector<16x512xbf16>, vector<512x128xbf16>, vector<16x128xf32> -> vector<16x128xf32>
    %c2_227 = arith.constant 2 : index
    %c0_228 = arith.constant 0 : index
    %c0_229 = arith.constant 0 : index
    %541 = vector.load %arg16[%c2_227, %c0_228, %c0_229] : memref<3x1x128xf32, #tpu.memory_space<vmem>>, vector<1x1x128xf32>
    %542 = vector.shape_cast %541 : vector<1x1x128xf32> to vector<1x128xf32>
    %543 = vector.broadcast %542 : vector<1x128xf32> to vector<16x128xf32>
    %544 = arith.addf %540, %543 : vector<16x128xf32>
    %545 = arith.addf %491, %544 : vector<16x128xf32>
    %c1_230 = arith.constant 1 : index
    %c0_231 = arith.constant 0 : index
    %c0_232 = arith.constant 0 : index
    %546 = vector.load %arg17[%c1_230, %c0_231, %c0_232] : memref<2x16x128xf32, #tpu.memory_space<vmem>>, vector<1x16x128xf32>
    %547 = vector.shape_cast %546 : vector<1x16x128xf32> to vector<16x128xf32>
    %548 = vector.shape_cast %545 : vector<16x128xf32> to vector<1x16x128xf32>
    tpu.vector_store %arg17[%c1_230, %c0_231, %c0_232], %548 {strides = array<i32>} : memref<2x16x128xf32, #tpu.memory_space<vmem>>, vector<1x16x128xf32>,
    return
  }
  func.func @transform_0(%arg0: i32) -> (i32, i32) {
    %c0_i32 = arith.constant 0 : i32
    %c0_i32_0 = arith.constant 0 : i32
    %c0_i32_1 = arith.constant 0 : i32
    return %c0_i32, %c0_i32_0 : i32, i32
  }
  func.func @transform_1(%arg0: i32) -> (i32, i32) {
    %c0_i32 = arith.constant 0 : i32
    %c0_i32_0 = arith.constant 0 : i32
    %c0_i32_1 = arith.constant 0 : i32
    return %c0_i32, %c0_i32_0 : i32, i32
  }
  func.func @transform_2(%arg0: i32) -> (i32, i32) {
    %c0_i32 = arith.constant 0 : i32
    %c0_i32_0 = arith.constant 0 : i32
    %c0_i32_1 = arith.constant 0 : i32
    return %c0_i32, %c0_i32_0 : i32, i32
  }
  func.func @transform_3(%arg0: i32) -> (i32, i32) {
    %c0_i32 = arith.constant 0 : i32
    %c0_i32_0 = arith.constant 0 : i32
    %c0_i32_1 = arith.constant 0 : i32
    return %c0_i32, %c0_i32_0 : i32, i32
  }
  func.func @transform_4(%arg0: i32) -> (i32, i32, i32) {
    %c0_i32 = arith.constant 0 : i32
    %c0_i32_0 = arith.constant 0 : i32
    %c0_i32_1 = arith.constant 0 : i32
    %c0_i32_2 = arith.constant 0 : i32
    return %c0_i32, %c0_i32_0, %c0_i32_1 : i32, i32, i32
  }
  func.func @transform_5(%arg0: i32) -> (i32, i32, i32) {
    %c0_i32 = arith.constant 0 : i32
    %c0_i32_0 = arith.constant 0 : i32
    %c0_i32_1 = arith.constant 0 : i32
    %c0_i32_2 = arith.constant 0 : i32
    return %c0_i32, %c0_i32_0, %c0_i32_1 : i32, i32, i32
  }
  func.func @transform_6(%arg0: i32) -> (i32, i32, i32) {
    %c0_i32 = arith.constant 0 : i32
    %c0_i32_0 = arith.constant 0 : i32
    %c0_i32_1 = arith.constant 0 : i32
    %c0_i32_2 = arith.constant 0 : i32
    return %c0_i32, %c0_i32_0, %c0_i32_1 : i32, i32, i32
  }
  func.func @transform_7(%arg0: i32) -> (i32, i32, i32) {
    %c0_i32 = arith.constant 0 : i32
    %c0_i32_0 = arith.constant 0 : i32
    %c0_i32_1 = arith.constant 0 : i32
    %c0_i32_2 = arith.constant 0 : i32
    return %c0_i32, %c0_i32_0, %c0_i32_1 : i32, i32, i32
  }
  func.func @transform_8(%arg0: i32) -> (i32, i32, i32) {
    %c0_i32 = arith.constant 0 : i32
    %c0_i32_0 = arith.constant 0 : i32
    %c0_i32_1 = arith.constant 0 : i32
    %c0_i32_2 = arith.constant 0 : i32
    return %c0_i32, %c0_i32_0, %c0_i32_1 : i32, i32, i32
  }
  func.func @transform_9(%arg0: i32) -> (i32, i32, i32) {
    %c0_i32 = arith.constant 0 : i32
    %c0_i32_0 = arith.constant 0 : i32
    %c0_i32_1 = arith.constant 0 : i32
    %c0_i32_2 = arith.constant 0 : i32
    return %c0_i32, %c0_i32_0, %c0_i32_1 : i32, i32, i32
  }
  func.func @transform_10(%arg0: i32) -> (i32, i32, i32) {
    %c0_i32 = arith.constant 0 : i32
    %c0_i32_0 = arith.constant 0 : i32
    %c0_i32_1 = arith.constant 0 : i32
    %c0_i32_2 = arith.constant 0 : i32
    return %c0_i32, %c0_i32_0, %c0_i32_1 : i32, i32, i32
  }
  func.func @transform_11(%arg0: i32) -> (i32, i32, i32) {
    %c0_i32 = arith.constant 0 : i32
    %c0_i32_0 = arith.constant 0 : i32
    %c0_i32_1 = arith.constant 0 : i32
    %c0_i32_2 = arith.constant 0 : i32
    return %c0_i32, %c0_i32_0, %c0_i32_1 : i32, i32, i32
  }
  func.func @transform_12(%arg0: i32) -> (i32, i32, i32) {
    %c0_i32 = arith.constant 0 : i32
    %c0_i32_0 = arith.constant 0 : i32
    %c0_i32_1 = arith.constant 0 : i32
    %c0_i32_2 = arith.constant 0 : i32
    return %c0_i32, %c0_i32_0, %c0_i32_1 : i32, i32, i32
  }
  func.func @transform_13(%arg0: i32) -> (i32, i32, i32) {
    %c0_i32 = arith.constant 0 : i32
    %c0_i32_0 = arith.constant 0 : i32
    %c0_i32_1 = arith.constant 0 : i32
    %c0_i32_2 = arith.constant 0 : i32
    return %c0_i32, %c0_i32_0, %c0_i32_1 : i32, i32, i32
  }
  func.func @transform_14(%arg0: i32) -> (i32, i32, i32) {
    %c0_i32 = arith.constant 0 : i32
    %c0_i32_0 = arith.constant 0 : i32
    %c0_i32_1 = arith.constant 0 : i32
    %c0_i32_2 = arith.constant 0 : i32
    return %c0_i32, %c0_i32_0, %c0_i32_1 : i32, i32, i32
  }
  func.func @transform_15(%arg0: i32) -> (i32, i32, i32) {
    %c0_i32 = arith.constant 0 : i32
    %c0_i32_0 = arith.constant 0 : i32
    %c0_i32_1 = arith.constant 0 : i32
    %c0_i32_2 = arith.constant 0 : i32
    return %c0_i32, %c0_i32_0, %c0_i32_1 : i32, i32, i32
  }
  func.func @transform_16(%arg0: i32) -> (i32, i32, i32) {
    %c0_i32 = arith.constant 0 : i32
    %c0_i32_0 = arith.constant 0 : i32
    %c0_i32_1 = arith.constant 0 : i32
    %c0_i32_2 = arith.constant 0 : i32
    return %c0_i32, %c0_i32_0, %c0_i32_1 : i32, i32, i32
  }
}

</mosaic_0001>

<llo_original>
// kernel: tpu_custom_call.1
$region0: #{tpu_custom_call.1}
  #allocation0 [shape = 'u32[]', space=smem, size = 0x4, offset = 0x4, fixed_abs, tag = 'smem constant byte address 0x4 - core index']
  #allocation1 [shape = 'u32[144,128]{1,0:T(1,128)}', space=vmem, size = 0x12000, scoped, tag = 'internal scratch']
  %s0 = inlined_call_operand.hbm [shape: bf16[16,192], index: 0, kind: input, shape index: {}]
  %s1 = inlined_call_operand.hbm [shape: bf16[192,128], index: 1, kind: input, shape index: {}]
  %s2 = inlined_call_operand.hbm [shape: f32[16,128], index: 2, kind: input, shape index: {}]
  %s3 = inlined_call_operand.hbm [shape: f32[16,16], index: 3, kind: input, shape index: {}]
  %s4 = inlined_call_operand.hbm [shape: f32[3,1,128], index: 4, kind: input, shape index: {}]
  %s5 = inlined_call_operand.hbm [shape: f32[3,1,128], index: 5, kind: input, shape index: {}]
  %s6 = inlined_call_operand.hbm [shape: bf16[3,128,384], index: 6, kind: input, shape index: {}]
  %s7 = inlined_call_operand.vmem [shape: f32[3,1,384], index: 7, kind: input, shape index: {}]
  %s8 = inlined_call_operand.hbm [shape: bf16[3,128,128], index: 8, kind: input, shape index: {}]
  %s9 = inlined_call_operand.hbm [shape: f32[3,1,128], index: 9, kind: input, shape index: {}]
  %s10 = inlined_call_operand.hbm [shape: f32[3,1,128], index: 10, kind: input, shape index: {}]
  %s11 = inlined_call_operand.hbm [shape: f32[3,1,128], index: 11, kind: input, shape index: {}]
  %s12 = inlined_call_operand.hbm [shape: bf16[3,128,512], index: 12, kind: input, shape index: {}]
  %s13 = inlined_call_operand.vmem [shape: f32[3,1,512], index: 13, kind: input, shape index: {}]
  %s14 = inlined_call_operand.hbm [shape: bf16[3,512,128], index: 14, kind: input, shape index: {}]
  %s15 = inlined_call_operand.vmem [shape: f32[3,1,128], index: 15, kind: input, shape index: {}]
  %s16 = inlined_call_operand.hbm [shape: f32[2,16,128], index: 16, kind: output, shape index: {}]
  %s17 = sld [smem:[#allocation0]]
  $region126: #{tpu_custom_call.1} parent=0
    _
  %s19 = ssub.s32 1, %s17
  %s20 = scalar_select 0, %s19, %s17
  $region1: #{tpu_custom_call.1} parent=0
    #allocation2 [shape = 'u8[8192]{0}', space=vmem, size = 0x2000, scoped, tag = 'input window, operand 0, single buffered']
    #allocation3 [shape = 's32[1]{0}', space=sflag, size = 0x4, scoped, tag = 'scoped memory for tpu_custom_call.1']
    #allocation4 [shape = 's32[1]{0}', space=sflag, size = 0x4, scoped, tag = 'scoped memory for tpu_custom_call.1']
    #allocation5 [shape = 'u8[49152]{0}', space=vmem, size = 0xc000, scoped, tag = 'input window, operand 1, single buffered']
    #allocation6 [shape = 's32[1]{0}', space=sflag, size = 0x4, scoped, tag = 'scoped memory for tpu_custom_call.1']
    #allocation7 [shape = 'u8[8192]{0}', space=vmem, size = 0x2000, scoped, tag = 'input window, operand 2, single buffered']
    #allocation8 [shape = 'u8[8192]{0}', space=vmem, size = 0x2000, scoped, tag = 'input window, operand 3, single buffered']
    #allocation9 [shape = 's32[1]{0}', space=sflag, size = 0x4, scoped, tag = 'scoped memory for tpu_custom_call.1']
    #allocation10 [shape = 'u8[1536]{0}', space=vmem, size = 0x800, scoped, tag = 'input window, operand 4, single buffered']
    #allocation11 [shape = 'u8[1536]{0}', space=vmem, size = 0x800, scoped, tag = 'input window, operand 5, single buffered']
    #allocation12 [shape = 's32[1]{0}', space=sflag, size = 0x4, scoped, tag = 'scoped memory for tpu_custom_call.1']
    #allocation13 [shape = 'u8[294912]{0}', space=vmem, size = 0x48000, scoped, tag = 'input window, operand 6, single buffered']
    #allocation14 [shape = 'u8[98304]{0}', space=vmem, size = 0x18000, scoped, tag = 'input window, operand 8, single buffered']
    #allocation15 [shape = 's32[1]{0}', space=sflag, size = 0x4, scoped, tag = 'scoped memory for tpu_custom_call.1']
    #allocation16 [shape = 'u8[1536]{0}', space=vmem, size = 0x800, scoped, tag = 'input window, operand 9, single buffered']
    #allocation17 [shape = 'u8[1536]{0}', space=vmem, size = 0x800, scoped, tag = 'input window, operand 10, single buffered']
    #allocation18 [shape = 's32[1]{0}', space=sflag, size = 0x4, scoped, tag = 'scoped memory for tpu_custom_call.1']
    #allocation19 [shape = 'u8[1536]{0}', space=vmem, size = 0x800, scoped, tag = 'input window, operand 11, single buffered']
    #allocation20 [shape = 'u8[393216]{0}', space=vmem, size = 0x60000, scoped, tag = 'input window, operand 12, single buffered']
    #allocation21 [shape = 's32[1]{0}', space=sflag, size = 0x4, scoped, tag = 'scoped memory for tpu_custom_call.1']
    #allocation22 [shape = 'u8[393216]{0}', space=vmem, size = 0x60000, scoped, tag = 'input window, operand 14, single buffered']
    #allocation23 [shape = 'u8[16384]{0}', space=vmem, size = 0x4000, scoped, tag = 'output window, operand 0, single buffered']
    %21 = vsyncpa [#allocation3], 0
    %22 = vsyncpa [#allocation6], 0
    %23 = vsyncpa [#allocation9], 0
    %24 = vsyncpa [#allocation12], 0
    %25 = vsyncpa [#allocation15], 0
    %26 = vsyncpa [#allocation18], 0
    %27 = vsyncpa [#allocation21], 0
    %28 = vsyncpa [#allocation4], 0
    // Predicated region
    $region2: #{tpu_custom_call.1} parent=1 // pred_check
      _
    $region3: #{tpu_custom_call.1} parent=1 // pred_check_branch
      %30 = sbr.rel (0) target = $region5
    $region4: #{tpu_custom_call.1} parent=1 // pred_region
      %s32 = ssub.s32 256, 256
      %33 = vsyncadd [#allocation3], %s32
      %s34 = sshll.u32 [#allocation2], 4
      %s35 = int_to_ptr.vmem [resolvable:$true] %s34
      %40 = dma.hbm_to_vmem [thread:$0]  %s0, 256, %s35, [#allocation3], 128, 128, 8
    $region5: #{tpu_custom_call.1} parent=1 // pred_fallthru
      _
    // Predicated region
    $region6: #{tpu_custom_call.1} parent=1 // pred_check
      _
    $region7: #{tpu_custom_call.1} parent=1 // pred_check_branch
      %42 = sbr.rel (0) target = $region9
    $region8: #{tpu_custom_call.1} parent=1 // pred_region
      %s44 = ssub.s32 1536, 1536
      %45 = vsyncadd [#allocation6], %s44
      %s46 = sshll.u32 [#allocation5], 4
      %s47 = int_to_ptr.vmem [resolvable:$true] %s46
      %52 = dma.hbm_to_vmem [thread:$0]  %s1, 1536, %s47, [#allocation6], 64, 64, 4
    $region9: #{tpu_custom_call.1} parent=1 // pred_fallthru
      _
    // Predicated region
    $region10: #{tpu_custom_call.1} parent=1 // pred_check
      _
    $region11: #{tpu_custom_call.1} parent=1 // pred_check_branch
      %54 = sbr.rel (0) target = $region13
    $region12: #{tpu_custom_call.1} parent=1 // pred_region
      %s56 = ssub.s32 256, 256
      %57 = vsyncadd [#allocation6], %s56
      %s58 = sshll.u32 [#allocation7], 4
      %s59 = int_to_ptr.vmem [resolvable:$true] %s58
      %64 = dma.hbm_to_vmem [thread:$0]  %s2, 256, %s59, [#allocation6], 128, 128, 8
    $region13: #{tpu_custom_call.1} parent=1 // pred_fallthru
      _
    // Predicated region
    $region14: #{tpu_custom_call.1} parent=1 // pred_check
      _
    $region15: #{tpu_custom_call.1} parent=1 // pred_check_branch
      %66 = sbr.rel (0) target = $region17
    $region16: #{tpu_custom_call.1} parent=1 // pred_region
      %s68 = ssub.s32 256, 256
      %69 = vsyncadd [#allocation9], %s68
      %s70 = sshll.u32 [#allocation8], 4
      %s71 = int_to_ptr.vmem [resolvable:$true] %s70
      %76 = dma.hbm_to_vmem [thread:$0]  %s3, 256, %s71, [#allocation9], 128, 128, 8
    $region17: #{tpu_custom_call.1} parent=1 // pred_fallthru
      _
    // Predicated region
    $region18: #{tpu_custom_call.1} parent=1 // pred_check
      _
    $region19: #{tpu_custom_call.1} parent=1 // pred_check_branch
      %78 = sbr.rel (0) target = $region21
    $region20: #{tpu_custom_call.1} parent=1 // pred_region
      %s80 = ssub.s32 48, 48
      %81 = vsyncadd [#allocation9], %s80
      %s82 = sshll.u32 [#allocation10], 4
      %s83 = int_to_ptr.vmem [resolvable:$true] %s82
      %88 = dma.hbm_to_vmem [thread:$0]  %s4, 48, %s83, [#allocation9], 16, 16, 1
    $region21: #{tpu_custom_call.1} parent=1 // pred_fallthru
      _
    // Predicated region
    $region22: #{tpu_custom_call.1} parent=1 // pred_check
      _
    $region23: #{tpu_custom_call.1} parent=1 // pred_check_branch
      %90 = sbr.rel (0) target = $region25
    $region24: #{tpu_custom_call.1} parent=1 // pred_region
      %s92 = ssub.s32 48, 48
      %93 = vsyncadd [#allocation12], %s92
      %s94 = sshll.u32 [#allocation11], 4
      %s95 = int_to_ptr.vmem [resolvable:$true] %s94
      %100 = dma.hbm_to_vmem [thread:$0]  %s5, 48, %s95, [#allocation12], 16, 16, 1
    $region25: #{tpu_custom_call.1} parent=1 // pred_fallthru
      _
    // Predicated region
    $region26: #{tpu_custom_call.1} parent=1 // pred_check
      _
    $region27: #{tpu_custom_call.1} parent=1 // pred_check_branch
      %102 = sbr.rel (0) target = $region29
    $region28: #{tpu_custom_call.1} parent=1 // pred_region
      %s104 = ssub.s32 9216, 9216
      %105 = vsyncadd [#allocation12], %s104
      %s106 = sshll.u32 [#allocation13], 4
      %s107 = int_to_ptr.vmem [resolvable:$true] %s106
      %112 = dma.hbm_to_vmem [thread:$0]  %s6, 9216, %s107, [#allocation12], 192, 192, 12
    $region29: #{tpu_custom_call.1} parent=1 // pred_fallthru
      _
    // Predicated region
    $region30: #{tpu_custom_call.1} parent=1 // pred_check
      _
    $region31: #{tpu_custom_call.1} parent=1 // pred_check_branch
      %114 = sbr.rel (0) target = $region33
    $region32: #{tpu_custom_call.1} parent=1 // pred_region
      _
    $region33: #{tpu_custom_call.1} parent=1 // pred_fallthru
      _
    // Predicated region
    $region34: #{tpu_custom_call.1} parent=1 // pred_check
      _
    $region35: #{tpu_custom_call.1} parent=1 // pred_check_branch
      %116 = sbr.rel (0) target = $region37
    $region36: #{tpu_custom_call.1} parent=1 // pred_region
      %s118 = ssub.s32 3072, 3072
      %119 = vsyncadd [#allocation15], %s118
      %s120 = sshll.u32 [#allocation14], 4
      %s121 = int_to_ptr.vmem [resolvable:$true] %s120
      %126 = dma.hbm_to_vmem [thread:$0]  %s8, 3072, %s121, [#allocation15], 64, 64, 4
    $region37: #{tpu_custom_call.1} parent=1 // pred_fallthru
      _
    // Predicated region
    $region38: #{tpu_custom_call.1} parent=1 // pred_check
      _
    $region39: #{tpu_custom_call.1} parent=1 // pred_check_branch
      %128 = sbr.rel (0) target = $region41
    $region40: #{tpu_custom_call.1} parent=1 // pred_region
      %s130 = ssub.s32 48, 48
      %131 = vsyncadd [#allocation15], %s130
      %s132 = sshll.u32 [#allocation16], 4
      %s133 = int_to_ptr.vmem [resolvable:$true] %s132
      %138 = dma.hbm_to_vmem [thread:$0]  %s9, 48, %s133, [#allocation15], 16, 16, 1
    $region41: #{tpu_custom_call.1} parent=1 // pred_fallthru
      _
    // Predicated region
    $region42: #{tpu_custom_call.1} parent=1 // pred_check
      _
    $region43: #{tpu_custom_call.1} parent=1 // pred_check_branch
      %140 = sbr.rel (0) target = $region45
    $region44: #{tpu_custom_call.1} parent=1 // pred_region
      %s142 = ssub.s32 48, 48
      %143 = vsyncadd [#allocation18], %s142
      %s144 = sshll.u32 [#allocation17], 4
      %s145 = int_to_ptr.vmem [resolvable:$true] %s144
      %150 = dma.hbm_to_vmem [thread:$0]  %s10, 48, %s145, [#allocation18], 16, 16, 1
    $region45: #{tpu_custom_call.1} parent=1 // pred_fallthru
      _
    // Predicated region
    $region46: #{tpu_custom_call.1} parent=1 // pred_check
      _
    $region47: #{tpu_custom_call.1} parent=1 // pred_check_branch
      %152 = sbr.rel (0) target = $region49
    $region48: #{tpu_custom_call.1} parent=1 // pred_region
      %s154 = ssub.s32 48, 48
      %155 = vsyncadd [#allocation18], %s154
      %s156 = sshll.u32 [#allocation19], 4
      %s157 = int_to_ptr.vmem [resolvable:$true] %s156
      %162 = dma.hbm_to_vmem [thread:$0]  %s11, 48, %s157, [#allocation18], 16, 16, 1
    $region49: #{tpu_custom_call.1} parent=1 // pred_fallthru
      _
    // Predicated region
    $region50: #{tpu_custom_call.1} parent=1 // pred_check
      _
    $region51: #{tpu_custom_call.1} parent=1 // pred_check_branch
      %164 = sbr.rel (0) target = $region53
    $region52: #{tpu_custom_call.1} parent=1 // pred_region
      %s166 = ssub.s32 12288, 12288
      %167 = vsyncadd [#allocation21], %s166
      %s168 = sshll.u32 [#allocation20], 4
      %s169 = int_to_ptr.vmem [resolvable:$true] %s168
      %174 = dma.hbm_to_vmem [thread:$0]  %s12, 12288, %s169, [#allocation21], 256, 256, 16
    $region53: #{tpu_custom_call.1} parent=1 // pred_fallthru
      _
    // Predicated region
    $region54: #{tpu_custom_call.1} parent=1 // pred_check
      _
    $region55: #{tpu_custom_call.1} parent=1 // pred_check_branch
      %176 = sbr.rel (0) target = $region57
    $region56: #{tpu_custom_call.1} parent=1 // pred_region
      _
    $region57: #{tpu_custom_call.1} parent=1 // pred_fallthru
      _
    // Predicated region
    $region58: #{tpu_custom_call.1} parent=1 // pred_check
      _
    $region59: #{tpu_custom_call.1} parent=1 // pred_check_branch
      %178 = sbr.rel (0) target = $region61
    $region60: #{tpu_custom_call.1} parent=1 // pred_region
      %s180 = ssub.s32 12288, 12288
      %181 = vsyncadd [#allocation21], %s180
      %s182 = sshll.u32 [#allocation22], 4
      %s183 = int_to_ptr.vmem [resolvable:$true] %s182
      %188 = dma.hbm_to_vmem [thread:$0]  %s14, 12288, %s183, [#allocation21], 64, 64, 4
    $region61: #{tpu_custom_call.1} parent=1 // pred_fallthru
      _
    // Predicated region
    $region62: #{tpu_custom_call.1} parent=1 // pred_check
      _
    $region63: #{tpu_custom_call.1} parent=1 // pred_check_branch
      %190 = sbr.rel (0) target = $region65
    $region64: #{tpu_custom_call.1} parent=1 // pred_region
      _
    $region65: #{tpu_custom_call.1} parent=1 // pred_fallthru
      _
    // Predicated region
    $region66: #{tpu_custom_call.1} parent=1 // pred_check
      _
    $region67: #{tpu_custom_call.1} parent=1 // pred_check_branch
      %192 = sbr.rel (0) target = $region69
    $region68: #{tpu_custom_call.1} parent=1 // pred_region
      %193 = dma.done [#allocation3], 256
    $region69: #{tpu_custom_call.1} parent=1 // pred_fallthru
      _
    // Predicated region
    $region70: #{tpu_custom_call.1} parent=1 // pred_check
      _
    $region71: #{tpu_custom_call.1} parent=1 // pred_check_branch
      %195 = sbr.rel (0) target = $region73
    $region72: #{tpu_custom_call.1} parent=1 // pred_region
      %196 = dma.done [#allocation6], 1536
    $region73: #{tpu_custom_call.1} parent=1 // pred_fallthru
      _
    // Predicated region
    $region74: #{tpu_custom_call.1} parent=1 // pred_check
      _
    $region75: #{tpu_custom_call.1} parent=1 // pred_check_branch
      %198 = sbr.rel (0) target = $region77
    $region76: #{tpu_custom_call.1} parent=1 // pred_region
      %199 = dma.done [#allocation6], 256
    $region77: #{tpu_custom_call.1} parent=1 // pred_fallthru
      _
    // Predicated region
    $region78: #{tpu_custom_call.1} parent=1 // pred_check
      _
    $region79: #{tpu_custom_call.1} parent=1 // pred_check_branch
      %201 = sbr.rel (0) target = $region81
    $region80: #{tpu_custom_call.1} parent=1 // pred_region
      %202 = dma.done [#allocation9], 256
    $region81: #{tpu_custom_call.1} parent=1 // pred_fallthru
      _
    // Predicated region
    $region82: #{tpu_custom_call.1} parent=1 // pred_check
      _
    $region83: #{tpu_custom_call.1} parent=1 // pred_check_branch
      %204 = sbr.rel (0) target = $region85
    $region84: #{tpu_custom_call.1} parent=1 // pred_region
      %205 = dma.done [#allocation9], 48
    $region85: #{tpu_custom_call.1} parent=1 // pred_fallthru
      _
    // Predicated region
    $region86: #{tpu_custom_call.1} parent=1 // pred_check
      _
    $region87: #{tpu_custom_call.1} parent=1 // pred_check_branch
      %207 = sbr.rel (0) target = $region89
    $region88: #{tpu_custom_call.1} parent=1 // pred_region
      %208 = dma.done [#allocation12], 48
    $region89: #{tpu_custom_call.1} parent=1 // pred_fallthru
      _
    // Predicated region
    $region90: #{tpu_custom_call.1} parent=1 // pred_check
      _
    $region91: #{tpu_custom_call.1} parent=1 // pred_check_branch
      %210 = sbr.rel (0) target = $region93
    $region92: #{tpu_custom_call.1} parent=1 // pred_region
      %211 = dma.done [#allocation12], 9216
    $region93: #{tpu_custom_call.1} parent=1 // pred_fallthru
      _
    // Predicated region
    $region94: #{tpu_custom_call.1} parent=1 // pred_check
      _
    $region95: #{tpu_custom_call.1} parent=1 // pred_check_branch
      %213 = sbr.rel (0) target = $region97
    $region96: #{tpu_custom_call.1} parent=1 // pred_region
      %214 = dma.done [#allocation15], 3072
    $region97: #{tpu_custom_call.1} parent=1 // pred_fallthru
      _
    // Predicated region
    $region98: #{tpu_custom_call.1} parent=1 // pred_check
      _
    $region99: #{tpu_custom_call.1} parent=1 // pred_check_branch
      %216 = sbr.rel (0) target = $region101
    $region100: #{tpu_custom_call.1} parent=1 // pred_region
      %217 = dma.done [#allocation15], 48
    $region101: #{tpu_custom_call.1} parent=1 // pred_fallthru
      _
    // Predicated region
    $region102: #{tpu_custom_call.1} parent=1 // pred_check
      _
    $region103: #{tpu_custom_call.1} parent=1 // pred_check_branch
      %219 = sbr.rel (0) target = $region105
    $region104: #{tpu_custom_call.1} parent=1 // pred_region
      %220 = dma.done [#allocation18], 48
    $region105: #{tpu_custom_call.1} parent=1 // pred_fallthru
      _
    // Predicated region
    $region106: #{tpu_custom_call.1} parent=1 // pred_check
      _
    $region107: #{tpu_custom_call.1} parent=1 // pred_check_branch
      %222 = sbr.rel (0) target = $region109
    $region108: #{tpu_custom_call.1} parent=1 // pred_region
      %223 = dma.done [#allocation18], 48
    $region109: #{tpu_custom_call.1} parent=1 // pred_fallthru
      _
    // Predicated region
    $region110: #{tpu_custom_call.1} parent=1 // pred_check
      _
    $region111: #{tpu_custom_call.1} parent=1 // pred_check_branch
      %225 = sbr.rel (0) target = $region113
    $region112: #{tpu_custom_call.1} parent=1 // pred_region
      %226 = dma.done [#allocation21], 12288
    $region113: #{tpu_custom_call.1} parent=1 // pred_fallthru
      _
    // Predicated region
    $region114: #{tpu_custom_call.1} parent=1 // pred_check
      _
    $region115: #{tpu_custom_call.1} parent=1 // pred_check_branch
      %228 = sbr.rel (0) target = $region117
    $region116: #{tpu_custom_call.1} parent=1 // pred_region
      %229 = dma.done [#allocation21], 12288
    $region117: #{tpu_custom_call.1} parent=1 // pred_fallthru
      _
    %v231 = vld [vmem:[#allocation2] sm:$0xff]
    %v232 = vld [vmem:[#allocation2 + $0x8] sm:$0xff]
    %v233 = vld [vmem:[#allocation5] sm:$0xf]
    %v234 = vld [vmem:[#allocation5 + $0x4] sm:$0xf]
    %v235 = vld [vmem:[#allocation5 + $0x8] sm:$0xf]
    %v236 = vld [vmem:[#allocation5 + $0xc] sm:$0xf]
    %v237 = vld [vmem:[#allocation5 + $0x10] sm:$0xf]
    %v238 = vld [vmem:[#allocation5 + $0x14] sm:$0xf]
    %v239 = vld [vmem:[#allocation5 + $0x18] sm:$0xf]
    %v240 = vld [vmem:[#allocation5 + $0x1c] sm:$0xf]
    %v241 = vld [vmem:[#allocation5 + $0x20] sm:$0xf]
    %v242 = vld [vmem:[#allocation5 + $0x24] sm:$0xf]
    %v243 = vld [vmem:[#allocation5 + $0x28] sm:$0xf]
    %v244 = vld [vmem:[#allocation5 + $0x2c] sm:$0xf]
    %v245 = vld [vmem:[#allocation5 + $0x30] sm:$0xf]
    %v246 = vld [vmem:[#allocation5 + $0x34] sm:$0xf]
    %v247 = vld [vmem:[#allocation5 + $0x38] sm:$0xf]
    %v248 = vld [vmem:[#allocation5 + $0x3c] sm:$0xf]
    %v249 = vld [vmem:[#allocation5 + $0x40] sm:$0xf]
    %v250 = vld [vmem:[#allocation5 + $0x44] sm:$0xf]
    %v251 = vld [vmem:[#allocation5 + $0x48] sm:$0xf]
    %v252 = vld [vmem:[#allocation5 + $0x4c] sm:$0xf]
    %v253 = vld [vmem:[#allocation5 + $0x50] sm:$0xf]
    %v254 = vld [vmem:[#allocation5 + $0x54] sm:$0xf]
    %v255 = vld [vmem:[#allocation5 + $0x58] sm:$0xf]
    %v256 = vld [vmem:[#allocation5 + $0x5c] sm:$0xf]
    %v257 = vld [vmem:[#allocation7] sm:$0xff]
    %v258 = vld [vmem:[#allocation7 + $0x8] sm:$0xff]
    %v261 = vunpack.c.l.b16 %v231
    %v262 = vunpack.c.h.b16 %v231
    %v263 = vunpack.c.l.b16 %v232
    %v264 = vunpack.c.h.b16 %v232
    %v265 = vpack.c.b16 %v263, %v261
    %v266 = vpack.c.b16 %v264, %v262
    %v292 = vunpack.c.l.b16 %v233
    %v293 = vunpack.c.l.b16 %v234
    %v294 = vunpack.c.l.b16 %v235
    %v295 = vunpack.c.l.b16 %v236
    %v296 = vunpack.c.l.b16 %v237
    %v297 = vunpack.c.l.b16 %v238
    %v298 = vunpack.c.l.b16 %v239
    %v299 = vunpack.c.l.b16 %v240
    %v300 = vunpack.c.l.b16 %v241
    %v301 = vunpack.c.l.b16 %v242
    %v302 = vunpack.c.l.b16 %v243
    %v303 = vunpack.c.l.b16 %v244
    %v304 = vunpack.c.l.b16 %v245
    %v305 = vunpack.c.l.b16 %v246
    %v306 = vunpack.c.l.b16 %v247
    %v307 = vunpack.c.l.b16 %v248
    %v308 = vunpack.c.l.b16 %v249
    %v309 = vunpack.c.l.b16 %v250
    %v310 = vunpack.c.l.b16 %v251
    %v311 = vunpack.c.l.b16 %v252
    %v312 = vunpack.c.l.b16 %v253
    %v313 = vunpack.c.l.b16 %v254
    %v314 = vunpack.c.l.b16 %v255
    %v315 = vunpack.c.l.b16 %v256
    %v316 = vpack.c.b16 %v293, %v292
    %v317 = vpack.c.b16 %v295, %v294
    %v318 = vpack.c.b16 %v297, %v296
    %v319 = vpack.c.b16 %v299, %v298
    %v320 = vpack.c.b16 %v301, %v300
    %v321 = vpack.c.b16 %v303, %v302
    %v322 = vpack.c.b16 %v305, %v304
    %v323 = vpack.c.b16 %v307, %v306
    %v324 = vpack.c.b16 %v309, %v308
    %v325 = vpack.c.b16 %v311, %v310
    %v326 = vpack.c.b16 %v313, %v312
    %v327 = vpack.c.b16 %v315, %v314
    %vm340 = vcmask 523264
    %v342 = vsel %vm340, %v266, 0
    %344 = vmatprep.subr.bf16.mxu0 0
    %345 = vmatpush1.bf16.msra.mxu0 %v323
    %346 = vmatprep.subr.bf16.mxu0 0
    %347 = vmatpush1.bf16.msra.mxu0 %v322
    %348 = vmatprep.subr.bf16.mxu0 0
    %349 = vmatpush1.bf16.msra.mxu0 %v321
    %350 = vmatprep.subr.bf16.mxu0 0
    %351 = vmatpush1.bf16.msra.mxu0 %v320
    %352 = vmatprep.subr.bf16.mxu0 0
    %353 = vmatpush1.bf16.msra.mxu0 %v319
    %354 = vmatprep.subr.bf16.mxu0 0
    %355 = vmatpush1.bf16.msra.mxu0 %v318
    %356 = vmatprep.subr.bf16.mxu0 0
    %357 = vmatpush1.bf16.msra.mxu0 %v317
    %358 = vmatprep.subr.bf16.mxu0 0
    %359 = vmatpush1.bf16.msra.mxu0 %v316
    %360 = vmatprep.subr.bf16.mxu0 0
    %361 = vmatpush2.bf16.msra.mxu0 0
    %362 = vmatprep.subr.bf16.mxu0 0
    %363 = vmatpush2.bf16.msra.mxu0 0
    %364 = vmatprep.subr.bf16.mxu0 0
    %365 = vmatpush2.bf16.msra.mxu0 0
    %366 = vmatprep.subr.bf16.mxu0 0
    %367 = vmatpush2.bf16.msra.mxu0 0
    %368 = vmatprep.subr.bf16.mxu0 0
    %369 = vmatpush2.bf16.msra.mxu0 %v327
    %370 = vmatprep.subr.bf16.mxu0 0
    %371 = vmatpush2.bf16.msra.mxu0 %v326
    %372 = vmatprep.subr.bf16.mxu0 0
    %373 = vmatpush2.bf16.msra.mxu0 %v325
    %374 = vmatprep.subr.bf16.mxu0 0
    %375 = vmatpush2.bf16.msra.mxu0 %v324
    %376 = vmatprep.mubr.bf16.mxu0 %v342
    %377 = vmatmul.mubr.bf16.gmra.mxu0 %v265
    %v378 = vpop.f32.mrf.mxu0
    %v379 = vadd.f32 %v257, %v378
    %v380 = vpop.f32.mrf.mxu0
    %v381 = vpop.f32.mrf.mxu0
    %v382 = vadd.f32 %v258, %v381
    %v383 = vpop.f32.mrf.mxu0
    %384 = vdwg.mxu0
    %v385 = vld [vmem:[#allocation8] sm:$0xff]
    %v386 = vld [vmem:[#allocation8 + $0x8] sm:$0xff]
    %v387 = vld [vmem:[#allocation10] sm:$0x1]
    %v388 = vld [vmem:[#allocation11] sm:$0x1]
    %389 = vadd.xlane.f32.xlu0 %v379
    %v390 = vpop.xlane.xlu0 %389
    %391 = vadd.xlane.f32.xlu0 %v382
    %v392 = vpop.xlane.xlu0 %391
    %v393 = vrcp.pop 128.0
    %v394 = vmul.f32 %v390, %v393
    %v395 = vmul.f32 %v392, %v393
    %v396 = vsub.f32 %v379, %v394
    %v397 = vsub.f32 %v382, %v395
    %v398 = vmul.f32 %v396, %v396
    %v399 = vmul.f32 %v397, %v397
    %400 = vadd.xlane.f32.xlu0 %v398
    %v401 = vpop.xlane.xlu0 %400
    %402 = vadd.xlane.f32.xlu0 %v399
    %v403 = vpop.xlane.xlu0 %402
    %v404 = vmul.f32 %v401, %v393
    %v405 = vmul.f32 %v403, %v393
    %v406 = vadd.f32 %v404, 1e-06
    %v407 = vadd.f32 %v405, 1e-06
    %v408 = vrsqrt.pop %v406
    %v409 = vrsqrt.pop %v407
    %v410 = vmul.f32 %v396, %v408
    %v411 = vmul.f32 %v397, %v409
    %v413 = vlaneseq
    %v414 = vshrl.u32 %v413, 7
    %v415 = vsub.s32 0, %v414
    %v416 = vrot.slane %v387, %v415
    %v418 = vmul.f32 %v410, %v416
    %v419 = vmul.f32 %v411, %v416
    %v421 = vlaneseq
    %v422 = vshrl.u32 %v421, 7
    %v423 = vsub.s32 0, %v422
    %v424 = vrot.slane %v388, %v423
    %v426 = vadd.f32 %v418, %v424
    %v427 = vadd.f32 %v419, %v424
    %v428 = vpack.c.bf16 %v427, %v426
    %v429 = vld [vmem:[#allocation13] sm:$0xff]
    %v430 = vld [vmem:[#allocation13 + $0x8] sm:$0xf]
    %v431 = vld [vmem:[#allocation13 + $0xc] sm:$0xff]
    %v432 = vld [vmem:[#allocation13 + $0x14] sm:$0xf]
    %v433 = vld [vmem:[#allocation13 + $0x18] sm:$0xff]
    %v434 = vld [vmem:[#allocation13 + $0x20] sm:$0xf]
    %v435 = vld [vmem:[#allocation13 + $0x24] sm:$0xff]
    %v436 = vld [vmem:[#allocation13 + $0x2c] sm:$0xf]
    %v437 = vld [vmem:[#allocation13 + $0x30] sm:$0xff]
    %v438 = vld [vmem:[#allocation13 + $0x38] sm:$0xf]
    %v439 = vld [vmem:[#allocation13 + $0x3c] sm:$0xff]
    %v440 = vld [vmem:[#allocation13 + $0x44] sm:$0xf]
    %v441 = vld [vmem:[#allocation13 + $0x48] sm:$0xff]
    %v442 = vld [vmem:[#allocation13 + $0x50] sm:$0xf]
    %v443 = vld [vmem:[#allocation13 + $0x54] sm:$0xff]
    %v444 = vld [vmem:[#allocation13 + $0x5c] sm:$0xf]
    %v445 = vld [vmem:[#allocation13 + $0x60] sm:$0xff]
    %v446 = vld [vmem:[#allocation13 + $0x68] sm:$0xf]
    %v447 = vld [vmem:[#allocation13 + $0x6c] sm:$0xff]
    %v448 = vld [vmem:[#allocation13 + $0x74] sm:$0xf]
    %v449 = vld [vmem:[#allocation13 + $0x78] sm:$0xff]
    %v450 = vld [vmem:[#allocation13 + $0x80] sm:$0xf]
    %v451 = vld [vmem:[#allocation13 + $0x84] sm:$0xff]
    %v452 = vld [vmem:[#allocation13 + $0x8c] sm:$0xf]
    %v453 = vld [vmem:[#allocation13 + $0x90] sm:$0xff]
    %v454 = vld [vmem:[#allocation13 + $0x98] sm:$0xf]
    %v455 = vld [vmem:[#allocation13 + $0x9c] sm:$0xff]
    %v456 = vld [vmem:[#allocation13 + $0xa4] sm:$0xf]
    %v457 = vld [vmem:[#allocation13 + $0xa8] sm:$0xff]
    %v458 = vld [vmem:[#allocation13 + $0xb0] sm:$0xf]
    %v459 = vld [vmem:[#allocation13 + $0xb4] sm:$0xff]
    %v460 = vld [vmem:[#allocation13 + $0xbc] sm:$0xf]
    %v461 = vld [vmem:[%s7] sm:$0x7]
    %v463 = vlaneseq
    %v464 = vshrl.u32 %v463, 7
    %v465 = vsub.s32 0, %v464
    %v466 = vrot.slane %v461, %v465
    %v467 = vlaneseq
    %v468 = vshrl.u32 %v467, 7
    %v469 = vsub.s32 1, %v468
    %v470 = vrot.slane %v461, %v469
    %v471 = vlaneseq
    %v472 = vshrl.u32 %v471, 7
    %v473 = vsub.s32 2, %v472
    %v474 = vrot.slane %v461, %v473
    %v510 = vunpack.c.l.b16 %v429
    %v511 = vunpack.c.h.b16 %v429
    %v512 = vunpack.c.l.b16 %v430
    %v513 = vunpack.c.l.b16 %v431
    %v514 = vunpack.c.h.b16 %v431
    %v515 = vunpack.c.l.b16 %v432
    %v516 = vunpack.c.l.b16 %v433
    %v517 = vunpack.c.h.b16 %v433
    %v518 = vunpack.c.l.b16 %v434
    %v519 = vunpack.c.l.b16 %v435
    %v520 = vunpack.c.h.b16 %v435
    %v521 = vunpack.c.l.b16 %v436
    %v522 = vunpack.c.l.b16 %v437
    %v523 = vunpack.c.h.b16 %v437
    %v524 = vunpack.c.l.b16 %v438
    %v525 = vunpack.c.l.b16 %v439
    %v526 = vunpack.c.h.b16 %v439
    %v527 = vunpack.c.l.b16 %v440
    %v528 = vunpack.c.l.b16 %v441
    %v529 = vunpack.c.h.b16 %v441
    %v530 = vunpack.c.l.b16 %v442
    %v531 = vunpack.c.l.b16 %v443
    %v532 = vunpack.c.h.b16 %v443
    %v533 = vunpack.c.l.b16 %v444
    %v534 = vunpack.c.l.b16 %v445
    %v535 = vunpack.c.h.b16 %v445
    %v536 = vunpack.c.l.b16 %v446
    %v537 = vunpack.c.l.b16 %v447
    %v538 = vunpack.c.h.b16 %v447
    %v539 = vunpack.c.l.b16 %v448
    %v540 = vunpack.c.l.b16 %v449
    %v541 = vunpack.c.h.b16 %v449
    %v542 = vunpack.c.l.b16 %v450
    %v543 = vunpack.c.l.b16 %v451
    %v544 = vunpack.c.h.b16 %v451
    %v545 = vunpack.c.l.b16 %v452
    %v546 = vunpack.c.l.b16 %v453
    %v547 = vunpack.c.h.b16 %v453
    %v548 = vunpack.c.l.b16 %v454
    %v549 = vunpack.c.l.b16 %v455
    %v550 = vunpack.c.h.b16 %v455
    %v551 = vunpack.c.l.b16 %v456
    %v552 = vunpack.c.l.b16 %v457
    %v553 = vunpack.c.h.b16 %v457
    %v554 = vunpack.c.l.b16 %v458
    %v555 = vunpack.c.l.b16 %v459
    %v556 = vunpack.c.h.b16 %v459
    %v557 = vunpack.c.l.b16 %v460
    %v558 = vpack.c.b16 %v513, %v510
    %v559 = vpack.c.b16 %v514, %v511
    %v560 = vpack.c.b16 %v515, %v512
    %v561 = vpack.c.b16 %v519, %v516
    %v562 = vpack.c.b16 %v520, %v517
    %v563 = vpack.c.b16 %v521, %v518
    %v564 = vpack.c.b16 %v525, %v522
    %v565 = vpack.c.b16 %v526, %v523
    %v566 = vpack.c.b16 %v527, %v524
    %v567 = vpack.c.b16 %v531, %v528
    %v568 = vpack.c.b16 %v532, %v529
    %v569 = vpack.c.b16 %v533, %v530
    %v570 = vpack.c.b16 %v537, %v534
    %v571 = vpack.c.b16 %v538, %v535
    %v572 = vpack.c.b16 %v539, %v536
    %v573 = vpack.c.b16 %v543, %v540
    %v574 = vpack.c.b16 %v544, %v541
    %v575 = vpack.c.b16 %v545, %v542
    %v576 = vpack.c.b16 %v549, %v546
    %v577 = vpack.c.b16 %v550, %v547
    %v578 = vpack.c.b16 %v551, %v548
    %v579 = vpack.c.b16 %v555, %v552
    %v580 = vpack.c.b16 %v556, %v553
    %v581 = vpack.c.b16 %v557, %v554
    %606 = vmatprep.subr.bf16.mxu0 %v580
    %607 = vmatpush1.bf16.msra.mxu0 %v579
    %608 = vmatprep.subr.bf16.mxu0 %v577
    %609 = vmatpush1.bf16.msra.mxu0 %v576
    %610 = vmatprep.subr.bf16.mxu0 %v574
    %611 = vmatpush1.bf16.msra.mxu0 %v573
    %612 = vmatprep.subr.bf16.mxu0 %v571
    %613 = vmatpush1.bf16.msra.mxu0 %v570
    %614 = vmatprep.subr.bf16.mxu0 %v568
    %615 = vmatpush1.bf16.msra.mxu0 %v567
    %616 = vmatprep.subr.bf16.mxu0 %v565
    %617 = vmatpush1.bf16.msra.mxu0 %v564
    %618 = vmatprep.subr.bf16.mxu0 %v562
    %619 = vmatpush1.bf16.msra.mxu0 %v561
    %620 = vmatprep.subr.bf16.mxu0 %v559
    %621 = vmatpush1.bf16.msra.mxu0 %v558
    %622 = vmatprep.subr.bf16.mxu0 0
    %623 = vmatpush2.bf16.msra.mxu0 0
    %624 = vmatprep.subr.bf16.mxu0 0
    %625 = vmatpush2.bf16.msra.mxu0 0
    %626 = vmatprep.subr.bf16.mxu0 0
    %627 = vmatpush2.bf16.msra.mxu0 0
    %628 = vmatprep.subr.bf16.mxu0 0
    %629 = vmatpush2.bf16.msra.mxu0 0
    %630 = vmatprep.subr.bf16.mxu0 0
    %631 = vmatpush2.bf16.msra.mxu0 0
    %632 = vmatprep.subr.bf16.mxu0 0
    %633 = vmatpush2.bf16.msra.mxu0 0
    %634 = vmatprep.subr.bf16.mxu0 0
    %635 = vmatpush2.bf16.msra.mxu0 0
    %636 = vmatprep.subr.bf16.mxu0 0
    %637 = vmatpush2.bf16.msra.mxu0 0
    %638 = vmatprep.mubr.bf16.mxu0 0
    %639 = vmatmul.mubr.bf16.gmra.mxu0 %v428
    %v640 = vpop.f32.mrf.mxu0
    %v641 = vadd.f32 %v466, %v640
    %v642 = vpop.f32.mrf.mxu0
    %v643 = vadd.f32 %v470, %v642
    %v644 = vpop.f32.mrf.mxu0
    %v645 = vadd.f32 %v466, %v644
    %v646 = vpop.f32.mrf.mxu0
    %v647 = vadd.f32 %v470, %v646
    %648 = vdwg.mxu0
    %649 = vmatprep.subr.bf16.mxu0 0
    %650 = vmatpush1.bf16.msra.mxu0 %v581
    %651 = vmatprep.subr.bf16.mxu0 0
    %652 = vmatpush1.bf16.msra.mxu0 %v578
    %653 = vmatprep.subr.bf16.mxu0 0
    %654 = vmatpush1.bf16.msra.mxu0 %v575
    %655 = vmatprep.subr.bf16.mxu0 0
    %656 = vmatpush1.bf16.msra.mxu0 %v572
    %657 = vmatprep.subr.bf16.mxu0 0
    %658 = vmatpush1.bf16.msra.mxu0 %v569
    %659 = vmatprep.subr.bf16.mxu0 0
    %660 = vmatpush1.bf16.msra.mxu0 %v566
    %661 = vmatprep.subr.bf16.mxu0 0
    %662 = vmatpush1.bf16.msra.mxu0 %v563
    %663 = vmatprep.subr.bf16.mxu0 0
    %664 = vmatpush1.bf16.msra.mxu0 %v560
    %665 = vmatprep.subr.bf16.mxu0 0
    %666 = vmatpush2.bf16.msra.mxu0 0
    %667 = vmatprep.subr.bf16.mxu0 0
    %668 = vmatpush2.bf16.msra.mxu0 0
    %669 = vmatprep.subr.bf16.mxu0 0
    %670 = vmatpush2.bf16.msra.mxu0 0
    %671 = vmatprep.subr.bf16.mxu0 0
    %672 = vmatpush2.bf16.msra.mxu0 0
    %673 = vmatprep.subr.bf16.mxu0 0
    %674 = vmatpush2.bf16.msra.mxu0 0
    %675 = vmatprep.subr.bf16.mxu0 0
    %676 = vmatpush2.bf16.msra.mxu0 0
    %677 = vmatprep.subr.bf16.mxu0 0
    %678 = vmatpush2.bf16.msra.mxu0 0
    %679 = vmatprep.subr.bf16.mxu0 0
    %680 = vmatpush2.bf16.msra.mxu0 0
    %681 = vmatprep.mubr.bf16.mxu0 0
    %682 = vmatmul.mubr.bf16.gmra.mxu0 %v428
    %v683 = vpop.f32.mrf.mxu0
    %v684 = vadd.f32 %v474, %v683
    %v685 = vpop.f32.mrf.mxu0
    %v686 = vpop.f32.mrf.mxu0
    %v687 = vadd.f32 %v474, %v686
    %v688 = vpop.f32.mrf.mxu0
    %689 = vdwg.mxu0
    %v690 = vpack.c.bf16 %v645, %v641
    %v691 = vpack.c.bf16 %v647, %v643
    %v692 = vpack.c.bf16 %v687, %v684
    %v693 = vld [vmem:[#allocation14] sm:$0xf]
    %v694 = vld [vmem:[#allocation14 + $0x4] sm:$0xf]
    %v695 = vld [vmem:[#allocation14 + $0x8] sm:$0xf]
    %v696 = vld [vmem:[#allocation14 + $0xc] sm:$0xf]
    %v697 = vld [vmem:[#allocation14 + $0x10] sm:$0xf]
    %v698 = vld [vmem:[#allocation14 + $0x14] sm:$0xf]
    %v699 = vld [vmem:[#allocation14 + $0x18] sm:$0xf]
    %v700 = vld [vmem:[#allocation14 + $0x1c] sm:$0xf]
    %v701 = vld [vmem:[#allocation14 + $0x20] sm:$0xf]
    %v702 = vld [vmem:[#allocation14 + $0x24] sm:$0xf]
    %v703 = vld [vmem:[#allocation14 + $0x28] sm:$0xf]
    %v704 = vld [vmem:[#allocation14 + $0x2c] sm:$0xf]
    %v705 = vld [vmem:[#allocation14 + $0x30] sm:$0xf]
    %v706 = vld [vmem:[#allocation14 + $0x34] sm:$0xf]
    %v707 = vld [vmem:[#allocation14 + $0x38] sm:$0xf]
    %v708 = vld [vmem:[#allocation14 + $0x3c] sm:$0xf]
    %vm709 = vcmask 261120
    %v711 = vsel %vm709, %v690, 0
    %v714 = vsel %vm709, %v691, 0
    %716 = vmatprep.subr.bf16.mxu0 0
    %717 = vmatpush1.bf16.xpose.msra.mxu0 0
    %718 = vmatprep.subr.bf16.mxu0 0
    %719 = vmatpush1.bf16.xpose.msra.mxu0 0
    %720 = vmatprep.subr.bf16.mxu0 0
    %721 = vmatpush1.bf16.xpose.msra.mxu0 0
    %722 = vmatprep.subr.bf16.mxu0 0
    %723 = vmatpush1.bf16.xpose.msra.mxu0 0
    %724 = vmatprep.subr.bf16.mxu0 0
    %725 = vmatpush1.bf16.xpose.msra.mxu0 0
    %726 = vmatprep.subr.bf16.mxu0 0
    %727 = vmatpush1.bf16.xpose.msra.mxu0 0
    %728 = vmatprep.subr.bf16.mxu0 0
    %729 = vmatpush1.bf16.xpose.msra.mxu0 0
    %730 = vmatprep.subr.bf16.mxu0 0
    %731 = vmatpush1.bf16.xpose.msra.mxu0 %v714
    %732 = vmatprep.subr.bf16.mxu0 0
    %733 = vmatpush2.bf16.xpose.msra.mxu0 0
    %734 = vmatprep.subr.bf16.mxu0 0
    %735 = vmatpush2.bf16.xpose.msra.mxu0 0
    %736 = vmatprep.subr.bf16.mxu0 0
    %737 = vmatpush2.bf16.xpose.msra.mxu0 0
    %738 = vmatprep.subr.bf16.mxu0 0
    %739 = vmatpush2.bf16.xpose.msra.mxu0 0
    %740 = vmatprep.subr.bf16.mxu0 0
    %741 = vmatpush2.bf16.xpose.msra.mxu0 0
    %742 = vmatprep.subr.bf16.mxu0 0
    %743 = vmatpush2.bf16.xpose.msra.mxu0 0
    %744 = vmatprep.subr.bf16.mxu0 0
    %745 = vmatpush2.bf16.xpose.msra.mxu0 0
    %746 = vmatprep.subr.bf16.mxu0 0
    %747 = vmatpush2.bf16.xpose.msra.mxu0 0
    %748 = vmatprep.mubr.bf16.mxu0 0
    %749 = vmatmul.mubr.bf16.gmra.mxu0 %v711
    %v750 = vpop.f32.mrf.mxu0
    %v751 = vadd.f32 %v385, %v750
    %v752 = vpop.f32.mrf.mxu0
    %v753 = vpop.f32.mrf.mxu0
    %v754 = vadd.f32 %v386, %v753
    %v755 = vpop.f32.mrf.mxu0
    %756 = vdwg.mxu0
    %vm757 = vcmask 130048
    %v758 = vsel %vm757, %v751, -inf
    %759 = vmax.xlane.f32.xlu0 %v758
    %v760 = vpop.xlane.xlu0 %759
    %v761 = vsel %vm757, %v754, -inf
    %762 = vmax.xlane.f32.xlu0 %v761
    %v763 = vpop.xlane.xlu0 %762
    %v764 = vsub.f32 %v751, %v760
    %v765 = vsub.f32 %v754, %v763
    %v766 = vmul.f32 %v764, 1.442695
    %v767 = vpow.pop %v766
    %v768 = vmul.f32 %v765, 1.442695
    %v769 = vpow.pop %v768
    %v770 = vsel %vm757, %v767, 0.0
    %771 = vadd.xlane.f32.xlu0 %v770
    %v772 = vpop.xlane.xlu0 %771
    %v773 = vsel %vm757, %v769, 0.0
    %774 = vadd.xlane.f32.xlu0 %v773
    %v775 = vpop.xlane.xlu0 %774
    %v776 = vrcp.pop %v772
    %v777 = vrcp.pop %v775
    %v778 = vmul.f32 %v767, %v776
    %v779 = vmul.f32 %v769, %v777
    %v780 = vpack.c.bf16 %v779, %v778
    %v782 = vsel %vm757, %v780, 0
    %784 = vmatprep.subr.bf16.mxu0 0
    %785 = vmatpush1.bf16.msra.mxu0 0
    %786 = vmatprep.subr.bf16.mxu0 0
    %787 = vmatpush1.bf16.msra.mxu0 0
    %788 = vmatprep.subr.bf16.mxu0 0
    %789 = vmatpush1.bf16.msra.mxu0 0
    %790 = vmatprep.subr.bf16.mxu0 0
    %791 = vmatpush1.bf16.msra.mxu0 0
    %792 = vmatprep.subr.bf16.mxu0 0
    %793 = vmatpush1.bf16.msra.mxu0 0
    %794 = vmatprep.subr.bf16.mxu0 0
    %795 = vmatpush1.bf16.msra.mxu0 0
    %796 = vmatprep.subr.bf16.mxu0 0
    %797 = vmatpush1.bf16.msra.mxu0 0
    %798 = vmatprep.subr.bf16.mxu0 0
    %799 = vmatpush1.bf16.msra.mxu0 %v692
    %800 = vmatprep.subr.bf16.mxu0 0
    %801 = vmatpush2.bf16.msra.mxu0 0
    %802 = vmatprep.subr.bf16.mxu0 0
    %803 = vmatpush2.bf16.msra.mxu0 0
    %804 = vmatprep.subr.bf16.mxu0 0
    %805 = vmatpush2.bf16.msra.mxu0 0
    %806 = vmatprep.subr.bf16.mxu0 0
    %807 = vmatpush2.bf16.msra.mxu0 0
    %808 = vmatprep.subr.bf16.mxu0 0
    %809 = vmatpush2.bf16.msra.mxu0 0
    %810 = vmatprep.subr.bf16.mxu0 0
    %811 = vmatpush2.bf16.msra.mxu0 0
    %812 = vmatprep.subr.bf16.mxu0 0
    %813 = vmatpush2.bf16.msra.mxu0 0
    %814 = vmatprep.subr.bf16.mxu0 0
    %815 = vmatpush2.bf16.msra.mxu0 0
    %816 = vmatprep.mubr.bf16.mxu0 0
    %817 = vmatmul.mubr.bf16.gmra.mxu0 %v782
    %v818 = vpop.f32.mrf.mxu0
    %v819 = vadd.f32 0.0, %v818
    %v820 = vpop.f32.mrf.mxu0
    %v821 = vpop.f32.mrf.mxu0
    %v822 = vadd.f32 0.0, %v821
    %v823 = vpop.f32.mrf.mxu0
    %824 = vdwg.mxu0
    %v825 = vpack.c.bf16 %v822, %v819
    %827 = vrot.lane.b32.xlu0 %v690, 96
    %v828 = vpop.permute.xlu0 %827
    %830 = vrot.lane.b32.xlu0 %v691, 96
    %v831 = vpop.permute.xlu0 %830
    %v833 = vsel %vm709, %v828, 0
    %v836 = vsel %vm709, %v831, 0
    %838 = vmatprep.subr.bf16.mxu0 0
    %839 = vmatpush1.bf16.xpose.msra.mxu0 0
    %840 = vmatprep.subr.bf16.mxu0 0
    %841 = vmatpush1.bf16.xpose.msra.mxu0 0
    %842 = vmatprep.subr.bf16.mxu0 0
    %843 = vmatpush1.bf16.xpose.msra.mxu0 0
    %844 = vmatprep.subr.bf16.mxu0 0
    %845 = vmatpush1.bf16.xpose.msra.mxu0 0
    %846 = vmatprep.subr.bf16.mxu0 0
    %847 = vmatpush1.bf16.xpose.msra.mxu0 0
    %848 = vmatprep.subr.bf16.mxu0 0
    %849 = vmatpush1.bf16.xpose.msra.mxu0 0
    %850 = vmatprep.subr.bf16.mxu0 0
    %851 = vmatpush1.bf16.xpose.msra.mxu0 0
    %852 = vmatprep.subr.bf16.mxu0 0
    %853 = vmatpush1.bf16.xpose.msra.mxu0 %v836
    %854 = vmatprep.subr.bf16.mxu0 0
    %855 = vmatpush2.bf16.xpose.msra.mxu0 0
    %856 = vmatprep.subr.bf16.mxu0 0
    %857 = vmatpush2.bf16.xpose.msra.mxu0 0
    %858 = vmatprep.subr.bf16.mxu0 0
    %859 = vmatpush2.bf16.xpose.msra.mxu0 0
    %860 = vmatprep.subr.bf16.mxu0 0
    %861 = vmatpush2.bf16.xpose.msra.mxu0 0
    %862 = vmatprep.subr.bf16.mxu0 0
    %863 = vmatpush2.bf16.xpose.msra.mxu0 0
    %864 = vmatprep.subr.bf16.mxu0 0
    %865 = vmatpush2.bf16.xpose.msra.mxu0 0
    %866 = vmatprep.subr.bf16.mxu0 0
    %867 = vmatpush2.bf16.xpose.msra.mxu0 0
    %868 = vmatprep.subr.bf16.mxu0 0
    %869 = vmatpush2.bf16.xpose.msra.mxu0 0
    %870 = vmatprep.mubr.bf16.mxu0 0
    %871 = vmatmul.mubr.bf16.gmra.mxu0 %v833
    %v872 = vpop.f32.mrf.mxu0
    %v873 = vadd.f32 %v385, %v872
    %v874 = vpop.f32.mrf.mxu0
    %v875 = vpop.f32.mrf.mxu0
    %v876 = vadd.f32 %v386, %v875
    %v877 = vpop.f32.mrf.mxu0
    %878 = vdwg.mxu0
    %v879 = vsel %vm757, %v873, -inf
    %880 = vmax.xlane.f32.xlu0 %v879
    %v881 = vpop.xlane.xlu0 %880
    %v882 = vsel %vm757, %v876, -inf
    %883 = vmax.xlane.f32.xlu0 %v882
    %v884 = vpop.xlane.xlu0 %883
    %v885 = vsub.f32 %v873, %v881
    %v886 = vsub.f32 %v876, %v884
    %v887 = vmul.f32 %v885, 1.442695
    %v888 = vpow.pop %v887
    %v889 = vmul.f32 %v886, 1.442695
    %v890 = vpow.pop %v889
    %v891 = vsel %vm757, %v888, 0.0
    %892 = vadd.xlane.f32.xlu0 %v891
    %v893 = vpop.xlane.xlu0 %892
    %v894 = vsel %vm757, %v890, 0.0
    %895 = vadd.xlane.f32.xlu0 %v894
    %v896 = vpop.xlane.xlu0 %895
    %v897 = vrcp.pop %v893
    %v898 = vrcp.pop %v896
    %v899 = vmul.f32 %v888, %v897
    %v900 = vmul.f32 %v890, %v898
    %v901 = vpack.c.bf16 %v900, %v899
    %903 = vrot.lane.b32.xlu0 %v692, 96
    %v904 = vpop.permute.xlu0 %903
    %v907 = vsel %vm757, %v901, 0
    %909 = vmatprep.subr.bf16.mxu0 0
    %910 = vmatpush1.bf16.msra.mxu0 0
    %911 = vmatprep.subr.bf16.mxu0 0
    %912 = vmatpush1.bf16.msra.mxu0 0
    %913 = vmatprep.subr.bf16.mxu0 0
    %914 = vmatpush1.bf16.msra.mxu0 0
    %915 = vmatprep.subr.bf16.mxu0 0
    %916 = vmatpush1.bf16.msra.mxu0 0
    %917 = vmatprep.subr.bf16.mxu0 0
    %918 = vmatpush1.bf16.msra.mxu0 0
    %919 = vmatprep.subr.bf16.mxu0 0
    %920 = vmatpush1.bf16.msra.mxu0 0
    %921 = vmatprep.subr.bf16.mxu0 0
    %922 = vmatpush1.bf16.msra.mxu0 0
    %923 = vmatprep.subr.bf16.mxu0 0
    %924 = vmatpush1.bf16.msra.mxu0 %v904
    %925 = vmatprep.subr.bf16.mxu0 0
    %926 = vmatpush2.bf16.msra.mxu0 0
    %927 = vmatprep.subr.bf16.mxu0 0
    %928 = vmatpush2.bf16.msra.mxu0 0
    %929 = vmatprep.subr.bf16.mxu0 0
    %930 = vmatpush2.bf16.msra.mxu0 0
    %931 = vmatprep.subr.bf16.mxu0 0
    %932 = vmatpush2.bf16.msra.mxu0 0
    %933 = vmatprep.subr.bf16.mxu0 0
    %934 = vmatpush2.bf16.msra.mxu0 0
    %935 = vmatprep.subr.bf16.mxu0 0
    %936 = vmatpush2.bf16.msra.mxu0 0
    %937 = vmatprep.subr.bf16.mxu0 0
    %938 = vmatpush2.bf16.msra.mxu0 0
    %939 = vmatprep.subr.bf16.mxu0 0
    %940 = vmatpush2.bf16.msra.mxu0 0
    %941 = vmatprep.mubr.bf16.mxu0 0
    %942 = vmatmul.mubr.bf16.gmra.mxu0 %v907
    %v943 = vpop.f32.mrf.mxu0
    %v944 = vadd.f32 0.0, %v943
    %v945 = vpop.f32.mrf.mxu0
    %v946 = vpop.f32.mrf.mxu0
    %v947 = vadd.f32 0.0, %v946
    %v948 = vpop.f32.mrf.mxu0
    %949 = vdwg.mxu0
    %v950 = vpack.c.bf16 %v947, %v944
    %v955 = vunpack.c.l.b16 %v697
    %v956 = vunpack.c.l.b16 %v698
    %v957 = vunpack.c.l.b16 %v699
    %v958 = vunpack.c.l.b16 %v700
    %v959 = vpack.c.b16 %v956, %v955
    %v960 = vpack.c.b16 %v958, %v957
    %v964 = vsel %vm709, %v950, 0
    %966 = vmatprep.subr.bf16.mxu0 0
    %967 = vmatpush1.bf16.msra.mxu0 0
    %968 = vmatprep.subr.bf16.mxu0 0
    %969 = vmatpush1.bf16.msra.mxu0 0
    %970 = vmatprep.subr.bf16.mxu0 0
    %971 = vmatpush1.bf16.msra.mxu0 0
    %972 = vmatprep.subr.bf16.mxu0 0
    %973 = vmatpush1.bf16.msra.mxu0 0
    %974 = vmatprep.subr.bf16.mxu0 0
    %975 = vmatpush1.bf16.msra.mxu0 0
    %976 = vmatprep.subr.bf16.mxu0 0
    %977 = vmatpush1.bf16.msra.mxu0 0
    %978 = vmatprep.subr.bf16.mxu0 0
    %979 = vmatpush1.bf16.msra.mxu0 %v960
    %980 = vmatprep.subr.bf16.mxu0 0
    %981 = vmatpush1.bf16.msra.mxu0 %v959
    %982 = vmatprep.subr.bf16.mxu0 0
    %983 = vmatpush2.bf16.msra.mxu0 0
    %984 = vmatprep.subr.bf16.mxu0 0
    %985 = vmatpush2.bf16.msra.mxu0 0
    %986 = vmatprep.subr.bf16.mxu0 0
    %987 = vmatpush2.bf16.msra.mxu0 0
    %988 = vmatprep.subr.bf16.mxu0 0
    %989 = vmatpush2.bf16.msra.mxu0 0
    %990 = vmatprep.subr.bf16.mxu0 0
    %991 = vmatpush2.bf16.msra.mxu0 0
    %992 = vmatprep.subr.bf16.mxu0 0
    %993 = vmatpush2.bf16.msra.mxu0 0
    %994 = vmatprep.subr.bf16.mxu0 0
    %995 = vmatpush2.bf16.msra.mxu0 0
    %996 = vmatprep.subr.bf16.mxu0 0
    %997 = vmatpush2.bf16.msra.mxu0 0
    %998 = vmatprep.mubr.bf16.mxu0 0
    %999 = vmatmul.mubr.bf16.gmra.mxu0 %v964
    %v1000 = vpop.f32.mrf.mxu0
    %v1001 = vadd.f32 0.0, %v1000
    %v1002 = vpop.f32.mrf.mxu0
    %v1003 = vpop.f32.mrf.mxu0
    %v1004 = vadd.f32 0.0, %v1003
    %v1005 = vpop.f32.mrf.mxu0
    %1006 = vdwg.mxu0
    %v1011 = vunpack.c.l.b16 %v693
    %v1012 = vunpack.c.l.b16 %v694
    %v1013 = vunpack.c.l.b16 %v695
    %v1014 = vunpack.c.l.b16 %v696
    %v1015 = vpack.c.b16 %v1012, %v1011
    %v1016 = vpack.c.b16 %v1014, %v1013
    %v1020 = vsel %vm709, %v825, 0
    %1022 = vmatprep.subr.bf16.mxu0 0
    %1023 = vmatpush1.bf16.msra.mxu0 0
    %1024 = vmatprep.subr.bf16.mxu0 0
    %1025 = vmatpush1.bf16.msra.mxu0 0
    %1026 = vmatprep.subr.bf16.mxu0 0
    %1027 = vmatpush1.bf16.msra.mxu0 0
    %1028 = vmatprep.subr.bf16.mxu0 0
    %1029 = vmatpush1.bf16.msra.mxu0 0
    %1030 = vmatprep.subr.bf16.mxu0 0
    %1031 = vmatpush1.bf16.msra.mxu0 0
    %1032 = vmatprep.subr.bf16.mxu0 0
    %1033 = vmatpush1.bf16.msra.mxu0 0
    %1034 = vmatprep.subr.bf16.mxu0 0
    %1035 = vmatpush1.bf16.msra.mxu0 %v1016
    %1036 = vmatprep.subr.bf16.mxu0 0
    %1037 = vmatpush1.bf16.msra.mxu0 %v1015
    %1038 = vmatprep.subr.bf16.mxu0 0
    %1039 = vmatpush2.bf16.msra.mxu0 0
    %1040 = vmatprep.subr.bf16.mxu0 0
    %1041 = vmatpush2.bf16.msra.mxu0 0
    %1042 = vmatprep.subr.bf16.mxu0 0
    %1043 = vmatpush2.bf16.msra.mxu0 0
    %1044 = vmatprep.subr.bf16.mxu0 0
    %1045 = vmatpush2.bf16.msra.mxu0 0
    %1046 = vmatprep.subr.bf16.mxu0 0
    %1047 = vmatpush2.bf16.msra.mxu0 0
    %1048 = vmatprep.subr.bf16.mxu0 0
    %1049 = vmatpush2.bf16.msra.mxu0 0
    %1050 = vmatprep.subr.bf16.mxu0 0
    %1051 = vmatpush2.bf16.msra.mxu0 0
    %1052 = vmatprep.subr.bf16.mxu0 0
    %1053 = vmatpush2.bf16.msra.mxu0 0
    %1054 = vmatprep.mubr.bf16.mxu0 0
    %1055 = vmatmul.mubr.bf16.gmra.mxu0 %v1020
    %v1056 = vpop.f32.mrf.mxu0
    %v1057 = vadd.f32 %v1001, %v1056
    %v1058 = vpop.f32.mrf.mxu0
    %v1059 = vpop.f32.mrf.mxu0
    %v1060 = vadd.f32 %v1004, %v1059
    %v1061 = vpop.f32.mrf.mxu0
    %1062 = vdwg.mxu0
    %1063 = vrot.lane.b32.xlu0 %v690, 64
    %v1064 = vpop.permute.xlu0 %1063
    %1065 = vrot.lane.b32.xlu0 %v691, 64
    %v1066 = vpop.permute.xlu0 %1065
    %v1068 = vsel %vm709, %v1064, 0
    %v1071 = vsel %vm709, %v1066, 0
    %1073 = vmatprep.subr.bf16.mxu0 0
    %1074 = vmatpush1.bf16.xpose.msra.mxu0 0
    %1075 = vmatprep.subr.bf16.mxu0 0
    %1076 = vmatpush1.bf16.xpose.msra.mxu0 0
    %1077 = vmatprep.subr.bf16.mxu0 0
    %1078 = vmatpush1.bf16.xpose.msra.mxu0 0
    %1079 = vmatprep.subr.bf16.mxu0 0
    %1080 = vmatpush1.bf16.xpose.msra.mxu0 0
    %1081 = vmatprep.subr.bf16.mxu0 0
    %1082 = vmatpush1.bf16.xpose.msra.mxu0 0
    %1083 = vmatprep.subr.bf16.mxu0 0
    %1084 = vmatpush1.bf16.xpose.msra.mxu0 0
    %1085 = vmatprep.subr.bf16.mxu0 0
    %1086 = vmatpush1.bf16.xpose.msra.mxu0 0
    %1087 = vmatprep.subr.bf16.mxu0 0
    %1088 = vmatpush1.bf16.xpose.msra.mxu0 %v1071
    %1089 = vmatprep.subr.bf16.mxu0 0
    %1090 = vmatpush2.bf16.xpose.msra.mxu0 0
    %1091 = vmatprep.subr.bf16.mxu0 0
    %1092 = vmatpush2.bf16.xpose.msra.mxu0 0
    %1093 = vmatprep.subr.bf16.mxu0 0
    %1094 = vmatpush2.bf16.xpose.msra.mxu0 0
    %1095 = vmatprep.subr.bf16.mxu0 0
    %1096 = vmatpush2.bf16.xpose.msra.mxu0 0
    %1097 = vmatprep.subr.bf16.mxu0 0
    %1098 = vmatpush2.bf16.xpose.msra.mxu0 0
    %1099 = vmatprep.subr.bf16.mxu0 0
    %1100 = vmatpush2.bf16.xpose.msra.mxu0 0
    %1101 = vmatprep.subr.bf16.mxu0 0
    %1102 = vmatpush2.bf16.xpose.msra.mxu0 0
    %1103 = vmatprep.subr.bf16.mxu0 0
    %1104 = vmatpush2.bf16.xpose.msra.mxu0 0
    %1105 = vmatprep.mubr.bf16.mxu0 0
    %1106 = vmatmul.mubr.bf16.gmra.mxu0 %v1068
    %v1107 = vpop.f32.mrf.mxu0
    %v1108 = vadd.f32 %v385, %v1107
    %v1109 = vpop.f32.mrf.mxu0
    %v1110 = vpop.f32.mrf.mxu0
    %v1111 = vadd.f32 %v386, %v1110
    %v1112 = vpop.f32.mrf.mxu0
    %1113 = vdwg.mxu0
    %v1114 = vsel %vm757, %v1108, -inf
    %1115 = vmax.xlane.f32.xlu0 %v1114
    %v1116 = vpop.xlane.xlu0 %1115
    %v1117 = vsel %vm757, %v1111, -inf
    %1118 = vmax.xlane.f32.xlu0 %v1117
    %v1119 = vpop.xlane.xlu0 %1118
    %v1120 = vsub.f32 %v1108, %v1116
    %v1121 = vsub.f32 %v1111, %v1119
    %v1122 = vmul.f32 %v1120, 1.442695
    %v1123 = vpow.pop %v1122
    %v1124 = vmul.f32 %v1121, 1.442695
    %v1125 = vpow.pop %v1124
    %v1126 = vsel %vm757, %v1123, 0.0
    %1127 = vadd.xlane.f32.xlu0 %v1126
    %v1128 = vpop.xlane.xlu0 %1127
    %v1129 = vsel %vm757, %v1125, 0.0
    %1130 = vadd.xlane.f32.xlu0 %v1129
    %v1131 = vpop.xlane.xlu0 %1130
    %v1132 = vrcp.pop %v1128
    %v1133 = vrcp.pop %v1131
    %v1134 = vmul.f32 %v1123, %v1132
    %v1135 = vmul.f32 %v1125, %v1133
    %v1136 = vpack.c.bf16 %v1135, %v1134
    %1137 = vrot.lane.b32.xlu0 %v692, 64
    %v1138 = vpop.permute.xlu0 %1137
    %v1141 = vsel %vm757, %v1136, 0
    %1143 = vmatprep.subr.bf16.mxu0 0
    %1144 = vmatpush1.bf16.msra.mxu0 0
    %1145 = vmatprep.subr.bf16.mxu0 0
    %1146 = vmatpush1.bf16.msra.mxu0 0
    %1147 = vmatprep.subr.bf16.mxu0 0
    %1148 = vmatpush1.bf16.msra.mxu0 0
    %1149 = vmatprep.subr.bf16.mxu0 0
    %1150 = vmatpush1.bf16.msra.mxu0 0
    %1151 = vmatprep.subr.bf16.mxu0 0
    %1152 = vmatpush1.bf16.msra.mxu0 0
    %1153 = vmatprep.subr.bf16.mxu0 0
    %1154 = vmatpush1.bf16.msra.mxu0 0
    %1155 = vmatprep.subr.bf16.mxu0 0
    %1156 = vmatpush1.bf16.msra.mxu0 0
    %1157 = vmatprep.subr.bf16.mxu0 0
    %1158 = vmatpush1.bf16.msra.mxu0 %v1138
    %1159 = vmatprep.subr.bf16.mxu0 0
    %1160 = vmatpush2.bf16.msra.mxu0 0
    %1161 = vmatprep.subr.bf16.mxu0 0
    %1162 = vmatpush2.bf16.msra.mxu0 0
    %1163 = vmatprep.subr.bf16.mxu0 0
    %1164 = vmatpush2.bf16.msra.mxu0 0
    %1165 = vmatprep.subr.bf16.mxu0 0
    %1166 = vmatpush2.bf16.msra.mxu0 0
    %1167 = vmatprep.subr.bf16.mxu0 0
    %1168 = vmatpush2.bf16.msra.mxu0 0
    %1169 = vmatprep.subr.bf16.mxu0 0
    %1170 = vmatpush2.bf16.msra.mxu0 0
    %1171 = vmatprep.subr.bf16.mxu0 0
    %1172 = vmatpush2.bf16.msra.mxu0 0
    %1173 = vmatprep.subr.bf16.mxu0 0
    %1174 = vmatpush2.bf16.msra.mxu0 0
    %1175 = vmatprep.mubr.bf16.mxu0 0
    %1176 = vmatmul.mubr.bf16.gmra.mxu0 %v1141
    %v1177 = vpop.f32.mrf.mxu0
    %v1178 = vadd.f32 0.0, %v1177
    %v1179 = vpop.f32.mrf.mxu0
    %v1180 = vpop.f32.mrf.mxu0
    %v1181 = vadd.f32 0.0, %v1180
    %v1182 = vpop.f32.mrf.mxu0
    %1183 = vdwg.mxu0
    %v1184 = vpack.c.bf16 %v1181, %v1178
    %v1189 = vunpack.c.l.b16 %v701
    %v1190 = vunpack.c.l.b16 %v702
    %v1191 = vunpack.c.l.b16 %v703
    %v1192 = vunpack.c.l.b16 %v704
    %v1193 = vpack.c.b16 %v1190, %v1189
    %v1194 = vpack.c.b16 %v1192, %v1191
    %v1198 = vsel %vm709, %v1184, 0
    %1200 = vmatprep.subr.bf16.mxu0 0
    %1201 = vmatpush1.bf16.msra.mxu0 0
    %1202 = vmatprep.subr.bf16.mxu0 0
    %1203 = vmatpush1.bf16.msra.mxu0 0
    %1204 = vmatprep.subr.bf16.mxu0 0
    %1205 = vmatpush1.bf16.msra.mxu0 0
    %1206 = vmatprep.subr.bf16.mxu0 0
    %1207 = vmatpush1.bf16.msra.mxu0 0
    %1208 = vmatprep.subr.bf16.mxu0 0
    %1209 = vmatpush1.bf16.msra.mxu0 0
    %1210 = vmatprep.subr.bf16.mxu0 0
    %1211 = vmatpush1.bf16.msra.mxu0 0
    %1212 = vmatprep.subr.bf16.mxu0 0
    %1213 = vmatpush1.bf16.msra.mxu0 %v1194
    %1214 = vmatprep.subr.bf16.mxu0 0
    %1215 = vmatpush1.bf16.msra.mxu0 %v1193
    %1216 = vmatprep.subr.bf16.mxu0 0
    %1217 = vmatpush2.bf16.msra.mxu0 0
    %1218 = vmatprep.subr.bf16.mxu0 0
    %1219 = vmatpush2.bf16.msra.mxu0 0
    %1220 = vmatprep.subr.bf16.mxu0 0
    %1221 = vmatpush2.bf16.msra.mxu0 0
    %1222 = vmatprep.subr.bf16.mxu0 0
    %1223 = vmatpush2.bf16.msra.mxu0 0
    %1224 = vmatprep.subr.bf16.mxu0 0
    %1225 = vmatpush2.bf16.msra.mxu0 0
    %1226 = vmatprep.subr.bf16.mxu0 0
    %1227 = vmatpush2.bf16.msra.mxu0 0
    %1228 = vmatprep.subr.bf16.mxu0 0
    %1229 = vmatpush2.bf16.msra.mxu0 0
    %1230 = vmatprep.subr.bf16.mxu0 0
    %1231 = vmatpush2.bf16.msra.mxu0 0
    %1232 = vmatprep.mubr.bf16.mxu0 0
    %1233 = vmatmul.mubr.bf16.gmra.mxu0 %v1198
    %v1234 = vpop.f32.mrf.mxu0
    %v1235 = vadd.f32 0.0, %v1234
    %v1236 = vpop.f32.mrf.mxu0
    %v1237 = vpop.f32.mrf.mxu0
    %v1238 = vadd.f32 0.0, %v1237
    %v1239 = vpop.f32.mrf.mxu0
    %1240 = vdwg.mxu0
    %v1241 = vadd.f32 %v1057, %v1235
    %v1242 = vadd.f32 %v1060, %v1238
    %1243 = vrot.lane.b32.xlu0 %v690, 32
    %v1244 = vpop.permute.xlu0 %1243
    %1245 = vrot.lane.b32.xlu0 %v691, 32
    %v1246 = vpop.permute.xlu0 %1245
    %v1248 = vsel %vm709, %v1244, 0
    %v1251 = vsel %vm709, %v1246, 0
    %1253 = vmatprep.subr.bf16.mxu0 0
    %1254 = vmatpush1.bf16.xpose.msra.mxu0 0
    %1255 = vmatprep.subr.bf16.mxu0 0
    %1256 = vmatpush1.bf16.xpose.msra.mxu0 0
    %1257 = vmatprep.subr.bf16.mxu0 0
    %1258 = vmatpush1.bf16.xpose.msra.mxu0 0
    %1259 = vmatprep.subr.bf16.mxu0 0
    %1260 = vmatpush1.bf16.xpose.msra.mxu0 0
    %1261 = vmatprep.subr.bf16.mxu0 0
    %1262 = vmatpush1.bf16.xpose.msra.mxu0 0
    %1263 = vmatprep.subr.bf16.mxu0 0
    %1264 = vmatpush1.bf16.xpose.msra.mxu0 0
    %1265 = vmatprep.subr.bf16.mxu0 0
    %1266 = vmatpush1.bf16.xpose.msra.mxu0 0
    %1267 = vmatprep.subr.bf16.mxu0 0
    %1268 = vmatpush1.bf16.xpose.msra.mxu0 %v1251
    %1269 = vmatprep.subr.bf16.mxu0 0
    %1270 = vmatpush2.bf16.xpose.msra.mxu0 0
    %1271 = vmatprep.subr.bf16.mxu0 0
    %1272 = vmatpush2.bf16.xpose.msra.mxu0 0
    %1273 = vmatprep.subr.bf16.mxu0 0
    %1274 = vmatpush2.bf16.xpose.msra.mxu0 0
    %1275 = vmatprep.subr.bf16.mxu0 0
    %1276 = vmatpush2.bf16.xpose.msra.mxu0 0
    %1277 = vmatprep.subr.bf16.mxu0 0
    %1278 = vmatpush2.bf16.xpose.msra.mxu0 0
    %1279 = vmatprep.subr.bf16.mxu0 0
    %1280 = vmatpush2.bf16.xpose.msra.mxu0 0
    %1281 = vmatprep.subr.bf16.mxu0 0
    %1282 = vmatpush2.bf16.xpose.msra.mxu0 0
    %1283 = vmatprep.subr.bf16.mxu0 0
    %1284 = vmatpush2.bf16.xpose.msra.mxu0 0
    %1285 = vmatprep.mubr.bf16.mxu0 0
    %1286 = vmatmul.mubr.bf16.gmra.mxu0 %v1248
    %v1287 = vpop.f32.mrf.mxu0
    %v1288 = vadd.f32 %v385, %v1287
    %v1289 = vpop.f32.mrf.mxu0
    %v1290 = vpop.f32.mrf.mxu0
    %v1291 = vadd.f32 %v386, %v1290
    %v1292 = vpop.f32.mrf.mxu0
    %1293 = vdwg.mxu0
    %v1294 = vsel %vm757, %v1288, -inf
    %1295 = vmax.xlane.f32.xlu0 %v1294
    %v1296 = vpop.xlane.xlu0 %1295
    %v1297 = vsel %vm757, %v1291, -inf
    %1298 = vmax.xlane.f32.xlu0 %v1297
    %v1299 = vpop.xlane.xlu0 %1298
    %v1300 = vsub.f32 %v1288, %v1296
    %v1301 = vsub.f32 %v1291, %v1299
    %v1302 = vmul.f32 %v1300, 1.442695
    %v1303 = vpow.pop %v1302
    %v1304 = vmul.f32 %v1301, 1.442695
    %v1305 = vpow.pop %v1304
    %v1306 = vsel %vm757, %v1303, 0.0
    %1307 = vadd.xlane.f32.xlu0 %v1306
    %v1308 = vpop.xlane.xlu0 %1307
    %v1309 = vsel %vm757, %v1305, 0.0
    %1310 = vadd.xlane.f32.xlu0 %v1309
    %v1311 = vpop.xlane.xlu0 %1310
    %v1312 = vrcp.pop %v1308
    %v1313 = vrcp.pop %v1311
    %v1314 = vmul.f32 %v1303, %v1312
    %v1315 = vmul.f32 %v1305, %v1313
    %v1316 = vpack.c.bf16 %v1315, %v1314
    %1317 = vrot.lane.b32.xlu0 %v692, 32
    %v1318 = vpop.permute.xlu0 %1317
    %v1321 = vsel %vm757, %v1316, 0
    %1323 = vmatprep.subr.bf16.mxu0 0
    %1324 = vmatpush1.bf16.msra.mxu0 0
    %1325 = vmatprep.subr.bf16.mxu0 0
    %1326 = vmatpush1.bf16.msra.mxu0 0
    %1327 = vmatprep.subr.bf16.mxu0 0
    %1328 = vmatpush1.bf16.msra.mxu0 0
    %1329 = vmatprep.subr.bf16.mxu0 0
    %1330 = vmatpush1.bf16.msra.mxu0 0
    %1331 = vmatprep.subr.bf16.mxu0 0
    %1332 = vmatpush1.bf16.msra.mxu0 0
    %1333 = vmatprep.subr.bf16.mxu0 0
    %1334 = vmatpush1.bf16.msra.mxu0 0
    %1335 = vmatprep.subr.bf16.mxu0 0
    %1336 = vmatpush1.bf16.msra.mxu0 0
    %1337 = vmatprep.subr.bf16.mxu0 0
    %1338 = vmatpush1.bf16.msra.mxu0 %v1318
    %1339 = vmatprep.subr.bf16.mxu0 0
    %1340 = vmatpush2.bf16.msra.mxu0 0
    %1341 = vmatprep.subr.bf16.mxu0 0
    %1342 = vmatpush2.bf16.msra.mxu0 0
    %1343 = vmatprep.subr.bf16.mxu0 0
    %1344 = vmatpush2.bf16.msra.mxu0 0
    %1345 = vmatprep.subr.bf16.mxu0 0
    %1346 = vmatpush2.bf16.msra.mxu0 0
    %1347 = vmatprep.subr.bf16.mxu0 0
    %1348 = vmatpush2.bf16.msra.mxu0 0
    %1349 = vmatprep.subr.bf16.mxu0 0
    %1350 = vmatpush2.bf16.msra.mxu0 0
    %1351 = vmatprep.subr.bf16.mxu0 0
    %1352 = vmatpush2.bf16.msra.mxu0 0
    %1353 = vmatprep.subr.bf16.mxu0 0
    %1354 = vmatpush2.bf16.msra.mxu0 0
    %1355 = vmatprep.mubr.bf16.mxu0 0
    %1356 = vmatmul.mubr.bf16.gmra.mxu0 %v1321
    %v1357 = vpop.f32.mrf.mxu0
    %v1358 = vadd.f32 0.0, %v1357
    %v1359 = vpop.f32.mrf.mxu0
    %v1360 = vpop.f32.mrf.mxu0
    %v1361 = vadd.f32 0.0, %v1360
    %v1362 = vpop.f32.mrf.mxu0
    %1363 = vdwg.mxu0
    %v1364 = vpack.c.bf16 %v1361, %v1358
    %v1369 = vunpack.c.l.b16 %v705
    %v1370 = vunpack.c.l.b16 %v706
    %v1371 = vunpack.c.l.b16 %v707
    %v1372 = vunpack.c.l.b16 %v708
    %v1373 = vpack.c.b16 %v1370, %v1369
    %v1374 = vpack.c.b16 %v1372, %v1371
    %v1378 = vsel %vm709, %v1364, 0
    %1380 = vmatprep.subr.bf16.mxu0 0
    %1381 = vmatpush1.bf16.msra.mxu0 0
    %1382 = vmatprep.subr.bf16.mxu0 0
    %1383 = vmatpush1.bf16.msra.mxu0 0
    %1384 = vmatprep.subr.bf16.mxu0 0
    %1385 = vmatpush1.bf16.msra.mxu0 0
    %1386 = vmatprep.subr.bf16.mxu0 0
    %1387 = vmatpush1.bf16.msra.mxu0 0
    %1388 = vmatprep.subr.bf16.mxu0 0
    %1389 = vmatpush1.bf16.msra.mxu0 0
    %1390 = vmatprep.subr.bf16.mxu0 0
    %1391 = vmatpush1.bf16.msra.mxu0 0
    %1392 = vmatprep.subr.bf16.mxu0 0
    %1393 = vmatpush1.bf16.msra.mxu0 %v1374
    %1394 = vmatprep.subr.bf16.mxu0 0
    %1395 = vmatpush1.bf16.msra.mxu0 %v1373
    %1396 = vmatprep.subr.bf16.mxu0 0
    %1397 = vmatpush2.bf16.msra.mxu0 0
    %1398 = vmatprep.subr.bf16.mxu0 0
    %1399 = vmatpush2.bf16.msra.mxu0 0
    %1400 = vmatprep.subr.bf16.mxu0 0
    %1401 = vmatpush2.bf16.msra.mxu0 0
    %1402 = vmatprep.subr.bf16.mxu0 0
    %1403 = vmatpush2.bf16.msra.mxu0 0
    %1404 = vmatprep.subr.bf16.mxu0 0
    %1405 = vmatpush2.bf16.msra.mxu0 0
    %1406 = vmatprep.subr.bf16.mxu0 0
    %1407 = vmatpush2.bf16.msra.mxu0 0
    %1408 = vmatprep.subr.bf16.mxu0 0
    %1409 = vmatpush2.bf16.msra.mxu0 0
    %1410 = vmatprep.subr.bf16.mxu0 0
    %1411 = vmatpush2.bf16.msra.mxu0 0
    %1412 = vmatprep.mubr.bf16.mxu0 0
    %1413 = vmatmul.mubr.bf16.gmra.mxu0 %v1378
    %v1414 = vpop.f32.mrf.mxu0
    %v1415 = vadd.f32 0.0, %v1414
    %v1416 = vpop.f32.mrf.mxu0
    %v1417 = vpop.f32.mrf.mxu0
    %v1418 = vadd.f32 0.0, %v1417
    %v1419 = vpop.f32.mrf.mxu0
    %1420 = vdwg.mxu0
    %v1421 = vadd.f32 %v1241, %v1415
    %v1422 = vadd.f32 %v1242, %v1418
    %v1423 = vadd.f32 %v379, %v1421
    %v1424 = vadd.f32 %v382, %v1422
    %v1425 = vld [vmem:[#allocation16] sm:$0x1]
    %v1427 = vlaneseq
    %v1428 = vshrl.u32 %v1427, 7
    %v1429 = vsub.s32 0, %v1428
    %v1430 = vrot.slane %v1425, %v1429
    %v1432 = vadd.f32 %v1423, %v1430
    %v1433 = vadd.f32 %v1424, %v1430
    %v1434 = vld [vmem:[#allocation17] sm:$0x1]
    %v1435 = vld [vmem:[#allocation19] sm:$0x1]
    %1436 = vadd.xlane.f32.xlu0 %v1432
    %v1437 = vpop.xlane.xlu0 %1436
    %1438 = vadd.xlane.f32.xlu0 %v1433
    %v1439 = vpop.xlane.xlu0 %1438
    %v1440 = vmul.f32 %v1437, %v393
    %v1441 = vmul.f32 %v1439, %v393
    %v1442 = vsub.f32 %v1432, %v1440
    %v1443 = vsub.f32 %v1433, %v1441
    %v1444 = vmul.f32 %v1442, %v1442
    %v1445 = vmul.f32 %v1443, %v1443
    %1446 = vadd.xlane.f32.xlu0 %v1444
    %v1447 = vpop.xlane.xlu0 %1446
    %1448 = vadd.xlane.f32.xlu0 %v1445
    %v1449 = vpop.xlane.xlu0 %1448
    %v1450 = vmul.f32 %v1447, %v393
    %v1451 = vmul.f32 %v1449, %v393
    %v1452 = vadd.f32 %v1450, 1e-06
    %v1453 = vadd.f32 %v1451, 1e-06
    %v1454 = vrsqrt.pop %v1452
    %v1455 = vrsqrt.pop %v1453
    %v1456 = vmul.f32 %v1442, %v1454
    %v1457 = vmul.f32 %v1443, %v1455
    %v1459 = vlaneseq
    %v1460 = vshrl.u32 %v1459, 7
    %v1461 = vsub.s32 0, %v1460
    %v1462 = vrot.slane %v1434, %v1461
    %v1464 = vmul.f32 %v1456, %v1462
    %v1465 = vmul.f32 %v1457, %v1462
    %v1467 = vlaneseq
    %v1468 = vshrl.u32 %v1467, 7
    %v1469 = vsub.s32 0, %v1468
    %v1470 = vrot.slane %v1435, %v1469
    %v1472 = vadd.f32 %v1464, %v1470
    %v1473 = vadd.f32 %v1465, %v1470
    %v1474 = vpack.c.bf16 %v1473, %v1472
    %v1475 = vld [vmem:[#allocation20] sm:$0xff]
    %v1476 = vld [vmem:[#allocation20 + $0x8] sm:$0xff]
    %v1477 = vld [vmem:[#allocation20 + $0x10] sm:$0xff]
    %v1478 = vld [vmem:[#allocation20 + $0x18] sm:$0xff]
    %v1479 = vld [vmem:[#allocation20 + $0x20] sm:$0xff]
    %v1480 = vld [vmem:[#allocation20 + $0x28] sm:$0xff]
    %v1481 = vld [vmem:[#allocation20 + $0x30] sm:$0xff]
    %v1482 = vld [vmem:[#allocation20 + $0x38] sm:$0xff]
    %v1483 = vld [vmem:[#allocation20 + $0x40] sm:$0xff]
    %v1484 = vld [vmem:[#allocation20 + $0x48] sm:$0xff]
    %v1485 = vld [vmem:[#allocation20 + $0x50] sm:$0xff]
    %v1486 = vld [vmem:[#allocation20 + $0x58] sm:$0xff]
    %v1487 = vld [vmem:[#allocation20 + $0x60] sm:$0xff]
    %v1488 = vld [vmem:[#allocation20 + $0x68] sm:$0xff]
    %v1489 = vld [vmem:[#allocation20 + $0x70] sm:$0xff]
    %v1490 = vld [vmem:[#allocation20 + $0x78] sm:$0xff]
    %v1491 = vld [vmem:[#allocation20 + $0x80] sm:$0xff]
    %v1492 = vld [vmem:[#allocation20 + $0x88] sm:$0xff]
    %v1493 = vld [vmem:[#allocation20 + $0x90] sm:$0xff]
    %v1494 = vld [vmem:[#allocation20 + $0x98] sm:$0xff]
    %v1495 = vld [vmem:[#allocation20 + $0xa0] sm:$0xff]
    %v1496 = vld [vmem:[#allocation20 + $0xa8] sm:$0xff]
    %v1497 = vld [vmem:[#allocation20 + $0xb0] sm:$0xff]
    %v1498 = vld [vmem:[#allocation20 + $0xb8] sm:$0xff]
    %v1499 = vld [vmem:[#allocation20 + $0xc0] sm:$0xff]
    %v1500 = vld [vmem:[#allocation20 + $0xc8] sm:$0xff]
    %v1501 = vld [vmem:[#allocation20 + $0xd0] sm:$0xff]
    %v1502 = vld [vmem:[#allocation20 + $0xd8] sm:$0xff]
    %v1503 = vld [vmem:[#allocation20 + $0xe0] sm:$0xff]
    %v1504 = vld [vmem:[#allocation20 + $0xe8] sm:$0xff]
    %v1505 = vld [vmem:[#allocation20 + $0xf0] sm:$0xff]
    %v1506 = vld [vmem:[#allocation20 + $0xf8] sm:$0xff]
    %v1507 = vld [vmem:[%s13] sm:$0xf]
    %v1509 = vlaneseq
    %v1510 = vshrl.u32 %v1509, 7
    %v1511 = vsub.s32 0, %v1510
    %v1512 = vrot.slane %v1507, %v1511
    %v1513 = vlaneseq
    %v1514 = vshrl.u32 %v1513, 7
    %v1515 = vsub.s32 1, %v1514
    %v1516 = vrot.slane %v1507, %v1515
    %v1517 = vlaneseq
    %v1518 = vshrl.u32 %v1517, 7
    %v1519 = vsub.s32 2, %v1518
    %v1520 = vrot.slane %v1507, %v1519
    %v1521 = vlaneseq
    %v1522 = vshrl.u32 %v1521, 7
    %v1523 = vsub.s32 3, %v1522
    %v1524 = vrot.slane %v1507, %v1523
    %v1561 = vunpack.c.l.b16 %v1475
    %v1562 = vunpack.c.h.b16 %v1475
    %v1563 = vunpack.c.l.b16 %v1476
    %v1564 = vunpack.c.h.b16 %v1476
    %v1565 = vunpack.c.l.b16 %v1477
    %v1566 = vunpack.c.h.b16 %v1477
    %v1567 = vunpack.c.l.b16 %v1478
    %v1568 = vunpack.c.h.b16 %v1478
    %v1569 = vunpack.c.l.b16 %v1479
    %v1570 = vunpack.c.h.b16 %v1479
    %v1571 = vunpack.c.l.b16 %v1480
    %v1572 = vunpack.c.h.b16 %v1480
    %v1573 = vunpack.c.l.b16 %v1481
    %v1574 = vunpack.c.h.b16 %v1481
    %v1575 = vunpack.c.l.b16 %v1482
    %v1576 = vunpack.c.h.b16 %v1482
    %v1577 = vunpack.c.l.b16 %v1483
    %v1578 = vunpack.c.h.b16 %v1483
    %v1579 = vunpack.c.l.b16 %v1484
    %v1580 = vunpack.c.h.b16 %v1484
    %v1581 = vunpack.c.l.b16 %v1485
    %v1582 = vunpack.c.h.b16 %v1485
    %v1583 = vunpack.c.l.b16 %v1486
    %v1584 = vunpack.c.h.b16 %v1486
    %v1585 = vunpack.c.l.b16 %v1487
    %v1586 = vunpack.c.h.b16 %v1487
    %v1587 = vunpack.c.l.b16 %v1488
    %v1588 = vunpack.c.h.b16 %v1488
    %v1589 = vunpack.c.l.b16 %v1489
    %v1590 = vunpack.c.h.b16 %v1489
    %v1591 = vunpack.c.l.b16 %v1490
    %v1592 = vunpack.c.h.b16 %v1490
    %v1593 = vunpack.c.l.b16 %v1491
    %v1594 = vunpack.c.h.b16 %v1491
    %v1595 = vunpack.c.l.b16 %v1492
    %v1596 = vunpack.c.h.b16 %v1492
    %v1597 = vunpack.c.l.b16 %v1493
    %v1598 = vunpack.c.h.b16 %v1493
    %v1599 = vunpack.c.l.b16 %v1494
    %v1600 = vunpack.c.h.b16 %v1494
    %v1601 = vunpack.c.l.b16 %v1495
    %v1602 = vunpack.c.h.b16 %v1495
    %v1603 = vunpack.c.l.b16 %v1496
    %v1604 = vunpack.c.h.b16 %v1496
    %v1605 = vunpack.c.l.b16 %v1497
    %v1606 = vunpack.c.h.b16 %v1497
    %v1607 = vunpack.c.l.b16 %v1498
    %v1608 = vunpack.c.h.b16 %v1498
    %v1609 = vunpack.c.l.b16 %v1499
    %v1610 = vunpack.c.h.b16 %v1499
    %v1611 = vunpack.c.l.b16 %v1500
    %v1612 = vunpack.c.h.b16 %v1500
    %v1613 = vunpack.c.l.b16 %v1501
    %v1614 = vunpack.c.h.b16 %v1501
    %v1615 = vunpack.c.l.b16 %v1502
    %v1616 = vunpack.c.h.b16 %v1502
    %v1617 = vunpack.c.l.b16 %v1503
    %v1618 = vunpack.c.h.b16 %v1503
    %v1619 = vunpack.c.l.b16 %v1504
    %v1620 = vunpack.c.h.b16 %v1504
    %v1621 = vunpack.c.l.b16 %v1505
    %v1622 = vunpack.c.h.b16 %v1505
    %v1623 = vunpack.c.l.b16 %v1506
    %v1624 = vunpack.c.h.b16 %v1506
    %v1625 = vpack.c.b16 %v1565, %v1561
    %v1626 = vpack.c.b16 %v1566, %v1562
    %v1627 = vpack.c.b16 %v1567, %v1563
    %v1628 = vpack.c.b16 %v1568, %v1564
    %v1629 = vpack.c.b16 %v1573, %v1569
    %v1630 = vpack.c.b16 %v1574, %v1570
    %v1631 = vpack.c.b16 %v1575, %v1571
    %v1632 = vpack.c.b16 %v1576, %v1572
    %v1633 = vpack.c.b16 %v1581, %v1577
    %v1634 = vpack.c.b16 %v1582, %v1578
    %v1635 = vpack.c.b16 %v1583, %v1579
    %v1636 = vpack.c.b16 %v1584, %v1580
    %v1637 = vpack.c.b16 %v1589, %v1585
    %v1638 = vpack.c.b16 %v1590, %v1586
    %v1639 = vpack.c.b16 %v1591, %v1587
    %v1640 = vpack.c.b16 %v1592, %v1588
    %v1641 = vpack.c.b16 %v1597, %v1593
    %v1642 = vpack.c.b16 %v1598, %v1594
    %v1643 = vpack.c.b16 %v1599, %v1595
    %v1644 = vpack.c.b16 %v1600, %v1596
    %v1645 = vpack.c.b16 %v1605, %v1601
    %v1646 = vpack.c.b16 %v1606, %v1602
    %v1647 = vpack.c.b16 %v1607, %v1603
    %v1648 = vpack.c.b16 %v1608, %v1604
    %v1649 = vpack.c.b16 %v1613, %v1609
    %v1650 = vpack.c.b16 %v1614, %v1610
    %v1651 = vpack.c.b16 %v1615, %v1611
    %v1652 = vpack.c.b16 %v1616, %v1612
    %v1653 = vpack.c.b16 %v1621, %v1617
    %v1654 = vpack.c.b16 %v1622, %v1618
    %v1655 = vpack.c.b16 %v1623, %v1619
    %v1656 = vpack.c.b16 %v1624, %v1620
    %1689 = vmatprep.subr.bf16.mxu0 %v1654
    %1690 = vmatpush1.bf16.msra.mxu0 %v1653
    %1691 = vmatprep.subr.bf16.mxu0 %v1650
    %1692 = vmatpush1.bf16.msra.mxu0 %v1649
    %1693 = vmatprep.subr.bf16.mxu0 %v1646
    %1694 = vmatpush1.bf16.msra.mxu0 %v1645
    %1695 = vmatprep.subr.bf16.mxu0 %v1642
    %1696 = vmatpush1.bf16.msra.mxu0 %v1641
    %1697 = vmatprep.subr.bf16.mxu0 %v1638
    %1698 = vmatpush1.bf16.msra.mxu0 %v1637
    %1699 = vmatprep.subr.bf16.mxu0 %v1634
    %1700 = vmatpush1.bf16.msra.mxu0 %v1633
    %1701 = vmatprep.subr.bf16.mxu0 %v1630
    %1702 = vmatpush1.bf16.msra.mxu0 %v1629
    %1703 = vmatprep.subr.bf16.mxu0 %v1626
    %1704 = vmatpush1.bf16.msra.mxu0 %v1625
    %1705 = vmatprep.subr.bf16.mxu0 0
    %1706 = vmatpush2.bf16.msra.mxu0 0
    %1707 = vmatprep.subr.bf16.mxu0 0
    %1708 = vmatpush2.bf16.msra.mxu0 0
    %1709 = vmatprep.subr.bf16.mxu0 0
    %1710 = vmatpush2.bf16.msra.mxu0 0
    %1711 = vmatprep.subr.bf16.mxu0 0
    %1712 = vmatpush2.bf16.msra.mxu0 0
    %1713 = vmatprep.subr.bf16.mxu0 0
    %1714 = vmatpush2.bf16.msra.mxu0 0
    %1715 = vmatprep.subr.bf16.mxu0 0
    %1716 = vmatpush2.bf16.msra.mxu0 0
    %1717 = vmatprep.subr.bf16.mxu0 0
    %1718 = vmatpush2.bf16.msra.mxu0 0
    %1719 = vmatprep.subr.bf16.mxu0 0
    %1720 = vmatpush2.bf16.msra.mxu0 0
    %1721 = vmatprep.mubr.bf16.mxu0 0
    %1722 = vmatmul.mubr.bf16.gmra.mxu0 %v1474
    %v1723 = vpop.f32.mrf.mxu0
    %v1724 = vadd.f32 %v1512, %v1723
    %v1725 = vpop.f32.mrf.mxu0
    %v1726 = vadd.f32 %v1516, %v1725
    %v1727 = vpop.f32.mrf.mxu0
    %v1728 = vadd.f32 %v1512, %v1727
    %v1729 = vpop.f32.mrf.mxu0
    %v1730 = vadd.f32 %v1516, %v1729
    %1731 = vdwg.mxu0
    %1732 = vmatprep.subr.bf16.mxu0 %v1656
    %1733 = vmatpush1.bf16.msra.mxu0 %v1655
    %1734 = vmatprep.subr.bf16.mxu0 %v1652
    %1735 = vmatpush1.bf16.msra.mxu0 %v1651
    %1736 = vmatprep.subr.bf16.mxu0 %v1648
    %1737 = vmatpush1.bf16.msra.mxu0 %v1647
    %1738 = vmatprep.subr.bf16.mxu0 %v1644
    %1739 = vmatpush1.bf16.msra.mxu0 %v1643
    %1740 = vmatprep.subr.bf16.mxu0 %v1640
    %1741 = vmatpush1.bf16.msra.mxu0 %v1639
    %1742 = vmatprep.subr.bf16.mxu0 %v1636
    %1743 = vmatpush1.bf16.msra.mxu0 %v1635
    %1744 = vmatprep.subr.bf16.mxu0 %v1632
    %1745 = vmatpush1.bf16.msra.mxu0 %v1631
    %1746 = vmatprep.subr.bf16.mxu0 %v1628
    %1747 = vmatpush1.bf16.msra.mxu0 %v1627
    %1748 = vmatprep.subr.bf16.mxu0 0
    %1749 = vmatpush2.bf16.msra.mxu0 0
    %1750 = vmatprep.subr.bf16.mxu0 0
    %1751 = vmatpush2.bf16.msra.mxu0 0
    %1752 = vmatprep.subr.bf16.mxu0 0
    %1753 = vmatpush2.bf16.msra.mxu0 0
    %1754 = vmatprep.subr.bf16.mxu0 0
    %1755 = vmatpush2.bf16.msra.mxu0 0
    %1756 = vmatprep.subr.bf16.mxu0 0
    %1757 = vmatpush2.bf16.msra.mxu0 0
    %1758 = vmatprep.subr.bf16.mxu0 0
    %1759 = vmatpush2.bf16.msra.mxu0 0
    %1760 = vmatprep.subr.bf16.mxu0 0
    %1761 = vmatpush2.bf16.msra.mxu0 0
    %1762 = vmatprep.subr.bf16.mxu0 0
    %1763 = vmatpush2.bf16.msra.mxu0 0
    %1764 = vmatprep.mubr.bf16.mxu0 0
    %1765 = vmatmul.mubr.bf16.gmra.mxu0 %v1474
    %v1766 = vpop.f32.mrf.mxu0
    %v1767 = vadd.f32 %v1520, %v1766
    %v1768 = vpop.f32.mrf.mxu0
    %v1769 = vadd.f32 %v1524, %v1768
    %v1770 = vpop.f32.mrf.mxu0
    %v1771 = vadd.f32 %v1520, %v1770
    %v1772 = vpop.f32.mrf.mxu0
    %v1773 = vadd.f32 %v1524, %v1772
    %1774 = vdwg.mxu0
    %v1775 = vmul.f32 %v1724, %v1724
    %v1776 = vmul.f32 %v1726, %v1726
    %v1777 = vmul.f32 %v1767, %v1767
    %v1778 = vmul.f32 %v1769, %v1769
    %v1779 = vmul.f32 %v1728, %v1728
    %v1780 = vmul.f32 %v1730, %v1730
    %v1781 = vmul.f32 %v1771, %v1771
    %v1782 = vmul.f32 %v1773, %v1773
    %v1783 = vmul.f32 %v1724, %v1775
    %v1784 = vmul.f32 %v1726, %v1776
    %v1785 = vmul.f32 %v1767, %v1777
    %v1786 = vmul.f32 %v1769, %v1778
    %v1787 = vmul.f32 %v1728, %v1779
    %v1788 = vmul.f32 %v1730, %v1780
    %v1789 = vmul.f32 %v1771, %v1781
    %v1790 = vmul.f32 %v1773, %v1782
    %v1791 = vmul.f32 %v1783, 0.044715
    %v1792 = vmul.f32 %v1784, 0.044715
    %v1793 = vmul.f32 %v1785, 0.044715
    %v1794 = vmul.f32 %v1786, 0.044715
    %v1795 = vmul.f32 %v1787, 0.044715
    %v1796 = vmul.f32 %v1788, 0.044715
    %v1797 = vmul.f32 %v1789, 0.044715
    %v1798 = vmul.f32 %v1790, 0.044715
    %v1799 = vadd.f32 %v1724, %v1791
    %v1800 = vadd.f32 %v1726, %v1792
    %v1801 = vadd.f32 %v1767, %v1793
    %v1802 = vadd.f32 %v1769, %v1794
    %v1803 = vadd.f32 %v1728, %v1795
    %v1804 = vadd.f32 %v1730, %v1796
    %v1805 = vadd.f32 %v1771, %v1797
    %v1806 = vadd.f32 %v1773, %v1798
    %v1807 = vmul.f32 %v1799, 0.7978846
    %v1808 = vmul.f32 %v1800, 0.7978846
    %v1809 = vmul.f32 %v1801, 0.7978846
    %v1810 = vmul.f32 %v1802, 0.7978846
    %v1811 = vmul.f32 %v1803, 0.7978846
    %v1812 = vmul.f32 %v1804, 0.7978846
    %v1813 = vmul.f32 %v1805, 0.7978846
    %v1814 = vmul.f32 %v1806, 0.7978846
    %v1815 = vtanh.pop %v1807
    %v1816 = vtanh.pop %v1808
    %v1817 = vtanh.pop %v1809
    %v1818 = vtanh.pop %v1810
    %v1819 = vtanh.pop %v1811
    %v1820 = vtanh.pop %v1812
    %v1821 = vtanh.pop %v1813
    %v1822 = vtanh.pop %v1814
    %v1823 = vadd.f32 %v1815, 1.0
    %v1824 = vadd.f32 %v1816, 1.0
    %v1825 = vadd.f32 %v1817, 1.0
    %v1826 = vadd.f32 %v1818, 1.0
    %v1827 = vadd.f32 %v1819, 1.0
    %v1828 = vadd.f32 %v1820, 1.0
    %v1829 = vadd.f32 %v1821, 1.0
    %v1830 = vadd.f32 %v1822, 1.0
    %v1831 = vmul.f32 %v1823, 0.5
    %v1832 = vmul.f32 %v1824, 0.5
    %v1833 = vmul.f32 %v1825, 0.5
    %v1834 = vmul.f32 %v1826, 0.5
    %v1835 = vmul.f32 %v1827, 0.5
    %v1836 = vmul.f32 %v1828, 0.5
    %v1837 = vmul.f32 %v1829, 0.5
    %v1838 = vmul.f32 %v1830, 0.5
    %v1839 = vmul.f32 %v1724, %v1831
    %v1840 = vmul.f32 %v1726, %v1832
    %v1841 = vmul.f32 %v1767, %v1833
    %v1842 = vmul.f32 %v1769, %v1834
    %v1843 = vmul.f32 %v1728, %v1835
    %v1844 = vmul.f32 %v1730, %v1836
    %v1845 = vmul.f32 %v1771, %v1837
    %v1846 = vmul.f32 %v1773, %v1838
    %v1847 = vpack.c.bf16 %v1843, %v1839
    %v1848 = vpack.c.bf16 %v1844, %v1840
    %v1849 = vpack.c.bf16 %v1845, %v1841
    %v1850 = vpack.c.bf16 %v1846, %v1842
    %v1851 = vld [vmem:[#allocation22] sm:$0xf]
    %v1852 = vld [vmem:[#allocation22 + $0x4] sm:$0xf]
    %v1853 = vld [vmem:[#allocation22 + $0x8] sm:$0xf]
    %v1854 = vld [vmem:[#allocation22 + $0xc] sm:$0xf]
    %v1855 = vld [vmem:[#allocation22 + $0x10] sm:$0xf]
    %v1856 = vld [vmem:[#allocation22 + $0x14] sm:$0xf]
    %v1857 = vld [vmem:[#allocation22 + $0x18] sm:$0xf]
    %v1858 = vld [vmem:[#allocation22 + $0x1c] sm:$0xf]
    %v1859 = vld [vmem:[#allocation22 + $0x20] sm:$0xf]
    %v1860 = vld [vmem:[#allocation22 + $0x24] sm:$0xf]
    %v1861 = vld [vmem:[#allocation22 + $0x28] sm:$0xf]
    %v1862 = vld [vmem:[#allocation22 + $0x2c] sm:$0xf]
    %v1863 = vld [vmem:[#allocation22 + $0x30] sm:$0xf]
    %v1864 = vld [vmem:[#allocation22 + $0x34] sm:$0xf]
    %v1865 = vld [vmem:[#allocation22 + $0x38] sm:$0xf]
    %v1866 = vld [vmem:[#allocation22 + $0x3c] sm:$0xf]
    %v1867 = vld [vmem:[#allocation22 + $0x40] sm:$0xf]
    %v1868 = vld [vmem:[#allocation22 + $0x44] sm:$0xf]
    %v1869 = vld [vmem:[#allocation22 + $0x48] sm:$0xf]
    %v1870 = vld [vmem:[#allocation22 + $0x4c] sm:$0xf]
    %v1871 = vld [vmem:[#allocation22 + $0x50] sm:$0xf]
    %v1872 = vld [vmem:[#allocation22 + $0x54] sm:$0xf]
    %v1873 = vld [vmem:[#allocation22 + $0x58] sm:$0xf]
    %v1874 = vld [vmem:[#allocation22 + $0x5c] sm:$0xf]
    %v1875 = vld [vmem:[#allocation22 + $0x60] sm:$0xf]
    %v1876 = vld [vmem:[#allocation22 + $0x64] sm:$0xf]
    %v1877 = vld [vmem:[#allocation22 + $0x68] sm:$0xf]
    %v1878 = vld [vmem:[#allocation22 + $0x6c] sm:$0xf]
    %v1879 = vld [vmem:[#allocation22 + $0x70] sm:$0xf]
    %v1880 = vld [vmem:[#allocation22 + $0x74] sm:$0xf]
    %v1881 = vld [vmem:[#allocation22 + $0x78] sm:$0xf]
    %v1882 = vld [vmem:[#allocation22 + $0x7c] sm:$0xf]
    %v1883 = vld [vmem:[#allocation22 + $0x80] sm:$0xf]
    %v1884 = vld [vmem:[#allocation22 + $0x84] sm:$0xf]
    %v1885 = vld [vmem:[#allocation22 + $0x88] sm:$0xf]
    %v1886 = vld [vmem:[#allocation22 + $0x8c] sm:$0xf]
    %v1887 = vld [vmem:[#allocation22 + $0x90] sm:$0xf]
    %v1888 = vld [vmem:[#allocation22 + $0x94] sm:$0xf]
    %v1889 = vld [vmem:[#allocation22 + $0x98] sm:$0xf]
    %v1890 = vld [vmem:[#allocation22 + $0x9c] sm:$0xf]
    %v1891 = vld [vmem:[#allocation22 + $0xa0] sm:$0xf]
    %v1892 = vld [vmem:[#allocation22 + $0xa4] sm:$0xf]
    %v1893 = vld [vmem:[#allocation22 + $0xa8] sm:$0xf]
    %v1894 = vld [vmem:[#allocation22 + $0xac] sm:$0xf]
    %v1895 = vld [vmem:[#allocation22 + $0xb0] sm:$0xf]
    %v1896 = vld [vmem:[#allocation22 + $0xb4] sm:$0xf]
    %v1897 = vld [vmem:[#allocation22 + $0xb8] sm:$0xf]
    %v1898 = vld [vmem:[#allocation22 + $0xbc] sm:$0xf]
    %v1899 = vld [vmem:[#allocation22 + $0xc0] sm:$0xf]
    %v1900 = vld [vmem:[#allocation22 + $0xc4] sm:$0xf]
    %v1901 = vld [vmem:[#allocation22 + $0xc8] sm:$0xf]
    %v1902 = vld [vmem:[#allocation22 + $0xcc] sm:$0xf]
    %v1903 = vld [vmem:[#allocation22 + $0xd0] sm:$0xf]
    %v1904 = vld [vmem:[#allocation22 + $0xd4] sm:$0xf]
    %v1905 = vld [vmem:[#allocation22 + $0xd8] sm:$0xf]
    %v1906 = vld [vmem:[#allocation22 + $0xdc] sm:$0xf]
    %v1907 = vld [vmem:[#allocation22 + $0xe0] sm:$0xf]
    %v1908 = vld [vmem:[#allocation22 + $0xe4] sm:$0xf]
    %v1909 = vld [vmem:[#allocation22 + $0xe8] sm:$0xf]
    %v1910 = vld [vmem:[#allocation22 + $0xec] sm:$0xf]
    %v1911 = vld [vmem:[#allocation22 + $0xf0] sm:$0xf]
    %v1912 = vld [vmem:[#allocation22 + $0xf4] sm:$0xf]
    %v1913 = vld [vmem:[#allocation22 + $0xf8] sm:$0xf]
    %v1914 = vld [vmem:[#allocation22 + $0xfc] sm:$0xf]
    %v1915 = vld [vmem:[%s15] sm:$0x1]
    %v1917 = vlaneseq
    %v1918 = vshrl.u32 %v1917, 7
    %v1919 = vsub.s32 0, %v1918
    %v1920 = vrot.slane %v1915, %v1919
    %v1986 = vunpack.c.l.b16 %v1851
    %v1987 = vunpack.c.l.b16 %v1852
    %v1988 = vunpack.c.l.b16 %v1853
    %v1989 = vunpack.c.l.b16 %v1854
    %v1990 = vunpack.c.l.b16 %v1855
    %v1991 = vunpack.c.l.b16 %v1856
    %v1992 = vunpack.c.l.b16 %v1857
    %v1993 = vunpack.c.l.b16 %v1858
    %v1994 = vunpack.c.l.b16 %v1859
    %v1995 = vunpack.c.l.b16 %v1860
    %v1996 = vunpack.c.l.b16 %v1861
    %v1997 = vunpack.c.l.b16 %v1862
    %v1998 = vunpack.c.l.b16 %v1863
    %v1999 = vunpack.c.l.b16 %v1864
    %v2000 = vunpack.c.l.b16 %v1865
    %v2001 = vunpack.c.l.b16 %v1866
    %v2002 = vunpack.c.l.b16 %v1867
    %v2003 = vunpack.c.l.b16 %v1868
    %v2004 = vunpack.c.l.b16 %v1869
    %v2005 = vunpack.c.l.b16 %v1870
    %v2006 = vunpack.c.l.b16 %v1871
    %v2007 = vunpack.c.l.b16 %v1872
    %v2008 = vunpack.c.l.b16 %v1873
    %v2009 = vunpack.c.l.b16 %v1874
    %v2010 = vunpack.c.l.b16 %v1875
    %v2011 = vunpack.c.l.b16 %v1876
    %v2012 = vunpack.c.l.b16 %v1877
    %v2013 = vunpack.c.l.b16 %v1878
    %v2014 = vunpack.c.l.b16 %v1879
    %v2015 = vunpack.c.l.b16 %v1880
    %v2016 = vunpack.c.l.b16 %v1881
    %v2017 = vunpack.c.l.b16 %v1882
    %v2018 = vunpack.c.l.b16 %v1883
    %v2019 = vunpack.c.l.b16 %v1884
    %v2020 = vunpack.c.l.b16 %v1885
    %v2021 = vunpack.c.l.b16 %v1886
    %v2022 = vunpack.c.l.b16 %v1887
    %v2023 = vunpack.c.l.b16 %v1888
    %v2024 = vunpack.c.l.b16 %v1889
    %v2025 = vunpack.c.l.b16 %v1890
    %v2026 = vunpack.c.l.b16 %v1891
    %v2027 = vunpack.c.l.b16 %v1892
    %v2028 = vunpack.c.l.b16 %v1893
    %v2029 = vunpack.c.l.b16 %v1894
    %v2030 = vunpack.c.l.b16 %v1895
    %v2031 = vunpack.c.l.b16 %v1896
    %v2032 = vunpack.c.l.b16 %v1897
    %v2033 = vunpack.c.l.b16 %v1898
    %v2034 = vunpack.c.l.b16 %v1899
    %v2035 = vunpack.c.l.b16 %v1900
    %v2036 = vunpack.c.l.b16 %v1901
    %v2037 = vunpack.c.l.b16 %v1902
    %v2038 = vunpack.c.l.b16 %v1903
    %v2039 = vunpack.c.l.b16 %v1904
    %v2040 = vunpack.c.l.b16 %v1905
    %v2041 = vunpack.c.l.b16 %v1906
    %v2042 = vunpack.c.l.b16 %v1907
    %v2043 = vunpack.c.l.b16 %v1908
    %v2044 = vunpack.c.l.b16 %v1909
    %v2045 = vunpack.c.l.b16 %v1910
    %v2046 = vunpack.c.l.b16 %v1911
    %v2047 = vunpack.c.l.b16 %v1912
    %v2048 = vunpack.c.l.b16 %v1913
    %v2049 = vunpack.c.l.b16 %v1914
    %v2050 = vpack.c.b16 %v1987, %v1986
    %v2051 = vpack.c.b16 %v1989, %v1988
    %v2052 = vpack.c.b16 %v1991, %v1990
    %v2053 = vpack.c.b16 %v1993, %v1992
    %v2054 = vpack.c.b16 %v1995, %v1994
    %v2055 = vpack.c.b16 %v1997, %v1996
    %v2056 = vpack.c.b16 %v1999, %v1998
    %v2057 = vpack.c.b16 %v2001, %v2000
    %v2058 = vpack.c.b16 %v2003, %v2002
    %v2059 = vpack.c.b16 %v2005, %v2004
    %v2060 = vpack.c.b16 %v2007, %v2006
    %v2061 = vpack.c.b16 %v2009, %v2008
    %v2062 = vpack.c.b16 %v2011, %v2010
    %v2063 = vpack.c.b16 %v2013, %v2012
    %v2064 = vpack.c.b16 %v2015, %v2014
    %v2065 = vpack.c.b16 %v2017, %v2016
    %v2066 = vpack.c.b16 %v2019, %v2018
    %v2067 = vpack.c.b16 %v2021, %v2020
    %v2068 = vpack.c.b16 %v2023, %v2022
    %v2069 = vpack.c.b16 %v2025, %v2024
    %v2070 = vpack.c.b16 %v2027, %v2026
    %v2071 = vpack.c.b16 %v2029, %v2028
    %v2072 = vpack.c.b16 %v2031, %v2030
    %v2073 = vpack.c.b16 %v2033, %v2032
    %v2074 = vpack.c.b16 %v2035, %v2034
    %v2075 = vpack.c.b16 %v2037, %v2036
    %v2076 = vpack.c.b16 %v2039, %v2038
    %v2077 = vpack.c.b16 %v2041, %v2040
    %v2078 = vpack.c.b16 %v2043, %v2042
    %v2079 = vpack.c.b16 %v2045, %v2044
    %v2080 = vpack.c.b16 %v2047, %v2046
    %v2081 = vpack.c.b16 %v2049, %v2048
    %2114 = vmatprep.subr.bf16.mxu0 0
    %2115 = vmatpush1.bf16.msra.mxu0 %v2057
    %2116 = vmatprep.subr.bf16.mxu0 0
    %2117 = vmatpush1.bf16.msra.mxu0 %v2056
    %2118 = vmatprep.subr.bf16.mxu0 0
    %2119 = vmatpush1.bf16.msra.mxu0 %v2055
    %2120 = vmatprep.subr.bf16.mxu0 0
    %2121 = vmatpush1.bf16.msra.mxu0 %v2054
    %2122 = vmatprep.subr.bf16.mxu0 0
    %2123 = vmatpush1.bf16.msra.mxu0 %v2053
    %2124 = vmatprep.subr.bf16.mxu0 0
    %2125 = vmatpush1.bf16.msra.mxu0 %v2052
    %2126 = vmatprep.subr.bf16.mxu0 0
    %2127 = vmatpush1.bf16.msra.mxu0 %v2051
    %2128 = vmatprep.subr.bf16.mxu0 0
    %2129 = vmatpush1.bf16.msra.mxu0 %v2050
    %2130 = vmatprep.subr.bf16.mxu0 0
    %2131 = vmatpush2.bf16.msra.mxu0 %v2065
    %2132 = vmatprep.subr.bf16.mxu0 0
    %2133 = vmatpush2.bf16.msra.mxu0 %v2064
    %2134 = vmatprep.subr.bf16.mxu0 0
    %2135 = vmatpush2.bf16.msra.mxu0 %v2063
    %2136 = vmatprep.subr.bf16.mxu0 0
    %2137 = vmatpush2.bf16.msra.mxu0 %v2062
    %2138 = vmatprep.subr.bf16.mxu0 0
    %2139 = vmatpush2.bf16.msra.mxu0 %v2061
    %2140 = vmatprep.subr.bf16.mxu0 0
    %2141 = vmatpush2.bf16.msra.mxu0 %v2060
    %2142 = vmatprep.subr.bf16.mxu0 0
    %2143 = vmatpush2.bf16.msra.mxu0 %v2059
    %2144 = vmatprep.subr.bf16.mxu0 0
    %2145 = vmatpush2.bf16.msra.mxu0 %v2058
    %2146 = vmatprep.mubr.bf16.mxu0 %v1848
    %2147 = vmatmul.mubr.bf16.gmra.mxu0 %v1847
    %v2148 = vpop.f32.mrf.mxu0
    %v2149 = vadd.f32 %v1920, %v2148
    %v2150 = vpop.f32.mrf.mxu0
    %v2151 = vpop.f32.mrf.mxu0
    %v2152 = vadd.f32 %v1920, %v2151
    %v2153 = vpop.f32.mrf.mxu0
    %2154 = vdwg.mxu0
    %2155 = vmatprep.subr.bf16.mxu0 0
    %2156 = vmatpush1.bf16.msra.mxu0 %v2073
    %2157 = vmatprep.subr.bf16.mxu0 0
    %2158 = vmatpush1.bf16.msra.mxu0 %v2072
    %2159 = vmatprep.subr.bf16.mxu0 0
    %2160 = vmatpush1.bf16.msra.mxu0 %v2071
    %2161 = vmatprep.subr.bf16.mxu0 0
    %2162 = vmatpush1.bf16.msra.mxu0 %v2070
    %2163 = vmatprep.subr.bf16.mxu0 0
    %2164 = vmatpush1.bf16.msra.mxu0 %v2069
    %2165 = vmatprep.subr.bf16.mxu0 0
    %2166 = vmatpush1.bf16.msra.mxu0 %v2068
    %2167 = vmatprep.subr.bf16.mxu0 0
    %2168 = vmatpush1.bf16.msra.mxu0 %v2067
    %2169 = vmatprep.subr.bf16.mxu0 0
    %2170 = vmatpush1.bf16.msra.mxu0 %v2066
    %2171 = vmatprep.subr.bf16.mxu0 0
    %2172 = vmatpush2.bf16.msra.mxu0 %v2081
    %2173 = vmatprep.subr.bf16.mxu0 0
    %2174 = vmatpush2.bf16.msra.mxu0 %v2080
    %2175 = vmatprep.subr.bf16.mxu0 0
    %2176 = vmatpush2.bf16.msra.mxu0 %v2079
    %2177 = vmatprep.subr.bf16.mxu0 0
    %2178 = vmatpush2.bf16.msra.mxu0 %v2078
    %2179 = vmatprep.subr.bf16.mxu0 0
    %2180 = vmatpush2.bf16.msra.mxu0 %v2077
    %2181 = vmatprep.subr.bf16.mxu0 0
    %2182 = vmatpush2.bf16.msra.mxu0 %v2076
    %2183 = vmatprep.subr.bf16.mxu0 0
    %2184 = vmatpush2.bf16.msra.mxu0 %v2075
    %2185 = vmatprep.subr.bf16.mxu0 0
    %2186 = vmatpush2.bf16.msra.mxu0 %v2074
    %2187 = vmatprep.mubr.bf16.mxu0 %v1850
    %2188 = vmatmul.mubr.bf16.gmra.mxu0 %v1849
    %v2189 = vpop.f32.mrf.mxu0
    %v2190 = vadd.f32 %v2149, %v2189
    %v2191 = vpop.f32.mrf.mxu0
    %v2192 = vpop.f32.mrf.mxu0
    %v2193 = vadd.f32 %v2152, %v2192
    %v2194 = vpop.f32.mrf.mxu0
    %2195 = vdwg.mxu0
    %v2196 = vadd.f32 %v1432, %v2190
    %v2197 = vadd.f32 %v1433, %v2193
    %s2198 = scalar_lea.vmem [#allocation10], 1
    %v2199 = vld [vmem:[%s2198] sm:$0x1]
    %s2200 = scalar_lea.vmem [#allocation11], 1
    %v2201 = vld [vmem:[%s2200] sm:$0x1]
    %2202 = vadd.xlane.f32.xlu0 %v2196
    %v2203 = vpop.xlane.xlu0 %2202
    %2204 = vadd.xlane.f32.xlu0 %v2197
    %v2205 = vpop.xlane.xlu0 %2204
    %v2206 = vmul.f32 %v2203, %v393
    %v2207 = vmul.f32 %v2205, %v393
    %v2208 = vsub.f32 %v2196, %v2206
    %v2209 = vsub.f32 %v2197, %v2207
    %v2210 = vmul.f32 %v2208, %v2208
    %v2211 = vmul.f32 %v2209, %v2209
    %2212 = vadd.xlane.f32.xlu0 %v2210
    %v2213 = vpop.xlane.xlu0 %2212
    %2214 = vadd.xlane.f32.xlu0 %v2211
    %v2215 = vpop.xlane.xlu0 %2214
    %v2216 = vmul.f32 %v2213, %v393
    %v2217 = vmul.f32 %v2215, %v393
    %v2218 = vadd.f32 %v2216, 1e-06
    %v2219 = vadd.f32 %v2217, 1e-06
    %v2220 = vrsqrt.pop %v2218
    %v2221 = vrsqrt.pop %v2219
    %v2222 = vmul.f32 %v2208, %v2220
    %v2223 = vmul.f32 %v2209, %v2221
    %v2225 = vlaneseq
    %v2226 = vshrl.u32 %v2225, 7
    %v2227 = vsub.s32 0, %v2226
    %v2228 = vrot.slane %v2199, %v2227
    %v2230 = vmul.f32 %v2222, %v2228
    %v2231 = vmul.f32 %v2223, %v2228
    %v2233 = vlaneseq
    %v2234 = vshrl.u32 %v2233, 7
    %v2235 = vsub.s32 0, %v2234
    %v2236 = vrot.slane %v2201, %v2235
    %v2238 = vadd.f32 %v2230, %v2236
    %v2239 = vadd.f32 %v2231, %v2236
    %v2240 = vpack.c.bf16 %v2239, %v2238
    %s2241 = scalar_lea.vmem [#allocation13], 192
    %v2242 = vld [vmem:[%s2241] sm:$0xff]
    %v2243 = vld [vmem:[%s2241 + $0x8] sm:$0xf]
    %v2244 = vld [vmem:[%s2241 + $0xc] sm:$0xff]
    %v2245 = vld [vmem:[%s2241 + $0x14] sm:$0xf]
    %v2246 = vld [vmem:[%s2241 + $0x18] sm:$0xff]
    %v2247 = vld [vmem:[%s2241 + $0x20] sm:$0xf]
    %v2248 = vld [vmem:[%s2241 + $0x24] sm:$0xff]
    %v2249 = vld [vmem:[%s2241 + $0x2c] sm:$0xf]
    %v2250 = vld [vmem:[%s2241 + $0x30] sm:$0xff]
    %v2251 = vld [vmem:[%s2241 + $0x38] sm:$0xf]
    %v2252 = vld [vmem:[%s2241 + $0x3c] sm:$0xff]
    %v2253 = vld [vmem:[%s2241 + $0x44] sm:$0xf]
    %v2254 = vld [vmem:[%s2241 + $0x48] sm:$0xff]
    %v2255 = vld [vmem:[%s2241 + $0x50] sm:$0xf]
    %v2256 = vld [vmem:[%s2241 + $0x54] sm:$0xff]
    %v2257 = vld [vmem:[%s2241 + $0x5c] sm:$0xf]
    %v2258 = vld [vmem:[%s2241 + $0x60] sm:$0xff]
    %v2259 = vld [vmem:[%s2241 + $0x68] sm:$0xf]
    %v2260 = vld [vmem:[%s2241 + $0x6c] sm:$0xff]
    %v2261 = vld [vmem:[%s2241 + $0x74] sm:$0xf]
    %v2262 = vld [vmem:[%s2241 + $0x78] sm:$0xff]
    %v2263 = vld [vmem:[%s2241 + $0x80] sm:$0xf]
    %v2264 = vld [vmem:[%s2241 + $0x84] sm:$0xff]
    %v2265 = vld [vmem:[%s2241 + $0x8c] sm:$0xf]
    %v2266 = vld [vmem:[%s2241 + $0x90] sm:$0xff]
    %v2267 = vld [vmem:[%s2241 + $0x98] sm:$0xf]
    %v2268 = vld [vmem:[%s2241 + $0x9c] sm:$0xff]
    %v2269 = vld [vmem:[%s2241 + $0xa4] sm:$0xf]
    %v2270 = vld [vmem:[%s2241 + $0xa8] sm:$0xff]
    %v2271 = vld [vmem:[%s2241 + $0xb0] sm:$0xf]
    %v2272 = vld [vmem:[%s2241 + $0xb4] sm:$0xff]
    %v2273 = vld [vmem:[%s2241 + $0xbc] sm:$0xf]
    %s2274 = scalar_lea.vmem %s7, 3
    %v2275 = vld [vmem:[%s2274] sm:$0x7]
    %v2277 = vlaneseq
    %v2278 = vshrl.u32 %v2277, 7
    %v2279 = vsub.s32 0, %v2278
    %v2280 = vrot.slane %v2275, %v2279
    %v2281 = vlaneseq
    %v2282 = vshrl.u32 %v2281, 7
    %v2283 = vsub.s32 1, %v2282
    %v2284 = vrot.slane %v2275, %v2283
    %v2285 = vlaneseq
    %v2286 = vshrl.u32 %v2285, 7
    %v2287 = vsub.s32 2, %v2286
    %v2288 = vrot.slane %v2275, %v2287
    %v2324 = vunpack.c.l.b16 %v2242
    %v2325 = vunpack.c.h.b16 %v2242
    %v2326 = vunpack.c.l.b16 %v2243
    %v2327 = vunpack.c.l.b16 %v2244
    %v2328 = vunpack.c.h.b16 %v2244
    %v2329 = vunpack.c.l.b16 %v2245
    %v2330 = vunpack.c.l.b16 %v2246
    %v2331 = vunpack.c.h.b16 %v2246
    %v2332 = vunpack.c.l.b16 %v2247
    %v2333 = vunpack.c.l.b16 %v2248
    %v2334 = vunpack.c.h.b16 %v2248
    %v2335 = vunpack.c.l.b16 %v2249
    %v2336 = vunpack.c.l.b16 %v2250
    %v2337 = vunpack.c.h.b16 %v2250
    %v2338 = vunpack.c.l.b16 %v2251
    %v2339 = vunpack.c.l.b16 %v2252
    %v2340 = vunpack.c.h.b16 %v2252
    %v2341 = vunpack.c.l.b16 %v2253
    %v2342 = vunpack.c.l.b16 %v2254
    %v2343 = vunpack.c.h.b16 %v2254
    %v2344 = vunpack.c.l.b16 %v2255
    %v2345 = vunpack.c.l.b16 %v2256
    %v2346 = vunpack.c.h.b16 %v2256
    %v2347 = vunpack.c.l.b16 %v2257
    %v2348 = vunpack.c.l.b16 %v2258
    %v2349 = vunpack.c.h.b16 %v2258
    %v2350 = vunpack.c.l.b16 %v2259
    %v2351 = vunpack.c.l.b16 %v2260
    %v2352 = vunpack.c.h.b16 %v2260
    %v2353 = vunpack.c.l.b16 %v2261
    %v2354 = vunpack.c.l.b16 %v2262
    %v2355 = vunpack.c.h.b16 %v2262
    %v2356 = vunpack.c.l.b16 %v2263
    %v2357 = vunpack.c.l.b16 %v2264
    %v2358 = vunpack.c.h.b16 %v2264
    %v2359 = vunpack.c.l.b16 %v2265
    %v2360 = vunpack.c.l.b16 %v2266
    %v2361 = vunpack.c.h.b16 %v2266
    %v2362 = vunpack.c.l.b16 %v2267
    %v2363 = vunpack.c.l.b16 %v2268
    %v2364 = vunpack.c.h.b16 %v2268
    %v2365 = vunpack.c.l.b16 %v2269
    %v2366 = vunpack.c.l.b16 %v2270
    %v2367 = vunpack.c.h.b16 %v2270
    %v2368 = vunpack.c.l.b16 %v2271
    %v2369 = vunpack.c.l.b16 %v2272
    %v2370 = vunpack.c.h.b16 %v2272
    %v2371 = vunpack.c.l.b16 %v2273
    %v2372 = vpack.c.b16 %v2327, %v2324
    %v2373 = vpack.c.b16 %v2328, %v2325
    %v2374 = vpack.c.b16 %v2329, %v2326
    %v2375 = vpack.c.b16 %v2333, %v2330
    %v2376 = vpack.c.b16 %v2334, %v2331
    %v2377 = vpack.c.b16 %v2335, %v2332
    %v2378 = vpack.c.b16 %v2339, %v2336
    %v2379 = vpack.c.b16 %v2340, %v2337
    %v2380 = vpack.c.b16 %v2341, %v2338
    %v2381 = vpack.c.b16 %v2345, %v2342
    %v2382 = vpack.c.b16 %v2346, %v2343
    %v2383 = vpack.c.b16 %v2347, %v2344
    %v2384 = vpack.c.b16 %v2351, %v2348
    %v2385 = vpack.c.b16 %v2352, %v2349
    %v2386 = vpack.c.b16 %v2353, %v2350
    %v2387 = vpack.c.b16 %v2357, %v2354
    %v2388 = vpack.c.b16 %v2358, %v2355
    %v2389 = vpack.c.b16 %v2359, %v2356
    %v2390 = vpack.c.b16 %v2363, %v2360
    %v2391 = vpack.c.b16 %v2364, %v2361
    %v2392 = vpack.c.b16 %v2365, %v2362
    %v2393 = vpack.c.b16 %v2369, %v2366
    %v2394 = vpack.c.b16 %v2370, %v2367
    %v2395 = vpack.c.b16 %v2371, %v2368
    %2420 = vmatprep.subr.bf16.mxu0 %v2394
    %2421 = vmatpush1.bf16.msra.mxu0 %v2393
    %2422 = vmatprep.subr.bf16.mxu0 %v2391
    %2423 = vmatpush1.bf16.msra.mxu0 %v2390
    %2424 = vmatprep.subr.bf16.mxu0 %v2388
    %2425 = vmatpush1.bf16.msra.mxu0 %v2387
    %2426 = vmatprep.subr.bf16.mxu0 %v2385
    %2427 = vmatpush1.bf16.msra.mxu0 %v2384
    %2428 = vmatprep.subr.bf16.mxu0 %v2382
    %2429 = vmatpush1.bf16.msra.mxu0 %v2381
    %2430 = vmatprep.subr.bf16.mxu0 %v2379
    %2431 = vmatpush1.bf16.msra.mxu0 %v2378
    %2432 = vmatprep.subr.bf16.mxu0 %v2376
    %2433 = vmatpush1.bf16.msra.mxu0 %v2375
    %2434 = vmatprep.subr.bf16.mxu0 %v2373
    %2435 = vmatpush1.bf16.msra.mxu0 %v2372
    %2436 = vmatprep.subr.bf16.mxu0 0
    %2437 = vmatpush2.bf16.msra.mxu0 0
    %2438 = vmatprep.subr.bf16.mxu0 0
    %2439 = vmatpush2.bf16.msra.mxu0 0
    %2440 = vmatprep.subr.bf16.mxu0 0
    %2441 = vmatpush2.bf16.msra.mxu0 0
    %2442 = vmatprep.subr.bf16.mxu0 0
    %2443 = vmatpush2.bf16.msra.mxu0 0
    %2444 = vmatprep.subr.bf16.mxu0 0
    %2445 = vmatpush2.bf16.msra.mxu0 0
    %2446 = vmatprep.subr.bf16.mxu0 0
    %2447 = vmatpush2.bf16.msra.mxu0 0
    %2448 = vmatprep.subr.bf16.mxu0 0
    %2449 = vmatpush2.bf16.msra.mxu0 0
    %2450 = vmatprep.subr.bf16.mxu0 0
    %2451 = vmatpush2.bf16.msra.mxu0 0
    %2452 = vmatprep.mubr.bf16.mxu0 0
    %2453 = vmatmul.mubr.bf16.gmra.mxu0 %v2240
    %v2454 = vpop.f32.mrf.mxu0
    %v2455 = vadd.f32 %v2280, %v2454
    %v2456 = vpop.f32.mrf.mxu0
    %v2457 = vadd.f32 %v2284, %v2456
    %v2458 = vpop.f32.mrf.mxu0
    %v2459 = vadd.f32 %v2280, %v2458
    %v2460 = vpop.f32.mrf.mxu0
    %v2461 = vadd.f32 %v2284, %v2460
    %2462 = vdwg.mxu0
    %2463 = vmatprep.subr.bf16.mxu0 0
    %2464 = vmatpush1.bf16.msra.mxu0 %v2395
    %2465 = vmatprep.subr.bf16.mxu0 0
    %2466 = vmatpush1.bf16.msra.mxu0 %v2392
    %2467 = vmatprep.subr.bf16.mxu0 0
    %2468 = vmatpush1.bf16.msra.mxu0 %v2389
    %2469 = vmatprep.subr.bf16.mxu0 0
    %2470 = vmatpush1.bf16.msra.mxu0 %v2386
    %2471 = vmatprep.subr.bf16.mxu0 0
    %2472 = vmatpush1.bf16.msra.mxu0 %v2383
    %2473 = vmatprep.subr.bf16.mxu0 0
    %2474 = vmatpush1.bf16.msra.mxu0 %v2380
    %2475 = vmatprep.subr.bf16.mxu0 0
    %2476 = vmatpush1.bf16.msra.mxu0 %v2377
    %2477 = vmatprep.subr.bf16.mxu0 0
    %2478 = vmatpush1.bf16.msra.mxu0 %v2374
    %2479 = vmatprep.subr.bf16.mxu0 0
    %2480 = vmatpush2.bf16.msra.mxu0 0
    %2481 = vmatprep.subr.bf16.mxu0 0
    %2482 = vmatpush2.bf16.msra.mxu0 0
    %2483 = vmatprep.subr.bf16.mxu0 0
    %2484 = vmatpush2.bf16.msra.mxu0 0
    %2485 = vmatprep.subr.bf16.mxu0 0
    %2486 = vmatpush2.bf16.msra.mxu0 0
    %2487 = vmatprep.subr.bf16.mxu0 0
    %2488 = vmatpush2.bf16.msra.mxu0 0
    %2489 = vmatprep.subr.bf16.mxu0 0
    %2490 = vmatpush2.bf16.msra.mxu0 0
    %2491 = vmatprep.subr.bf16.mxu0 0
    %2492 = vmatpush2.bf16.msra.mxu0 0
    %2493 = vmatprep.subr.bf16.mxu0 0
    %2494 = vmatpush2.bf16.msra.mxu0 0
    %2495 = vmatprep.mubr.bf16.mxu0 0
    %2496 = vmatmul.mubr.bf16.gmra.mxu0 %v2240
    %v2497 = vpop.f32.mrf.mxu0
    %v2498 = vadd.f32 %v2288, %v2497
    %v2499 = vpop.f32.mrf.mxu0
    %v2500 = vpop.f32.mrf.mxu0
    %v2501 = vadd.f32 %v2288, %v2500
    %v2502 = vpop.f32.mrf.mxu0
    %2503 = vdwg.mxu0
    %v2504 = vpack.c.bf16 %v2459, %v2455
    %v2505 = vpack.c.bf16 %v2461, %v2457
    %v2506 = vpack.c.bf16 %v2501, %v2498
    %s2507 = scalar_lea.vmem [#allocation14], 64
    %v2508 = vld [vmem:[%s2507] sm:$0xf]
    %v2509 = vld [vmem:[%s2507 + $0x4] sm:$0xf]
    %v2510 = vld [vmem:[%s2507 + $0x8] sm:$0xf]
    %v2511 = vld [vmem:[%s2507 + $0xc] sm:$0xf]
    %v2512 = vld [vmem:[%s2507 + $0x10] sm:$0xf]
    %v2513 = vld [vmem:[%s2507 + $0x14] sm:$0xf]
    %v2514 = vld [vmem:[%s2507 + $0x18] sm:$0xf]
    %v2515 = vld [vmem:[%s2507 + $0x1c] sm:$0xf]
    %v2516 = vld [vmem:[%s2507 + $0x20] sm:$0xf]
    %v2517 = vld [vmem:[%s2507 + $0x24] sm:$0xf]
    %v2518 = vld [vmem:[%s2507 + $0x28] sm:$0xf]
    %v2519 = vld [vmem:[%s2507 + $0x2c] sm:$0xf]
    %v2520 = vld [vmem:[%s2507 + $0x30] sm:$0xf]
    %v2521 = vld [vmem:[%s2507 + $0x34] sm:$0xf]
    %v2522 = vld [vmem:[%s2507 + $0x38] sm:$0xf]
    %v2523 = vld [vmem:[%s2507 + $0x3c] sm:$0xf]
    %v2525 = vsel %vm709, %v2504, 0
    %v2528 = vsel %vm709, %v2505, 0
    %2530 = vmatprep.subr.bf16.mxu0 0
    %2531 = vmatpush1.bf16.xpose.msra.mxu0 0
    %2532 = vmatprep.subr.bf16.mxu0 0
    %2533 = vmatpush1.bf16.xpose.msra.mxu0 0
    %2534 = vmatprep.subr.bf16.mxu0 0
    %2535 = vmatpush1.bf16.xpose.msra.mxu0 0
    %2536 = vmatprep.subr.bf16.mxu0 0
    %2537 = vmatpush1.bf16.xpose.msra.mxu0 0
    %2538 = vmatprep.subr.bf16.mxu0 0
    %2539 = vmatpush1.bf16.xpose.msra.mxu0 0
    %2540 = vmatprep.subr.bf16.mxu0 0
    %2541 = vmatpush1.bf16.xpose.msra.mxu0 0
    %2542 = vmatprep.subr.bf16.mxu0 0
    %2543 = vmatpush1.bf16.xpose.msra.mxu0 0
    %2544 = vmatprep.subr.bf16.mxu0 0
    %2545 = vmatpush1.bf16.xpose.msra.mxu0 %v2528
    %2546 = vmatprep.subr.bf16.mxu0 0
    %2547 = vmatpush2.bf16.xpose.msra.mxu0 0
    %2548 = vmatprep.subr.bf16.mxu0 0
    %2549 = vmatpush2.bf16.xpose.msra.mxu0 0
    %2550 = vmatprep.subr.bf16.mxu0 0
    %2551 = vmatpush2.bf16.xpose.msra.mxu0 0
    %2552 = vmatprep.subr.bf16.mxu0 0
    %2553 = vmatpush2.bf16.xpose.msra.mxu0 0
    %2554 = vmatprep.subr.bf16.mxu0 0
    %2555 = vmatpush2.bf16.xpose.msra.mxu0 0
    %2556 = vmatprep.subr.bf16.mxu0 0
    %2557 = vmatpush2.bf16.xpose.msra.mxu0 0
    %2558 = vmatprep.subr.bf16.mxu0 0
    %2559 = vmatpush2.bf16.xpose.msra.mxu0 0
    %2560 = vmatprep.subr.bf16.mxu0 0
    %2561 = vmatpush2.bf16.xpose.msra.mxu0 0
    %2562 = vmatprep.mubr.bf16.mxu0 0
    %2563 = vmatmul.mubr.bf16.gmra.mxu0 %v2525
    %v2564 = vpop.f32.mrf.mxu0
    %v2565 = vadd.f32 %v385, %v2564
    %v2566 = vpop.f32.mrf.mxu0
    %v2567 = vpop.f32.mrf.mxu0
    %v2568 = vadd.f32 %v386, %v2567
    %v2569 = vpop.f32.mrf.mxu0
    %2570 = vdwg.mxu0
    %v2571 = vsel %vm757, %v2565, -inf
    %2572 = vmax.xlane.f32.xlu0 %v2571
    %v2573 = vpop.xlane.xlu0 %2572
    %v2574 = vsel %vm757, %v2568, -inf
    %2575 = vmax.xlane.f32.xlu0 %v2574
    %v2576 = vpop.xlane.xlu0 %2575
    %v2577 = vsub.f32 %v2565, %v2573
    %v2578 = vsub.f32 %v2568, %v2576
    %v2579 = vmul.f32 %v2577, 1.442695
    %v2580 = vpow.pop %v2579
    %v2581 = vmul.f32 %v2578, 1.442695
    %v2582 = vpow.pop %v2581
    %v2583 = vsel %vm757, %v2580, 0.0
    %2584 = vadd.xlane.f32.xlu0 %v2583
    %v2585 = vpop.xlane.xlu0 %2584
    %v2586 = vsel %vm757, %v2582, 0.0
    %2587 = vadd.xlane.f32.xlu0 %v2586
    %v2588 = vpop.xlane.xlu0 %2587
    %v2589 = vrcp.pop %v2585
    %v2590 = vrcp.pop %v2588
    %v2591 = vmul.f32 %v2580, %v2589
    %v2592 = vmul.f32 %v2582, %v2590
    %v2593 = vpack.c.bf16 %v2592, %v2591
    %v2595 = vsel %vm757, %v2593, 0
    %2597 = vmatprep.subr.bf16.mxu0 0
    %2598 = vmatpush1.bf16.msra.mxu0 0
    %2599 = vmatprep.subr.bf16.mxu0 0
    %2600 = vmatpush1.bf16.msra.mxu0 0
    %2601 = vmatprep.subr.bf16.mxu0 0
    %2602 = vmatpush1.bf16.msra.mxu0 0
    %2603 = vmatprep.subr.bf16.mxu0 0
    %2604 = vmatpush1.bf16.msra.mxu0 0
    %2605 = vmatprep.subr.bf16.mxu0 0
    %2606 = vmatpush1.bf16.msra.mxu0 0
    %2607 = vmatprep.subr.bf16.mxu0 0
    %2608 = vmatpush1.bf16.msra.mxu0 0
    %2609 = vmatprep.subr.bf16.mxu0 0
    %2610 = vmatpush1.bf16.msra.mxu0 0
    %2611 = vmatprep.subr.bf16.mxu0 0
    %2612 = vmatpush1.bf16.msra.mxu0 %v2506
    %2613 = vmatprep.subr.bf16.mxu0 0
    %2614 = vmatpush2.bf16.msra.mxu0 0
    %2615 = vmatprep.subr.bf16.mxu0 0
    %2616 = vmatpush2.bf16.msra.mxu0 0
    %2617 = vmatprep.subr.bf16.mxu0 0
    %2618 = vmatpush2.bf16.msra.mxu0 0
    %2619 = vmatprep.subr.bf16.mxu0 0
    %2620 = vmatpush2.bf16.msra.mxu0 0
    %2621 = vmatprep.subr.bf16.mxu0 0
    %2622 = vmatpush2.bf16.msra.mxu0 0
    %2623 = vmatprep.subr.bf16.mxu0 0
    %2624 = vmatpush2.bf16.msra.mxu0 0
    %2625 = vmatprep.subr.bf16.mxu0 0
    %2626 = vmatpush2.bf16.msra.mxu0 0
    %2627 = vmatprep.subr.bf16.mxu0 0
    %2628 = vmatpush2.bf16.msra.mxu0 0
    %2629 = vmatprep.mubr.bf16.mxu0 0
    %2630 = vmatmul.mubr.bf16.gmra.mxu0 %v2595
    %v2631 = vpop.f32.mrf.mxu0
    %v2632 = vadd.f32 0.0, %v2631
    %v2633 = vpop.f32.mrf.mxu0
    %v2634 = vpop.f32.mrf.mxu0
    %v2635 = vadd.f32 0.0, %v2634
    %v2636 = vpop.f32.mrf.mxu0
    %2637 = vdwg.mxu0
    %v2638 = vpack.c.bf16 %v2635, %v2632
    %2640 = vrot.lane.b32.xlu0 %v2504, 96
    %v2641 = vpop.permute.xlu0 %2640
    %2643 = vrot.lane.b32.xlu0 %v2505, 96
    %v2644 = vpop.permute.xlu0 %2643
    %v2646 = vsel %vm709, %v2641, 0
    %v2649 = vsel %vm709, %v2644, 0
    %2651 = vmatprep.subr.bf16.mxu0 0
    %2652 = vmatpush1.bf16.xpose.msra.mxu0 0
    %2653 = vmatprep.subr.bf16.mxu0 0
    %2654 = vmatpush1.bf16.xpose.msra.mxu0 0
    %2655 = vmatprep.subr.bf16.mxu0 0
    %2656 = vmatpush1.bf16.xpose.msra.mxu0 0
    %2657 = vmatprep.subr.bf16.mxu0 0
    %2658 = vmatpush1.bf16.xpose.msra.mxu0 0
    %2659 = vmatprep.subr.bf16.mxu0 0
    %2660 = vmatpush1.bf16.xpose.msra.mxu0 0
    %2661 = vmatprep.subr.bf16.mxu0 0
    %2662 = vmatpush1.bf16.xpose.msra.mxu0 0
    %2663 = vmatprep.subr.bf16.mxu0 0
    %2664 = vmatpush1.bf16.xpose.msra.mxu0 0
    %2665 = vmatprep.subr.bf16.mxu0 0
    %2666 = vmatpush1.bf16.xpose.msra.mxu0 %v2649
    %2667 = vmatprep.subr.bf16.mxu0 0
    %2668 = vmatpush2.bf16.xpose.msra.mxu0 0
    %2669 = vmatprep.subr.bf16.mxu0 0
    %2670 = vmatpush2.bf16.xpose.msra.mxu0 0
    %2671 = vmatprep.subr.bf16.mxu0 0
    %2672 = vmatpush2.bf16.xpose.msra.mxu0 0
    %2673 = vmatprep.subr.bf16.mxu0 0
    %2674 = vmatpush2.bf16.xpose.msra.mxu0 0
    %2675 = vmatprep.subr.bf16.mxu0 0
    %2676 = vmatpush2.bf16.xpose.msra.mxu0 0
    %2677 = vmatprep.subr.bf16.mxu0 0
    %2678 = vmatpush2.bf16.xpose.msra.mxu0 0
    %2679 = vmatprep.subr.bf16.mxu0 0
    %2680 = vmatpush2.bf16.xpose.msra.mxu0 0
    %2681 = vmatprep.subr.bf16.mxu0 0
    %2682 = vmatpush2.bf16.xpose.msra.mxu0 0
    %2683 = vmatprep.mubr.bf16.mxu0 0
    %2684 = vmatmul.mubr.bf16.gmra.mxu0 %v2646
    %v2685 = vpop.f32.mrf.mxu0
    %v2686 = vadd.f32 %v385, %v2685
    %v2687 = vpop.f32.mrf.mxu0
    %v2688 = vpop.f32.mrf.mxu0
    %v2689 = vadd.f32 %v386, %v2688
    %v2690 = vpop.f32.mrf.mxu0
    %2691 = vdwg.mxu0
    %v2692 = vsel %vm757, %v2686, -inf
    %2693 = vmax.xlane.f32.xlu0 %v2692
    %v2694 = vpop.xlane.xlu0 %2693
    %v2695 = vsel %vm757, %v2689, -inf
    %2696 = vmax.xlane.f32.xlu0 %v2695
    %v2697 = vpop.xlane.xlu0 %2696
    %v2698 = vsub.f32 %v2686, %v2694
    %v2699 = vsub.f32 %v2689, %v2697
    %v2700 = vmul.f32 %v2698, 1.442695
    %v2701 = vpow.pop %v2700
    %v2702 = vmul.f32 %v2699, 1.442695
    %v2703 = vpow.pop %v2702
    %v2704 = vsel %vm757, %v2701, 0.0
    %2705 = vadd.xlane.f32.xlu0 %v2704
    %v2706 = vpop.xlane.xlu0 %2705
    %v2707 = vsel %vm757, %v2703, 0.0
    %2708 = vadd.xlane.f32.xlu0 %v2707
    %v2709 = vpop.xlane.xlu0 %2708
    %v2710 = vrcp.pop %v2706
    %v2711 = vrcp.pop %v2709
    %v2712 = vmul.f32 %v2701, %v2710
    %v2713 = vmul.f32 %v2703, %v2711
    %v2714 = vpack.c.bf16 %v2713, %v2712
    %2716 = vrot.lane.b32.xlu0 %v2506, 96
    %v2717 = vpop.permute.xlu0 %2716
    %v2720 = vsel %vm757, %v2714, 0
    %2722 = vmatprep.subr.bf16.mxu0 0
    %2723 = vmatpush1.bf16.msra.mxu0 0
    %2724 = vmatprep.subr.bf16.mxu0 0
    %2725 = vmatpush1.bf16.msra.mxu0 0
    %2726 = vmatprep.subr.bf16.mxu0 0
    %2727 = vmatpush1.bf16.msra.mxu0 0
    %2728 = vmatprep.subr.bf16.mxu0 0
    %2729 = vmatpush1.bf16.msra.mxu0 0
    %2730 = vmatprep.subr.bf16.mxu0 0
    %2731 = vmatpush1.bf16.msra.mxu0 0
    %2732 = vmatprep.subr.bf16.mxu0 0
    %2733 = vmatpush1.bf16.msra.mxu0 0
    %2734 = vmatprep.subr.bf16.mxu0 0
    %2735 = vmatpush1.bf16.msra.mxu0 0
    %2736 = vmatprep.subr.bf16.mxu0 0
    %2737 = vmatpush1.bf16.msra.mxu0 %v2717
    %2738 = vmatprep.subr.bf16.mxu0 0
    %2739 = vmatpush2.bf16.msra.mxu0 0
    %2740 = vmatprep.subr.bf16.mxu0 0
    %2741 = vmatpush2.bf16.msra.mxu0 0
    %2742 = vmatprep.subr.bf16.mxu0 0
    %2743 = vmatpush2.bf16.msra.mxu0 0
    %2744 = vmatprep.subr.bf16.mxu0 0
    %2745 = vmatpush2.bf16.msra.mxu0 0
    %2746 = vmatprep.subr.bf16.mxu0 0
    %2747 = vmatpush2.bf16.msra.mxu0 0
    %2748 = vmatprep.subr.bf16.mxu0 0
    %2749 = vmatpush2.bf16.msra.mxu0 0
    %2750 = vmatprep.subr.bf16.mxu0 0
    %2751 = vmatpush2.bf16.msra.mxu0 0
    %2752 = vmatprep.subr.bf16.mxu0 0
    %2753 = vmatpush2.bf16.msra.mxu0 0
    %2754 = vmatprep.mubr.bf16.mxu0 0
    %2755 = vmatmul.mubr.bf16.gmra.mxu0 %v2720
    %v2756 = vpop.f32.mrf.mxu0
    %v2757 = vadd.f32 0.0, %v2756
    %v2758 = vpop.f32.mrf.mxu0
    %v2759 = vpop.f32.mrf.mxu0
    %v2760 = vadd.f32 0.0, %v2759
    %v2761 = vpop.f32.mrf.mxu0
    %2762 = vdwg.mxu0
    %v2763 = vpack.c.bf16 %v2760, %v2757
    %v2768 = vunpack.c.l.b16 %v2512
    %v2769 = vunpack.c.l.b16 %v2513
    %v2770 = vunpack.c.l.b16 %v2514
    %v2771 = vunpack.c.l.b16 %v2515
    %v2772 = vpack.c.b16 %v2769, %v2768
    %v2773 = vpack.c.b16 %v2771, %v2770
    %v2777 = vsel %vm709, %v2763, 0
    %2779 = vmatprep.subr.bf16.mxu0 0
    %2780 = vmatpush1.bf16.msra.mxu0 0
    %2781 = vmatprep.subr.bf16.mxu0 0
    %2782 = vmatpush1.bf16.msra.mxu0 0
    %2783 = vmatprep.subr.bf16.mxu0 0
    %2784 = vmatpush1.bf16.msra.mxu0 0
    %2785 = vmatprep.subr.bf16.mxu0 0
    %2786 = vmatpush1.bf16.msra.mxu0 0
    %2787 = vmatprep.subr.bf16.mxu0 0
    %2788 = vmatpush1.bf16.msra.mxu0 0
    %2789 = vmatprep.subr.bf16.mxu0 0
    %2790 = vmatpush1.bf16.msra.mxu0 0
    %2791 = vmatprep.subr.bf16.mxu0 0
    %2792 = vmatpush1.bf16.msra.mxu0 %v2773
    %2793 = vmatprep.subr.bf16.mxu0 0
    %2794 = vmatpush1.bf16.msra.mxu0 %v2772
    %2795 = vmatprep.subr.bf16.mxu0 0
    %2796 = vmatpush2.bf16.msra.mxu0 0
    %2797 = vmatprep.subr.bf16.mxu0 0
    %2798 = vmatpush2.bf16.msra.mxu0 0
    %2799 = vmatprep.subr.bf16.mxu0 0
    %2800 = vmatpush2.bf16.msra.mxu0 0
    %2801 = vmatprep.subr.bf16.mxu0 0
    %2802 = vmatpush2.bf16.msra.mxu0 0
    %2803 = vmatprep.subr.bf16.mxu0 0
    %2804 = vmatpush2.bf16.msra.mxu0 0
    %2805 = vmatprep.subr.bf16.mxu0 0
    %2806 = vmatpush2.bf16.msra.mxu0 0
    %2807 = vmatprep.subr.bf16.mxu0 0
    %2808 = vmatpush2.bf16.msra.mxu0 0
    %2809 = vmatprep.subr.bf16.mxu0 0
    %2810 = vmatpush2.bf16.msra.mxu0 0
    %2811 = vmatprep.mubr.bf16.mxu0 0
    %2812 = vmatmul.mubr.bf16.gmra.mxu0 %v2777
    %v2813 = vpop.f32.mrf.mxu0
    %v2814 = vadd.f32 0.0, %v2813
    %v2815 = vpop.f32.mrf.mxu0
    %v2816 = vpop.f32.mrf.mxu0
    %v2817 = vadd.f32 0.0, %v2816
    %v2818 = vpop.f32.mrf.mxu0
    %2819 = vdwg.mxu0
    %v2824 = vunpack.c.l.b16 %v2508
    %v2825 = vunpack.c.l.b16 %v2509
    %v2826 = vunpack.c.l.b16 %v2510
    %v2827 = vunpack.c.l.b16 %v2511
    %v2828 = vpack.c.b16 %v2825, %v2824
    %v2829 = vpack.c.b16 %v2827, %v2826
    %v2833 = vsel %vm709, %v2638, 0
    %2835 = vmatprep.subr.bf16.mxu0 0
    %2836 = vmatpush1.bf16.msra.mxu0 0
    %2837 = vmatprep.subr.bf16.mxu0 0
    %2838 = vmatpush1.bf16.msra.mxu0 0
    %2839 = vmatprep.subr.bf16.mxu0 0
    %2840 = vmatpush1.bf16.msra.mxu0 0
    %2841 = vmatprep.subr.bf16.mxu0 0
    %2842 = vmatpush1.bf16.msra.mxu0 0
    %2843 = vmatprep.subr.bf16.mxu0 0
    %2844 = vmatpush1.bf16.msra.mxu0 0
    %2845 = vmatprep.subr.bf16.mxu0 0
    %2846 = vmatpush1.bf16.msra.mxu0 0
    %2847 = vmatprep.subr.bf16.mxu0 0
    %2848 = vmatpush1.bf16.msra.mxu0 %v2829
    %2849 = vmatprep.subr.bf16.mxu0 0
    %2850 = vmatpush1.bf16.msra.mxu0 %v2828
    %2851 = vmatprep.subr.bf16.mxu0 0
    %2852 = vmatpush2.bf16.msra.mxu0 0
    %2853 = vmatprep.subr.bf16.mxu0 0
    %2854 = vmatpush2.bf16.msra.mxu0 0
    %2855 = vmatprep.subr.bf16.mxu0 0
    %2856 = vmatpush2.bf16.msra.mxu0 0
    %2857 = vmatprep.subr.bf16.mxu0 0
    %2858 = vmatpush2.bf16.msra.mxu0 0
    %2859 = vmatprep.subr.bf16.mxu0 0
    %2860 = vmatpush2.bf16.msra.mxu0 0
    %2861 = vmatprep.subr.bf16.mxu0 0
    %2862 = vmatpush2.bf16.msra.mxu0 0
    %2863 = vmatprep.subr.bf16.mxu0 0
    %2864 = vmatpush2.bf16.msra.mxu0 0
    %2865 = vmatprep.subr.bf16.mxu0 0
    %2866 = vmatpush2.bf16.msra.mxu0 0
    %2867 = vmatprep.mubr.bf16.mxu0 0
    %2868 = vmatmul.mubr.bf16.gmra.mxu0 %v2833
    %v2869 = vpop.f32.mrf.mxu0
    %v2870 = vadd.f32 %v2814, %v2869
    %v2871 = vpop.f32.mrf.mxu0
    %v2872 = vpop.f32.mrf.mxu0
    %v2873 = vadd.f32 %v2817, %v2872
    %v2874 = vpop.f32.mrf.mxu0
    %2875 = vdwg.mxu0
    %2876 = vrot.lane.b32.xlu0 %v2504, 64
    %v2877 = vpop.permute.xlu0 %2876
    %2878 = vrot.lane.b32.xlu0 %v2505, 64
    %v2879 = vpop.permute.xlu0 %2878
    %v2881 = vsel %vm709, %v2877, 0
    %v2884 = vsel %vm709, %v2879, 0
    %2886 = vmatprep.subr.bf16.mxu0 0
    %2887 = vmatpush1.bf16.xpose.msra.mxu0 0
    %2888 = vmatprep.subr.bf16.mxu0 0
    %2889 = vmatpush1.bf16.xpose.msra.mxu0 0
    %2890 = vmatprep.subr.bf16.mxu0 0
    %2891 = vmatpush1.bf16.xpose.msra.mxu0 0
    %2892 = vmatprep.subr.bf16.mxu0 0
    %2893 = vmatpush1.bf16.xpose.msra.mxu0 0
    %2894 = vmatprep.subr.bf16.mxu0 0
    %2895 = vmatpush1.bf16.xpose.msra.mxu0 0
    %2896 = vmatprep.subr.bf16.mxu0 0
    %2897 = vmatpush1.bf16.xpose.msra.mxu0 0
    %2898 = vmatprep.subr.bf16.mxu0 0
    %2899 = vmatpush1.bf16.xpose.msra.mxu0 0
    %2900 = vmatprep.subr.bf16.mxu0 0
    %2901 = vmatpush1.bf16.xpose.msra.mxu0 %v2884
    %2902 = vmatprep.subr.bf16.mxu0 0
    %2903 = vmatpush2.bf16.xpose.msra.mxu0 0
    %2904 = vmatprep.subr.bf16.mxu0 0
    %2905 = vmatpush2.bf16.xpose.msra.mxu0 0
    %2906 = vmatprep.subr.bf16.mxu0 0
    %2907 = vmatpush2.bf16.xpose.msra.mxu0 0
    %2908 = vmatprep.subr.bf16.mxu0 0
    %2909 = vmatpush2.bf16.xpose.msra.mxu0 0
    %2910 = vmatprep.subr.bf16.mxu0 0
    %2911 = vmatpush2.bf16.xpose.msra.mxu0 0
    %2912 = vmatprep.subr.bf16.mxu0 0
    %2913 = vmatpush2.bf16.xpose.msra.mxu0 0
    %2914 = vmatprep.subr.bf16.mxu0 0
    %2915 = vmatpush2.bf16.xpose.msra.mxu0 0
    %2916 = vmatprep.subr.bf16.mxu0 0
    %2917 = vmatpush2.bf16.xpose.msra.mxu0 0
    %2918 = vmatprep.mubr.bf16.mxu0 0
    %2919 = vmatmul.mubr.bf16.gmra.mxu0 %v2881
    %v2920 = vpop.f32.mrf.mxu0
    %v2921 = vadd.f32 %v385, %v2920
    %v2922 = vpop.f32.mrf.mxu0
    %v2923 = vpop.f32.mrf.mxu0
    %v2924 = vadd.f32 %v386, %v2923
    %v2925 = vpop.f32.mrf.mxu0
    %2926 = vdwg.mxu0
    %v2927 = vsel %vm757, %v2921, -inf
    %2928 = vmax.xlane.f32.xlu0 %v2927
    %v2929 = vpop.xlane.xlu0 %2928
    %v2930 = vsel %vm757, %v2924, -inf
    %2931 = vmax.xlane.f32.xlu0 %v2930
    %v2932 = vpop.xlane.xlu0 %2931
    %v2933 = vsub.f32 %v2921, %v2929
    %v2934 = vsub.f32 %v2924, %v2932
    %v2935 = vmul.f32 %v2933, 1.442695
    %v2936 = vpow.pop %v2935
    %v2937 = vmul.f32 %v2934, 1.442695
    %v2938 = vpow.pop %v2937
    %v2939 = vsel %vm757, %v2936, 0.0
    %2940 = vadd.xlane.f32.xlu0 %v2939
    %v2941 = vpop.xlane.xlu0 %2940
    %v2942 = vsel %vm757, %v2938, 0.0
    %2943 = vadd.xlane.f32.xlu0 %v2942
    %v2944 = vpop.xlane.xlu0 %2943
    %v2945 = vrcp.pop %v2941
    %v2946 = vrcp.pop %v2944
    %v2947 = vmul.f32 %v2936, %v2945
    %v2948 = vmul.f32 %v2938, %v2946
    %v2949 = vpack.c.bf16 %v2948, %v2947
    %2950 = vrot.lane.b32.xlu0 %v2506, 64
    %v2951 = vpop.permute.xlu0 %2950
    %v2954 = vsel %vm757, %v2949, 0
    %2956 = vmatprep.subr.bf16.mxu0 0
    %2957 = vmatpush1.bf16.msra.mxu0 0
    %2958 = vmatprep.subr.bf16.mxu0 0
    %2959 = vmatpush1.bf16.msra.mxu0 0
    %2960 = vmatprep.subr.bf16.mxu0 0
    %2961 = vmatpush1.bf16.msra.mxu0 0
    %2962 = vmatprep.subr.bf16.mxu0 0
    %2963 = vmatpush1.bf16.msra.mxu0 0
    %2964 = vmatprep.subr.bf16.mxu0 0
    %2965 = vmatpush1.bf16.msra.mxu0 0
    %2966 = vmatprep.subr.bf16.mxu0 0
    %2967 = vmatpush1.bf16.msra.mxu0 0
    %2968 = vmatprep.subr.bf16.mxu0 0
    %2969 = vmatpush1.bf16.msra.mxu0 0
    %2970 = vmatprep.subr.bf16.mxu0 0
    %2971 = vmatpush1.bf16.msra.mxu0 %v2951
    %2972 = vmatprep.subr.bf16.mxu0 0
    %2973 = vmatpush2.bf16.msra.mxu0 0
    %2974 = vmatprep.subr.bf16.mxu0 0
    %2975 = vmatpush2.bf16.msra.mxu0 0
    %2976 = vmatprep.subr.bf16.mxu0 0
    %2977 = vmatpush2.bf16.msra.mxu0 0
    %2978 = vmatprep.subr.bf16.mxu0 0
    %2979 = vmatpush2.bf16.msra.mxu0 0
    %2980 = vmatprep.subr.bf16.mxu0 0
    %2981 = vmatpush2.bf16.msra.mxu0 0
    %2982 = vmatprep.subr.bf16.mxu0 0
    %2983 = vmatpush2.bf16.msra.mxu0 0
    %2984 = vmatprep.subr.bf16.mxu0 0
    %2985 = vmatpush2.bf16.msra.mxu0 0
    %2986 = vmatprep.subr.bf16.mxu0 0
    %2987 = vmatpush2.bf16.msra.mxu0 0
    %2988 = vmatprep.mubr.bf16.mxu0 0
    %2989 = vmatmul.mubr.bf16.gmra.mxu0 %v2954
    %v2990 = vpop.f32.mrf.mxu0
    %v2991 = vadd.f32 0.0, %v2990
    %v2992 = vpop.f32.mrf.mxu0
    %v2993 = vpop.f32.mrf.mxu0
    %v2994 = vadd.f32 0.0, %v2993
    %v2995 = vpop.f32.mrf.mxu0
    %2996 = vdwg.mxu0
    %v2997 = vpack.c.bf16 %v2994, %v2991
    %v3002 = vunpack.c.l.b16 %v2516
    %v3003 = vunpack.c.l.b16 %v2517
    %v3004 = vunpack.c.l.b16 %v2518
    %v3005 = vunpack.c.l.b16 %v2519
    %v3006 = vpack.c.b16 %v3003, %v3002
    %v3007 = vpack.c.b16 %v3005, %v3004
    %v3011 = vsel %vm709, %v2997, 0
    %3013 = vmatprep.subr.bf16.mxu0 0
    %3014 = vmatpush1.bf16.msra.mxu0 0
    %3015 = vmatprep.subr.bf16.mxu0 0
    %3016 = vmatpush1.bf16.msra.mxu0 0
    %3017 = vmatprep.subr.bf16.mxu0 0
    %3018 = vmatpush1.bf16.msra.mxu0 0
    %3019 = vmatprep.subr.bf16.mxu0 0
    %3020 = vmatpush1.bf16.msra.mxu0 0
    %3021 = vmatprep.subr.bf16.mxu0 0
    %3022 = vmatpush1.bf16.msra.mxu0 0
    %3023 = vmatprep.subr.bf16.mxu0 0
    %3024 = vmatpush1.bf16.msra.mxu0 0
    %3025 = vmatprep.subr.bf16.mxu0 0
    %3026 = vmatpush1.bf16.msra.mxu0 %v3007
    %3027 = vmatprep.subr.bf16.mxu0 0
    %3028 = vmatpush1.bf16.msra.mxu0 %v3006
    %3029 = vmatprep.subr.bf16.mxu0 0
    %3030 = vmatpush2.bf16.msra.mxu0 0
    %3031 = vmatprep.subr.bf16.mxu0 0
    %3032 = vmatpush2.bf16.msra.mxu0 0
    %3033 = vmatprep.subr.bf16.mxu0 0
    %3034 = vmatpush2.bf16.msra.mxu0 0
    %3035 = vmatprep.subr.bf16.mxu0 0
    %3036 = vmatpush2.bf16.msra.mxu0 0
    %3037 = vmatprep.subr.bf16.mxu0 0
    %3038 = vmatpush2.bf16.msra.mxu0 0
    %3039 = vmatprep.subr.bf16.mxu0 0
    %3040 = vmatpush2.bf16.msra.mxu0 0
    %3041 = vmatprep.subr.bf16.mxu0 0
    %3042 = vmatpush2.bf16.msra.mxu0 0
    %3043 = vmatprep.subr.bf16.mxu0 0
    %3044 = vmatpush2.bf16.msra.mxu0 0
    %3045 = vmatprep.mubr.bf16.mxu0 0
    %3046 = vmatmul.mubr.bf16.gmra.mxu0 %v3011
    %v3047 = vpop.f32.mrf.mxu0
    %v3048 = vadd.f32 0.0, %v3047
    %v3049 = vpop.f32.mrf.mxu0
    %v3050 = vpop.f32.mrf.mxu0
    %v3051 = vadd.f32 0.0, %v3050
    %v3052 = vpop.f32.mrf.mxu0
    %3053 = vdwg.mxu0
    %v3054 = vadd.f32 %v2870, %v3048
    %v3055 = vadd.f32 %v2873, %v3051
    %3056 = vrot.lane.b32.xlu0 %v2504, 32
    %v3057 = vpop.permute.xlu0 %3056
    %3058 = vrot.lane.b32.xlu0 %v2505, 32
    %v3059 = vpop.permute.xlu0 %3058
    %v3061 = vsel %vm709, %v3057, 0
    %v3064 = vsel %vm709, %v3059, 0
    %3066 = vmatprep.subr.bf16.mxu0 0
    %3067 = vmatpush1.bf16.xpose.msra.mxu0 0
    %3068 = vmatprep.subr.bf16.mxu0 0
    %3069 = vmatpush1.bf16.xpose.msra.mxu0 0
    %3070 = vmatprep.subr.bf16.mxu0 0
    %3071 = vmatpush1.bf16.xpose.msra.mxu0 0
    %3072 = vmatprep.subr.bf16.mxu0 0
    %3073 = vmatpush1.bf16.xpose.msra.mxu0 0
    %3074 = vmatprep.subr.bf16.mxu0 0
    %3075 = vmatpush1.bf16.xpose.msra.mxu0 0
    %3076 = vmatprep.subr.bf16.mxu0 0
    %3077 = vmatpush1.bf16.xpose.msra.mxu0 0
    %3078 = vmatprep.subr.bf16.mxu0 0
    %3079 = vmatpush1.bf16.xpose.msra.mxu0 0
    %3080 = vmatprep.subr.bf16.mxu0 0
    %3081 = vmatpush1.bf16.xpose.msra.mxu0 %v3064
    %3082 = vmatprep.subr.bf16.mxu0 0
    %3083 = vmatpush2.bf16.xpose.msra.mxu0 0
    %3084 = vmatprep.subr.bf16.mxu0 0
    %3085 = vmatpush2.bf16.xpose.msra.mxu0 0
    %3086 = vmatprep.subr.bf16.mxu0 0
    %3087 = vmatpush2.bf16.xpose.msra.mxu0 0
    %3088 = vmatprep.subr.bf16.mxu0 0
    %3089 = vmatpush2.bf16.xpose.msra.mxu0 0
    %3090 = vmatprep.subr.bf16.mxu0 0
    %3091 = vmatpush2.bf16.xpose.msra.mxu0 0
    %3092 = vmatprep.subr.bf16.mxu0 0
    %3093 = vmatpush2.bf16.xpose.msra.mxu0 0
    %3094 = vmatprep.subr.bf16.mxu0 0
    %3095 = vmatpush2.bf16.xpose.msra.mxu0 0
    %3096 = vmatprep.subr.bf16.mxu0 0
    %3097 = vmatpush2.bf16.xpose.msra.mxu0 0
    %3098 = vmatprep.mubr.bf16.mxu0 0
    %3099 = vmatmul.mubr.bf16.gmra.mxu0 %v3061
    %v3100 = vpop.f32.mrf.mxu0
    %v3101 = vadd.f32 %v385, %v3100
    %v3102 = vpop.f32.mrf.mxu0
    %v3103 = vpop.f32.mrf.mxu0
    %v3104 = vadd.f32 %v386, %v3103
    %v3105 = vpop.f32.mrf.mxu0
    %3106 = vdwg.mxu0
    %v3107 = vsel %vm757, %v3101, -inf
    %3108 = vmax.xlane.f32.xlu0 %v3107
    %v3109 = vpop.xlane.xlu0 %3108
    %v3110 = vsel %vm757, %v3104, -inf
    %3111 = vmax.xlane.f32.xlu0 %v3110
    %v3112 = vpop.xlane.xlu0 %3111
    %v3113 = vsub.f32 %v3101, %v3109
    %v3114 = vsub.f32 %v3104, %v3112
    %v3115 = vmul.f32 %v3113, 1.442695
    %v3116 = vpow.pop %v3115
    %v3117 = vmul.f32 %v3114, 1.442695
    %v3118 = vpow.pop %v3117
    %v3119 = vsel %vm757, %v3116, 0.0
    %3120 = vadd.xlane.f32.xlu0 %v3119
    %v3121 = vpop.xlane.xlu0 %3120
    %v3122 = vsel %vm757, %v3118, 0.0
    %3123 = vadd.xlane.f32.xlu0 %v3122
    %v3124 = vpop.xlane.xlu0 %3123
    %v3125 = vrcp.pop %v3121
    %v3126 = vrcp.pop %v3124
    %v3127 = vmul.f32 %v3116, %v3125
    %v3128 = vmul.f32 %v3118, %v3126
    %v3129 = vpack.c.bf16 %v3128, %v3127
    %3130 = vrot.lane.b32.xlu0 %v2506, 32
    %v3131 = vpop.permute.xlu0 %3130
    %v3134 = vsel %vm757, %v3129, 0
    %3136 = vmatprep.subr.bf16.mxu0 0
    %3137 = vmatpush1.bf16.msra.mxu0 0
    %3138 = vmatprep.subr.bf16.mxu0 0
    %3139 = vmatpush1.bf16.msra.mxu0 0
    %3140 = vmatprep.subr.bf16.mxu0 0
    %3141 = vmatpush1.bf16.msra.mxu0 0
    %3142 = vmatprep.subr.bf16.mxu0 0
    %3143 = vmatpush1.bf16.msra.mxu0 0
    %3144 = vmatprep.subr.bf16.mxu0 0
    %3145 = vmatpush1.bf16.msra.mxu0 0
    %3146 = vmatprep.subr.bf16.mxu0 0
    %3147 = vmatpush1.bf16.msra.mxu0 0
    %3148 = vmatprep.subr.bf16.mxu0 0
    %3149 = vmatpush1.bf16.msra.mxu0 0
    %3150 = vmatprep.subr.bf16.mxu0 0
    %3151 = vmatpush1.bf16.msra.mxu0 %v3131
    %3152 = vmatprep.subr.bf16.mxu0 0
    %3153 = vmatpush2.bf16.msra.mxu0 0
    %3154 = vmatprep.subr.bf16.mxu0 0
    %3155 = vmatpush2.bf16.msra.mxu0 0
    %3156 = vmatprep.subr.bf16.mxu0 0
    %3157 = vmatpush2.bf16.msra.mxu0 0
    %3158 = vmatprep.subr.bf16.mxu0 0
    %3159 = vmatpush2.bf16.msra.mxu0 0
    %3160 = vmatprep.subr.bf16.mxu0 0
    %3161 = vmatpush2.bf16.msra.mxu0 0
    %3162 = vmatprep.subr.bf16.mxu0 0
    %3163 = vmatpush2.bf16.msra.mxu0 0
    %3164 = vmatprep.subr.bf16.mxu0 0
    %3165 = vmatpush2.bf16.msra.mxu0 0
    %3166 = vmatprep.subr.bf16.mxu0 0
    %3167 = vmatpush2.bf16.msra.mxu0 0
    %3168 = vmatprep.mubr.bf16.mxu0 0
    %3169 = vmatmul.mubr.bf16.gmra.mxu0 %v3134
    %v3170 = vpop.f32.mrf.mxu0
    %v3171 = vadd.f32 0.0, %v3170
    %v3172 = vpop.f32.mrf.mxu0
    %v3173 = vpop.f32.mrf.mxu0
    %v3174 = vadd.f32 0.0, %v3173
    %v3175 = vpop.f32.mrf.mxu0
    %3176 = vdwg.mxu0
    %v3177 = vpack.c.bf16 %v3174, %v3171
    %v3182 = vunpack.c.l.b16 %v2520
    %v3183 = vunpack.c.l.b16 %v2521
    %v3184 = vunpack.c.l.b16 %v2522
    %v3185 = vunpack.c.l.b16 %v2523
    %v3186 = vpack.c.b16 %v3183, %v3182
    %v3187 = vpack.c.b16 %v3185, %v3184
    %v3191 = vsel %vm709, %v3177, 0
    %3193 = vmatprep.subr.bf16.mxu0 0
    %3194 = vmatpush1.bf16.msra.mxu0 0
    %3195 = vmatprep.subr.bf16.mxu0 0
    %3196 = vmatpush1.bf16.msra.mxu0 0
    %3197 = vmatprep.subr.bf16.mxu0 0
    %3198 = vmatpush1.bf16.msra.mxu0 0
    %3199 = vmatprep.subr.bf16.mxu0 0
    %3200 = vmatpush1.bf16.msra.mxu0 0
    %3201 = vmatprep.subr.bf16.mxu0 0
    %3202 = vmatpush1.bf16.msra.mxu0 0
    %3203 = vmatprep.subr.bf16.mxu0 0
    %3204 = vmatpush1.bf16.msra.mxu0 0
    %3205 = vmatprep.subr.bf16.mxu0 0
    %3206 = vmatpush1.bf16.msra.mxu0 %v3187
    %3207 = vmatprep.subr.bf16.mxu0 0
    %3208 = vmatpush1.bf16.msra.mxu0 %v3186
    %3209 = vmatprep.subr.bf16.mxu0 0
    %3210 = vmatpush2.bf16.msra.mxu0 0
    %3211 = vmatprep.subr.bf16.mxu0 0
    %3212 = vmatpush2.bf16.msra.mxu0 0
    %3213 = vmatprep.subr.bf16.mxu0 0
    %3214 = vmatpush2.bf16.msra.mxu0 0
    %3215 = vmatprep.subr.bf16.mxu0 0
    %3216 = vmatpush2.bf16.msra.mxu0 0
    %3217 = vmatprep.subr.bf16.mxu0 0
    %3218 = vmatpush2.bf16.msra.mxu0 0
    %3219 = vmatprep.subr.bf16.mxu0 0
    %3220 = vmatpush2.bf16.msra.mxu0 0
    %3221 = vmatprep.subr.bf16.mxu0 0
    %3222 = vmatpush2.bf16.msra.mxu0 0
    %3223 = vmatprep.subr.bf16.mxu0 0
    %3224 = vmatpush2.bf16.msra.mxu0 0
    %3225 = vmatprep.mubr.bf16.mxu0 0
    %3226 = vmatmul.mubr.bf16.gmra.mxu0 %v3191
    %v3227 = vpop.f32.mrf.mxu0
    %v3228 = vadd.f32 0.0, %v3227
    %v3229 = vpop.f32.mrf.mxu0
    %v3230 = vpop.f32.mrf.mxu0
    %v3231 = vadd.f32 0.0, %v3230
    %v3232 = vpop.f32.mrf.mxu0
    %3233 = vdwg.mxu0
    %v3234 = vadd.f32 %v3054, %v3228
    %v3235 = vadd.f32 %v3055, %v3231
    %v3236 = vadd.f32 %v2196, %v3234
    %v3237 = vadd.f32 %v2197, %v3235
    %s3238 = scalar_lea.vmem [#allocation16], 1
    %v3239 = vld [vmem:[%s3238] sm:$0x1]
    %v3241 = vlaneseq
    %v3242 = vshrl.u32 %v3241, 7
    %v3243 = vsub.s32 0, %v3242
    %v3244 = vrot.slane %v3239, %v3243
    %v3246 = vadd.f32 %v3236, %v3244
    %v3247 = vadd.f32 %v3237, %v3244
    %s3248 = scalar_lea.vmem [#allocation17], 1
    %v3249 = vld [vmem:[%s3248] sm:$0x1]
    %s3250 = scalar_lea.vmem [#allocation19], 1
    %v3251 = vld [vmem:[%s3250] sm:$0x1]
    %3252 = vadd.xlane.f32.xlu0 %v3246
    %v3253 = vpop.xlane.xlu0 %3252
    %3254 = vadd.xlane.f32.xlu0 %v3247
    %v3255 = vpop.xlane.xlu0 %3254
    %v3256 = vmul.f32 %v3253, %v393
    %v3257 = vmul.f32 %v3255, %v393
    %v3258 = vsub.f32 %v3246, %v3256
    %v3259 = vsub.f32 %v3247, %v3257
    %v3260 = vmul.f32 %v3258, %v3258
    %v3261 = vmul.f32 %v3259, %v3259
    %3262 = vadd.xlane.f32.xlu0 %v3260
    %v3263 = vpop.xlane.xlu0 %3262
    %3264 = vadd.xlane.f32.xlu0 %v3261
    %v3265 = vpop.xlane.xlu0 %3264
    %v3266 = vmul.f32 %v3263, %v393
    %v3267 = vmul.f32 %v3265, %v393
    %v3268 = vadd.f32 %v3266, 1e-06
    %v3269 = vadd.f32 %v3267, 1e-06
    %v3270 = vrsqrt.pop %v3268
    %v3271 = vrsqrt.pop %v3269
    %v3272 = vmul.f32 %v3258, %v3270
    %v3273 = vmul.f32 %v3259, %v3271
    %v3275 = vlaneseq
    %v3276 = vshrl.u32 %v3275, 7
    %v3277 = vsub.s32 0, %v3276
    %v3278 = vrot.slane %v3249, %v3277
    %v3280 = vmul.f32 %v3272, %v3278
    %v3281 = vmul.f32 %v3273, %v3278
    %v3283 = vlaneseq
    %v3284 = vshrl.u32 %v3283, 7
    %v3285 = vsub.s32 0, %v3284
    %v3286 = vrot.slane %v3251, %v3285
    %v3288 = vadd.f32 %v3280, %v3286
    %v3289 = vadd.f32 %v3281, %v3286
    %v3290 = vpack.c.bf16 %v3289, %v3288
    %s3291 = scalar_lea.vmem [#allocation20], 256
    %v3292 = vld [vmem:[%s3291] sm:$0xff]
    %v3293 = vld [vmem:[%s3291 + $0x8] sm:$0xff]
    %v3294 = vld [vmem:[%s3291 + $0x10] sm:$0xff]
    %v3295 = vld [vmem:[%s3291 + $0x18] sm:$0xff]
    %v3296 = vld [vmem:[%s3291 + $0x20] sm:$0xff]
    %v3297 = vld [vmem:[%s3291 + $0x28] sm:$0xff]
    %v3298 = vld [vmem:[%s3291 + $0x30] sm:$0xff]
    %v3299 = vld [vmem:[%s3291 + $0x38] sm:$0xff]
    %v3300 = vld [vmem:[%s3291 + $0x40] sm:$0xff]
    %v3301 = vld [vmem:[%s3291 + $0x48] sm:$0xff]
    %v3302 = vld [vmem:[%s3291 + $0x50] sm:$0xff]
    %v3303 = vld [vmem:[%s3291 + $0x58] sm:$0xff]
    %v3304 = vld [vmem:[%s3291 + $0x60] sm:$0xff]
    %v3305 = vld [vmem:[%s3291 + $0x68] sm:$0xff]
    %v3306 = vld [vmem:[%s3291 + $0x70] sm:$0xff]
    %v3307 = vld [vmem:[%s3291 + $0x78] sm:$0xff]
    %v3308 = vld [vmem:[%s3291 + $0x80] sm:$0xff]
    %v3309 = vld [vmem:[%s3291 + $0x88] sm:$0xff]
    %v3310 = vld [vmem:[%s3291 + $0x90] sm:$0xff]
    %v3311 = vld [vmem:[%s3291 + $0x98] sm:$0xff]
    %v3312 = vld [vmem:[%s3291 + $0xa0] sm:$0xff]
    %v3313 = vld [vmem:[%s3291 + $0xa8] sm:$0xff]
    %v3314 = vld [vmem:[%s3291 + $0xb0] sm:$0xff]
    %v3315 = vld [vmem:[%s3291 + $0xb8] sm:$0xff]
    %v3316 = vld [vmem:[%s3291 + $0xc0] sm:$0xff]
    %v3317 = vld [vmem:[%s3291 + $0xc8] sm:$0xff]
    %v3318 = vld [vmem:[%s3291 + $0xd0] sm:$0xff]
    %v3319 = vld [vmem:[%s3291 + $0xd8] sm:$0xff]
    %v3320 = vld [vmem:[%s3291 + $0xe0] sm:$0xff]
    %v3321 = vld [vmem:[%s3291 + $0xe8] sm:$0xff]
    %v3322 = vld [vmem:[%s3291 + $0xf0] sm:$0xff]
    %v3323 = vld [vmem:[%s3291 + $0xf8] sm:$0xff]
    %s3324 = scalar_lea.vmem %s13, 4
    %v3325 = vld [vmem:[%s3324] sm:$0xf]
    %v3327 = vlaneseq
    %v3328 = vshrl.u32 %v3327, 7
    %v3329 = vsub.s32 0, %v3328
    %v3330 = vrot.slane %v3325, %v3329
    %v3331 = vlaneseq
    %v3332 = vshrl.u32 %v3331, 7
    %v3333 = vsub.s32 1, %v3332
    %v3334 = vrot.slane %v3325, %v3333
    %v3335 = vlaneseq
    %v3336 = vshrl.u32 %v3335, 7
    %v3337 = vsub.s32 2, %v3336
    %v3338 = vrot.slane %v3325, %v3337
    %v3339 = vlaneseq
    %v3340 = vshrl.u32 %v3339, 7
    %v3341 = vsub.s32 3, %v3340
    %v3342 = vrot.slane %v3325, %v3341
    %v3379 = vunpack.c.l.b16 %v3292
    %v3380 = vunpack.c.h.b16 %v3292
    %v3381 = vunpack.c.l.b16 %v3293
    %v3382 = vunpack.c.h.b16 %v3293
    %v3383 = vunpack.c.l.b16 %v3294
    %v3384 = vunpack.c.h.b16 %v3294
    %v3385 = vunpack.c.l.b16 %v3295
    %v3386 = vunpack.c.h.b16 %v3295
    %v3387 = vunpack.c.l.b16 %v3296
    %v3388 = vunpack.c.h.b16 %v3296
    %v3389 = vunpack.c.l.b16 %v3297
    %v3390 = vunpack.c.h.b16 %v3297
    %v3391 = vunpack.c.l.b16 %v3298
    %v3392 = vunpack.c.h.b16 %v3298
    %v3393 = vunpack.c.l.b16 %v3299
    %v3394 = vunpack.c.h.b16 %v3299
    %v3395 = vunpack.c.l.b16 %v3300
    %v3396 = vunpack.c.h.b16 %v3300
    %v3397 = vunpack.c.l.b16 %v3301
    %v3398 = vunpack.c.h.b16 %v3301
    %v3399 = vunpack.c.l.b16 %v3302
    %v3400 = vunpack.c.h.b16 %v3302
    %v3401 = vunpack.c.l.b16 %v3303
    %v3402 = vunpack.c.h.b16 %v3303
    %v3403 = vunpack.c.l.b16 %v3304
    %v3404 = vunpack.c.h.b16 %v3304
    %v3405 = vunpack.c.l.b16 %v3305
    %v3406 = vunpack.c.h.b16 %v3305
    %v3407 = vunpack.c.l.b16 %v3306
    %v3408 = vunpack.c.h.b16 %v3306
    %v3409 = vunpack.c.l.b16 %v3307
    %v3410 = vunpack.c.h.b16 %v3307
    %v3411 = vunpack.c.l.b16 %v3308
    %v3412 = vunpack.c.h.b16 %v3308
    %v3413 = vunpack.c.l.b16 %v3309
    %v3414 = vunpack.c.h.b16 %v3309
    %v3415 = vunpack.c.l.b16 %v3310
    %v3416 = vunpack.c.h.b16 %v3310
    %v3417 = vunpack.c.l.b16 %v3311
    %v3418 = vunpack.c.h.b16 %v3311
    %v3419 = vunpack.c.l.b16 %v3312
    %v3420 = vunpack.c.h.b16 %v3312
    %v3421 = vunpack.c.l.b16 %v3313
    %v3422 = vunpack.c.h.b16 %v3313
    %v3423 = vunpack.c.l.b16 %v3314
    %v3424 = vunpack.c.h.b16 %v3314
    %v3425 = vunpack.c.l.b16 %v3315
    %v3426 = vunpack.c.h.b16 %v3315
    %v3427 = vunpack.c.l.b16 %v3316
    %v3428 = vunpack.c.h.b16 %v3316
    %v3429 = vunpack.c.l.b16 %v3317
    %v3430 = vunpack.c.h.b16 %v3317
    %v3431 = vunpack.c.l.b16 %v3318
    %v3432 = vunpack.c.h.b16 %v3318
    %v3433 = vunpack.c.l.b16 %v3319
    %v3434 = vunpack.c.h.b16 %v3319
    %v3435 = vunpack.c.l.b16 %v3320
    %v3436 = vunpack.c.h.b16 %v3320
    %v3437 = vunpack.c.l.b16 %v3321
    %v3438 = vunpack.c.h.b16 %v3321
    %v3439 = vunpack.c.l.b16 %v3322
    %v3440 = vunpack.c.h.b16 %v3322
    %v3441 = vunpack.c.l.b16 %v3323
    %v3442 = vunpack.c.h.b16 %v3323
    %v3443 = vpack.c.b16 %v3383, %v3379
    %v3444 = vpack.c.b16 %v3384, %v3380
    %v3445 = vpack.c.b16 %v3385, %v3381
    %v3446 = vpack.c.b16 %v3386, %v3382
    %v3447 = vpack.c.b16 %v3391, %v3387
    %v3448 = vpack.c.b16 %v3392, %v3388
    %v3449 = vpack.c.b16 %v3393, %v3389
    %v3450 = vpack.c.b16 %v3394, %v3390
    %v3451 = vpack.c.b16 %v3399, %v3395
    %v3452 = vpack.c.b16 %v3400, %v3396
    %v3453 = vpack.c.b16 %v3401, %v3397
    %v3454 = vpack.c.b16 %v3402, %v3398
    %v3455 = vpack.c.b16 %v3407, %v3403
    %v3456 = vpack.c.b16 %v3408, %v3404
    %v3457 = vpack.c.b16 %v3409, %v3405
    %v3458 = vpack.c.b16 %v3410, %v3406
    %v3459 = vpack.c.b16 %v3415, %v3411
    %v3460 = vpack.c.b16 %v3416, %v3412
    %v3461 = vpack.c.b16 %v3417, %v3413
    %v3462 = vpack.c.b16 %v3418, %v3414
    %v3463 = vpack.c.b16 %v3423, %v3419
    %v3464 = vpack.c.b16 %v3424, %v3420
    %v3465 = vpack.c.b16 %v3425, %v3421
    %v3466 = vpack.c.b16 %v3426, %v3422
    %v3467 = vpack.c.b16 %v3431, %v3427
    %v3468 = vpack.c.b16 %v3432, %v3428
    %v3469 = vpack.c.b16 %v3433, %v3429
    %v3470 = vpack.c.b16 %v3434, %v3430
    %v3471 = vpack.c.b16 %v3439, %v3435
    %v3472 = vpack.c.b16 %v3440, %v3436
    %v3473 = vpack.c.b16 %v3441, %v3437
    %v3474 = vpack.c.b16 %v3442, %v3438
    %3507 = vmatprep.subr.bf16.mxu0 %v3472
    %3508 = vmatpush1.bf16.msra.mxu0 %v3471
    %3509 = vmatprep.subr.bf16.mxu0 %v3468
    %3510 = vmatpush1.bf16.msra.mxu0 %v3467
    %3511 = vmatprep.subr.bf16.mxu0 %v3464
    %3512 = vmatpush1.bf16.msra.mxu0 %v3463
    %3513 = vmatprep.subr.bf16.mxu0 %v3460
    %3514 = vmatpush1.bf16.msra.mxu0 %v3459
    %3515 = vmatprep.subr.bf16.mxu0 %v3456
    %3516 = vmatpush1.bf16.msra.mxu0 %v3455
    %3517 = vmatprep.subr.bf16.mxu0 %v3452
    %3518 = vmatpush1.bf16.msra.mxu0 %v3451
    %3519 = vmatprep.subr.bf16.mxu0 %v3448
    %3520 = vmatpush1.bf16.msra.mxu0 %v3447
    %3521 = vmatprep.subr.bf16.mxu0 %v3444
    %3522 = vmatpush1.bf16.msra.mxu0 %v3443
    %3523 = vmatprep.subr.bf16.mxu0 0
    %3524 = vmatpush2.bf16.msra.mxu0 0
    %3525 = vmatprep.subr.bf16.mxu0 0
    %3526 = vmatpush2.bf16.msra.mxu0 0
    %3527 = vmatprep.subr.bf16.mxu0 0
    %3528 = vmatpush2.bf16.msra.mxu0 0
    %3529 = vmatprep.subr.bf16.mxu0 0
    %3530 = vmatpush2.bf16.msra.mxu0 0
    %3531 = vmatprep.subr.bf16.mxu0 0
    %3532 = vmatpush2.bf16.msra.mxu0 0
    %3533 = vmatprep.subr.bf16.mxu0 0
    %3534 = vmatpush2.bf16.msra.mxu0 0
    %3535 = vmatprep.subr.bf16.mxu0 0
    %3536 = vmatpush2.bf16.msra.mxu0 0
    %3537 = vmatprep.subr.bf16.mxu0 0
    %3538 = vmatpush2.bf16.msra.mxu0 0
    %3539 = vmatprep.mubr.bf16.mxu0 0
    %3540 = vmatmul.mubr.bf16.gmra.mxu0 %v3290
    %v3541 = vpop.f32.mrf.mxu0
    %v3542 = vadd.f32 %v3330, %v3541
    %v3543 = vpop.f32.mrf.mxu0
    %v3544 = vadd.f32 %v3334, %v3543
    %v3545 = vpop.f32.mrf.mxu0
    %v3546 = vadd.f32 %v3330, %v3545
    %v3547 = vpop.f32.mrf.mxu0
    %v3548 = vadd.f32 %v3334, %v3547
    %3549 = vdwg.mxu0
    %3550 = vmatprep.subr.bf16.mxu0 %v3474
    %3551 = vmatpush1.bf16.msra.mxu0 %v3473
    %3552 = vmatprep.subr.bf16.mxu0 %v3470
    %3553 = vmatpush1.bf16.msra.mxu0 %v3469
    %3554 = vmatprep.subr.bf16.mxu0 %v3466
    %3555 = vmatpush1.bf16.msra.mxu0 %v3465
    %3556 = vmatprep.subr.bf16.mxu0 %v3462
    %3557 = vmatpush1.bf16.msra.mxu0 %v3461
    %3558 = vmatprep.subr.bf16.mxu0 %v3458
    %3559 = vmatpush1.bf16.msra.mxu0 %v3457
    %3560 = vmatprep.subr.bf16.mxu0 %v3454
    %3561 = vmatpush1.bf16.msra.mxu0 %v3453
    %3562 = vmatprep.subr.bf16.mxu0 %v3450
    %3563 = vmatpush1.bf16.msra.mxu0 %v3449
    %3564 = vmatprep.subr.bf16.mxu0 %v3446
    %3565 = vmatpush1.bf16.msra.mxu0 %v3445
    %3566 = vmatprep.subr.bf16.mxu0 0
    %3567 = vmatpush2.bf16.msra.mxu0 0
    %3568 = vmatprep.subr.bf16.mxu0 0
    %3569 = vmatpush2.bf16.msra.mxu0 0
    %3570 = vmatprep.subr.bf16.mxu0 0
    %3571 = vmatpush2.bf16.msra.mxu0 0
    %3572 = vmatprep.subr.bf16.mxu0 0
    %3573 = vmatpush2.bf16.msra.mxu0 0
    %3574 = vmatprep.subr.bf16.mxu0 0
    %3575 = vmatpush2.bf16.msra.mxu0 0
    %3576 = vmatprep.subr.bf16.mxu0 0
    %3577 = vmatpush2.bf16.msra.mxu0 0
    %3578 = vmatprep.subr.bf16.mxu0 0
    %3579 = vmatpush2.bf16.msra.mxu0 0
    %3580 = vmatprep.subr.bf16.mxu0 0
    %3581 = vmatpush2.bf16.msra.mxu0 0
    %3582 = vmatprep.mubr.bf16.mxu0 0
    %3583 = vmatmul.mubr.bf16.gmra.mxu0 %v3290
    %v3584 = vpop.f32.mrf.mxu0
    %v3585 = vadd.f32 %v3338, %v3584
    %v3586 = vpop.f32.mrf.mxu0
    %v3587 = vadd.f32 %v3342, %v3586
    %v3588 = vpop.f32.mrf.mxu0
    %v3589 = vadd.f32 %v3338, %v3588
    %v3590 = vpop.f32.mrf.mxu0
    %v3591 = vadd.f32 %v3342, %v3590
    %3592 = vdwg.mxu0
    %v3593 = vmul.f32 %v3542, %v3542
    %v3594 = vmul.f32 %v3544, %v3544
    %v3595 = vmul.f32 %v3585, %v3585
    %v3596 = vmul.f32 %v3587, %v3587
    %v3597 = vmul.f32 %v3546, %v3546
    %v3598 = vmul.f32 %v3548, %v3548
    %v3599 = vmul.f32 %v3589, %v3589
    %v3600 = vmul.f32 %v3591, %v3591
    %v3601 = vmul.f32 %v3542, %v3593
    %v3602 = vmul.f32 %v3544, %v3594
    %v3603 = vmul.f32 %v3585, %v3595
    %v3604 = vmul.f32 %v3587, %v3596
    %v3605 = vmul.f32 %v3546, %v3597
    %v3606 = vmul.f32 %v3548, %v3598
    %v3607 = vmul.f32 %v3589, %v3599
    %v3608 = vmul.f32 %v3591, %v3600
    %v3609 = vmul.f32 %v3601, 0.044715
    %v3610 = vmul.f32 %v3602, 0.044715
    %v3611 = vmul.f32 %v3603, 0.044715
    %v3612 = vmul.f32 %v3604, 0.044715
    %v3613 = vmul.f32 %v3605, 0.044715
    %v3614 = vmul.f32 %v3606, 0.044715
    %v3615 = vmul.f32 %v3607, 0.044715
    %v3616 = vmul.f32 %v3608, 0.044715
    %v3617 = vadd.f32 %v3542, %v3609
    %v3618 = vadd.f32 %v3544, %v3610
    %v3619 = vadd.f32 %v3585, %v3611
    %v3620 = vadd.f32 %v3587, %v3612
    %v3621 = vadd.f32 %v3546, %v3613
    %v3622 = vadd.f32 %v3548, %v3614
    %v3623 = vadd.f32 %v3589, %v3615
    %v3624 = vadd.f32 %v3591, %v3616
    %v3625 = vmul.f32 %v3617, 0.7978846
    %v3626 = vmul.f32 %v3618, 0.7978846
    %v3627 = vmul.f32 %v3619, 0.7978846
    %v3628 = vmul.f32 %v3620, 0.7978846
    %v3629 = vmul.f32 %v3621, 0.7978846
    %v3630 = vmul.f32 %v3622, 0.7978846
    %v3631 = vmul.f32 %v3623, 0.7978846
    %v3632 = vmul.f32 %v3624, 0.7978846
    %v3633 = vtanh.pop %v3625
    %v3634 = vtanh.pop %v3626
    %v3635 = vtanh.pop %v3627
    %v3636 = vtanh.pop %v3628
    %v3637 = vtanh.pop %v3629
    %v3638 = vtanh.pop %v3630
    %v3639 = vtanh.pop %v3631
    %v3640 = vtanh.pop %v3632
    %v3641 = vadd.f32 %v3633, 1.0
    %v3642 = vadd.f32 %v3634, 1.0
    %v3643 = vadd.f32 %v3635, 1.0
    %v3644 = vadd.f32 %v3636, 1.0
    %v3645 = vadd.f32 %v3637, 1.0
    %v3646 = vadd.f32 %v3638, 1.0
    %v3647 = vadd.f32 %v3639, 1.0
    %v3648 = vadd.f32 %v3640, 1.0
    %v3649 = vmul.f32 %v3641, 0.5
    %v3650 = vmul.f32 %v3642, 0.5
    %v3651 = vmul.f32 %v3643, 0.5
    %v3652 = vmul.f32 %v3644, 0.5
    %v3653 = vmul.f32 %v3645, 0.5
    %v3654 = vmul.f32 %v3646, 0.5
    %v3655 = vmul.f32 %v3647, 0.5
    %v3656 = vmul.f32 %v3648, 0.5
    %v3657 = vmul.f32 %v3542, %v3649
    %v3658 = vmul.f32 %v3544, %v3650
    %v3659 = vmul.f32 %v3585, %v3651
    %v3660 = vmul.f32 %v3587, %v3652
    %v3661 = vmul.f32 %v3546, %v3653
    %v3662 = vmul.f32 %v3548, %v3654
    %v3663 = vmul.f32 %v3589, %v3655
    %v3664 = vmul.f32 %v3591, %v3656
    %v3665 = vpack.c.bf16 %v3661, %v3657
    %v3666 = vpack.c.bf16 %v3662, %v3658
    %v3667 = vpack.c.bf16 %v3663, %v3659
    %v3668 = vpack.c.bf16 %v3664, %v3660
    %s3669 = scalar_lea.vmem [#allocation22], 256
    %v3670 = vld [vmem:[%s3669] sm:$0xf]
    %v3671 = vld [vmem:[%s3669 + $0x4] sm:$0xf]
    %v3672 = vld [vmem:[%s3669 + $0x8] sm:$0xf]
    %v3673 = vld [vmem:[%s3669 + $0xc] sm:$0xf]
    %v3674 = vld [vmem:[%s3669 + $0x10] sm:$0xf]
    %v3675 = vld [vmem:[%s3669 + $0x14] sm:$0xf]
    %v3676 = vld [vmem:[%s3669 + $0x18] sm:$0xf]
    %v3677 = vld [vmem:[%s3669 + $0x1c] sm:$0xf]
    %v3678 = vld [vmem:[%s3669 + $0x20] sm:$0xf]
    %v3679 = vld [vmem:[%s3669 + $0x24] sm:$0xf]
    %v3680 = vld [vmem:[%s3669 + $0x28] sm:$0xf]
    %v3681 = vld [vmem:[%s3669 + $0x2c] sm:$0xf]
    %v3682 = vld [vmem:[%s3669 + $0x30] sm:$0xf]
    %v3683 = vld [vmem:[%s3669 + $0x34] sm:$0xf]
    %v3684 = vld [vmem:[%s3669 + $0x38] sm:$0xf]
    %v3685 = vld [vmem:[%s3669 + $0x3c] sm:$0xf]
    %v3686 = vld [vmem:[%s3669 + $0x40] sm:$0xf]
    %v3687 = vld [vmem:[%s3669 + $0x44] sm:$0xf]
    %v3688 = vld [vmem:[%s3669 + $0x48] sm:$0xf]
    %v3689 = vld [vmem:[%s3669 + $0x4c] sm:$0xf]
    %v3690 = vld [vmem:[%s3669 + $0x50] sm:$0xf]
    %v3691 = vld [vmem:[%s3669 + $0x54] sm:$0xf]
    %v3692 = vld [vmem:[%s3669 + $0x58] sm:$0xf]
    %v3693 = vld [vmem:[%s3669 + $0x5c] sm:$0xf]
    %v3694 = vld [vmem:[%s3669 + $0x60] sm:$0xf]
    %v3695 = vld [vmem:[%s3669 + $0x64] sm:$0xf]
    %v3696 = vld [vmem:[%s3669 + $0x68] sm:$0xf]
    %v3697 = vld [vmem:[%s3669 + $0x6c] sm:$0xf]
    %v3698 = vld [vmem:[%s3669 + $0x70] sm:$0xf]
    %v3699 = vld [vmem:[%s3669 + $0x74] sm:$0xf]
    %v3700 = vld [vmem:[%s3669 + $0x78] sm:$0xf]
    %v3701 = vld [vmem:[%s3669 + $0x7c] sm:$0xf]
    %v3702 = vld [vmem:[%s3669 + $0x80] sm:$0xf]
    %v3703 = vld [vmem:[%s3669 + $0x84] sm:$0xf]
    %v3704 = vld [vmem:[%s3669 + $0x88] sm:$0xf]
    %v3705 = vld [vmem:[%s3669 + $0x8c] sm:$0xf]
    %v3706 = vld [vmem:[%s3669 + $0x90] sm:$0xf]
    %v3707 = vld [vmem:[%s3669 + $0x94] sm:$0xf]
    %v3708 = vld [vmem:[%s3669 + $0x98] sm:$0xf]
    %v3709 = vld [vmem:[%s3669 + $0x9c] sm:$0xf]
    %v3710 = vld [vmem:[%s3669 + $0xa0] sm:$0xf]
    %v3711 = vld [vmem:[%s3669 + $0xa4] sm:$0xf]
    %v3712 = vld [vmem:[%s3669 + $0xa8] sm:$0xf]
    %v3713 = vld [vmem:[%s3669 + $0xac] sm:$0xf]
    %v3714 = vld [vmem:[%s3669 + $0xb0] sm:$0xf]
    %v3715 = vld [vmem:[%s3669 + $0xb4] sm:$0xf]
    %v3716 = vld [vmem:[%s3669 + $0xb8] sm:$0xf]
    %v3717 = vld [vmem:[%s3669 + $0xbc] sm:$0xf]
    %v3718 = vld [vmem:[%s3669 + $0xc0] sm:$0xf]
    %v3719 = vld [vmem:[%s3669 + $0xc4] sm:$0xf]
    %v3720 = vld [vmem:[%s3669 + $0xc8] sm:$0xf]
    %v3721 = vld [vmem:[%s3669 + $0xcc] sm:$0xf]
    %v3722 = vld [vmem:[%s3669 + $0xd0] sm:$0xf]
    %v3723 = vld [vmem:[%s3669 + $0xd4] sm:$0xf]
    %v3724 = vld [vmem:[%s3669 + $0xd8] sm:$0xf]
    %v3725 = vld [vmem:[%s3669 + $0xdc] sm:$0xf]
    %v3726 = vld [vmem:[%s3669 + $0xe0] sm:$0xf]
    %v3727 = vld [vmem:[%s3669 + $0xe4] sm:$0xf]
    %v3728 = vld [vmem:[%s3669 + $0xe8] sm:$0xf]
    %v3729 = vld [vmem:[%s3669 + $0xec] sm:$0xf]
    %v3730 = vld [vmem:[%s3669 + $0xf0] sm:$0xf]
    %v3731 = vld [vmem:[%s3669 + $0xf4] sm:$0xf]
    %v3732 = vld [vmem:[%s3669 + $0xf8] sm:$0xf]
    %v3733 = vld [vmem:[%s3669 + $0xfc] sm:$0xf]
    %s3734 = scalar_lea.vmem %s15, 1
    %v3735 = vld [vmem:[%s3734] sm:$0x1]
    %v3737 = vlaneseq
    %v3738 = vshrl.u32 %v3737, 7
    %v3739 = vsub.s32 0, %v3738
    %v3740 = vrot.slane %v3735, %v3739
    %v3806 = vunpack.c.l.b16 %v3670
    %v3807 = vunpack.c.l.b16 %v3671
    %v3808 = vunpack.c.l.b16 %v3672
    %v3809 = vunpack.c.l.b16 %v3673
    %v3810 = vunpack.c.l.b16 %v3674
    %v3811 = vunpack.c.l.b16 %v3675
    %v3812 = vunpack.c.l.b16 %v3676
    %v3813 = vunpack.c.l.b16 %v3677
    %v3814 = vunpack.c.l.b16 %v3678
    %v3815 = vunpack.c.l.b16 %v3679
    %v3816 = vunpack.c.l.b16 %v3680
    %v3817 = vunpack.c.l.b16 %v3681
    %v3818 = vunpack.c.l.b16 %v3682
    %v3819 = vunpack.c.l.b16 %v3683
    %v3820 = vunpack.c.l.b16 %v3684
    %v3821 = vunpack.c.l.b16 %v3685
    %v3822 = vunpack.c.l.b16 %v3686
    %v3823 = vunpack.c.l.b16 %v3687
    %v3824 = vunpack.c.l.b16 %v3688
    %v3825 = vunpack.c.l.b16 %v3689
    %v3826 = vunpack.c.l.b16 %v3690
    %v3827 = vunpack.c.l.b16 %v3691
    %v3828 = vunpack.c.l.b16 %v3692
    %v3829 = vunpack.c.l.b16 %v3693
    %v3830 = vunpack.c.l.b16 %v3694
    %v3831 = vunpack.c.l.b16 %v3695
    %v3832 = vunpack.c.l.b16 %v3696
    %v3833 = vunpack.c.l.b16 %v3697
    %v3834 = vunpack.c.l.b16 %v3698
    %v3835 = vunpack.c.l.b16 %v3699
    %v3836 = vunpack.c.l.b16 %v3700
    %v3837 = vunpack.c.l.b16 %v3701
    %v3838 = vunpack.c.l.b16 %v3702
    %v3839 = vunpack.c.l.b16 %v3703
    %v3840 = vunpack.c.l.b16 %v3704
    %v3841 = vunpack.c.l.b16 %v3705
    %v3842 = vunpack.c.l.b16 %v3706
    %v3843 = vunpack.c.l.b16 %v3707
    %v3844 = vunpack.c.l.b16 %v3708
    %v3845 = vunpack.c.l.b16 %v3709
    %v3846 = vunpack.c.l.b16 %v3710
    %v3847 = vunpack.c.l.b16 %v3711
    %v3848 = vunpack.c.l.b16 %v3712
    %v3849 = vunpack.c.l.b16 %v3713
    %v3850 = vunpack.c.l.b16 %v3714
    %v3851 = vunpack.c.l.b16 %v3715
    %v3852 = vunpack.c.l.b16 %v3716
    %v3853 = vunpack.c.l.b16 %v3717
    %v3854 = vunpack.c.l.b16 %v3718
    %v3855 = vunpack.c.l.b16 %v3719
    %v3856 = vunpack.c.l.b16 %v3720
    %v3857 = vunpack.c.l.b16 %v3721
    %v3858 = vunpack.c.l.b16 %v3722
    %v3859 = vunpack.c.l.b16 %v3723
    %v3860 = vunpack.c.l.b16 %v3724
    %v3861 = vunpack.c.l.b16 %v3725
    %v3862 = vunpack.c.l.b16 %v3726
    %v3863 = vunpack.c.l.b16 %v3727
    %v3864 = vunpack.c.l.b16 %v3728
    %v3865 = vunpack.c.l.b16 %v3729
    %v3866 = vunpack.c.l.b16 %v3730
    %v3867 = vunpack.c.l.b16 %v3731
    %v3868 = vunpack.c.l.b16 %v3732
    %v3869 = vunpack.c.l.b16 %v3733
    %v3870 = vpack.c.b16 %v3807, %v3806
    %v3871 = vpack.c.b16 %v3809, %v3808
    %v3872 = vpack.c.b16 %v3811, %v3810
    %v3873 = vpack.c.b16 %v3813, %v3812
    %v3874 = vpack.c.b16 %v3815, %v3814
    %v3875 = vpack.c.b16 %v3817, %v3816
    %v3876 = vpack.c.b16 %v3819, %v3818
    %v3877 = vpack.c.b16 %v3821, %v3820
    %v3878 = vpack.c.b16 %v3823, %v3822
    %v3879 = vpack.c.b16 %v3825, %v3824
    %v3880 = vpack.c.b16 %v3827, %v3826
    %v3881 = vpack.c.b16 %v3829, %v3828
    %v3882 = vpack.c.b16 %v3831, %v3830
    %v3883 = vpack.c.b16 %v3833, %v3832
    %v3884 = vpack.c.b16 %v3835, %v3834
    %v3885 = vpack.c.b16 %v3837, %v3836
    %v3886 = vpack.c.b16 %v3839, %v3838
    %v3887 = vpack.c.b16 %v3841, %v3840
    %v3888 = vpack.c.b16 %v3843, %v3842
    %v3889 = vpack.c.b16 %v3845, %v3844
    %v3890 = vpack.c.b16 %v3847, %v3846
    %v3891 = vpack.c.b16 %v3849, %v3848
    %v3892 = vpack.c.b16 %v3851, %v3850
    %v3893 = vpack.c.b16 %v3853, %v3852
    %v3894 = vpack.c.b16 %v3855, %v3854
    %v3895 = vpack.c.b16 %v3857, %v3856
    %v3896 = vpack.c.b16 %v3859, %v3858
    %v3897 = vpack.c.b16 %v3861, %v3860
    %v3898 = vpack.c.b16 %v3863, %v3862
    %v3899 = vpack.c.b16 %v3865, %v3864
    %v3900 = vpack.c.b16 %v3867, %v3866
    %v3901 = vpack.c.b16 %v3869, %v3868
    %3934 = vmatprep.subr.bf16.mxu0 0
    %3935 = vmatpush1.bf16.msra.mxu0 %v3877
    %3936 = vmatprep.subr.bf16.mxu0 0
    %3937 = vmatpush1.bf16.msra.mxu0 %v3876
    %3938 = vmatprep.subr.bf16.mxu0 0
    %3939 = vmatpush1.bf16.msra.mxu0 %v3875
    %3940 = vmatprep.subr.bf16.mxu0 0
    %3941 = vmatpush1.bf16.msra.mxu0 %v3874
    %3942 = vmatprep.subr.bf16.mxu0 0
    %3943 = vmatpush1.bf16.msra.mxu0 %v3873
    %3944 = vmatprep.subr.bf16.mxu0 0
    %3945 = vmatpush1.bf16.msra.mxu0 %v3872
    %3946 = vmatprep.subr.bf16.mxu0 0
    %3947 = vmatpush1.bf16.msra.mxu0 %v3871
    %3948 = vmatprep.subr.bf16.mxu0 0
    %3949 = vmatpush1.bf16.msra.mxu0 %v3870
    %3950 = vmatprep.subr.bf16.mxu0 0
    %3951 = vmatpush2.bf16.msra.mxu0 %v3885
    %3952 = vmatprep.subr.bf16.mxu0 0
    %3953 = vmatpush2.bf16.msra.mxu0 %v3884
    %3954 = vmatprep.subr.bf16.mxu0 0
    %3955 = vmatpush2.bf16.msra.mxu0 %v3883
    %3956 = vmatprep.subr.bf16.mxu0 0
    %3957 = vmatpush2.bf16.msra.mxu0 %v3882
    %3958 = vmatprep.subr.bf16.mxu0 0
    %3959 = vmatpush2.bf16.msra.mxu0 %v3881
    %3960 = vmatprep.subr.bf16.mxu0 0
    %3961 = vmatpush2.bf16.msra.mxu0 %v3880
    %3962 = vmatprep.subr.bf16.mxu0 0
    %3963 = vmatpush2.bf16.msra.mxu0 %v3879
    %3964 = vmatprep.subr.bf16.mxu0 0
    %3965 = vmatpush2.bf16.msra.mxu0 %v3878
    %3966 = vmatprep.mubr.bf16.mxu0 %v3666
    %3967 = vmatmul.mubr.bf16.gmra.mxu0 %v3665
    %v3968 = vpop.f32.mrf.mxu0
    %v3969 = vadd.f32 %v3740, %v3968
    %v3970 = vpop.f32.mrf.mxu0
    %v3971 = vpop.f32.mrf.mxu0
    %v3972 = vadd.f32 %v3740, %v3971
    %v3973 = vpop.f32.mrf.mxu0
    %3974 = vdwg.mxu0
    %3975 = vmatprep.subr.bf16.mxu0 0
    %3976 = vmatpush1.bf16.msra.mxu0 %v3893
    %3977 = vmatprep.subr.bf16.mxu0 0
    %3978 = vmatpush1.bf16.msra.mxu0 %v3892
    %3979 = vmatprep.subr.bf16.mxu0 0
    %3980 = vmatpush1.bf16.msra.mxu0 %v3891
    %3981 = vmatprep.subr.bf16.mxu0 0
    %3982 = vmatpush1.bf16.msra.mxu0 %v3890
    %3983 = vmatprep.subr.bf16.mxu0 0
    %3984 = vmatpush1.bf16.msra.mxu0 %v3889
    %3985 = vmatprep.subr.bf16.mxu0 0
    %3986 = vmatpush1.bf16.msra.mxu0 %v3888
    %3987 = vmatprep.subr.bf16.mxu0 0
    %3988 = vmatpush1.bf16.msra.mxu0 %v3887
    %3989 = vmatprep.subr.bf16.mxu0 0
    %3990 = vmatpush1.bf16.msra.mxu0 %v3886
    %3991 = vmatprep.subr.bf16.mxu0 0
    %3992 = vmatpush2.bf16.msra.mxu0 %v3901
    %3993 = vmatprep.subr.bf16.mxu0 0
    %3994 = vmatpush2.bf16.msra.mxu0 %v3900
    %3995 = vmatprep.subr.bf16.mxu0 0
    %3996 = vmatpush2.bf16.msra.mxu0 %v3899
    %3997 = vmatprep.subr.bf16.mxu0 0
    %3998 = vmatpush2.bf16.msra.mxu0 %v3898
    %3999 = vmatprep.subr.bf16.mxu0 0
    %4000 = vmatpush2.bf16.msra.mxu0 %v3897
    %4001 = vmatprep.subr.bf16.mxu0 0
    %4002 = vmatpush2.bf16.msra.mxu0 %v3896
    %4003 = vmatprep.subr.bf16.mxu0 0
    %4004 = vmatpush2.bf16.msra.mxu0 %v3895
    %4005 = vmatprep.subr.bf16.mxu0 0
    %4006 = vmatpush2.bf16.msra.mxu0 %v3894
    %4007 = vmatprep.mubr.bf16.mxu0 %v3668
    %4008 = vmatmul.mubr.bf16.gmra.mxu0 %v3667
    %v4009 = vpop.f32.mrf.mxu0
    %v4010 = vadd.f32 %v3969, %v4009
    %v4011 = vpop.f32.mrf.mxu0
    %v4012 = vpop.f32.mrf.mxu0
    %v4013 = vadd.f32 %v3972, %v4012
    %v4014 = vpop.f32.mrf.mxu0
    %4015 = vdwg.mxu0
    %v4016 = vadd.f32 %v3246, %v4010
    %v4017 = vadd.f32 %v3247, %v4013
    %4018 = vst [vmem:[#allocation23] sm:$0xff] %v4016
    %4019 = vst [vmem:[#allocation23 + $0x8] sm:$0xff] %v4017
    %s4020 = scalar_lea.vmem [#allocation10], 2
    %v4021 = vld [vmem:[%s4020] sm:$0x1]
    %s4022 = scalar_lea.vmem [#allocation11], 2
    %v4023 = vld [vmem:[%s4022] sm:$0x1]
    %4024 = vadd.xlane.f32.xlu0 %v4016
    %v4025 = vpop.xlane.xlu0 %4024
    %4026 = vadd.xlane.f32.xlu0 %v4017
    %v4027 = vpop.xlane.xlu0 %4026
    %v4028 = vmul.f32 %v4025, %v393
    %v4029 = vmul.f32 %v4027, %v393
    %v4030 = vsub.f32 %v4016, %v4028
    %v4031 = vsub.f32 %v4017, %v4029
    %v4032 = vmul.f32 %v4030, %v4030
    %v4033 = vmul.f32 %v4031, %v4031
    %4034 = vadd.xlane.f32.xlu0 %v4032
    %v4035 = vpop.xlane.xlu0 %4034
    %4036 = vadd.xlane.f32.xlu0 %v4033
    %v4037 = vpop.xlane.xlu0 %4036
    %v4038 = vmul.f32 %v4035, %v393
    %v4039 = vmul.f32 %v4037, %v393
    %v4040 = vadd.f32 %v4038, 1e-06
    %v4041 = vadd.f32 %v4039, 1e-06
    %v4042 = vrsqrt.pop %v4040
    %v4043 = vrsqrt.pop %v4041
    %v4044 = vmul.f32 %v4030, %v4042
    %v4045 = vmul.f32 %v4031, %v4043
    %v4047 = vlaneseq
    %v4048 = vshrl.u32 %v4047, 7
    %v4049 = vsub.s32 0, %v4048
    %v4050 = vrot.slane %v4021, %v4049
    %v4052 = vmul.f32 %v4044, %v4050
    %v4053 = vmul.f32 %v4045, %v4050
    %v4055 = vlaneseq
    %v4056 = vshrl.u32 %v4055, 7
    %v4057 = vsub.s32 0, %v4056
    %v4058 = vrot.slane %v4023, %v4057
    %v4060 = vadd.f32 %v4052, %v4058
    %v4061 = vadd.f32 %v4053, %v4058
    %v4062 = vpack.c.bf16 %v4061, %v4060
    %s4063 = scalar_lea.vmem [#allocation13], 384
    %v4064 = vld [vmem:[%s4063] sm:$0xff]
    %v4065 = vld [vmem:[%s4063 + $0x8] sm:$0xf]
    %v4066 = vld [vmem:[%s4063 + $0xc] sm:$0xff]
    %v4067 = vld [vmem:[%s4063 + $0x14] sm:$0xf]
    %v4068 = vld [vmem:[%s4063 + $0x18] sm:$0xff]
    %v4069 = vld [vmem:[%s4063 + $0x20] sm:$0xf]
    %v4070 = vld [vmem:[%s4063 + $0x24] sm:$0xff]
    %v4071 = vld [vmem:[%s4063 + $0x2c] sm:$0xf]
    %v4072 = vld [vmem:[%s4063 + $0x30] sm:$0xff]
    %v4073 = vld [vmem:[%s4063 + $0x38] sm:$0xf]
    %v4074 = vld [vmem:[%s4063 + $0x3c] sm:$0xff]
    %v4075 = vld [vmem:[%s4063 + $0x44] sm:$0xf]
    %v4076 = vld [vmem:[%s4063 + $0x48] sm:$0xff]
    %v4077 = vld [vmem:[%s4063 + $0x50] sm:$0xf]
    %v4078 = vld [vmem:[%s4063 + $0x54] sm:$0xff]
    %v4079 = vld [vmem:[%s4063 + $0x5c] sm:$0xf]
    %v4080 = vld [vmem:[%s4063 + $0x60] sm:$0xff]
    %v4081 = vld [vmem:[%s4063 + $0x68] sm:$0xf]
    %v4082 = vld [vmem:[%s4063 + $0x6c] sm:$0xff]
    %v4083 = vld [vmem:[%s4063 + $0x74] sm:$0xf]
    %v4084 = vld [vmem:[%s4063 + $0x78] sm:$0xff]
    %v4085 = vld [vmem:[%s4063 + $0x80] sm:$0xf]
    %v4086 = vld [vmem:[%s4063 + $0x84] sm:$0xff]
    %v4087 = vld [vmem:[%s4063 + $0x8c] sm:$0xf]
    %v4088 = vld [vmem:[%s4063 + $0x90] sm:$0xff]
    %v4089 = vld [vmem:[%s4063 + $0x98] sm:$0xf]
    %v4090 = vld [vmem:[%s4063 + $0x9c] sm:$0xff]
    %v4091 = vld [vmem:[%s4063 + $0xa4] sm:$0xf]
    %v4092 = vld [vmem:[%s4063 + $0xa8] sm:$0xff]
    %v4093 = vld [vmem:[%s4063 + $0xb0] sm:$0xf]
    %v4094 = vld [vmem:[%s4063 + $0xb4] sm:$0xff]
    %v4095 = vld [vmem:[%s4063 + $0xbc] sm:$0xf]
    %s4096 = scalar_lea.vmem %s7, 6
    %v4097 = vld [vmem:[%s4096] sm:$0x7]
    %v4099 = vlaneseq
    %v4100 = vshrl.u32 %v4099, 7
    %v4101 = vsub.s32 0, %v4100
    %v4102 = vrot.slane %v4097, %v4101
    %v4103 = vlaneseq
    %v4104 = vshrl.u32 %v4103, 7
    %v4105 = vsub.s32 1, %v4104
    %v4106 = vrot.slane %v4097, %v4105
    %v4107 = vlaneseq
    %v4108 = vshrl.u32 %v4107, 7
    %v4109 = vsub.s32 2, %v4108
    %v4110 = vrot.slane %v4097, %v4109
    %v4146 = vunpack.c.l.b16 %v4064
    %v4147 = vunpack.c.h.b16 %v4064
    %v4148 = vunpack.c.l.b16 %v4065
    %v4149 = vunpack.c.l.b16 %v4066
    %v4150 = vunpack.c.h.b16 %v4066
    %v4151 = vunpack.c.l.b16 %v4067
    %v4152 = vunpack.c.l.b16 %v4068
    %v4153 = vunpack.c.h.b16 %v4068
    %v4154 = vunpack.c.l.b16 %v4069
    %v4155 = vunpack.c.l.b16 %v4070
    %v4156 = vunpack.c.h.b16 %v4070
    %v4157 = vunpack.c.l.b16 %v4071
    %v4158 = vunpack.c.l.b16 %v4072
    %v4159 = vunpack.c.h.b16 %v4072
    %v4160 = vunpack.c.l.b16 %v4073
    %v4161 = vunpack.c.l.b16 %v4074
    %v4162 = vunpack.c.h.b16 %v4074
    %v4163 = vunpack.c.l.b16 %v4075
    %v4164 = vunpack.c.l.b16 %v4076
    %v4165 = vunpack.c.h.b16 %v4076
    %v4166 = vunpack.c.l.b16 %v4077
    %v4167 = vunpack.c.l.b16 %v4078
    %v4168 = vunpack.c.h.b16 %v4078
    %v4169 = vunpack.c.l.b16 %v4079
    %v4170 = vunpack.c.l.b16 %v4080
    %v4171 = vunpack.c.h.b16 %v4080
    %v4172 = vunpack.c.l.b16 %v4081
    %v4173 = vunpack.c.l.b16 %v4082
    %v4174 = vunpack.c.h.b16 %v4082
    %v4175 = vunpack.c.l.b16 %v4083
    %v4176 = vunpack.c.l.b16 %v4084
    %v4177 = vunpack.c.h.b16 %v4084
    %v4178 = vunpack.c.l.b16 %v4085
    %v4179 = vunpack.c.l.b16 %v4086
    %v4180 = vunpack.c.h.b16 %v4086
    %v4181 = vunpack.c.l.b16 %v4087
    %v4182 = vunpack.c.l.b16 %v4088
    %v4183 = vunpack.c.h.b16 %v4088
    %v4184 = vunpack.c.l.b16 %v4089
    %v4185 = vunpack.c.l.b16 %v4090
    %v4186 = vunpack.c.h.b16 %v4090
    %v4187 = vunpack.c.l.b16 %v4091
    %v4188 = vunpack.c.l.b16 %v4092
    %v4189 = vunpack.c.h.b16 %v4092
    %v4190 = vunpack.c.l.b16 %v4093
    %v4191 = vunpack.c.l.b16 %v4094
    %v4192 = vunpack.c.h.b16 %v4094
    %v4193 = vunpack.c.l.b16 %v4095
    %v4194 = vpack.c.b16 %v4149, %v4146
    %v4195 = vpack.c.b16 %v4150, %v4147
    %v4196 = vpack.c.b16 %v4151, %v4148
    %v4197 = vpack.c.b16 %v4155, %v4152
    %v4198 = vpack.c.b16 %v4156, %v4153
    %v4199 = vpack.c.b16 %v4157, %v4154
    %v4200 = vpack.c.b16 %v4161, %v4158
    %v4201 = vpack.c.b16 %v4162, %v4159
    %v4202 = vpack.c.b16 %v4163, %v4160
    %v4203 = vpack.c.b16 %v4167, %v4164
    %v4204 = vpack.c.b16 %v4168, %v4165
    %v4205 = vpack.c.b16 %v4169, %v4166
    %v4206 = vpack.c.b16 %v4173, %v4170
    %v4207 = vpack.c.b16 %v4174, %v4171
    %v4208 = vpack.c.b16 %v4175, %v4172
    %v4209 = vpack.c.b16 %v4179, %v4176
    %v4210 = vpack.c.b16 %v4180, %v4177
    %v4211 = vpack.c.b16 %v4181, %v4178
    %v4212 = vpack.c.b16 %v4185, %v4182
    %v4213 = vpack.c.b16 %v4186, %v4183
    %v4214 = vpack.c.b16 %v4187, %v4184
    %v4215 = vpack.c.b16 %v4191, %v4188
    %v4216 = vpack.c.b16 %v4192, %v4189
    %v4217 = vpack.c.b16 %v4193, %v4190
    %4242 = vmatprep.subr.bf16.mxu0 %v4216
    %4243 = vmatpush1.bf16.msra.mxu0 %v4215
    %4244 = vmatprep.subr.bf16.mxu0 %v4213
    %4245 = vmatpush1.bf16.msra.mxu0 %v4212
    %4246 = vmatprep.subr.bf16.mxu0 %v4210
    %4247 = vmatpush1.bf16.msra.mxu0 %v4209
    %4248 = vmatprep.subr.bf16.mxu0 %v4207
    %4249 = vmatpush1.bf16.msra.mxu0 %v4206
    %4250 = vmatprep.subr.bf16.mxu0 %v4204
    %4251 = vmatpush1.bf16.msra.mxu0 %v4203
    %4252 = vmatprep.subr.bf16.mxu0 %v4201
    %4253 = vmatpush1.bf16.msra.mxu0 %v4200
    %4254 = vmatprep.subr.bf16.mxu0 %v4198
    %4255 = vmatpush1.bf16.msra.mxu0 %v4197
    %4256 = vmatprep.subr.bf16.mxu0 %v4195
    %4257 = vmatpush1.bf16.msra.mxu0 %v4194
    %4258 = vmatprep.subr.bf16.mxu0 0
    %4259 = vmatpush2.bf16.msra.mxu0 0
    %4260 = vmatprep.subr.bf16.mxu0 0
    %4261 = vmatpush2.bf16.msra.mxu0 0
    %4262 = vmatprep.subr.bf16.mxu0 0
    %4263 = vmatpush2.bf16.msra.mxu0 0
    %4264 = vmatprep.subr.bf16.mxu0 0
    %4265 = vmatpush2.bf16.msra.mxu0 0
    %4266 = vmatprep.subr.bf16.mxu0 0
    %4267 = vmatpush2.bf16.msra.mxu0 0
    %4268 = vmatprep.subr.bf16.mxu0 0
    %4269 = vmatpush2.bf16.msra.mxu0 0
    %4270 = vmatprep.subr.bf16.mxu0 0
    %4271 = vmatpush2.bf16.msra.mxu0 0
    %4272 = vmatprep.subr.bf16.mxu0 0
    %4273 = vmatpush2.bf16.msra.mxu0 0
    %4274 = vmatprep.mubr.bf16.mxu0 0
    %4275 = vmatmul.mubr.bf16.gmra.mxu0 %v4062
    %v4276 = vpop.f32.mrf.mxu0
    %v4277 = vadd.f32 %v4102, %v4276
    %v4278 = vpop.f32.mrf.mxu0
    %v4279 = vadd.f32 %v4106, %v4278
    %v4280 = vpop.f32.mrf.mxu0
    %v4281 = vadd.f32 %v4102, %v4280
    %v4282 = vpop.f32.mrf.mxu0
    %v4283 = vadd.f32 %v4106, %v4282
    %4284 = vdwg.mxu0
    %4285 = vmatprep.subr.bf16.mxu0 0
    %4286 = vmatpush1.bf16.msra.mxu0 %v4217
    %4287 = vmatprep.subr.bf16.mxu0 0
    %4288 = vmatpush1.bf16.msra.mxu0 %v4214
    %4289 = vmatprep.subr.bf16.mxu0 0
    %4290 = vmatpush1.bf16.msra.mxu0 %v4211
    %4291 = vmatprep.subr.bf16.mxu0 0
    %4292 = vmatpush1.bf16.msra.mxu0 %v4208
    %4293 = vmatprep.subr.bf16.mxu0 0
    %4294 = vmatpush1.bf16.msra.mxu0 %v4205
    %4295 = vmatprep.subr.bf16.mxu0 0
    %4296 = vmatpush1.bf16.msra.mxu0 %v4202
    %4297 = vmatprep.subr.bf16.mxu0 0
    %4298 = vmatpush1.bf16.msra.mxu0 %v4199
    %4299 = vmatprep.subr.bf16.mxu0 0
    %4300 = vmatpush1.bf16.msra.mxu0 %v4196
    %4301 = vmatprep.subr.bf16.mxu0 0
    %4302 = vmatpush2.bf16.msra.mxu0 0
    %4303 = vmatprep.subr.bf16.mxu0 0
    %4304 = vmatpush2.bf16.msra.mxu0 0
    %4305 = vmatprep.subr.bf16.mxu0 0
    %4306 = vmatpush2.bf16.msra.mxu0 0
    %4307 = vmatprep.subr.bf16.mxu0 0
    %4308 = vmatpush2.bf16.msra.mxu0 0
    %4309 = vmatprep.subr.bf16.mxu0 0
    %4310 = vmatpush2.bf16.msra.mxu0 0
    %4311 = vmatprep.subr.bf16.mxu0 0
    %4312 = vmatpush2.bf16.msra.mxu0 0
    %4313 = vmatprep.subr.bf16.mxu0 0
    %4314 = vmatpush2.bf16.msra.mxu0 0
    %4315 = vmatprep.subr.bf16.mxu0 0
    %4316 = vmatpush2.bf16.msra.mxu0 0
    %4317 = vmatprep.mubr.bf16.mxu0 0
    %4318 = vmatmul.mubr.bf16.gmra.mxu0 %v4062
    %v4319 = vpop.f32.mrf.mxu0
    %v4320 = vadd.f32 %v4110, %v4319
    %v4321 = vpop.f32.mrf.mxu0
    %v4322 = vpop.f32.mrf.mxu0
    %v4323 = vadd.f32 %v4110, %v4322
    %v4324 = vpop.f32.mrf.mxu0
    %4325 = vdwg.mxu0
    %v4326 = vpack.c.bf16 %v4281, %v4277
    %v4327 = vpack.c.bf16 %v4283, %v4279
    %v4328 = vpack.c.bf16 %v4323, %v4320
    %s4329 = scalar_lea.vmem [#allocation14], 128
    %v4330 = vld [vmem:[%s4329] sm:$0xf]
    %v4331 = vld [vmem:[%s4329 + $0x4] sm:$0xf]
    %v4332 = vld [vmem:[%s4329 + $0x8] sm:$0xf]
    %v4333 = vld [vmem:[%s4329 + $0xc] sm:$0xf]
    %v4334 = vld [vmem:[%s4329 + $0x10] sm:$0xf]
    %v4335 = vld [vmem:[%s4329 + $0x14] sm:$0xf]
    %v4336 = vld [vmem:[%s4329 + $0x18] sm:$0xf]
    %v4337 = vld [vmem:[%s4329 + $0x1c] sm:$0xf]
    %v4338 = vld [vmem:[%s4329 + $0x20] sm:$0xf]
    %v4339 = vld [vmem:[%s4329 + $0x24] sm:$0xf]
    %v4340 = vld [vmem:[%s4329 + $0x28] sm:$0xf]
    %v4341 = vld [vmem:[%s4329 + $0x2c] sm:$0xf]
    %v4342 = vld [vmem:[%s4329 + $0x30] sm:$0xf]
    %v4343 = vld [vmem:[%s4329 + $0x34] sm:$0xf]
    %v4344 = vld [vmem:[%s4329 + $0x38] sm:$0xf]
    %v4345 = vld [vmem:[%s4329 + $0x3c] sm:$0xf]
    %v4347 = vsel %vm709, %v4326, 0
    %v4350 = vsel %vm709, %v4327, 0
    %4352 = vmatprep.subr.bf16.mxu0 0
    %4353 = vmatpush1.bf16.xpose.msra.mxu0 0
    %4354 = vmatprep.subr.bf16.mxu0 0
    %4355 = vmatpush1.bf16.xpose.msra.mxu0 0
    %4356 = vmatprep.subr.bf16.mxu0 0
    %4357 = vmatpush1.bf16.xpose.msra.mxu0 0
    %4358 = vmatprep.subr.bf16.mxu0 0
    %4359 = vmatpush1.bf16.xpose.msra.mxu0 0
    %4360 = vmatprep.subr.bf16.mxu0 0
    %4361 = vmatpush1.bf16.xpose.msra.mxu0 0
    %4362 = vmatprep.subr.bf16.mxu0 0
    %4363 = vmatpush1.bf16.xpose.msra.mxu0 0
    %4364 = vmatprep.subr.bf16.mxu0 0
    %4365 = vmatpush1.bf16.xpose.msra.mxu0 0
    %4366 = vmatprep.subr.bf16.mxu0 0
    %4367 = vmatpush1.bf16.xpose.msra.mxu0 %v4350
    %4368 = vmatprep.subr.bf16.mxu0 0
    %4369 = vmatpush2.bf16.xpose.msra.mxu0 0
    %4370 = vmatprep.subr.bf16.mxu0 0
    %4371 = vmatpush2.bf16.xpose.msra.mxu0 0
    %4372 = vmatprep.subr.bf16.mxu0 0
    %4373 = vmatpush2.bf16.xpose.msra.mxu0 0
    %4374 = vmatprep.subr.bf16.mxu0 0
    %4375 = vmatpush2.bf16.xpose.msra.mxu0 0
    %4376 = vmatprep.subr.bf16.mxu0 0
    %4377 = vmatpush2.bf16.xpose.msra.mxu0 0
    %4378 = vmatprep.subr.bf16.mxu0 0
    %4379 = vmatpush2.bf16.xpose.msra.mxu0 0
    %4380 = vmatprep.subr.bf16.mxu0 0
    %4381 = vmatpush2.bf16.xpose.msra.mxu0 0
    %4382 = vmatprep.subr.bf16.mxu0 0
    %4383 = vmatpush2.bf16.xpose.msra.mxu0 0
    %4384 = vmatprep.mubr.bf16.mxu0 0
    %4385 = vmatmul.mubr.bf16.gmra.mxu0 %v4347
    %v4386 = vpop.f32.mrf.mxu0
    %v4387 = vadd.f32 %v385, %v4386
    %v4388 = vpop.f32.mrf.mxu0
    %v4389 = vpop.f32.mrf.mxu0
    %v4390 = vadd.f32 %v386, %v4389
    %v4391 = vpop.f32.mrf.mxu0
    %4392 = vdwg.mxu0
    %v4393 = vsel %vm757, %v4387, -inf
    %4394 = vmax.xlane.f32.xlu0 %v4393
    %v4395 = vpop.xlane.xlu0 %4394
    %v4396 = vsel %vm757, %v4390, -inf
    %4397 = vmax.xlane.f32.xlu0 %v4396
    %v4398 = vpop.xlane.xlu0 %4397
    %v4399 = vsub.f32 %v4387, %v4395
    %v4400 = vsub.f32 %v4390, %v4398
    %v4401 = vmul.f32 %v4399, 1.442695
    %v4402 = vpow.pop %v4401
    %v4403 = vmul.f32 %v4400, 1.442695
    %v4404 = vpow.pop %v4403
    %v4405 = vsel %vm757, %v4402, 0.0
    %4406 = vadd.xlane.f32.xlu0 %v4405
    %v4407 = vpop.xlane.xlu0 %4406
    %v4408 = vsel %vm757, %v4404, 0.0
    %4409 = vadd.xlane.f32.xlu0 %v4408
    %v4410 = vpop.xlane.xlu0 %4409
    %v4411 = vrcp.pop %v4407
    %v4412 = vrcp.pop %v4410
    %v4413 = vmul.f32 %v4402, %v4411
    %v4414 = vmul.f32 %v4404, %v4412
    %v4415 = vpack.c.bf16 %v4414, %v4413
    %v4417 = vsel %vm757, %v4415, 0
    %4419 = vmatprep.subr.bf16.mxu0 0
    %4420 = vmatpush1.bf16.msra.mxu0 0
    %4421 = vmatprep.subr.bf16.mxu0 0
    %4422 = vmatpush1.bf16.msra.mxu0 0
    %4423 = vmatprep.subr.bf16.mxu0 0
    %4424 = vmatpush1.bf16.msra.mxu0 0
    %4425 = vmatprep.subr.bf16.mxu0 0
    %4426 = vmatpush1.bf16.msra.mxu0 0
    %4427 = vmatprep.subr.bf16.mxu0 0
    %4428 = vmatpush1.bf16.msra.mxu0 0
    %4429 = vmatprep.subr.bf16.mxu0 0
    %4430 = vmatpush1.bf16.msra.mxu0 0
    %4431 = vmatprep.subr.bf16.mxu0 0
    %4432 = vmatpush1.bf16.msra.mxu0 0
    %4433 = vmatprep.subr.bf16.mxu0 0
    %4434 = vmatpush1.bf16.msra.mxu0 %v4328
    %4435 = vmatprep.subr.bf16.mxu0 0
    %4436 = vmatpush2.bf16.msra.mxu0 0
    %4437 = vmatprep.subr.bf16.mxu0 0
    %4438 = vmatpush2.bf16.msra.mxu0 0
    %4439 = vmatprep.subr.bf16.mxu0 0
    %4440 = vmatpush2.bf16.msra.mxu0 0
    %4441 = vmatprep.subr.bf16.mxu0 0
    %4442 = vmatpush2.bf16.msra.mxu0 0
    %4443 = vmatprep.subr.bf16.mxu0 0
    %4444 = vmatpush2.bf16.msra.mxu0 0
    %4445 = vmatprep.subr.bf16.mxu0 0
    %4446 = vmatpush2.bf16.msra.mxu0 0
    %4447 = vmatprep.subr.bf16.mxu0 0
    %4448 = vmatpush2.bf16.msra.mxu0 0
    %4449 = vmatprep.subr.bf16.mxu0 0
    %4450 = vmatpush2.bf16.msra.mxu0 0
    %4451 = vmatprep.mubr.bf16.mxu0 0
    %4452 = vmatmul.mubr.bf16.gmra.mxu0 %v4417
    %v4453 = vpop.f32.mrf.mxu0
    %v4454 = vadd.f32 0.0, %v4453
    %v4455 = vpop.f32.mrf.mxu0
    %v4456 = vpop.f32.mrf.mxu0
    %v4457 = vadd.f32 0.0, %v4456
    %v4458 = vpop.f32.mrf.mxu0
    %4459 = vdwg.mxu0
    %v4460 = vpack.c.bf16 %v4457, %v4454
    %4462 = vrot.lane.b32.xlu0 %v4326, 96
    %v4463 = vpop.permute.xlu0 %4462
    %4465 = vrot.lane.b32.xlu0 %v4327, 96
    %v4466 = vpop.permute.xlu0 %4465
    %v4468 = vsel %vm709, %v4463, 0
    %v4471 = vsel %vm709, %v4466, 0
    %4473 = vmatprep.subr.bf16.mxu0 0
    %4474 = vmatpush1.bf16.xpose.msra.mxu0 0
    %4475 = vmatprep.subr.bf16.mxu0 0
    %4476 = vmatpush1.bf16.xpose.msra.mxu0 0
    %4477 = vmatprep.subr.bf16.mxu0 0
    %4478 = vmatpush1.bf16.xpose.msra.mxu0 0
    %4479 = vmatprep.subr.bf16.mxu0 0
    %4480 = vmatpush1.bf16.xpose.msra.mxu0 0
    %4481 = vmatprep.subr.bf16.mxu0 0
    %4482 = vmatpush1.bf16.xpose.msra.mxu0 0
    %4483 = vmatprep.subr.bf16.mxu0 0
    %4484 = vmatpush1.bf16.xpose.msra.mxu0 0
    %4485 = vmatprep.subr.bf16.mxu0 0
    %4486 = vmatpush1.bf16.xpose.msra.mxu0 0
    %4487 = vmatprep.subr.bf16.mxu0 0
    %4488 = vmatpush1.bf16.xpose.msra.mxu0 %v4471
    %4489 = vmatprep.subr.bf16.mxu0 0
    %4490 = vmatpush2.bf16.xpose.msra.mxu0 0
    %4491 = vmatprep.subr.bf16.mxu0 0
    %4492 = vmatpush2.bf16.xpose.msra.mxu0 0
    %4493 = vmatprep.subr.bf16.mxu0 0
    %4494 = vmatpush2.bf16.xpose.msra.mxu0 0
    %4495 = vmatprep.subr.bf16.mxu0 0
    %4496 = vmatpush2.bf16.xpose.msra.mxu0 0
    %4497 = vmatprep.subr.bf16.mxu0 0
    %4498 = vmatpush2.bf16.xpose.msra.mxu0 0
    %4499 = vmatprep.subr.bf16.mxu0 0
    %4500 = vmatpush2.bf16.xpose.msra.mxu0 0
    %4501 = vmatprep.subr.bf16.mxu0 0
    %4502 = vmatpush2.bf16.xpose.msra.mxu0 0
    %4503 = vmatprep.subr.bf16.mxu0 0
    %4504 = vmatpush2.bf16.xpose.msra.mxu0 0
    %4505 = vmatprep.mubr.bf16.mxu0 0
    %4506 = vmatmul.mubr.bf16.gmra.mxu0 %v4468
    %v4507 = vpop.f32.mrf.mxu0
    %v4508 = vadd.f32 %v385, %v4507
    %v4509 = vpop.f32.mrf.mxu0
    %v4510 = vpop.f32.mrf.mxu0
    %v4511 = vadd.f32 %v386, %v4510
    %v4512 = vpop.f32.mrf.mxu0
    %4513 = vdwg.mxu0
    %v4514 = vsel %vm757, %v4508, -inf
    %4515 = vmax.xlane.f32.xlu0 %v4514
    %v4516 = vpop.xlane.xlu0 %4515
    %v4517 = vsel %vm757, %v4511, -inf
    %4518 = vmax.xlane.f32.xlu0 %v4517
    %v4519 = vpop.xlane.xlu0 %4518
    %v4520 = vsub.f32 %v4508, %v4516
    %v4521 = vsub.f32 %v4511, %v4519
    %v4522 = vmul.f32 %v4520, 1.442695
    %v4523 = vpow.pop %v4522
    %v4524 = vmul.f32 %v4521, 1.442695
    %v4525 = vpow.pop %v4524
    %v4526 = vsel %vm757, %v4523, 0.0
    %4527 = vadd.xlane.f32.xlu0 %v4526
    %v4528 = vpop.xlane.xlu0 %4527
    %v4529 = vsel %vm757, %v4525, 0.0
    %4530 = vadd.xlane.f32.xlu0 %v4529
    %v4531 = vpop.xlane.xlu0 %4530
    %v4532 = vrcp.pop %v4528
    %v4533 = vrcp.pop %v4531
    %v4534 = vmul.f32 %v4523, %v4532
    %v4535 = vmul.f32 %v4525, %v4533
    %v4536 = vpack.c.bf16 %v4535, %v4534
    %4538 = vrot.lane.b32.xlu0 %v4328, 96
    %v4539 = vpop.permute.xlu0 %4538
    %v4542 = vsel %vm757, %v4536, 0
    %4544 = vmatprep.subr.bf16.mxu0 0
    %4545 = vmatpush1.bf16.msra.mxu0 0
    %4546 = vmatprep.subr.bf16.mxu0 0
    %4547 = vmatpush1.bf16.msra.mxu0 0
    %4548 = vmatprep.subr.bf16.mxu0 0
    %4549 = vmatpush1.bf16.msra.mxu0 0
    %4550 = vmatprep.subr.bf16.mxu0 0
    %4551 = vmatpush1.bf16.msra.mxu0 0
    %4552 = vmatprep.subr.bf16.mxu0 0
    %4553 = vmatpush1.bf16.msra.mxu0 0
    %4554 = vmatprep.subr.bf16.mxu0 0
    %4555 = vmatpush1.bf16.msra.mxu0 0
    %4556 = vmatprep.subr.bf16.mxu0 0
    %4557 = vmatpush1.bf16.msra.mxu0 0
    %4558 = vmatprep.subr.bf16.mxu0 0
    %4559 = vmatpush1.bf16.msra.mxu0 %v4539
    %4560 = vmatprep.subr.bf16.mxu0 0
    %4561 = vmatpush2.bf16.msra.mxu0 0
    %4562 = vmatprep.subr.bf16.mxu0 0
    %4563 = vmatpush2.bf16.msra.mxu0 0
    %4564 = vmatprep.subr.bf16.mxu0 0
    %4565 = vmatpush2.bf16.msra.mxu0 0
    %4566 = vmatprep.subr.bf16.mxu0 0
    %4567 = vmatpush2.bf16.msra.mxu0 0
    %4568 = vmatprep.subr.bf16.mxu0 0
    %4569 = vmatpush2.bf16.msra.mxu0 0
    %4570 = vmatprep.subr.bf16.mxu0 0
    %4571 = vmatpush2.bf16.msra.mxu0 0
    %4572 = vmatprep.subr.bf16.mxu0 0
    %4573 = vmatpush2.bf16.msra.mxu0 0
    %4574 = vmatprep.subr.bf16.mxu0 0
    %4575 = vmatpush2.bf16.msra.mxu0 0
    %4576 = vmatprep.mubr.bf16.mxu0 0
    %4577 = vmatmul.mubr.bf16.gmra.mxu0 %v4542
    %v4578 = vpop.f32.mrf.mxu0
    %v4579 = vadd.f32 0.0, %v4578
    %v4580 = vpop.f32.mrf.mxu0
    %v4581 = vpop.f32.mrf.mxu0
    %v4582 = vadd.f32 0.0, %v4581
    %v4583 = vpop.f32.mrf.mxu0
    %4584 = vdwg.mxu0
    %v4585 = vpack.c.bf16 %v4582, %v4579
    %v4590 = vunpack.c.l.b16 %v4334
    %v4591 = vunpack.c.l.b16 %v4335
    %v4592 = vunpack.c.l.b16 %v4336
    %v4593 = vunpack.c.l.b16 %v4337
    %v4594 = vpack.c.b16 %v4591, %v4590
    %v4595 = vpack.c.b16 %v4593, %v4592
    %v4599 = vsel %vm709, %v4585, 0
    %4601 = vmatprep.subr.bf16.mxu0 0
    %4602 = vmatpush1.bf16.msra.mxu0 0
    %4603 = vmatprep.subr.bf16.mxu0 0
    %4604 = vmatpush1.bf16.msra.mxu0 0
    %4605 = vmatprep.subr.bf16.mxu0 0
    %4606 = vmatpush1.bf16.msra.mxu0 0
    %4607 = vmatprep.subr.bf16.mxu0 0
    %4608 = vmatpush1.bf16.msra.mxu0 0
    %4609 = vmatprep.subr.bf16.mxu0 0
    %4610 = vmatpush1.bf16.msra.mxu0 0
    %4611 = vmatprep.subr.bf16.mxu0 0
    %4612 = vmatpush1.bf16.msra.mxu0 0
    %4613 = vmatprep.subr.bf16.mxu0 0
    %4614 = vmatpush1.bf16.msra.mxu0 %v4595
    %4615 = vmatprep.subr.bf16.mxu0 0
    %4616 = vmatpush1.bf16.msra.mxu0 %v4594
    %4617 = vmatprep.subr.bf16.mxu0 0
    %4618 = vmatpush2.bf16.msra.mxu0 0
    %4619 = vmatprep.subr.bf16.mxu0 0
    %4620 = vmatpush2.bf16.msra.mxu0 0
    %4621 = vmatprep.subr.bf16.mxu0 0
    %4622 = vmatpush2.bf16.msra.mxu0 0
    %4623 = vmatprep.subr.bf16.mxu0 0
    %4624 = vmatpush2.bf16.msra.mxu0 0
    %4625 = vmatprep.subr.bf16.mxu0 0
    %4626 = vmatpush2.bf16.msra.mxu0 0
    %4627 = vmatprep.subr.bf16.mxu0 0
    %4628 = vmatpush2.bf16.msra.mxu0 0
    %4629 = vmatprep.subr.bf16.mxu0 0
    %4630 = vmatpush2.bf16.msra.mxu0 0
    %4631 = vmatprep.subr.bf16.mxu0 0
    %4632 = vmatpush2.bf16.msra.mxu0 0
    %4633 = vmatprep.mubr.bf16.mxu0 0
    %4634 = vmatmul.mubr.bf16.gmra.mxu0 %v4599
    %v4635 = vpop.f32.mrf.mxu0
    %v4636 = vadd.f32 0.0, %v4635
    %v4637 = vpop.f32.mrf.mxu0
    %v4638 = vpop.f32.mrf.mxu0
    %v4639 = vadd.f32 0.0, %v4638
    %v4640 = vpop.f32.mrf.mxu0
    %4641 = vdwg.mxu0
    %v4646 = vunpack.c.l.b16 %v4330
    %v4647 = vunpack.c.l.b16 %v4331
    %v4648 = vunpack.c.l.b16 %v4332
    %v4649 = vunpack.c.l.b16 %v4333
    %v4650 = vpack.c.b16 %v4647, %v4646
    %v4651 = vpack.c.b16 %v4649, %v4648
    %v4655 = vsel %vm709, %v4460, 0
    %4657 = vmatprep.subr.bf16.mxu0 0
    %4658 = vmatpush1.bf16.msra.mxu0 0
    %4659 = vmatprep.subr.bf16.mxu0 0
    %4660 = vmatpush1.bf16.msra.mxu0 0
    %4661 = vmatprep.subr.bf16.mxu0 0
    %4662 = vmatpush1.bf16.msra.mxu0 0
    %4663 = vmatprep.subr.bf16.mxu0 0
    %4664 = vmatpush1.bf16.msra.mxu0 0
    %4665 = vmatprep.subr.bf16.mxu0 0
    %4666 = vmatpush1.bf16.msra.mxu0 0
    %4667 = vmatprep.subr.bf16.mxu0 0
    %4668 = vmatpush1.bf16.msra.mxu0 0
    %4669 = vmatprep.subr.bf16.mxu0 0
    %4670 = vmatpush1.bf16.msra.mxu0 %v4651
    %4671 = vmatprep.subr.bf16.mxu0 0
    %4672 = vmatpush1.bf16.msra.mxu0 %v4650
    %4673 = vmatprep.subr.bf16.mxu0 0
    %4674 = vmatpush2.bf16.msra.mxu0 0
    %4675 = vmatprep.subr.bf16.mxu0 0
    %4676 = vmatpush2.bf16.msra.mxu0 0
    %4677 = vmatprep.subr.bf16.mxu0 0
    %4678 = vmatpush2.bf16.msra.mxu0 0
    %4679 = vmatprep.subr.bf16.mxu0 0
    %4680 = vmatpush2.bf16.msra.mxu0 0
    %4681 = vmatprep.subr.bf16.mxu0 0
    %4682 = vmatpush2.bf16.msra.mxu0 0
    %4683 = vmatprep.subr.bf16.mxu0 0
    %4684 = vmatpush2.bf16.msra.mxu0 0
    %4685 = vmatprep.subr.bf16.mxu0 0
    %4686 = vmatpush2.bf16.msra.mxu0 0
    %4687 = vmatprep.subr.bf16.mxu0 0
    %4688 = vmatpush2.bf16.msra.mxu0 0
    %4689 = vmatprep.mubr.bf16.mxu0 0
    %4690 = vmatmul.mubr.bf16.gmra.mxu0 %v4655
    %v4691 = vpop.f32.mrf.mxu0
    %v4692 = vadd.f32 %v4636, %v4691
    %v4693 = vpop.f32.mrf.mxu0
    %v4694 = vpop.f32.mrf.mxu0
    %v4695 = vadd.f32 %v4639, %v4694
    %v4696 = vpop.f32.mrf.mxu0
    %4697 = vdwg.mxu0
    %4698 = vrot.lane.b32.xlu0 %v4326, 64
    %v4699 = vpop.permute.xlu0 %4698
    %4700 = vrot.lane.b32.xlu0 %v4327, 64
    %v4701 = vpop.permute.xlu0 %4700
    %v4703 = vsel %vm709, %v4699, 0
    %v4706 = vsel %vm709, %v4701, 0
    %4708 = vmatprep.subr.bf16.mxu0 0
    %4709 = vmatpush1.bf16.xpose.msra.mxu0 0
    %4710 = vmatprep.subr.bf16.mxu0 0
    %4711 = vmatpush1.bf16.xpose.msra.mxu0 0
    %4712 = vmatprep.subr.bf16.mxu0 0
    %4713 = vmatpush1.bf16.xpose.msra.mxu0 0
    %4714 = vmatprep.subr.bf16.mxu0 0
    %4715 = vmatpush1.bf16.xpose.msra.mxu0 0
    %4716 = vmatprep.subr.bf16.mxu0 0
    %4717 = vmatpush1.bf16.xpose.msra.mxu0 0
    %4718 = vmatprep.subr.bf16.mxu0 0
    %4719 = vmatpush1.bf16.xpose.msra.mxu0 0
    %4720 = vmatprep.subr.bf16.mxu0 0
    %4721 = vmatpush1.bf16.xpose.msra.mxu0 0
    %4722 = vmatprep.subr.bf16.mxu0 0
    %4723 = vmatpush1.bf16.xpose.msra.mxu0 %v4706
    %4724 = vmatprep.subr.bf16.mxu0 0
    %4725 = vmatpush2.bf16.xpose.msra.mxu0 0
    %4726 = vmatprep.subr.bf16.mxu0 0
    %4727 = vmatpush2.bf16.xpose.msra.mxu0 0
    %4728 = vmatprep.subr.bf16.mxu0 0
    %4729 = vmatpush2.bf16.xpose.msra.mxu0 0
    %4730 = vmatprep.subr.bf16.mxu0 0
    %4731 = vmatpush2.bf16.xpose.msra.mxu0 0
    %4732 = vmatprep.subr.bf16.mxu0 0
    %4733 = vmatpush2.bf16.xpose.msra.mxu0 0
    %4734 = vmatprep.subr.bf16.mxu0 0
    %4735 = vmatpush2.bf16.xpose.msra.mxu0 0
    %4736 = vmatprep.subr.bf16.mxu0 0
    %4737 = vmatpush2.bf16.xpose.msra.mxu0 0
    %4738 = vmatprep.subr.bf16.mxu0 0
    %4739 = vmatpush2.bf16.xpose.msra.mxu0 0
    %4740 = vmatprep.mubr.bf16.mxu0 0
    %4741 = vmatmul.mubr.bf16.gmra.mxu0 %v4703
    %v4742 = vpop.f32.mrf.mxu0
    %v4743 = vadd.f32 %v385, %v4742
    %v4744 = vpop.f32.mrf.mxu0
    %v4745 = vpop.f32.mrf.mxu0
    %v4746 = vadd.f32 %v386, %v4745
    %v4747 = vpop.f32.mrf.mxu0
    %4748 = vdwg.mxu0
    %v4749 = vsel %vm757, %v4743, -inf
    %4750 = vmax.xlane.f32.xlu0 %v4749
    %v4751 = vpop.xlane.xlu0 %4750
    %v4752 = vsel %vm757, %v4746, -inf
    %4753 = vmax.xlane.f32.xlu0 %v4752
    %v4754 = vpop.xlane.xlu0 %4753
    %v4755 = vsub.f32 %v4743, %v4751
    %v4756 = vsub.f32 %v4746, %v4754
    %v4757 = vmul.f32 %v4755, 1.442695
    %v4758 = vpow.pop %v4757
    %v4759 = vmul.f32 %v4756, 1.442695
    %v4760 = vpow.pop %v4759
    %v4761 = vsel %vm757, %v4758, 0.0
    %4762 = vadd.xlane.f32.xlu0 %v4761
    %v4763 = vpop.xlane.xlu0 %4762
    %v4764 = vsel %vm757, %v4760, 0.0
    %4765 = vadd.xlane.f32.xlu0 %v4764
    %v4766 = vpop.xlane.xlu0 %4765
    %v4767 = vrcp.pop %v4763
    %v4768 = vrcp.pop %v4766
    %v4769 = vmul.f32 %v4758, %v4767
    %v4770 = vmul.f32 %v4760, %v4768
    %v4771 = vpack.c.bf16 %v4770, %v4769
    %4772 = vrot.lane.b32.xlu0 %v4328, 64
    %v4773 = vpop.permute.xlu0 %4772
    %v4776 = vsel %vm757, %v4771, 0
    %4778 = vmatprep.subr.bf16.mxu0 0
    %4779 = vmatpush1.bf16.msra.mxu0 0
    %4780 = vmatprep.subr.bf16.mxu0 0
    %4781 = vmatpush1.bf16.msra.mxu0 0
    %4782 = vmatprep.subr.bf16.mxu0 0
    %4783 = vmatpush1.bf16.msra.mxu0 0
    %4784 = vmatprep.subr.bf16.mxu0 0
    %4785 = vmatpush1.bf16.msra.mxu0 0
    %4786 = vmatprep.subr.bf16.mxu0 0
    %4787 = vmatpush1.bf16.msra.mxu0 0
    %4788 = vmatprep.subr.bf16.mxu0 0
    %4789 = vmatpush1.bf16.msra.mxu0 0
    %4790 = vmatprep.subr.bf16.mxu0 0
    %4791 = vmatpush1.bf16.msra.mxu0 0
    %4792 = vmatprep.subr.bf16.mxu0 0
    %4793 = vmatpush1.bf16.msra.mxu0 %v4773
    %4794 = vmatprep.subr.bf16.mxu0 0
    %4795 = vmatpush2.bf16.msra.mxu0 0
    %4796 = vmatprep.subr.bf16.mxu0 0
    %4797 = vmatpush2.bf16.msra.mxu0 0
    %4798 = vmatprep.subr.bf16.mxu0 0
    %4799 = vmatpush2.bf16.msra.mxu0 0
    %4800 = vmatprep.subr.bf16.mxu0 0
    %4801 = vmatpush2.bf16.msra.mxu0 0
    %4802 = vmatprep.subr.bf16.mxu0 0
    %4803 = vmatpush2.bf16.msra.mxu0 0
    %4804 = vmatprep.subr.bf16.mxu0 0
    %4805 = vmatpush2.bf16.msra.mxu0 0
    %4806 = vmatprep.subr.bf16.mxu0 0
    %4807 = vmatpush2.bf16.msra.mxu0 0
    %4808 = vmatprep.subr.bf16.mxu0 0
    %4809 = vmatpush2.bf16.msra.mxu0 0
    %4810 = vmatprep.mubr.bf16.mxu0 0
    %4811 = vmatmul.mubr.bf16.gmra.mxu0 %v4776
    %v4812 = vpop.f32.mrf.mxu0
    %v4813 = vadd.f32 0.0, %v4812
    %v4814 = vpop.f32.mrf.mxu0
    %v4815 = vpop.f32.mrf.mxu0
    %v4816 = vadd.f32 0.0, %v4815
    %v4817 = vpop.f32.mrf.mxu0
    %4818 = vdwg.mxu0
    %v4819 = vpack.c.bf16 %v4816, %v4813
    %v4824 = vunpack.c.l.b16 %v4338
    %v4825 = vunpack.c.l.b16 %v4339
    %v4826 = vunpack.c.l.b16 %v4340
    %v4827 = vunpack.c.l.b16 %v4341
    %v4828 = vpack.c.b16 %v4825, %v4824
    %v4829 = vpack.c.b16 %v4827, %v4826
    %v4833 = vsel %vm709, %v4819, 0
    %4835 = vmatprep.subr.bf16.mxu0 0
    %4836 = vmatpush1.bf16.msra.mxu0 0
    %4837 = vmatprep.subr.bf16.mxu0 0
    %4838 = vmatpush1.bf16.msra.mxu0 0
    %4839 = vmatprep.subr.bf16.mxu0 0
    %4840 = vmatpush1.bf16.msra.mxu0 0
    %4841 = vmatprep.subr.bf16.mxu0 0
    %4842 = vmatpush1.bf16.msra.mxu0 0
    %4843 = vmatprep.subr.bf16.mxu0 0
    %4844 = vmatpush1.bf16.msra.mxu0 0
    %4845 = vmatprep.subr.bf16.mxu0 0
    %4846 = vmatpush1.bf16.msra.mxu0 0
    %4847 = vmatprep.subr.bf16.mxu0 0
    %4848 = vmatpush1.bf16.msra.mxu0 %v4829
    %4849 = vmatprep.subr.bf16.mxu0 0
    %4850 = vmatpush1.bf16.msra.mxu0 %v4828
    %4851 = vmatprep.subr.bf16.mxu0 0
    %4852 = vmatpush2.bf16.msra.mxu0 0
    %4853 = vmatprep.subr.bf16.mxu0 0
    %4854 = vmatpush2.bf16.msra.mxu0 0
    %4855 = vmatprep.subr.bf16.mxu0 0
    %4856 = vmatpush2.bf16.msra.mxu0 0
    %4857 = vmatprep.subr.bf16.mxu0 0
    %4858 = vmatpush2.bf16.msra.mxu0 0
    %4859 = vmatprep.subr.bf16.mxu0 0
    %4860 = vmatpush2.bf16.msra.mxu0 0
    %4861 = vmatprep.subr.bf16.mxu0 0
    %4862 = vmatpush2.bf16.msra.mxu0 0
    %4863 = vmatprep.subr.bf16.mxu0 0
    %4864 = vmatpush2.bf16.msra.mxu0 0
    %4865 = vmatprep.subr.bf16.mxu0 0
    %4866 = vmatpush2.bf16.msra.mxu0 0
    %4867 = vmatprep.mubr.bf16.mxu0 0
    %4868 = vmatmul.mubr.bf16.gmra.mxu0 %v4833
    %v4869 = vpop.f32.mrf.mxu0
    %v4870 = vadd.f32 0.0, %v4869
    %v4871 = vpop.f32.mrf.mxu0
    %v4872 = vpop.f32.mrf.mxu0
    %v4873 = vadd.f32 0.0, %v4872
    %v4874 = vpop.f32.mrf.mxu0
    %4875 = vdwg.mxu0
    %v4876 = vadd.f32 %v4692, %v4870
    %v4877 = vadd.f32 %v4695, %v4873
    %4878 = vrot.lane.b32.xlu0 %v4326, 32
    %v4879 = vpop.permute.xlu0 %4878
    %4880 = vrot.lane.b32.xlu0 %v4327, 32
    %v4881 = vpop.permute.xlu0 %4880
    %v4883 = vsel %vm709, %v4879, 0
    %v4886 = vsel %vm709, %v4881, 0
    %4888 = vmatprep.subr.bf16.mxu0 0
    %4889 = vmatpush1.bf16.xpose.msra.mxu0 0
    %4890 = vmatprep.subr.bf16.mxu0 0
    %4891 = vmatpush1.bf16.xpose.msra.mxu0 0
    %4892 = vmatprep.subr.bf16.mxu0 0
    %4893 = vmatpush1.bf16.xpose.msra.mxu0 0
    %4894 = vmatprep.subr.bf16.mxu0 0
    %4895 = vmatpush1.bf16.xpose.msra.mxu0 0
    %4896 = vmatprep.subr.bf16.mxu0 0
    %4897 = vmatpush1.bf16.xpose.msra.mxu0 0
    %4898 = vmatprep.subr.bf16.mxu0 0
    %4899 = vmatpush1.bf16.xpose.msra.mxu0 0
    %4900 = vmatprep.subr.bf16.mxu0 0
    %4901 = vmatpush1.bf16.xpose.msra.mxu0 0
    %4902 = vmatprep.subr.bf16.mxu0 0
    %4903 = vmatpush1.bf16.xpose.msra.mxu0 %v4886
    %4904 = vmatprep.subr.bf16.mxu0 0
    %4905 = vmatpush2.bf16.xpose.msra.mxu0 0
    %4906 = vmatprep.subr.bf16.mxu0 0
    %4907 = vmatpush2.bf16.xpose.msra.mxu0 0
    %4908 = vmatprep.subr.bf16.mxu0 0
    %4909 = vmatpush2.bf16.xpose.msra.mxu0 0
    %4910 = vmatprep.subr.bf16.mxu0 0
    %4911 = vmatpush2.bf16.xpose.msra.mxu0 0
    %4912 = vmatprep.subr.bf16.mxu0 0
    %4913 = vmatpush2.bf16.xpose.msra.mxu0 0
    %4914 = vmatprep.subr.bf16.mxu0 0
    %4915 = vmatpush2.bf16.xpose.msra.mxu0 0
    %4916 = vmatprep.subr.bf16.mxu0 0
    %4917 = vmatpush2.bf16.xpose.msra.mxu0 0
    %4918 = vmatprep.subr.bf16.mxu0 0
    %4919 = vmatpush2.bf16.xpose.msra.mxu0 0
    %4920 = vmatprep.mubr.bf16.mxu0 0
    %4921 = vmatmul.mubr.bf16.gmra.mxu0 %v4883
    %v4922 = vpop.f32.mrf.mxu0
    %v4923 = vadd.f32 %v385, %v4922
    %v4924 = vpop.f32.mrf.mxu0
    %v4925 = vpop.f32.mrf.mxu0
    %v4926 = vadd.f32 %v386, %v4925
    %v4927 = vpop.f32.mrf.mxu0
    %4928 = vdwg.mxu0
    %v4929 = vsel %vm757, %v4923, -inf
    %4930 = vmax.xlane.f32.xlu0 %v4929
    %v4931 = vpop.xlane.xlu0 %4930
    %v4932 = vsel %vm757, %v4926, -inf
    %4933 = vmax.xlane.f32.xlu0 %v4932
    %v4934 = vpop.xlane.xlu0 %4933
    %v4935 = vsub.f32 %v4923, %v4931
    %v4936 = vsub.f32 %v4926, %v4934
    %v4937 = vmul.f32 %v4935, 1.442695
    %v4938 = vpow.pop %v4937
    %v4939 = vmul.f32 %v4936, 1.442695
    %v4940 = vpow.pop %v4939
    %v4941 = vsel %vm757, %v4938, 0.0
    %4942 = vadd.xlane.f32.xlu0 %v4941
    %v4943 = vpop.xlane.xlu0 %4942
    %v4944 = vsel %vm757, %v4940, 0.0
    %4945 = vadd.xlane.f32.xlu0 %v4944
    %v4946 = vpop.xlane.xlu0 %4945
    %v4947 = vrcp.pop %v4943
    %v4948 = vrcp.pop %v4946
    %v4949 = vmul.f32 %v4938, %v4947
    %v4950 = vmul.f32 %v4940, %v4948
    %v4951 = vpack.c.bf16 %v4950, %v4949
    %4952 = vrot.lane.b32.xlu0 %v4328, 32
    %v4953 = vpop.permute.xlu0 %4952
    %v4956 = vsel %vm757, %v4951, 0
    %4958 = vmatprep.subr.bf16.mxu0 0
    %4959 = vmatpush1.bf16.msra.mxu0 0
    %4960 = vmatprep.subr.bf16.mxu0 0
    %4961 = vmatpush1.bf16.msra.mxu0 0
    %4962 = vmatprep.subr.bf16.mxu0 0
    %4963 = vmatpush1.bf16.msra.mxu0 0
    %4964 = vmatprep.subr.bf16.mxu0 0
    %4965 = vmatpush1.bf16.msra.mxu0 0
    %4966 = vmatprep.subr.bf16.mxu0 0
    %4967 = vmatpush1.bf16.msra.mxu0 0
    %4968 = vmatprep.subr.bf16.mxu0 0
    %4969 = vmatpush1.bf16.msra.mxu0 0
    %4970 = vmatprep.subr.bf16.mxu0 0
    %4971 = vmatpush1.bf16.msra.mxu0 0
    %4972 = vmatprep.subr.bf16.mxu0 0
    %4973 = vmatpush1.bf16.msra.mxu0 %v4953
    %4974 = vmatprep.subr.bf16.mxu0 0
    %4975 = vmatpush2.bf16.msra.mxu0 0
    %4976 = vmatprep.subr.bf16.mxu0 0
    %4977 = vmatpush2.bf16.msra.mxu0 0
    %4978 = vmatprep.subr.bf16.mxu0 0
    %4979 = vmatpush2.bf16.msra.mxu0 0
    %4980 = vmatprep.subr.bf16.mxu0 0
    %4981 = vmatpush2.bf16.msra.mxu0 0
    %4982 = vmatprep.subr.bf16.mxu0 0
    %4983 = vmatpush2.bf16.msra.mxu0 0
    %4984 = vmatprep.subr.bf16.mxu0 0
    %4985 = vmatpush2.bf16.msra.mxu0 0
    %4986 = vmatprep.subr.bf16.mxu0 0
    %4987 = vmatpush2.bf16.msra.mxu0 0
    %4988 = vmatprep.subr.bf16.mxu0 0
    %4989 = vmatpush2.bf16.msra.mxu0 0
    %4990 = vmatprep.mubr.bf16.mxu0 0
    %4991 = vmatmul.mubr.bf16.gmra.mxu0 %v4956
    %v4992 = vpop.f32.mrf.mxu0
    %v4993 = vadd.f32 0.0, %v4992
    %v4994 = vpop.f32.mrf.mxu0
    %v4995 = vpop.f32.mrf.mxu0
    %v4996 = vadd.f32 0.0, %v4995
    %v4997 = vpop.f32.mrf.mxu0
    %4998 = vdwg.mxu0
    %v4999 = vpack.c.bf16 %v4996, %v4993
    %v5004 = vunpack.c.l.b16 %v4342
    %v5005 = vunpack.c.l.b16 %v4343
    %v5006 = vunpack.c.l.b16 %v4344
    %v5007 = vunpack.c.l.b16 %v4345
    %v5008 = vpack.c.b16 %v5005, %v5004
    %v5009 = vpack.c.b16 %v5007, %v5006
    %v5013 = vsel %vm709, %v4999, 0
    %5015 = vmatprep.subr.bf16.mxu0 0
    %5016 = vmatpush1.bf16.msra.mxu0 0
    %5017 = vmatprep.subr.bf16.mxu0 0
    %5018 = vmatpush1.bf16.msra.mxu0 0
    %5019 = vmatprep.subr.bf16.mxu0 0
    %5020 = vmatpush1.bf16.msra.mxu0 0
    %5021 = vmatprep.subr.bf16.mxu0 0
    %5022 = vmatpush1.bf16.msra.mxu0 0
    %5023 = vmatprep.subr.bf16.mxu0 0
    %5024 = vmatpush1.bf16.msra.mxu0 0
    %5025 = vmatprep.subr.bf16.mxu0 0
    %5026 = vmatpush1.bf16.msra.mxu0 0
    %5027 = vmatprep.subr.bf16.mxu0 0
    %5028 = vmatpush1.bf16.msra.mxu0 %v5009
    %5029 = vmatprep.subr.bf16.mxu0 0
    %5030 = vmatpush1.bf16.msra.mxu0 %v5008
    %5031 = vmatprep.subr.bf16.mxu0 0
    %5032 = vmatpush2.bf16.msra.mxu0 0
    %5033 = vmatprep.subr.bf16.mxu0 0
    %5034 = vmatpush2.bf16.msra.mxu0 0
    %5035 = vmatprep.subr.bf16.mxu0 0
    %5036 = vmatpush2.bf16.msra.mxu0 0
    %5037 = vmatprep.subr.bf16.mxu0 0
    %5038 = vmatpush2.bf16.msra.mxu0 0
    %5039 = vmatprep.subr.bf16.mxu0 0
    %5040 = vmatpush2.bf16.msra.mxu0 0
    %5041 = vmatprep.subr.bf16.mxu0 0
    %5042 = vmatpush2.bf16.msra.mxu0 0
    %5043 = vmatprep.subr.bf16.mxu0 0
    %5044 = vmatpush2.bf16.msra.mxu0 0
    %5045 = vmatprep.subr.bf16.mxu0 0
    %5046 = vmatpush2.bf16.msra.mxu0 0
    %5047 = vmatprep.mubr.bf16.mxu0 0
    %5048 = vmatmul.mubr.bf16.gmra.mxu0 %v5013
    %v5049 = vpop.f32.mrf.mxu0
    %v5050 = vadd.f32 0.0, %v5049
    %v5051 = vpop.f32.mrf.mxu0
    %v5052 = vpop.f32.mrf.mxu0
    %v5053 = vadd.f32 0.0, %v5052
    %v5054 = vpop.f32.mrf.mxu0
    %5055 = vdwg.mxu0
    %v5056 = vadd.f32 %v4876, %v5050
    %v5057 = vadd.f32 %v4877, %v5053
    %v5058 = vadd.f32 %v4016, %v5056
    %v5059 = vadd.f32 %v4017, %v5057
    %s5060 = scalar_lea.vmem [#allocation16], 2
    %v5061 = vld [vmem:[%s5060] sm:$0x1]
    %v5063 = vlaneseq
    %v5064 = vshrl.u32 %v5063, 7
    %v5065 = vsub.s32 0, %v5064
    %v5066 = vrot.slane %v5061, %v5065
    %v5068 = vadd.f32 %v5058, %v5066
    %v5069 = vadd.f32 %v5059, %v5066
    %s5070 = scalar_lea.vmem [#allocation17], 2
    %v5071 = vld [vmem:[%s5070] sm:$0x1]
    %s5072 = scalar_lea.vmem [#allocation19], 2
    %v5073 = vld [vmem:[%s5072] sm:$0x1]
    %5074 = vadd.xlane.f32.xlu0 %v5068
    %v5075 = vpop.xlane.xlu0 %5074
    %5076 = vadd.xlane.f32.xlu0 %v5069
    %v5077 = vpop.xlane.xlu0 %5076
    %v5078 = vmul.f32 %v5075, %v393
    %v5079 = vmul.f32 %v5077, %v393
    %v5080 = vsub.f32 %v5068, %v5078
    %v5081 = vsub.f32 %v5069, %v5079
    %v5082 = vmul.f32 %v5080, %v5080
    %v5083 = vmul.f32 %v5081, %v5081
    %5084 = vadd.xlane.f32.xlu0 %v5082
    %v5085 = vpop.xlane.xlu0 %5084
    %5086 = vadd.xlane.f32.xlu0 %v5083
    %v5087 = vpop.xlane.xlu0 %5086
    %v5088 = vmul.f32 %v5085, %v393
    %v5089 = vmul.f32 %v5087, %v393
    %v5090 = vadd.f32 %v5088, 1e-06
    %v5091 = vadd.f32 %v5089, 1e-06
    %v5092 = vrsqrt.pop %v5090
    %v5093 = vrsqrt.pop %v5091
    %v5094 = vmul.f32 %v5080, %v5092
    %v5095 = vmul.f32 %v5081, %v5093
    %v5097 = vlaneseq
    %v5098 = vshrl.u32 %v5097, 7
    %v5099 = vsub.s32 0, %v5098
    %v5100 = vrot.slane %v5071, %v5099
    %v5102 = vmul.f32 %v5094, %v5100
    %v5103 = vmul.f32 %v5095, %v5100
    %v5105 = vlaneseq
    %v5106 = vshrl.u32 %v5105, 7
    %v5107 = vsub.s32 0, %v5106
    %v5108 = vrot.slane %v5073, %v5107
    %v5110 = vadd.f32 %v5102, %v5108
    %v5111 = vadd.f32 %v5103, %v5108
    %v5112 = vpack.c.bf16 %v5111, %v5110
    %s5113 = scalar_lea.vmem [#allocation20], 512
    %v5114 = vld [vmem:[%s5113] sm:$0xff]
    %v5115 = vld [vmem:[%s5113 + $0x8] sm:$0xff]
    %v5116 = vld [vmem:[%s5113 + $0x10] sm:$0xff]
    %v5117 = vld [vmem:[%s5113 + $0x18] sm:$0xff]
    %v5118 = vld [vmem:[%s5113 + $0x20] sm:$0xff]
    %v5119 = vld [vmem:[%s5113 + $0x28] sm:$0xff]
    %v5120 = vld [vmem:[%s5113 + $0x30] sm:$0xff]
    %v5121 = vld [vmem:[%s5113 + $0x38] sm:$0xff]
    %v5122 = vld [vmem:[%s5113 + $0x40] sm:$0xff]
    %v5123 = vld [vmem:[%s5113 + $0x48] sm:$0xff]
    %v5124 = vld [vmem:[%s5113 + $0x50] sm:$0xff]
    %v5125 = vld [vmem:[%s5113 + $0x58] sm:$0xff]
    %v5126 = vld [vmem:[%s5113 + $0x60] sm:$0xff]
    %v5127 = vld [vmem:[%s5113 + $0x68] sm:$0xff]
    %v5128 = vld [vmem:[%s5113 + $0x70] sm:$0xff]
    %v5129 = vld [vmem:[%s5113 + $0x78] sm:$0xff]
    %v5130 = vld [vmem:[%s5113 + $0x80] sm:$0xff]
    %v5131 = vld [vmem:[%s5113 + $0x88] sm:$0xff]
    %v5132 = vld [vmem:[%s5113 + $0x90] sm:$0xff]
    %v5133 = vld [vmem:[%s5113 + $0x98] sm:$0xff]
    %v5134 = vld [vmem:[%s5113 + $0xa0] sm:$0xff]
    %v5135 = vld [vmem:[%s5113 + $0xa8] sm:$0xff]
    %v5136 = vld [vmem:[%s5113 + $0xb0] sm:$0xff]
    %v5137 = vld [vmem:[%s5113 + $0xb8] sm:$0xff]
    %v5138 = vld [vmem:[%s5113 + $0xc0] sm:$0xff]
    %v5139 = vld [vmem:[%s5113 + $0xc8] sm:$0xff]
    %v5140 = vld [vmem:[%s5113 + $0xd0] sm:$0xff]
    %v5141 = vld [vmem:[%s5113 + $0xd8] sm:$0xff]
    %v5142 = vld [vmem:[%s5113 + $0xe0] sm:$0xff]
    %v5143 = vld [vmem:[%s5113 + $0xe8] sm:$0xff]
    %v5144 = vld [vmem:[%s5113 + $0xf0] sm:$0xff]
    %v5145 = vld [vmem:[%s5113 + $0xf8] sm:$0xff]
    %s5146 = scalar_lea.vmem %s13, 8
    %v5147 = vld [vmem:[%s5146] sm:$0xf]
    %v5149 = vlaneseq
    %v5150 = vshrl.u32 %v5149, 7
    %v5151 = vsub.s32 0, %v5150
    %v5152 = vrot.slane %v5147, %v5151
    %v5153 = vlaneseq
    %v5154 = vshrl.u32 %v5153, 7
    %v5155 = vsub.s32 1, %v5154
    %v5156 = vrot.slane %v5147, %v5155
    %v5157 = vlaneseq
    %v5158 = vshrl.u32 %v5157, 7
    %v5159 = vsub.s32 2, %v5158
    %v5160 = vrot.slane %v5147, %v5159
    %v5161 = vlaneseq
    %v5162 = vshrl.u32 %v5161, 7
    %v5163 = vsub.s32 3, %v5162
    %v5164 = vrot.slane %v5147, %v5163
    %v5201 = vunpack.c.l.b16 %v5114
    %v5202 = vunpack.c.h.b16 %v5114
    %v5203 = vunpack.c.l.b16 %v5115
    %v5204 = vunpack.c.h.b16 %v5115
    %v5205 = vunpack.c.l.b16 %v5116
    %v5206 = vunpack.c.h.b16 %v5116
    %v5207 = vunpack.c.l.b16 %v5117
    %v5208 = vunpack.c.h.b16 %v5117
    %v5209 = vunpack.c.l.b16 %v5118
    %v5210 = vunpack.c.h.b16 %v5118
    %v5211 = vunpack.c.l.b16 %v5119
    %v5212 = vunpack.c.h.b16 %v5119
    %v5213 = vunpack.c.l.b16 %v5120
    %v5214 = vunpack.c.h.b16 %v5120
    %v5215 = vunpack.c.l.b16 %v5121
    %v5216 = vunpack.c.h.b16 %v5121
    %v5217 = vunpack.c.l.b16 %v5122
    %v5218 = vunpack.c.h.b16 %v5122
    %v5219 = vunpack.c.l.b16 %v5123
    %v5220 = vunpack.c.h.b16 %v5123
    %v5221 = vunpack.c.l.b16 %v5124
    %v5222 = vunpack.c.h.b16 %v5124
    %v5223 = vunpack.c.l.b16 %v5125
    %v5224 = vunpack.c.h.b16 %v5125
    %v5225 = vunpack.c.l.b16 %v5126
    %v5226 = vunpack.c.h.b16 %v5126
    %v5227 = vunpack.c.l.b16 %v5127
    %v5228 = vunpack.c.h.b16 %v5127
    %v5229 = vunpack.c.l.b16 %v5128
    %v5230 = vunpack.c.h.b16 %v5128
    %v5231 = vunpack.c.l.b16 %v5129
    %v5232 = vunpack.c.h.b16 %v5129
    %v5233 = vunpack.c.l.b16 %v5130
    %v5234 = vunpack.c.h.b16 %v5130
    %v5235 = vunpack.c.l.b16 %v5131
    %v5236 = vunpack.c.h.b16 %v5131
    %v5237 = vunpack.c.l.b16 %v5132
    %v5238 = vunpack.c.h.b16 %v5132
    %v5239 = vunpack.c.l.b16 %v5133
    %v5240 = vunpack.c.h.b16 %v5133
    %v5241 = vunpack.c.l.b16 %v5134
    %v5242 = vunpack.c.h.b16 %v5134
    %v5243 = vunpack.c.l.b16 %v5135
    %v5244 = vunpack.c.h.b16 %v5135
    %v5245 = vunpack.c.l.b16 %v5136
    %v5246 = vunpack.c.h.b16 %v5136
    %v5247 = vunpack.c.l.b16 %v5137
    %v5248 = vunpack.c.h.b16 %v5137
    %v5249 = vunpack.c.l.b16 %v5138
    %v5250 = vunpack.c.h.b16 %v5138
    %v5251 = vunpack.c.l.b16 %v5139
    %v5252 = vunpack.c.h.b16 %v5139
    %v5253 = vunpack.c.l.b16 %v5140
    %v5254 = vunpack.c.h.b16 %v5140
    %v5255 = vunpack.c.l.b16 %v5141
    %v5256 = vunpack.c.h.b16 %v5141
    %v5257 = vunpack.c.l.b16 %v5142
    %v5258 = vunpack.c.h.b16 %v5142
    %v5259 = vunpack.c.l.b16 %v5143
    %v5260 = vunpack.c.h.b16 %v5143
    %v5261 = vunpack.c.l.b16 %v5144
    %v5262 = vunpack.c.h.b16 %v5144
    %v5263 = vunpack.c.l.b16 %v5145
    %v5264 = vunpack.c.h.b16 %v5145
    %v5265 = vpack.c.b16 %v5205, %v5201
    %v5266 = vpack.c.b16 %v5206, %v5202
    %v5267 = vpack.c.b16 %v5207, %v5203
    %v5268 = vpack.c.b16 %v5208, %v5204
    %v5269 = vpack.c.b16 %v5213, %v5209
    %v5270 = vpack.c.b16 %v5214, %v5210
    %v5271 = vpack.c.b16 %v5215, %v5211
    %v5272 = vpack.c.b16 %v5216, %v5212
    %v5273 = vpack.c.b16 %v5221, %v5217
    %v5274 = vpack.c.b16 %v5222, %v5218
    %v5275 = vpack.c.b16 %v5223, %v5219
    %v5276 = vpack.c.b16 %v5224, %v5220
    %v5277 = vpack.c.b16 %v5229, %v5225
    %v5278 = vpack.c.b16 %v5230, %v5226
    %v5279 = vpack.c.b16 %v5231, %v5227
    %v5280 = vpack.c.b16 %v5232, %v5228
    %v5281 = vpack.c.b16 %v5237, %v5233
    %v5282 = vpack.c.b16 %v5238, %v5234
    %v5283 = vpack.c.b16 %v5239, %v5235
    %v5284 = vpack.c.b16 %v5240, %v5236
    %v5285 = vpack.c.b16 %v5245, %v5241
    %v5286 = vpack.c.b16 %v5246, %v5242
    %v5287 = vpack.c.b16 %v5247, %v5243
    %v5288 = vpack.c.b16 %v5248, %v5244
    %v5289 = vpack.c.b16 %v5253, %v5249
    %v5290 = vpack.c.b16 %v5254, %v5250
    %v5291 = vpack.c.b16 %v5255, %v5251
    %v5292 = vpack.c.b16 %v5256, %v5252
    %v5293 = vpack.c.b16 %v5261, %v5257
    %v5294 = vpack.c.b16 %v5262, %v5258
    %v5295 = vpack.c.b16 %v5263, %v5259
    %v5296 = vpack.c.b16 %v5264, %v5260
    %5329 = vmatprep.subr.bf16.mxu0 %v5294
    %5330 = vmatpush1.bf16.msra.mxu0 %v5293
    %5331 = vmatprep.subr.bf16.mxu0 %v5290
    %5332 = vmatpush1.bf16.msra.mxu0 %v5289
    %5333 = vmatprep.subr.bf16.mxu0 %v5286
    %5334 = vmatpush1.bf16.msra.mxu0 %v5285
    %5335 = vmatprep.subr.bf16.mxu0 %v5282
    %5336 = vmatpush1.bf16.msra.mxu0 %v5281
    %5337 = vmatprep.subr.bf16.mxu0 %v5278
    %5338 = vmatpush1.bf16.msra.mxu0 %v5277
    %5339 = vmatprep.subr.bf16.mxu0 %v5274
    %5340 = vmatpush1.bf16.msra.mxu0 %v5273
    %5341 = vmatprep.subr.bf16.mxu0 %v5270
    %5342 = vmatpush1.bf16.msra.mxu0 %v5269
    %5343 = vmatprep.subr.bf16.mxu0 %v5266
    %5344 = vmatpush1.bf16.msra.mxu0 %v5265
    %5345 = vmatprep.subr.bf16.mxu0 0
    %5346 = vmatpush2.bf16.msra.mxu0 0
    %5347 = vmatprep.subr.bf16.mxu0 0
    %5348 = vmatpush2.bf16.msra.mxu0 0
    %5349 = vmatprep.subr.bf16.mxu0 0
    %5350 = vmatpush2.bf16.msra.mxu0 0
    %5351 = vmatprep.subr.bf16.mxu0 0
    %5352 = vmatpush2.bf16.msra.mxu0 0
    %5353 = vmatprep.subr.bf16.mxu0 0
    %5354 = vmatpush2.bf16.msra.mxu0 0
    %5355 = vmatprep.subr.bf16.mxu0 0
    %5356 = vmatpush2.bf16.msra.mxu0 0
    %5357 = vmatprep.subr.bf16.mxu0 0
    %5358 = vmatpush2.bf16.msra.mxu0 0
    %5359 = vmatprep.subr.bf16.mxu0 0
    %5360 = vmatpush2.bf16.msra.mxu0 0
    %5361 = vmatprep.mubr.bf16.mxu0 0
    %5362 = vmatmul.mubr.bf16.gmra.mxu0 %v5112
    %v5363 = vpop.f32.mrf.mxu0
    %v5364 = vadd.f32 %v5152, %v5363
    %v5365 = vpop.f32.mrf.mxu0
    %v5366 = vadd.f32 %v5156, %v5365
    %v5367 = vpop.f32.mrf.mxu0
    %v5368 = vadd.f32 %v5152, %v5367
    %v5369 = vpop.f32.mrf.mxu0
    %v5370 = vadd.f32 %v5156, %v5369
    %5371 = vdwg.mxu0
    %5372 = vmatprep.subr.bf16.mxu0 %v5296
    %5373 = vmatpush1.bf16.msra.mxu0 %v5295
    %5374 = vmatprep.subr.bf16.mxu0 %v5292
    %5375 = vmatpush1.bf16.msra.mxu0 %v5291
    %5376 = vmatprep.subr.bf16.mxu0 %v5288
    %5377 = vmatpush1.bf16.msra.mxu0 %v5287
    %5378 = vmatprep.subr.bf16.mxu0 %v5284
    %5379 = vmatpush1.bf16.msra.mxu0 %v5283
    %5380 = vmatprep.subr.bf16.mxu0 %v5280
    %5381 = vmatpush1.bf16.msra.mxu0 %v5279
    %5382 = vmatprep.subr.bf16.mxu0 %v5276
    %5383 = vmatpush1.bf16.msra.mxu0 %v5275
    %5384 = vmatprep.subr.bf16.mxu0 %v5272
    %5385 = vmatpush1.bf16.msra.mxu0 %v5271
    %5386 = vmatprep.subr.bf16.mxu0 %v5268
    %5387 = vmatpush1.bf16.msra.mxu0 %v5267
    %5388 = vmatprep.subr.bf16.mxu0 0
    %5389 = vmatpush2.bf16.msra.mxu0 0
    %5390 = vmatprep.subr.bf16.mxu0 0
    %5391 = vmatpush2.bf16.msra.mxu0 0
    %5392 = vmatprep.subr.bf16.mxu0 0
    %5393 = vmatpush2.bf16.msra.mxu0 0
    %5394 = vmatprep.subr.bf16.mxu0 0
    %5395 = vmatpush2.bf16.msra.mxu0 0
    %5396 = vmatprep.subr.bf16.mxu0 0
    %5397 = vmatpush2.bf16.msra.mxu0 0
    %5398 = vmatprep.subr.bf16.mxu0 0
    %5399 = vmatpush2.bf16.msra.mxu0 0
    %5400 = vmatprep.subr.bf16.mxu0 0
    %5401 = vmatpush2.bf16.msra.mxu0 0
    %5402 = vmatprep.subr.bf16.mxu0 0
    %5403 = vmatpush2.bf16.msra.mxu0 0
    %5404 = vmatprep.mubr.bf16.mxu0 0
    %5405 = vmatmul.mubr.bf16.gmra.mxu0 %v5112
    %v5406 = vpop.f32.mrf.mxu0
    %v5407 = vadd.f32 %v5160, %v5406
    %v5408 = vpop.f32.mrf.mxu0
    %v5409 = vadd.f32 %v5164, %v5408
    %v5410 = vpop.f32.mrf.mxu0
    %v5411 = vadd.f32 %v5160, %v5410
    %v5412 = vpop.f32.mrf.mxu0
    %v5413 = vadd.f32 %v5164, %v5412
    %5414 = vdwg.mxu0
    %v5415 = vmul.f32 %v5364, %v5364
    %v5416 = vmul.f32 %v5366, %v5366
    %v5417 = vmul.f32 %v5407, %v5407
    %v5418 = vmul.f32 %v5409, %v5409
    %v5419 = vmul.f32 %v5368, %v5368
    %v5420 = vmul.f32 %v5370, %v5370
    %v5421 = vmul.f32 %v5411, %v5411
    %v5422 = vmul.f32 %v5413, %v5413
    %v5423 = vmul.f32 %v5364, %v5415
    %v5424 = vmul.f32 %v5366, %v5416
    %v5425 = vmul.f32 %v5407, %v5417
    %v5426 = vmul.f32 %v5409, %v5418
    %v5427 = vmul.f32 %v5368, %v5419
    %v5428 = vmul.f32 %v5370, %v5420
    %v5429 = vmul.f32 %v5411, %v5421
    %v5430 = vmul.f32 %v5413, %v5422
    %v5431 = vmul.f32 %v5423, 0.044715
    %v5432 = vmul.f32 %v5424, 0.044715
    %v5433 = vmul.f32 %v5425, 0.044715
    %v5434 = vmul.f32 %v5426, 0.044715
    %v5435 = vmul.f32 %v5427, 0.044715
    %v5436 = vmul.f32 %v5428, 0.044715
    %v5437 = vmul.f32 %v5429, 0.044715
    %v5438 = vmul.f32 %v5430, 0.044715
    %v5439 = vadd.f32 %v5364, %v5431
    %v5440 = vadd.f32 %v5366, %v5432
    %v5441 = vadd.f32 %v5407, %v5433
    %v5442 = vadd.f32 %v5409, %v5434
    %v5443 = vadd.f32 %v5368, %v5435
    %v5444 = vadd.f32 %v5370, %v5436
    %v5445 = vadd.f32 %v5411, %v5437
    %v5446 = vadd.f32 %v5413, %v5438
    %v5447 = vmul.f32 %v5439, 0.7978846
    %v5448 = vmul.f32 %v5440, 0.7978846
    %v5449 = vmul.f32 %v5441, 0.7978846
    %v5450 = vmul.f32 %v5442, 0.7978846
    %v5451 = vmul.f32 %v5443, 0.7978846
    %v5452 = vmul.f32 %v5444, 0.7978846
    %v5453 = vmul.f32 %v5445, 0.7978846
    %v5454 = vmul.f32 %v5446, 0.7978846
    %v5455 = vtanh.pop %v5447
    %v5456 = vtanh.pop %v5448
    %v5457 = vtanh.pop %v5449
    %v5458 = vtanh.pop %v5450
    %v5459 = vtanh.pop %v5451
    %v5460 = vtanh.pop %v5452
    %v5461 = vtanh.pop %v5453
    %v5462 = vtanh.pop %v5454
    %v5463 = vadd.f32 %v5455, 1.0
    %v5464 = vadd.f32 %v5456, 1.0
    %v5465 = vadd.f32 %v5457, 1.0
    %v5466 = vadd.f32 %v5458, 1.0
    %v5467 = vadd.f32 %v5459, 1.0
    %v5468 = vadd.f32 %v5460, 1.0
    %v5469 = vadd.f32 %v5461, 1.0
    %v5470 = vadd.f32 %v5462, 1.0
    %v5471 = vmul.f32 %v5463, 0.5
    %v5472 = vmul.f32 %v5464, 0.5
    %v5473 = vmul.f32 %v5465, 0.5
    %v5474 = vmul.f32 %v5466, 0.5
    %v5475 = vmul.f32 %v5467, 0.5
    %v5476 = vmul.f32 %v5468, 0.5
    %v5477 = vmul.f32 %v5469, 0.5
    %v5478 = vmul.f32 %v5470, 0.5
    %v5479 = vmul.f32 %v5364, %v5471
    %v5480 = vmul.f32 %v5366, %v5472
    %v5481 = vmul.f32 %v5407, %v5473
    %v5482 = vmul.f32 %v5409, %v5474
    %v5483 = vmul.f32 %v5368, %v5475
    %v5484 = vmul.f32 %v5370, %v5476
    %v5485 = vmul.f32 %v5411, %v5477
    %v5486 = vmul.f32 %v5413, %v5478
    %v5487 = vpack.c.bf16 %v5483, %v5479
    %v5488 = vpack.c.bf16 %v5484, %v5480
    %v5489 = vpack.c.bf16 %v5485, %v5481
    %v5490 = vpack.c.bf16 %v5486, %v5482
    %s5491 = scalar_lea.vmem [#allocation22], 512
    %v5492 = vld [vmem:[%s5491] sm:$0xf]
    %v5493 = vld [vmem:[%s5491 + $0x4] sm:$0xf]
    %v5494 = vld [vmem:[%s5491 + $0x8] sm:$0xf]
    %v5495 = vld [vmem:[%s5491 + $0xc] sm:$0xf]
    %v5496 = vld [vmem:[%s5491 + $0x10] sm:$0xf]
    %v5497 = vld [vmem:[%s5491 + $0x14] sm:$0xf]
    %v5498 = vld [vmem:[%s5491 + $0x18] sm:$0xf]
    %v5499 = vld [vmem:[%s5491 + $0x1c] sm:$0xf]
    %v5500 = vld [vmem:[%s5491 + $0x20] sm:$0xf]
    %v5501 = vld [vmem:[%s5491 + $0x24] sm:$0xf]
    %v5502 = vld [vmem:[%s5491 + $0x28] sm:$0xf]
    %v5503 = vld [vmem:[%s5491 + $0x2c] sm:$0xf]
    %v5504 = vld [vmem:[%s5491 + $0x30] sm:$0xf]
    %v5505 = vld [vmem:[%s5491 + $0x34] sm:$0xf]
    %v5506 = vld [vmem:[%s5491 + $0x38] sm:$0xf]
    %v5507 = vld [vmem:[%s5491 + $0x3c] sm:$0xf]
    %v5508 = vld [vmem:[%s5491 + $0x40] sm:$0xf]
    %v5509 = vld [vmem:[%s5491 + $0x44] sm:$0xf]
    %v5510 = vld [vmem:[%s5491 + $0x48] sm:$0xf]
    %v5511 = vld [vmem:[%s5491 + $0x4c] sm:$0xf]
    %v5512 = vld [vmem:[%s5491 + $0x50] sm:$0xf]
    %v5513 = vld [vmem:[%s5491 + $0x54] sm:$0xf]
    %v5514 = vld [vmem:[%s5491 + $0x58] sm:$0xf]
    %v5515 = vld [vmem:[%s5491 + $0x5c] sm:$0xf]
    %v5516 = vld [vmem:[%s5491 + $0x60] sm:$0xf]
    %v5517 = vld [vmem:[%s5491 + $0x64] sm:$0xf]
    %v5518 = vld [vmem:[%s5491 + $0x68] sm:$0xf]
    %v5519 = vld [vmem:[%s5491 + $0x6c] sm:$0xf]
    %v5520 = vld [vmem:[%s5491 + $0x70] sm:$0xf]
    %v5521 = vld [vmem:[%s5491 + $0x74] sm:$0xf]
    %v5522 = vld [vmem:[%s5491 + $0x78] sm:$0xf]
    %v5523 = vld [vmem:[%s5491 + $0x7c] sm:$0xf]
    %v5524 = vld [vmem:[%s5491 + $0x80] sm:$0xf]
    %v5525 = vld [vmem:[%s5491 + $0x84] sm:$0xf]
    %v5526 = vld [vmem:[%s5491 + $0x88] sm:$0xf]
    %v5527 = vld [vmem:[%s5491 + $0x8c] sm:$0xf]
    %v5528 = vld [vmem:[%s5491 + $0x90] sm:$0xf]
    %v5529 = vld [vmem:[%s5491 + $0x94] sm:$0xf]
    %v5530 = vld [vmem:[%s5491 + $0x98] sm:$0xf]
    %v5531 = vld [vmem:[%s5491 + $0x9c] sm:$0xf]
    %v5532 = vld [vmem:[%s5491 + $0xa0] sm:$0xf]
    %v5533 = vld [vmem:[%s5491 + $0xa4] sm:$0xf]
    %v5534 = vld [vmem:[%s5491 + $0xa8] sm:$0xf]
    %v5535 = vld [vmem:[%s5491 + $0xac] sm:$0xf]
    %v5536 = vld [vmem:[%s5491 + $0xb0] sm:$0xf]
    %v5537 = vld [vmem:[%s5491 + $0xb4] sm:$0xf]
    %v5538 = vld [vmem:[%s5491 + $0xb8] sm:$0xf]
    %v5539 = vld [vmem:[%s5491 + $0xbc] sm:$0xf]
    %v5540 = vld [vmem:[%s5491 + $0xc0] sm:$0xf]
    %v5541 = vld [vmem:[%s5491 + $0xc4] sm:$0xf]
    %v5542 = vld [vmem:[%s5491 + $0xc8] sm:$0xf]
    %v5543 = vld [vmem:[%s5491 + $0xcc] sm:$0xf]
    %v5544 = vld [vmem:[%s5491 + $0xd0] sm:$0xf]
    %v5545 = vld [vmem:[%s5491 + $0xd4] sm:$0xf]
    %v5546 = vld [vmem:[%s5491 + $0xd8] sm:$0xf]
    %v5547 = vld [vmem:[%s5491 + $0xdc] sm:$0xf]
    %v5548 = vld [vmem:[%s5491 + $0xe0] sm:$0xf]
    %v5549 = vld [vmem:[%s5491 + $0xe4] sm:$0xf]
    %v5550 = vld [vmem:[%s5491 + $0xe8] sm:$0xf]
    %v5551 = vld [vmem:[%s5491 + $0xec] sm:$0xf]
    %v5552 = vld [vmem:[%s5491 + $0xf0] sm:$0xf]
    %v5553 = vld [vmem:[%s5491 + $0xf4] sm:$0xf]
    %v5554 = vld [vmem:[%s5491 + $0xf8] sm:$0xf]
    %v5555 = vld [vmem:[%s5491 + $0xfc] sm:$0xf]
    %s5556 = scalar_lea.vmem %s15, 2
    %v5557 = vld [vmem:[%s5556] sm:$0x1]
    %v5559 = vlaneseq
    %v5560 = vshrl.u32 %v5559, 7
    %v5561 = vsub.s32 0, %v5560
    %v5562 = vrot.slane %v5557, %v5561
    %v5628 = vunpack.c.l.b16 %v5492
    %v5629 = vunpack.c.l.b16 %v5493
    %v5630 = vunpack.c.l.b16 %v5494
    %v5631 = vunpack.c.l.b16 %v5495
    %v5632 = vunpack.c.l.b16 %v5496
    %v5633 = vunpack.c.l.b16 %v5497
    %v5634 = vunpack.c.l.b16 %v5498
    %v5635 = vunpack.c.l.b16 %v5499
    %v5636 = vunpack.c.l.b16 %v5500
    %v5637 = vunpack.c.l.b16 %v5501
    %v5638 = vunpack.c.l.b16 %v5502
    %v5639 = vunpack.c.l.b16 %v5503
    %v5640 = vunpack.c.l.b16 %v5504
    %v5641 = vunpack.c.l.b16 %v5505
    %v5642 = vunpack.c.l.b16 %v5506
    %v5643 = vunpack.c.l.b16 %v5507
    %v5644 = vunpack.c.l.b16 %v5508
    %v5645 = vunpack.c.l.b16 %v5509
    %v5646 = vunpack.c.l.b16 %v5510
    %v5647 = vunpack.c.l.b16 %v5511
    %v5648 = vunpack.c.l.b16 %v5512
    %v5649 = vunpack.c.l.b16 %v5513
    %v5650 = vunpack.c.l.b16 %v5514
    %v5651 = vunpack.c.l.b16 %v5515
    %v5652 = vunpack.c.l.b16 %v5516
    %v5653 = vunpack.c.l.b16 %v5517
    %v5654 = vunpack.c.l.b16 %v5518
    %v5655 = vunpack.c.l.b16 %v5519
    %v5656 = vunpack.c.l.b16 %v5520
    %v5657 = vunpack.c.l.b16 %v5521
    %v5658 = vunpack.c.l.b16 %v5522
    %v5659 = vunpack.c.l.b16 %v5523
    %v5660 = vunpack.c.l.b16 %v5524
    %v5661 = vunpack.c.l.b16 %v5525
    %v5662 = vunpack.c.l.b16 %v5526
    %v5663 = vunpack.c.l.b16 %v5527
    %v5664 = vunpack.c.l.b16 %v5528
    %v5665 = vunpack.c.l.b16 %v5529
    %v5666 = vunpack.c.l.b16 %v5530
    %v5667 = vunpack.c.l.b16 %v5531
    %v5668 = vunpack.c.l.b16 %v5532
    %v5669 = vunpack.c.l.b16 %v5533
    %v5670 = vunpack.c.l.b16 %v5534
    %v5671 = vunpack.c.l.b16 %v5535
    %v5672 = vunpack.c.l.b16 %v5536
    %v5673 = vunpack.c.l.b16 %v5537
    %v5674 = vunpack.c.l.b16 %v5538
    %v5675 = vunpack.c.l.b16 %v5539
    %v5676 = vunpack.c.l.b16 %v5540
    %v5677 = vunpack.c.l.b16 %v5541
    %v5678 = vunpack.c.l.b16 %v5542
    %v5679 = vunpack.c.l.b16 %v5543
    %v5680 = vunpack.c.l.b16 %v5544
    %v5681 = vunpack.c.l.b16 %v5545
    %v5682 = vunpack.c.l.b16 %v5546
    %v5683 = vunpack.c.l.b16 %v5547
    %v5684 = vunpack.c.l.b16 %v5548
    %v5685 = vunpack.c.l.b16 %v5549
    %v5686 = vunpack.c.l.b16 %v5550
    %v5687 = vunpack.c.l.b16 %v5551
    %v5688 = vunpack.c.l.b16 %v5552
    %v5689 = vunpack.c.l.b16 %v5553
    %v5690 = vunpack.c.l.b16 %v5554
    %v5691 = vunpack.c.l.b16 %v5555
    %v5692 = vpack.c.b16 %v5629, %v5628
    %v5693 = vpack.c.b16 %v5631, %v5630
    %v5694 = vpack.c.b16 %v5633, %v5632
    %v5695 = vpack.c.b16 %v5635, %v5634
    %v5696 = vpack.c.b16 %v5637, %v5636
    %v5697 = vpack.c.b16 %v5639, %v5638
    %v5698 = vpack.c.b16 %v5641, %v5640
    %v5699 = vpack.c.b16 %v5643, %v5642
    %v5700 = vpack.c.b16 %v5645, %v5644
    %v5701 = vpack.c.b16 %v5647, %v5646
    %v5702 = vpack.c.b16 %v5649, %v5648
    %v5703 = vpack.c.b16 %v5651, %v5650
    %v5704 = vpack.c.b16 %v5653, %v5652
    %v5705 = vpack.c.b16 %v5655, %v5654
    %v5706 = vpack.c.b16 %v5657, %v5656
    %v5707 = vpack.c.b16 %v5659, %v5658
    %v5708 = vpack.c.b16 %v5661, %v5660
    %v5709 = vpack.c.b16 %v5663, %v5662
    %v5710 = vpack.c.b16 %v5665, %v5664
    %v5711 = vpack.c.b16 %v5667, %v5666
    %v5712 = vpack.c.b16 %v5669, %v5668
    %v5713 = vpack.c.b16 %v5671, %v5670
    %v5714 = vpack.c.b16 %v5673, %v5672
    %v5715 = vpack.c.b16 %v5675, %v5674
    %v5716 = vpack.c.b16 %v5677, %v5676
    %v5717 = vpack.c.b16 %v5679, %v5678
    %v5718 = vpack.c.b16 %v5681, %v5680
    %v5719 = vpack.c.b16 %v5683, %v5682
    %v5720 = vpack.c.b16 %v5685, %v5684
    %v5721 = vpack.c.b16 %v5687, %v5686
    %v5722 = vpack.c.b16 %v5689, %v5688
    %v5723 = vpack.c.b16 %v5691, %v5690
    %5756 = vmatprep.subr.bf16.mxu0 0
    %5757 = vmatpush1.bf16.msra.mxu0 %v5699
    %5758 = vmatprep.subr.bf16.mxu0 0
    %5759 = vmatpush1.bf16.msra.mxu0 %v5698
    %5760 = vmatprep.subr.bf16.mxu0 0
    %5761 = vmatpush1.bf16.msra.mxu0 %v5697
    %5762 = vmatprep.subr.bf16.mxu0 0
    %5763 = vmatpush1.bf16.msra.mxu0 %v5696
    %5764 = vmatprep.subr.bf16.mxu0 0
    %5765 = vmatpush1.bf16.msra.mxu0 %v5695
    %5766 = vmatprep.subr.bf16.mxu0 0
    %5767 = vmatpush1.bf16.msra.mxu0 %v5694
    %5768 = vmatprep.subr.bf16.mxu0 0
    %5769 = vmatpush1.bf16.msra.mxu0 %v5693
    %5770 = vmatprep.subr.bf16.mxu0 0
    %5771 = vmatpush1.bf16.msra.mxu0 %v5692
    %5772 = vmatprep.subr.bf16.mxu0 0
    %5773 = vmatpush2.bf16.msra.mxu0 %v5707
    %5774 = vmatprep.subr.bf16.mxu0 0
    %5775 = vmatpush2.bf16.msra.mxu0 %v5706
    %5776 = vmatprep.subr.bf16.mxu0 0
    %5777 = vmatpush2.bf16.msra.mxu0 %v5705
    %5778 = vmatprep.subr.bf16.mxu0 0
    %5779 = vmatpush2.bf16.msra.mxu0 %v5704
    %5780 = vmatprep.subr.bf16.mxu0 0
    %5781 = vmatpush2.bf16.msra.mxu0 %v5703
    %5782 = vmatprep.subr.bf16.mxu0 0
    %5783 = vmatpush2.bf16.msra.mxu0 %v5702
    %5784 = vmatprep.subr.bf16.mxu0 0
    %5785 = vmatpush2.bf16.msra.mxu0 %v5701
    %5786 = vmatprep.subr.bf16.mxu0 0
    %5787 = vmatpush2.bf16.msra.mxu0 %v5700
    %5788 = vmatprep.mubr.bf16.mxu0 %v5488
    %5789 = vmatmul.mubr.bf16.gmra.mxu0 %v5487
    %v5790 = vpop.f32.mrf.mxu0
    %v5791 = vadd.f32 %v5562, %v5790
    %v5792 = vpop.f32.mrf.mxu0
    %v5793 = vpop.f32.mrf.mxu0
    %v5794 = vadd.f32 %v5562, %v5793
    %v5795 = vpop.f32.mrf.mxu0
    %5796 = vdwg.mxu0
    %5797 = vmatprep.subr.bf16.mxu0 0
    %5798 = vmatpush1.bf16.msra.mxu0 %v5715
    %5799 = vmatprep.subr.bf16.mxu0 0
    %5800 = vmatpush1.bf16.msra.mxu0 %v5714
    %5801 = vmatprep.subr.bf16.mxu0 0
    %5802 = vmatpush1.bf16.msra.mxu0 %v5713
    %5803 = vmatprep.subr.bf16.mxu0 0
    %5804 = vmatpush1.bf16.msra.mxu0 %v5712
    %5805 = vmatprep.subr.bf16.mxu0 0
    %5806 = vmatpush1.bf16.msra.mxu0 %v5711
    %5807 = vmatprep.subr.bf16.mxu0 0
    %5808 = vmatpush1.bf16.msra.mxu0 %v5710
    %5809 = vmatprep.subr.bf16.mxu0 0
    %5810 = vmatpush1.bf16.msra.mxu0 %v5709
    %5811 = vmatprep.subr.bf16.mxu0 0
    %5812 = vmatpush1.bf16.msra.mxu0 %v5708
    %5813 = vmatprep.subr.bf16.mxu0 0
    %5814 = vmatpush2.bf16.msra.mxu0 %v5723
    %5815 = vmatprep.subr.bf16.mxu0 0
    %5816 = vmatpush2.bf16.msra.mxu0 %v5722
    %5817 = vmatprep.subr.bf16.mxu0 0
    %5818 = vmatpush2.bf16.msra.mxu0 %v5721
    %5819 = vmatprep.subr.bf16.mxu0 0
    %5820 = vmatpush2.bf16.msra.mxu0 %v5720
    %5821 = vmatprep.subr.bf16.mxu0 0
    %5822 = vmatpush2.bf16.msra.mxu0 %v5719
    %5823 = vmatprep.subr.bf16.mxu0 0
    %5824 = vmatpush2.bf16.msra.mxu0 %v5718
    %5825 = vmatprep.subr.bf16.mxu0 0
    %5826 = vmatpush2.bf16.msra.mxu0 %v5717
    %5827 = vmatprep.subr.bf16.mxu0 0
    %5828 = vmatpush2.bf16.msra.mxu0 %v5716
    %5829 = vmatprep.mubr.bf16.mxu0 %v5490
    %5830 = vmatmul.mubr.bf16.gmra.mxu0 %v5489
    %v5831 = vpop.f32.mrf.mxu0
    %v5832 = vadd.f32 %v5791, %v5831
    %v5833 = vpop.f32.mrf.mxu0
    %v5834 = vpop.f32.mrf.mxu0
    %v5835 = vadd.f32 %v5794, %v5834
    %v5836 = vpop.f32.mrf.mxu0
    %5837 = vdwg.mxu0
    %v5838 = vadd.f32 %v5068, %v5832
    %v5839 = vadd.f32 %v5069, %v5835
    %s5840 = scalar_lea.vmem [#allocation23], 16
    %5841 = vst [vmem:[%s5840] sm:$0xff] %v5838
    %5842 = vst [vmem:[%s5840 + $0x8] sm:$0xff] %v5839
    // Predicated region
    $region118: #{tpu_custom_call.1} parent=1 // pred_check
      _
    $region119: #{tpu_custom_call.1} parent=1 // pred_check_branch
      %5844 = sbr.rel (0) target = $region121
    $region120: #{tpu_custom_call.1} parent=1 // pred_region
      %s5846 = ssub.s32 512, 512
      %5847 = vsyncadd [#allocation4], %s5846
      %s5848 = sshll.u32 [#allocation23], 4
      %s5849 = int_to_ptr.vmem [resolvable:$true] %s5848
      %5854 = dma.vmem_to_hbm [thread:$0]  %s5849, 512, %s16, [#allocation4], 128, 128, 8
    $region121: #{tpu_custom_call.1} parent=1 // pred_fallthru
      _
    // Predicated region
    $region122: #{tpu_custom_call.1} parent=1 // pred_check
      _
    $region123: #{tpu_custom_call.1} parent=1 // pred_check_branch
      %5856 = sbr.rel (0) target = $region125
    $region124: #{tpu_custom_call.1} parent=1 // pred_region
      %5857 = dma.done [#allocation4], 512
    $region125: #{tpu_custom_call.1} parent=1 // pred_fallthru
      _
    %5858 = vsyncpa [#allocation3], 1
    %5859 = vsyncpa [#allocation6], 1
    %5860 = vsyncpa [#allocation9], 1
    %5861 = vsyncpa [#allocation12], 1
    %5862 = vsyncpa [#allocation15], 1
    %5863 = vsyncpa [#allocation18], 1
    %5864 = vsyncpa [#allocation21], 1
    %5865 = vsyncpa [#allocation4], 1

</llo_original>
